<compile_context>
chip_gen: v5e
topology: v5e:2x2
jax: 0.10.0
libtpu: 0.0.40
codegen_flags: <defaults>
</compile_context>

<pallas_src>
import math
import jax
import jax.numpy as jnp
from jax.experimental import pallas as pl
from jax.experimental.pallas import tpu as pltpu

# ---------------- config (small, consistent with the module) ----------------
N_ATOMS = 8          # total_atom_number (per molecule)
D_ATOM = 16          # raw atom feature dim
D_MODEL = 32         # hidden dim
H = 4                # heads
D_K = D_MODEL // H
N_LAYERS = 2         # encoder depth N
N_DENSE = 2          # feed-forward depth
LAMBDA_ATT = 0.5     # lambda_attention (trainable_lambda=False)
LAMBDA_ADJ = 1.0 - LAMBDA_ATT
LEAKY_SLOPE = 0.0    # leaky_relu_slope
LN_EPS = 1e-5        # nn.LayerNorm default eps
ADJ_EPS = 1e-6       # eps in graph_attention
NEG_INF = -1e9

TILE_B = 16          # molecules per grid step -> 16*8 = 128 stacked atom rows

# layout of the packed "vecs" slab (one (D_MODEL,) row per entry)
VEC_EMB_B = 0
_VEC_PER_LAYER = 5 + N_DENSE          # ln0_g, ln0_b, b_out, ln1_g, ln1_b, ff biases
VEC_NORM_G = 1 + N_LAYERS * _VEC_PER_LAYER
VEC_NORM_B = VEC_NORM_G + 1
NUM_VEC = VEC_NORM_B + 1

N_PROJ = 2 * D_MODEL + H * D_MODEL    # [Q(scaled) | K | V'_0 .. V'_{H-1}] columns


# ---------------- in-kernel helpers ----------------
def _layernorm(x, g, b):
    mu = jnp.mean(x, axis=-1, keepdims=True)
    xc = x - mu
    var = jnp.mean(xc * xc, axis=-1, keepdims=True)
    return xc * jax.lax.rsqrt(var + LN_EPS) * g + b


# ---------------- fully fused kernel (TILE_B molecules per grid step) ----------------
def graph_transformer_kernel(x_ref, mask_ref, adj_ref,
                             emb_w_ref, w_proj_ref, b_proj_ref, w_ff_ref,
                             vec_ref, o_ref):
    def vrow(i):                               # static (1, D_MODEL) row of the vec slab
        return vec_ref[i:i + 1, :]

    x = x_ref[...]                             # (R, d_atom), R = TILE_B * N_ATOMS rows
    mask = mask_ref[0]                         # (R, R) block-diag additive mask
    p_adj = adj_ref[0]                         # (R, R) block-diag lambda_adj*adj/rowsum
    rows = x.shape[0]

    # ---- src_embed: dropout(Linear(d_atom, d_model)), dropout == identity ----
    h = jnp.dot(x, emb_w_ref[...], preferred_element_type=jnp.float32) + vrow(VEC_EMB_B)

    for li in range(N_LAYERS):                 # static unrolled layer loop
        base = 1 + li * _VEC_PER_LAYER

        # ---- sublayer[0]: x + self_attn(norm(x)) ----
        xn = _layernorm(h, vrow(base + 0), vrow(base + 1))
        # one fused (d_model, 2d + H*d) projection: Q (pre-scaled by 1/sqrt(d_k)),
        # K, and per-head folded V' = W_v_h @ W_out_h  (128-row lane-dense MXU push)
        proj = (jnp.dot(xn, w_proj_ref[li], preferred_element_type=jnp.float32)
                + b_proj_ref[li:li + 1, :])    # (R, N_PROJ)

        attn = jnp.zeros((rows, D_MODEL), jnp.float32)
        for hh in range(H):                    # static head loop
            qh = proj[:, hh * D_K:(hh + 1) * D_K]                      # (R, d_k)
            kh = proj[:, D_MODEL + hh * D_K:D_MODEL + (hh + 1) * D_K]  # (R, d_k)
            vh = proj[:, 2 * D_MODEL + hh * D_MODEL:
                         2 * D_MODEL + (hh + 1) * D_MODEL]             # (R, d_model)
            # block-diagonal scores over the whole 128-row tile (scale folded into Q)
            scores = jax.lax.dot_general(
                qh, kh, (((1,), (1,)), ((), ())),
                preferred_element_type=jnp.float32) + mask             # (R, R)
            m = jnp.max(scores, axis=-1, keepdims=True)
            e = jnp.exp(scores - m)
            inv = pl.reciprocal(jnp.sum(e, axis=-1, keepdims=True), approx=True)
            # lambda_att folded into the (R,1) reciprocal; p_adj already lambda-scaled
            p_w = e * (LAMBDA_ATT * inv) + p_adj
            attn = attn + jnp.dot(p_w, vh, preferred_element_type=jnp.float32)
        h = h + attn + vrow(base + 2)          # residual + out-projection bias

        # ---- sublayer[1]: x + feed_forward(norm(x)) ----
        t = _layernorm(h, vrow(base + 3), vrow(base + 4))
        for j in range(N_DENSE):
            t = (jnp.dot(t, w_ff_ref[li * N_DENSE + j],
                         preferred_element_type=jnp.float32)
                 + vrow(base + 5 + j))
            # leaky_relu after every FF linear (dense_output_nonlinearity='relu')
            if LEAKY_SLOPE == 0.0:
                t = jnp.maximum(t, 0.0)        # single vmax instead of cmp+select
            else:
                t = jnp.where(t >= 0, t, LEAKY_SLOPE * t)
        h = h + t                              # residual

    # ---- encoder final nn.LayerNorm(d_model) ----
    o_ref[...] = _layernorm(h, vrow(VEC_NORM_G), vrow(VEC_NORM_B))


# ---------------- pallas_call wrapper ----------------
def graph_transformer_forward(params, x, mask, adj, *, tile_b=TILE_B):
    """x: (B, n_atoms, d_atom), mask/adj: (B, n_atoms, n_atoms) (mask is additive)."""
    B = x.shape[0]
    G = -(-B // tile_b)                         # number of grid steps
    Bp = G * tile_b
    pad = Bp - B
    if pad:                                     # pad batch to a tile multiple
        x = jnp.pad(x, ((0, pad), (0, 0), (0, 0)))
        mask = jnp.pad(mask, ((0, pad), (0, 0), (0, 0)))
        adj = jnp.pad(adj, ((0, pad), (0, 0), (0, 0)))
    R = tile_b * N_ATOMS

    # ---- once-per-batch XLA prep: block-diagonal mask & normalized adjacency slabs ----
    eye = jnp.eye(tile_b, dtype=bool)[None, :, None, :, None]      # (1,T,1,T,1)
    mask_g = mask.reshape(G, tile_b, N_ATOMS, N_ATOMS)
    big_mask = jnp.where(eye, mask_g[:, :, :, None, :], NEG_INF).reshape(G, R, R)
    p_adj = (LAMBDA_ADJ * adj) / (adj.sum(axis=-1, keepdims=True) + ADJ_EPS)
    adj_g = p_adj.reshape(G, tile_b, N_ATOMS, N_ATOMS)
    big_adj = jnp.where(eye, adj_g[:, :, :, None, :], 0.0).reshape(G, R, R)

    x2d = x.reshape(Bp * N_ATOMS, D_ATOM)       # atoms stacked on the sublane axis

    out2d = pl.pallas_call(
        graph_transformer_kernel,
        out_shape=jax.ShapeDtypeStruct((Bp * N_ATOMS, D_MODEL), jnp.float32),
        grid=(G,),
        in_specs=[
            pl.BlockSpec((R, D_ATOM), lambda g: (g, 0)),
            pl.BlockSpec((1, R, R), lambda g: (g, 0, 0)),
            pl.BlockSpec((1, R, R), lambda g: (g, 0, 0)),
            pl.BlockSpec(params["emb_w"].shape, lambda g: (0, 0)),
            pl.BlockSpec(params["w_proj"].shape, lambda g: (0, 0, 0)),
            pl.BlockSpec(params["b_proj"].shape, lambda g: (0, 0)),
            pl.BlockSpec(params["w_ff"].shape, lambda g: (0, 0, 0)),
            pl.BlockSpec(params["vecs"].shape, lambda g: (0, 0)),
        ],
        out_specs=pl.BlockSpec((R, D_MODEL), lambda g: (g, 0)),
        compiler_params=pltpu.CompilerParams(
            dimension_semantics=("parallel",)),   # shards molecule groups across TCs
    )(x2d, big_mask, big_adj,
      params["emb_w"], params["w_proj"], params["b_proj"],
      params["w_ff"], params["vecs"])

    return out2d.reshape(Bp, N_ATOMS, D_MODEL)[:B]


# ---------------- parameter init (PyTorch-Linear-like) + host-side folds ----------------
def _init_linear(key, fan_in, fan_out):
    """Returns W^T of shape (fan_in, fan_out) and bias of shape (fan_out,)."""
    kw, kb = jax.random.split(key)
    bound = 1.0 / math.sqrt(fan_in)
    w_t = jax.random.uniform(kw, (fan_in, fan_out), jnp.float32, -bound, bound)
    b = jax.random.uniform(kb, (fan_out,), jnp.float32, -bound, bound)
    return w_t, b


def init_params(key):
    """Initializes Linear-style params and packs them into the pre-folded kernel layout:
    Q scaled by 1/sqrt(d_k); per-head W_v column-block folded with its W_out row-block;
    all (d_model,)-wide vectors stacked into one 'vecs' slab."""
    scale = 1.0 / math.sqrt(D_K)
    keys = jax.random.split(key, 1 + N_LAYERS)
    emb_w, emb_b = _init_linear(keys[0], D_ATOM, D_MODEL)

    ones = jnp.ones((D_MODEL,), jnp.float32)
    zeros = jnp.zeros((D_MODEL,), jnp.float32)
    w_proj, b_proj, w_ff = [], [], []
    vec_rows = [emb_b]
    for li in range(N_LAYERS):
        lk = jax.random.split(keys[1 + li], 4 + N_DENSE)
        wq, bq = _init_linear(lk[0], D_MODEL, D_MODEL)
        wk, bk = _init_linear(lk[1], D_MODEL, D_MODEL)
        wv, bv = _init_linear(lk[2], D_MODEL, D_MODEL)
        wo, bo = _init_linear(lk[3], D_MODEL, D_MODEL)
        # fold 1/sqrt(d_k) into the Q projection (weights AND bias) -- exact
        wq, bq = wq * scale, bq * scale
        # fold each head's W_v column-block with its W_out row-block -- exact
        v_blk = [wv[:, h * D_K:(h + 1) * D_K] @ wo[h * D_K:(h + 1) * D_K, :]
                 for h in range(H)]
        bv_blk = [bv[h * D_K:(h + 1) * D_K] @ wo[h * D_K:(h + 1) * D_K, :]
                  for h in range(H)]
        w_proj.append(jnp.concatenate([wq, wk] + v_blk, axis=1))    # (d, 2d + H*d)
        b_proj.append(jnp.concatenate([bq, bk] + bv_blk, axis=0))   # (2d + H*d,)

        ff_bias = []
        for j in range(N_DENSE):
            w, b = _init_linear(lk[4 + j], D_MODEL, D_MODEL)
            w_ff.append(w)
            ff_bias.append(b)
        # per-layer vec rows: ln0_g, ln0_b, b_out, ln1_g, ln1_b, ff biases
        vec_rows += [ones, zeros, bo, ones, zeros] + ff_bias
    vec_rows += [ones, zeros]                                       # final LayerNorm

    return dict(
        emb_w=emb_w,                                   # (d_atom, d_model)
        w_proj=jnp.stack(w_proj),                      # (N_LAYERS, d, 2d + H*d)
        b_proj=jnp.stack(b_proj),                      # (N_LAYERS, 2d + H*d)
        w_ff=jnp.stack(w_ff),                          # (N_LAYERS*N_DENSE, d, d)
        vecs=jnp.stack(vec_rows),                      # (NUM_VEC, d)
    )


if __name__ == "__main__":
    key = jax.random.PRNGKey(0)
    kx, km, ka, kp = jax.random.split(key, 4)

    B = 32  # 2 grid blocks of TILE_B=16 -> both TensorCores get work on v7x
    x = jax.random.normal(kx, (B, N_ATOMS, D_ATOM), jnp.float32)
    # additive attention mask: 0 where allowed, -1e9 where masked
    mask_bits = jax.random.bernoulli(km, 0.85, (B, N_ATOMS, N_ATOMS))
    mask = jnp.where(mask_bits, 0.0, NEG_INF).astype(jnp.float32)
    # adjacency: symmetric 0/1 with self loops
    adj_raw = jax.random.bernoulli(ka, 0.4, (B, N_ATOMS, N_ATOMS)).astype(jnp.float32)
    eye = jnp.eye(N_ATOMS, dtype=jnp.float32)[None]
    adj = jnp.clip(adj_raw + jnp.swapaxes(adj_raw, -1, -2) + eye, 0.0, 1.0)

    params = init_params(kp)

    out = graph_transformer_forward(params, x, mask, adj)
    jax.block_until_ready(out)
    assert out.shape == (B, N_ATOMS, D_MODEL)
    assert bool(jnp.all(jnp.isfinite(out)))
    print("KERNEL_OK")
</pallas_src>

<mosaic_0001>
module attributes {stable_mosaic.version = 11 : i64} {
  func.func @graph_transformer_kernel(%arg0: i32, %arg1: memref<128x16xf32, #tpu.memory_space<vmem>>, %arg2: memref<1x128x128xf32, #tpu.memory_space<vmem>>, %arg3: memref<1x128x128xf32, #tpu.memory_space<vmem>>, %arg4: memref<16x32xf32, #tpu.memory_space<vmem>>, %arg5: memref<2x32x192xf32, #tpu.memory_space<vmem>>, %arg6: memref<2x192xf32, #tpu.memory_space<vmem>>, %arg7: memref<4x32x32xf32, #tpu.memory_space<vmem>>, %arg8: memref<17x32xf32, #tpu.memory_space<vmem>>, %arg9: memref<128x32xf32, #tpu.memory_space<vmem>>) attributes {dimension_semantics = [#tpu.dimension_semantics<parallel>], iteration_bounds = array<i64: 2>, scalar_prefetch = 0 : i64, scratch_operands = 0 : i64, tpu.core_type = #tpu.core_type<tc>, window_params = [{transform_indices = @transform_0, window_bounds = array<i64: 128, 16>}, {transform_indices = @transform_1, window_bounds = array<i64: 1, 128, 128>}, {transform_indices = @transform_2, window_bounds = array<i64: 1, 128, 128>}, {pipeline_mode = #tpu.pipeline_mode<synchronous>, transform_indices = @transform_3, window_bounds = array<i64: 16, 32>}, {pipeline_mode = #tpu.pipeline_mode<synchronous>, transform_indices = @transform_4, window_bounds = array<i64: 2, 32, 192>}, {pipeline_mode = #tpu.pipeline_mode<synchronous>, transform_indices = @transform_5, window_bounds = array<i64: 2, 192>}, {pipeline_mode = #tpu.pipeline_mode<synchronous>, transform_indices = @transform_6, window_bounds = array<i64: 4, 32, 32>}, {pipeline_mode = #tpu.pipeline_mode<synchronous>, transform_indices = @transform_7, window_bounds = array<i64: 17, 32>}, {transform_indices = @transform_8, window_bounds = array<i64: 128, 32>}]} {
    %c0 = arith.constant 0 : index
    %c0_0 = arith.constant 0 : index
    %0 = vector.load %arg1[%c0, %c0_0] : memref<128x16xf32, #tpu.memory_space<vmem>>, vector<128x16xf32>
    %c0_1 = arith.constant 0 : index
    %c0_2 = arith.constant 0 : index
    %c0_3 = arith.constant 0 : index
    %1 = vector.load %arg2[%c0_1, %c0_2, %c0_3] : memref<1x128x128xf32, #tpu.memory_space<vmem>>, vector<1x128x128xf32>
    %2 = vector.shape_cast %1 : vector<1x128x128xf32> to vector<128x128xf32>
    %c0_4 = arith.constant 0 : index
    %c0_5 = arith.constant 0 : index
    %c0_6 = arith.constant 0 : index
    %3 = vector.load %arg3[%c0_4, %c0_5, %c0_6] : memref<1x128x128xf32, #tpu.memory_space<vmem>>, vector<1x128x128xf32>
    %4 = vector.shape_cast %3 : vector<1x128x128xf32> to vector<128x128xf32>
    %c0_7 = arith.constant 0 : index
    %c0_8 = arith.constant 0 : index
    %5 = vector.load %arg4[%c0_7, %c0_8] : memref<16x32xf32, #tpu.memory_space<vmem>>, vector<16x32xf32>
    %cst = arith.constant dense<0.000000e+00> : vector<128x32xf32>
    %6 = tpu.matmul %0, %5, %cst {dimension_numbers = #tpu.dot_dimension_numbers<[1], [0], [0], [1], [0, 0, 1, 1], [], []>} : vector<128x16xf32>, vector<16x32xf32>, vector<128x32xf32> -> vector<128x32xf32>
    %c0_9 = arith.constant 0 : index
    %c0_10 = arith.constant 0 : index
    %7 = vector.load %arg8[%c0_9, %c0_10] : memref<17x32xf32, #tpu.memory_space<vmem>>, vector<1x32xf32>
    %8 = vector.broadcast %7 : vector<1x32xf32> to vector<128x32xf32>
    %9 = arith.addf %6, %8 : vector<128x32xf32>
    %c1 = arith.constant 1 : index
    %c0_11 = arith.constant 0 : index
    %10 = vector.load %arg8[%c1, %c0_11] : memref<17x32xf32, #tpu.memory_space<vmem>>, vector<1x32xf32>
    %c2 = arith.constant 2 : index
    %c0_12 = arith.constant 0 : index
    %11 = vector.load %arg8[%c2, %c0_12] : memref<17x32xf32, #tpu.memory_space<vmem>>, vector<1x32xf32>
    %cst_13 = arith.constant dense<0.000000e+00> : vector<128xf32>
    %12 = vector.multi_reduction <add>, %9, %cst_13 [1] : vector<128x32xf32> to vector<128xf32>
    %13 = vector.shape_cast %12 : vector<128xf32> to vector<128x1xf32>
    %cst_14 = arith.constant 3.200000e+01 : f32
    %14 = vector.broadcast %cst_14 : f32 to vector<128x1xf32>
    %15 = arith.divf %13, %14 : vector<128x1xf32>
    %16 = vector.broadcast %15 : vector<128x1xf32> to vector<128x32xf32>
    %17 = arith.subf %9, %16 : vector<128x32xf32>
    %18 = arith.mulf %17, %17 : vector<128x32xf32>
    %cst_15 = arith.constant dense<0.000000e+00> : vector<128xf32>
    %19 = vector.multi_reduction <add>, %18, %cst_15 [1] : vector<128x32xf32> to vector<128xf32>
    %20 = vector.shape_cast %19 : vector<128xf32> to vector<128x1xf32>
    %cst_16 = arith.constant 3.200000e+01 : f32
    %21 = vector.broadcast %cst_16 : f32 to vector<128x1xf32>
    %22 = arith.divf %20, %21 : vector<128x1xf32>
    %cst_17 = arith.constant 9.99999974E-6 : f32
    %23 = vector.broadcast %cst_17 : f32 to vector<128x1xf32>
    %24 = arith.addf %22, %23 : vector<128x1xf32>
    %25 = math.rsqrt %24 : vector<128x1xf32>
    %26 = vector.broadcast %25 : vector<128x1xf32> to vector<128x32xf32>
    %27 = arith.mulf %17, %26 : vector<128x32xf32>
    %28 = vector.broadcast %10 : vector<1x32xf32> to vector<128x32xf32>
    %29 = arith.mulf %27, %28 : vector<128x32xf32>
    %30 = vector.broadcast %11 : vector<1x32xf32> to vector<128x32xf32>
    %31 = arith.addf %29, %30 : vector<128x32xf32>
    %c0_18 = arith.constant 0 : index
    %c0_19 = arith.constant 0 : index
    %c0_20 = arith.constant 0 : index
    %32 = vector.load %arg5[%c0_18, %c0_19, %c0_20] : memref<2x32x192xf32, #tpu.memory_space<vmem>>, vector<1x32x192xf32>
    %33 = vector.shape_cast %32 : vector<1x32x192xf32> to vector<32x192xf32>
    %cst_21 = arith.constant dense<0.000000e+00> : vector<128x192xf32>
    %34 = tpu.matmul %31, %33, %cst_21 {dimension_numbers = #tpu.dot_dimension_numbers<[1], [0], [0], [1], [0, 0, 1, 1], [], []>} : vector<128x32xf32>, vector<32x192xf32>, vector<128x192xf32> -> vector<128x192xf32>
    %c0_22 = arith.constant 0 : index
    %c0_23 = arith.constant 0 : index
    %35 = vector.load %arg6[%c0_22, %c0_23] : memref<2x192xf32, #tpu.memory_space<vmem>>, vector<1x192xf32>
    %36 = vector.broadcast %35 : vector<1x192xf32> to vector<128x192xf32>
    %37 = arith.addf %34, %36 : vector<128x192xf32>
    %cst_24 = arith.constant 0.000000e+00 : f32
    %38 = vector.broadcast %cst_24 : f32 to vector<128x32xf32>
    %39 = vector.extract_strided_slice %37 {offsets = [0, 0], sizes = [128, 8], strides = [1, 1]} : vector<128x192xf32> to vector<128x8xf32>
    %40 = vector.extract_strided_slice %37 {offsets = [0, 32], sizes = [128, 8], strides = [1, 1]} : vector<128x192xf32> to vector<128x8xf32>
    %41 = vector.extract_strided_slice %37 {offsets = [0, 64], sizes = [128, 32], strides = [1, 1]} : vector<128x192xf32> to vector<128x32xf32>
    %cst_25 = arith.constant dense<0.000000e+00> : vector<128x128xf32>
    %42 = tpu.matmul %39, %40, %cst_25 {dimension_numbers = #tpu.dot_dimension_numbers<[1], [1], [0], [0], [0, 0, 1, 0], [], []>} : vector<128x8xf32>, vector<128x8xf32>, vector<128x128xf32> -> vector<128x128xf32>
    %43 = arith.addf %42, %2 : vector<128x128xf32>
    %cst_26 = arith.constant dense<0xFF800000> : vector<128xf32>
    %44 = vector.multi_reduction <maximumf>, %43, %cst_26 [1] : vector<128x128xf32> to vector<128xf32>
    %45 = vector.shape_cast %44 : vector<128xf32> to vector<128x1xf32>
    %46 = vector.broadcast %45 : vector<128x1xf32> to vector<128x128xf32>
    %47 = arith.subf %43, %46 : vector<128x128xf32>
    %48 = math.exp %47 : vector<128x128xf32>
    %cst_27 = arith.constant dense<0.000000e+00> : vector<128xf32>
    %49 = vector.multi_reduction <add>, %48, %cst_27 [1] : vector<128x128xf32> to vector<128xf32>
    %50 = vector.shape_cast %49 : vector<128xf32> to vector<128x1xf32>
    %51 = tpu.reciprocal %50 {approx = true} : vector<128x1xf32> -> vector<128x1xf32>
    %cst_28 = arith.constant 5.000000e-01 : f32
    %52 = vector.broadcast %cst_28 : f32 to vector<128x1xf32>
    %53 = arith.mulf %52, %51 : vector<128x1xf32>
    %54 = vector.broadcast %53 : vector<128x1xf32> to vector<128x128xf32>
    %55 = arith.mulf %48, %54 : vector<128x128xf32>
    %56 = arith.addf %55, %4 : vector<128x128xf32>
    %cst_29 = arith.constant dense<0.000000e+00> : vector<128x32xf32>
    %57 = tpu.matmul %56, %41, %cst_29 {dimension_numbers = #tpu.dot_dimension_numbers<[1], [0], [0], [1], [0, 0, 1, 1], [], []>} : vector<128x128xf32>, vector<128x32xf32>, vector<128x32xf32> -> vector<128x32xf32>
    %58 = arith.addf %38, %57 : vector<128x32xf32>
    %59 = vector.extract_strided_slice %37 {offsets = [0, 8], sizes = [128, 8], strides = [1, 1]} : vector<128x192xf32> to vector<128x8xf32>
    %60 = vector.extract_strided_slice %37 {offsets = [0, 40], sizes = [128, 8], strides = [1, 1]} : vector<128x192xf32> to vector<128x8xf32>
    %61 = vector.extract_strided_slice %37 {offsets = [0, 96], sizes = [128, 32], strides = [1, 1]} : vector<128x192xf32> to vector<128x32xf32>
    %cst_30 = arith.constant dense<0.000000e+00> : vector<128x128xf32>
    %62 = tpu.matmul %59, %60, %cst_30 {dimension_numbers = #tpu.dot_dimension_numbers<[1], [1], [0], [0], [0, 0, 1, 0], [], []>} : vector<128x8xf32>, vector<128x8xf32>, vector<128x128xf32> -> vector<128x128xf32>
    %63 = arith.addf %62, %2 : vector<128x128xf32>
    %cst_31 = arith.constant dense<0xFF800000> : vector<128xf32>
    %64 = vector.multi_reduction <maximumf>, %63, %cst_31 [1] : vector<128x128xf32> to vector<128xf32>
    %65 = vector.shape_cast %64 : vector<128xf32> to vector<128x1xf32>
    %66 = vector.broadcast %65 : vector<128x1xf32> to vector<128x128xf32>
    %67 = arith.subf %63, %66 : vector<128x128xf32>
    %68 = math.exp %67 : vector<128x128xf32>
    %cst_32 = arith.constant dense<0.000000e+00> : vector<128xf32>
    %69 = vector.multi_reduction <add>, %68, %cst_32 [1] : vector<128x128xf32> to vector<128xf32>
    %70 = vector.shape_cast %69 : vector<128xf32> to vector<128x1xf32>
    %71 = tpu.reciprocal %70 {approx = true} : vector<128x1xf32> -> vector<128x1xf32>
    %cst_33 = arith.constant 5.000000e-01 : f32
    %72 = vector.broadcast %cst_33 : f32 to vector<128x1xf32>
    %73 = arith.mulf %72, %71 : vector<128x1xf32>
    %74 = vector.broadcast %73 : vector<128x1xf32> to vector<128x128xf32>
    %75 = arith.mulf %68, %74 : vector<128x128xf32>
    %76 = arith.addf %75, %4 : vector<128x128xf32>
    %cst_34 = arith.constant dense<0.000000e+00> : vector<128x32xf32>
    %77 = tpu.matmul %76, %61, %cst_34 {dimension_numbers = #tpu.dot_dimension_numbers<[1], [0], [0], [1], [0, 0, 1, 1], [], []>} : vector<128x128xf32>, vector<128x32xf32>, vector<128x32xf32> -> vector<128x32xf32>
    %78 = arith.addf %58, %77 : vector<128x32xf32>
    %79 = vector.extract_strided_slice %37 {offsets = [0, 16], sizes = [128, 8], strides = [1, 1]} : vector<128x192xf32> to vector<128x8xf32>
    %80 = vector.extract_strided_slice %37 {offsets = [0, 48], sizes = [128, 8], strides = [1, 1]} : vector<128x192xf32> to vector<128x8xf32>
    %81 = vector.extract_strided_slice %37 {offsets = [0, 128], sizes = [128, 32], strides = [1, 1]} : vector<128x192xf32> to vector<128x32xf32>
    %cst_35 = arith.constant dense<0.000000e+00> : vector<128x128xf32>
    %82 = tpu.matmul %79, %80, %cst_35 {dimension_numbers = #tpu.dot_dimension_numbers<[1], [1], [0], [0], [0, 0, 1, 0], [], []>} : vector<128x8xf32>, vector<128x8xf32>, vector<128x128xf32> -> vector<128x128xf32>
    %83 = arith.addf %82, %2 : vector<128x128xf32>
    %cst_36 = arith.constant dense<0xFF800000> : vector<128xf32>
    %84 = vector.multi_reduction <maximumf>, %83, %cst_36 [1] : vector<128x128xf32> to vector<128xf32>
    %85 = vector.shape_cast %84 : vector<128xf32> to vector<128x1xf32>
    %86 = vector.broadcast %85 : vector<128x1xf32> to vector<128x128xf32>
    %87 = arith.subf %83, %86 : vector<128x128xf32>
    %88 = math.exp %87 : vector<128x128xf32>
    %cst_37 = arith.constant dense<0.000000e+00> : vector<128xf32>
    %89 = vector.multi_reduction <add>, %88, %cst_37 [1] : vector<128x128xf32> to vector<128xf32>
    %90 = vector.shape_cast %89 : vector<128xf32> to vector<128x1xf32>
    %91 = tpu.reciprocal %90 {approx = true} : vector<128x1xf32> -> vector<128x1xf32>
    %cst_38 = arith.constant 5.000000e-01 : f32
    %92 = vector.broadcast %cst_38 : f32 to vector<128x1xf32>
    %93 = arith.mulf %92, %91 : vector<128x1xf32>
    %94 = vector.broadcast %93 : vector<128x1xf32> to vector<128x128xf32>
    %95 = arith.mulf %88, %94 : vector<128x128xf32>
    %96 = arith.addf %95, %4 : vector<128x128xf32>
    %cst_39 = arith.constant dense<0.000000e+00> : vector<128x32xf32>
    %97 = tpu.matmul %96, %81, %cst_39 {dimension_numbers = #tpu.dot_dimension_numbers<[1], [0], [0], [1], [0, 0, 1, 1], [], []>} : vector<128x128xf32>, vector<128x32xf32>, vector<128x32xf32> -> vector<128x32xf32>
    %98 = arith.addf %78, %97 : vector<128x32xf32>
    %99 = vector.extract_strided_slice %37 {offsets = [0, 24], sizes = [128, 8], strides = [1, 1]} : vector<128x192xf32> to vector<128x8xf32>
    %100 = vector.extract_strided_slice %37 {offsets = [0, 56], sizes = [128, 8], strides = [1, 1]} : vector<128x192xf32> to vector<128x8xf32>
    %101 = vector.extract_strided_slice %37 {offsets = [0, 160], sizes = [128, 32], strides = [1, 1]} : vector<128x192xf32> to vector<128x32xf32>
    %cst_40 = arith.constant dense<0.000000e+00> : vector<128x128xf32>
    %102 = tpu.matmul %99, %100, %cst_40 {dimension_numbers = #tpu.dot_dimension_numbers<[1], [1], [0], [0], [0, 0, 1, 0], [], []>} : vector<128x8xf32>, vector<128x8xf32>, vector<128x128xf32> -> vector<128x128xf32>
    %103 = arith.addf %102, %2 : vector<128x128xf32>
    %cst_41 = arith.constant dense<0xFF800000> : vector<128xf32>
    %104 = vector.multi_reduction <maximumf>, %103, %cst_41 [1] : vector<128x128xf32> to vector<128xf32>
    %105 = vector.shape_cast %104 : vector<128xf32> to vector<128x1xf32>
    %106 = vector.broadcast %105 : vector<128x1xf32> to vector<128x128xf32>
    %107 = arith.subf %103, %106 : vector<128x128xf32>
    %108 = math.exp %107 : vector<128x128xf32>
    %cst_42 = arith.constant dense<0.000000e+00> : vector<128xf32>
    %109 = vector.multi_reduction <add>, %108, %cst_42 [1] : vector<128x128xf32> to vector<128xf32>
    %110 = vector.shape_cast %109 : vector<128xf32> to vector<128x1xf32>
    %111 = tpu.reciprocal %110 {approx = true} : vector<128x1xf32> -> vector<128x1xf32>
    %cst_43 = arith.constant 5.000000e-01 : f32
    %112 = vector.broadcast %cst_43 : f32 to vector<128x1xf32>
    %113 = arith.mulf %112, %111 : vector<128x1xf32>
    %114 = vector.broadcast %113 : vector<128x1xf32> to vector<128x128xf32>
    %115 = arith.mulf %108, %114 : vector<128x128xf32>
    %116 = arith.addf %115, %4 : vector<128x128xf32>
    %cst_44 = arith.constant dense<0.000000e+00> : vector<128x32xf32>
    %117 = tpu.matmul %116, %101, %cst_44 {dimension_numbers = #tpu.dot_dimension_numbers<[1], [0], [0], [1], [0, 0, 1, 1], [], []>} : vector<128x128xf32>, vector<128x32xf32>, vector<128x32xf32> -> vector<128x32xf32>
    %118 = arith.addf %98, %117 : vector<128x32xf32>
    %119 = arith.addf %9, %118 : vector<128x32xf32>
    %c3 = arith.constant 3 : index
    %c0_45 = arith.constant 0 : index
    %120 = vector.load %arg8[%c3, %c0_45] : memref<17x32xf32, #tpu.memory_space<vmem>>, vector<1x32xf32>
    %121 = vector.broadcast %120 : vector<1x32xf32> to vector<128x32xf32>
    %122 = arith.addf %119, %121 : vector<128x32xf32>
    %c4 = arith.constant 4 : index
    %c0_46 = arith.constant 0 : index
    %123 = vector.load %arg8[%c4, %c0_46] : memref<17x32xf32, #tpu.memory_space<vmem>>, vector<1x32xf32>
    %c5 = arith.constant 5 : index
    %c0_47 = arith.constant 0 : index
    %124 = vector.load %arg8[%c5, %c0_47] : memref<17x32xf32, #tpu.memory_space<vmem>>, vector<1x32xf32>
    %cst_48 = arith.constant dense<0.000000e+00> : vector<128xf32>
    %125 = vector.multi_reduction <add>, %122, %cst_48 [1] : vector<128x32xf32> to vector<128xf32>
    %126 = vector.shape_cast %125 : vector<128xf32> to vector<128x1xf32>
    %cst_49 = arith.constant 3.200000e+01 : f32
    %127 = vector.broadcast %cst_49 : f32 to vector<128x1xf32>
    %128 = arith.divf %126, %127 : vector<128x1xf32>
    %129 = vector.broadcast %128 : vector<128x1xf32> to vector<128x32xf32>
    %130 = arith.subf %122, %129 : vector<128x32xf32>
    %131 = arith.mulf %130, %130 : vector<128x32xf32>
    %cst_50 = arith.constant dense<0.000000e+00> : vector<128xf32>
    %132 = vector.multi_reduction <add>, %131, %cst_50 [1] : vector<128x32xf32> to vector<128xf32>
    %133 = vector.shape_cast %132 : vector<128xf32> to vector<128x1xf32>
    %cst_51 = arith.constant 3.200000e+01 : f32
    %134 = vector.broadcast %cst_51 : f32 to vector<128x1xf32>
    %135 = arith.divf %133, %134 : vector<128x1xf32>
    %cst_52 = arith.constant 9.99999974E-6 : f32
    %136 = vector.broadcast %cst_52 : f32 to vector<128x1xf32>
    %137 = arith.addf %135, %136 : vector<128x1xf32>
    %138 = math.rsqrt %137 : vector<128x1xf32>
    %139 = vector.broadcast %138 : vector<128x1xf32> to vector<128x32xf32>
    %140 = arith.mulf %130, %139 : vector<128x32xf32>
    %141 = vector.broadcast %123 : vector<1x32xf32> to vector<128x32xf32>
    %142 = arith.mulf %140, %141 : vector<128x32xf32>
    %143 = vector.broadcast %124 : vector<1x32xf32> to vector<128x32xf32>
    %144 = arith.addf %142, %143 : vector<128x32xf32>
    %c0_53 = arith.constant 0 : index
    %c0_54 = arith.constant 0 : index
    %c0_55 = arith.constant 0 : index
    %145 = vector.load %arg7[%c0_53, %c0_54, %c0_55] : memref<4x32x32xf32, #tpu.memory_space<vmem>>, vector<1x32x32xf32>
    %146 = vector.shape_cast %145 : vector<1x32x32xf32> to vector<32x32xf32>
    %cst_56 = arith.constant dense<0.000000e+00> : vector<128x32xf32>
    %147 = tpu.matmul %144, %146, %cst_56 {dimension_numbers = #tpu.dot_dimension_numbers<[1], [0], [0], [1], [0, 0, 1, 1], [], []>} : vector<128x32xf32>, vector<32x32xf32>, vector<128x32xf32> -> vector<128x32xf32>
    %c6 = arith.constant 6 : index
    %c0_57 = arith.constant 0 : index
    %148 = vector.load %arg8[%c6, %c0_57] : memref<17x32xf32, #tpu.memory_space<vmem>>, vector<1x32xf32>
    %149 = vector.broadcast %148 : vector<1x32xf32> to vector<128x32xf32>
    %150 = arith.addf %147, %149 : vector<128x32xf32>
    %cst_58 = arith.constant 0.000000e+00 : f32
    %151 = vector.broadcast %cst_58 : f32 to vector<128x32xf32>
    %152 = arith.maximumf %150, %151 : vector<128x32xf32>
    %c1_59 = arith.constant 1 : index
    %c0_60 = arith.constant 0 : index
    %c0_61 = arith.constant 0 : index
    %153 = vector.load %arg7[%c1_59, %c0_60, %c0_61] : memref<4x32x32xf32, #tpu.memory_space<vmem>>, vector<1x32x32xf32>
    %154 = vector.shape_cast %153 : vector<1x32x32xf32> to vector<32x32xf32>
    %cst_62 = arith.constant dense<0.000000e+00> : vector<128x32xf32>
    %155 = tpu.matmul %152, %154, %cst_62 {dimension_numbers = #tpu.dot_dimension_numbers<[1], [0], [0], [1], [0, 0, 1, 1], [], []>} : vector<128x32xf32>, vector<32x32xf32>, vector<128x32xf32> -> vector<128x32xf32>
    %c7 = arith.constant 7 : index
    %c0_63 = arith.constant 0 : index
    %156 = vector.load %arg8[%c7, %c0_63] : memref<17x32xf32, #tpu.memory_space<vmem>>, vector<1x32xf32>
    %157 = vector.broadcast %156 : vector<1x32xf32> to vector<128x32xf32>
    %158 = arith.addf %155, %157 : vector<128x32xf32>
    %cst_64 = arith.constant 0.000000e+00 : f32
    %159 = vector.broadcast %cst_64 : f32 to vector<128x32xf32>
    %160 = arith.maximumf %158, %159 : vector<128x32xf32>
    %161 = arith.addf %122, %160 : vector<128x32xf32>
    %c8 = arith.constant 8 : index
    %c0_65 = arith.constant 0 : index
    %162 = vector.load %arg8[%c8, %c0_65] : memref<17x32xf32, #tpu.memory_space<vmem>>, vector<1x32xf32>
    %c9 = arith.constant 9 : index
    %c0_66 = arith.constant 0 : index
    %163 = vector.load %arg8[%c9, %c0_66] : memref<17x32xf32, #tpu.memory_space<vmem>>, vector<1x32xf32>
    %cst_67 = arith.constant dense<0.000000e+00> : vector<128xf32>
    %164 = vector.multi_reduction <add>, %161, %cst_67 [1] : vector<128x32xf32> to vector<128xf32>
    %165 = vector.shape_cast %164 : vector<128xf32> to vector<128x1xf32>
    %cst_68 = arith.constant 3.200000e+01 : f32
    %166 = vector.broadcast %cst_68 : f32 to vector<128x1xf32>
    %167 = arith.divf %165, %166 : vector<128x1xf32>
    %168 = vector.broadcast %167 : vector<128x1xf32> to vector<128x32xf32>
    %169 = arith.subf %161, %168 : vector<128x32xf32>
    %170 = arith.mulf %169, %169 : vector<128x32xf32>
    %cst_69 = arith.constant dense<0.000000e+00> : vector<128xf32>
    %171 = vector.multi_reduction <add>, %170, %cst_69 [1] : vector<128x32xf32> to vector<128xf32>
    %172 = vector.shape_cast %171 : vector<128xf32> to vector<128x1xf32>
    %cst_70 = arith.constant 3.200000e+01 : f32
    %173 = vector.broadcast %cst_70 : f32 to vector<128x1xf32>
    %174 = arith.divf %172, %173 : vector<128x1xf32>
    %cst_71 = arith.constant 9.99999974E-6 : f32
    %175 = vector.broadcast %cst_71 : f32 to vector<128x1xf32>
    %176 = arith.addf %174, %175 : vector<128x1xf32>
    %177 = math.rsqrt %176 : vector<128x1xf32>
    %178 = vector.broadcast %177 : vector<128x1xf32> to vector<128x32xf32>
    %179 = arith.mulf %169, %178 : vector<128x32xf32>
    %180 = vector.broadcast %162 : vector<1x32xf32> to vector<128x32xf32>
    %181 = arith.mulf %179, %180 : vector<128x32xf32>
    %182 = vector.broadcast %163 : vector<1x32xf32> to vector<128x32xf32>
    %183 = arith.addf %181, %182 : vector<128x32xf32>
    %c1_72 = arith.constant 1 : index
    %c0_73 = arith.constant 0 : index
    %c0_74 = arith.constant 0 : index
    %184 = vector.load %arg5[%c1_72, %c0_73, %c0_74] : memref<2x32x192xf32, #tpu.memory_space<vmem>>, vector<1x32x192xf32>
    %185 = vector.shape_cast %184 : vector<1x32x192xf32> to vector<32x192xf32>
    %cst_75 = arith.constant dense<0.000000e+00> : vector<128x192xf32>
    %186 = tpu.matmul %183, %185, %cst_75 {dimension_numbers = #tpu.dot_dimension_numbers<[1], [0], [0], [1], [0, 0, 1, 1], [], []>} : vector<128x32xf32>, vector<32x192xf32>, vector<128x192xf32> -> vector<128x192xf32>
    %c1_76 = arith.constant 1 : index
    %c0_77 = arith.constant 0 : index
    %187 = vector.load %arg6[%c1_76, %c0_77] : memref<2x192xf32, #tpu.memory_space<vmem>>, vector<1x192xf32>
    %188 = vector.broadcast %187 : vector<1x192xf32> to vector<128x192xf32>
    %189 = arith.addf %186, %188 : vector<128x192xf32>
    %cst_78 = arith.constant 0.000000e+00 : f32
    %190 = vector.broadcast %cst_78 : f32 to vector<128x32xf32>
    %191 = vector.extract_strided_slice %189 {offsets = [0, 0], sizes = [128, 8], strides = [1, 1]} : vector<128x192xf32> to vector<128x8xf32>
    %192 = vector.extract_strided_slice %189 {offsets = [0, 32], sizes = [128, 8], strides = [1, 1]} : vector<128x192xf32> to vector<128x8xf32>
    %193 = vector.extract_strided_slice %189 {offsets = [0, 64], sizes = [128, 32], strides = [1, 1]} : vector<128x192xf32> to vector<128x32xf32>
    %cst_79 = arith.constant dense<0.000000e+00> : vector<128x128xf32>
    %194 = tpu.matmul %191, %192, %cst_79 {dimension_numbers = #tpu.dot_dimension_numbers<[1], [1], [0], [0], [0, 0, 1, 0], [], []>} : vector<128x8xf32>, vector<128x8xf32>, vector<128x128xf32> -> vector<128x128xf32>
    %195 = arith.addf %194, %2 : vector<128x128xf32>
    %cst_80 = arith.constant dense<0xFF800000> : vector<128xf32>
    %196 = vector.multi_reduction <maximumf>, %195, %cst_80 [1] : vector<128x128xf32> to vector<128xf32>
    %197 = vector.shape_cast %196 : vector<128xf32> to vector<128x1xf32>
    %198 = vector.broadcast %197 : vector<128x1xf32> to vector<128x128xf32>
    %199 = arith.subf %195, %198 : vector<128x128xf32>
    %200 = math.exp %199 : vector<128x128xf32>
    %cst_81 = arith.constant dense<0.000000e+00> : vector<128xf32>
    %201 = vector.multi_reduction <add>, %200, %cst_81 [1] : vector<128x128xf32> to vector<128xf32>
    %202 = vector.shape_cast %201 : vector<128xf32> to vector<128x1xf32>
    %203 = tpu.reciprocal %202 {approx = true} : vector<128x1xf32> -> vector<128x1xf32>
    %cst_82 = arith.constant 5.000000e-01 : f32
    %204 = vector.broadcast %cst_82 : f32 to vector<128x1xf32>
    %205 = arith.mulf %204, %203 : vector<128x1xf32>
    %206 = vector.broadcast %205 : vector<128x1xf32> to vector<128x128xf32>
    %207 = arith.mulf %200, %206 : vector<128x128xf32>
    %208 = arith.addf %207, %4 : vector<128x128xf32>
    %cst_83 = arith.constant dense<0.000000e+00> : vector<128x32xf32>
    %209 = tpu.matmul %208, %193, %cst_83 {dimension_numbers = #tpu.dot_dimension_numbers<[1], [0], [0], [1], [0, 0, 1, 1], [], []>} : vector<128x128xf32>, vector<128x32xf32>, vector<128x32xf32> -> vector<128x32xf32>
    %210 = arith.addf %190, %209 : vector<128x32xf32>
    %211 = vector.extract_strided_slice %189 {offsets = [0, 8], sizes = [128, 8], strides = [1, 1]} : vector<128x192xf32> to vector<128x8xf32>
    %212 = vector.extract_strided_slice %189 {offsets = [0, 40], sizes = [128, 8], strides = [1, 1]} : vector<128x192xf32> to vector<128x8xf32>
    %213 = vector.extract_strided_slice %189 {offsets = [0, 96], sizes = [128, 32], strides = [1, 1]} : vector<128x192xf32> to vector<128x32xf32>
    %cst_84 = arith.constant dense<0.000000e+00> : vector<128x128xf32>
    %214 = tpu.matmul %211, %212, %cst_84 {dimension_numbers = #tpu.dot_dimension_numbers<[1], [1], [0], [0], [0, 0, 1, 0], [], []>} : vector<128x8xf32>, vector<128x8xf32>, vector<128x128xf32> -> vector<128x128xf32>
    %215 = arith.addf %214, %2 : vector<128x128xf32>
    %cst_85 = arith.constant dense<0xFF800000> : vector<128xf32>
    %216 = vector.multi_reduction <maximumf>, %215, %cst_85 [1] : vector<128x128xf32> to vector<128xf32>
    %217 = vector.shape_cast %216 : vector<128xf32> to vector<128x1xf32>
    %218 = vector.broadcast %217 : vector<128x1xf32> to vector<128x128xf32>
    %219 = arith.subf %215, %218 : vector<128x128xf32>
    %220 = math.exp %219 : vector<128x128xf32>
    %cst_86 = arith.constant dense<0.000000e+00> : vector<128xf32>
    %221 = vector.multi_reduction <add>, %220, %cst_86 [1] : vector<128x128xf32> to vector<128xf32>
    %222 = vector.shape_cast %221 : vector<128xf32> to vector<128x1xf32>
    %223 = tpu.reciprocal %222 {approx = true} : vector<128x1xf32> -> vector<128x1xf32>
    %cst_87 = arith.constant 5.000000e-01 : f32
    %224 = vector.broadcast %cst_87 : f32 to vector<128x1xf32>
    %225 = arith.mulf %224, %223 : vector<128x1xf32>
    %226 = vector.broadcast %225 : vector<128x1xf32> to vector<128x128xf32>
    %227 = arith.mulf %220, %226 : vector<128x128xf32>
    %228 = arith.addf %227, %4 : vector<128x128xf32>
    %cst_88 = arith.constant dense<0.000000e+00> : vector<128x32xf32>
    %229 = tpu.matmul %228, %213, %cst_88 {dimension_numbers = #tpu.dot_dimension_numbers<[1], [0], [0], [1], [0, 0, 1, 1], [], []>} : vector<128x128xf32>, vector<128x32xf32>, vector<128x32xf32> -> vector<128x32xf32>
    %230 = arith.addf %210, %229 : vector<128x32xf32>
    %231 = vector.extract_strided_slice %189 {offsets = [0, 16], sizes = [128, 8], strides = [1, 1]} : vector<128x192xf32> to vector<128x8xf32>
    %232 = vector.extract_strided_slice %189 {offsets = [0, 48], sizes = [128, 8], strides = [1, 1]} : vector<128x192xf32> to vector<128x8xf32>
    %233 = vector.extract_strided_slice %189 {offsets = [0, 128], sizes = [128, 32], strides = [1, 1]} : vector<128x192xf32> to vector<128x32xf32>
    %cst_89 = arith.constant dense<0.000000e+00> : vector<128x128xf32>
    %234 = tpu.matmul %231, %232, %cst_89 {dimension_numbers = #tpu.dot_dimension_numbers<[1], [1], [0], [0], [0, 0, 1, 0], [], []>} : vector<128x8xf32>, vector<128x8xf32>, vector<128x128xf32> -> vector<128x128xf32>
    %235 = arith.addf %234, %2 : vector<128x128xf32>
    %cst_90 = arith.constant dense<0xFF800000> : vector<128xf32>
    %236 = vector.multi_reduction <maximumf>, %235, %cst_90 [1] : vector<128x128xf32> to vector<128xf32>
    %237 = vector.shape_cast %236 : vector<128xf32> to vector<128x1xf32>
    %238 = vector.broadcast %237 : vector<128x1xf32> to vector<128x128xf32>
    %239 = arith.subf %235, %238 : vector<128x128xf32>
    %240 = math.exp %239 : vector<128x128xf32>
    %cst_91 = arith.constant dense<0.000000e+00> : vector<128xf32>
    %241 = vector.multi_reduction <add>, %240, %cst_91 [1] : vector<128x128xf32> to vector<128xf32>
    %242 = vector.shape_cast %241 : vector<128xf32> to vector<128x1xf32>
    %243 = tpu.reciprocal %242 {approx = true} : vector<128x1xf32> -> vector<128x1xf32>
    %cst_92 = arith.constant 5.000000e-01 : f32
    %244 = vector.broadcast %cst_92 : f32 to vector<128x1xf32>
    %245 = arith.mulf %244, %243 : vector<128x1xf32>
    %246 = vector.broadcast %245 : vector<128x1xf32> to vector<128x128xf32>
    %247 = arith.mulf %240, %246 : vector<128x128xf32>
    %248 = arith.addf %247, %4 : vector<128x128xf32>
    %cst_93 = arith.constant dense<0.000000e+00> : vector<128x32xf32>
    %249 = tpu.matmul %248, %233, %cst_93 {dimension_numbers = #tpu.dot_dimension_numbers<[1], [0], [0], [1], [0, 0, 1, 1], [], []>} : vector<128x128xf32>, vector<128x32xf32>, vector<128x32xf32> -> vector<128x32xf32>
    %250 = arith.addf %230, %249 : vector<128x32xf32>
    %251 = vector.extract_strided_slice %189 {offsets = [0, 24], sizes = [128, 8], strides = [1, 1]} : vector<128x192xf32> to vector<128x8xf32>
    %252 = vector.extract_strided_slice %189 {offsets = [0, 56], sizes = [128, 8], strides = [1, 1]} : vector<128x192xf32> to vector<128x8xf32>
    %253 = vector.extract_strided_slice %189 {offsets = [0, 160], sizes = [128, 32], strides = [1, 1]} : vector<128x192xf32> to vector<128x32xf32>
    %cst_94 = arith.constant dense<0.000000e+00> : vector<128x128xf32>
    %254 = tpu.matmul %251, %252, %cst_94 {dimension_numbers = #tpu.dot_dimension_numbers<[1], [1], [0], [0], [0, 0, 1, 0], [], []>} : vector<128x8xf32>, vector<128x8xf32>, vector<128x128xf32> -> vector<128x128xf32>
    %255 = arith.addf %254, %2 : vector<128x128xf32>
    %cst_95 = arith.constant dense<0xFF800000> : vector<128xf32>
    %256 = vector.multi_reduction <maximumf>, %255, %cst_95 [1] : vector<128x128xf32> to vector<128xf32>
    %257 = vector.shape_cast %256 : vector<128xf32> to vector<128x1xf32>
    %258 = vector.broadcast %257 : vector<128x1xf32> to vector<128x128xf32>
    %259 = arith.subf %255, %258 : vector<128x128xf32>
    %260 = math.exp %259 : vector<128x128xf32>
    %cst_96 = arith.constant dense<0.000000e+00> : vector<128xf32>
    %261 = vector.multi_reduction <add>, %260, %cst_96 [1] : vector<128x128xf32> to vector<128xf32>
    %262 = vector.shape_cast %261 : vector<128xf32> to vector<128x1xf32>
    %263 = tpu.reciprocal %262 {approx = true} : vector<128x1xf32> -> vector<128x1xf32>
    %cst_97 = arith.constant 5.000000e-01 : f32
    %264 = vector.broadcast %cst_97 : f32 to vector<128x1xf32>
    %265 = arith.mulf %264, %263 : vector<128x1xf32>
    %266 = vector.broadcast %265 : vector<128x1xf32> to vector<128x128xf32>
    %267 = arith.mulf %260, %266 : vector<128x128xf32>
    %268 = arith.addf %267, %4 : vector<128x128xf32>
    %cst_98 = arith.constant dense<0.000000e+00> : vector<128x32xf32>
    %269 = tpu.matmul %268, %253, %cst_98 {dimension_numbers = #tpu.dot_dimension_numbers<[1], [0], [0], [1], [0, 0, 1, 1], [], []>} : vector<128x128xf32>, vector<128x32xf32>, vector<128x32xf32> -> vector<128x32xf32>
    %270 = arith.addf %250, %269 : vector<128x32xf32>
    %271 = arith.addf %161, %270 : vector<128x32xf32>
    %c10 = arith.constant 10 : index
    %c0_99 = arith.constant 0 : index
    %272 = vector.load %arg8[%c10, %c0_99] : memref<17x32xf32, #tpu.memory_space<vmem>>, vector<1x32xf32>
    %273 = vector.broadcast %272 : vector<1x32xf32> to vector<128x32xf32>
    %274 = arith.addf %271, %273 : vector<128x32xf32>
    %c11 = arith.constant 11 : index
    %c0_100 = arith.constant 0 : index
    %275 = vector.load %arg8[%c11, %c0_100] : memref<17x32xf32, #tpu.memory_space<vmem>>, vector<1x32xf32>
    %c12 = arith.constant 12 : index
    %c0_101 = arith.constant 0 : index
    %276 = vector.load %arg8[%c12, %c0_101] : memref<17x32xf32, #tpu.memory_space<vmem>>, vector<1x32xf32>
    %cst_102 = arith.constant dense<0.000000e+00> : vector<128xf32>
    %277 = vector.multi_reduction <add>, %274, %cst_102 [1] : vector<128x32xf32> to vector<128xf32>
    %278 = vector.shape_cast %277 : vector<128xf32> to vector<128x1xf32>
    %cst_103 = arith.constant 3.200000e+01 : f32
    %279 = vector.broadcast %cst_103 : f32 to vector<128x1xf32>
    %280 = arith.divf %278, %279 : vector<128x1xf32>
    %281 = vector.broadcast %280 : vector<128x1xf32> to vector<128x32xf32>
    %282 = arith.subf %274, %281 : vector<128x32xf32>
    %283 = arith.mulf %282, %282 : vector<128x32xf32>
    %cst_104 = arith.constant dense<0.000000e+00> : vector<128xf32>
    %284 = vector.multi_reduction <add>, %283, %cst_104 [1] : vector<128x32xf32> to vector<128xf32>
    %285 = vector.shape_cast %284 : vector<128xf32> to vector<128x1xf32>
    %cst_105 = arith.constant 3.200000e+01 : f32
    %286 = vector.broadcast %cst_105 : f32 to vector<128x1xf32>
    %287 = arith.divf %285, %286 : vector<128x1xf32>
    %cst_106 = arith.constant 9.99999974E-6 : f32
    %288 = vector.broadcast %cst_106 : f32 to vector<128x1xf32>
    %289 = arith.addf %287, %288 : vector<128x1xf32>
    %290 = math.rsqrt %289 : vector<128x1xf32>
    %291 = vector.broadcast %290 : vector<128x1xf32> to vector<128x32xf32>
    %292 = arith.mulf %282, %291 : vector<128x32xf32>
    %293 = vector.broadcast %275 : vector<1x32xf32> to vector<128x32xf32>
    %294 = arith.mulf %292, %293 : vector<128x32xf32>
    %295 = vector.broadcast %276 : vector<1x32xf32> to vector<128x32xf32>
    %296 = arith.addf %294, %295 : vector<128x32xf32>
    %c2_107 = arith.constant 2 : index
    %c0_108 = arith.constant 0 : index
    %c0_109 = arith.constant 0 : index
    %297 = vector.load %arg7[%c2_107, %c0_108, %c0_109] : memref<4x32x32xf32, #tpu.memory_space<vmem>>, vector<1x32x32xf32>
    %298 = vector.shape_cast %297 : vector<1x32x32xf32> to vector<32x32xf32>
    %cst_110 = arith.constant dense<0.000000e+00> : vector<128x32xf32>
    %299 = tpu.matmul %296, %298, %cst_110 {dimension_numbers = #tpu.dot_dimension_numbers<[1], [0], [0], [1], [0, 0, 1, 1], [], []>} : vector<128x32xf32>, vector<32x32xf32>, vector<128x32xf32> -> vector<128x32xf32>
    %c13 = arith.constant 13 : index
    %c0_111 = arith.constant 0 : index
    %300 = vector.load %arg8[%c13, %c0_111] : memref<17x32xf32, #tpu.memory_space<vmem>>, vector<1x32xf32>
    %301 = vector.broadcast %300 : vector<1x32xf32> to vector<128x32xf32>
    %302 = arith.addf %299, %301 : vector<128x32xf32>
    %cst_112 = arith.constant 0.000000e+00 : f32
    %303 = vector.broadcast %cst_112 : f32 to vector<128x32xf32>
    %304 = arith.maximumf %302, %303 : vector<128x32xf32>
    %c3_113 = arith.constant 3 : index
    %c0_114 = arith.constant 0 : index
    %c0_115 = arith.constant 0 : index
    %305 = vector.load %arg7[%c3_113, %c0_114, %c0_115] : memref<4x32x32xf32, #tpu.memory_space<vmem>>, vector<1x32x32xf32>
    %306 = vector.shape_cast %305 : vector<1x32x32xf32> to vector<32x32xf32>
    %cst_116 = arith.constant dense<0.000000e+00> : vector<128x32xf32>
    %307 = tpu.matmul %304, %306, %cst_116 {dimension_numbers = #tpu.dot_dimension_numbers<[1], [0], [0], [1], [0, 0, 1, 1], [], []>} : vector<128x32xf32>, vector<32x32xf32>, vector<128x32xf32> -> vector<128x32xf32>
    %c14 = arith.constant 14 : index
    %c0_117 = arith.constant 0 : index
    %308 = vector.load %arg8[%c14, %c0_117] : memref<17x32xf32, #tpu.memory_space<vmem>>, vector<1x32xf32>
    %309 = vector.broadcast %308 : vector<1x32xf32> to vector<128x32xf32>
    %310 = arith.addf %307, %309 : vector<128x32xf32>
    %cst_118 = arith.constant 0.000000e+00 : f32
    %311 = vector.broadcast %cst_118 : f32 to vector<128x32xf32>
    %312 = arith.maximumf %310, %311 : vector<128x32xf32>
    %313 = arith.addf %274, %312 : vector<128x32xf32>
    %c15 = arith.constant 15 : index
    %c0_119 = arith.constant 0 : index
    %314 = vector.load %arg8[%c15, %c0_119] : memref<17x32xf32, #tpu.memory_space<vmem>>, vector<1x32xf32>
    %c16 = arith.constant 16 : index
    %c0_120 = arith.constant 0 : index
    %315 = vector.load %arg8[%c16, %c0_120] : memref<17x32xf32, #tpu.memory_space<vmem>>, vector<1x32xf32>
    %cst_121 = arith.constant dense<0.000000e+00> : vector<128xf32>
    %316 = vector.multi_reduction <add>, %313, %cst_121 [1] : vector<128x32xf32> to vector<128xf32>
    %317 = vector.shape_cast %316 : vector<128xf32> to vector<128x1xf32>
    %cst_122 = arith.constant 3.200000e+01 : f32
    %318 = vector.broadcast %cst_122 : f32 to vector<128x1xf32>
    %319 = arith.divf %317, %318 : vector<128x1xf32>
    %320 = vector.broadcast %319 : vector<128x1xf32> to vector<128x32xf32>
    %321 = arith.subf %313, %320 : vector<128x32xf32>
    %322 = arith.mulf %321, %321 : vector<128x32xf32>
    %cst_123 = arith.constant dense<0.000000e+00> : vector<128xf32>
    %323 = vector.multi_reduction <add>, %322, %cst_123 [1] : vector<128x32xf32> to vector<128xf32>
    %324 = vector.shape_cast %323 : vector<128xf32> to vector<128x1xf32>
    %cst_124 = arith.constant 3.200000e+01 : f32
    %325 = vector.broadcast %cst_124 : f32 to vector<128x1xf32>
    %326 = arith.divf %324, %325 : vector<128x1xf32>
    %cst_125 = arith.constant 9.99999974E-6 : f32
    %327 = vector.broadcast %cst_125 : f32 to vector<128x1xf32>
    %328 = arith.addf %326, %327 : vector<128x1xf32>
    %329 = math.rsqrt %328 : vector<128x1xf32>
    %330 = vector.broadcast %329 : vector<128x1xf32> to vector<128x32xf32>
    %331 = arith.mulf %321, %330 : vector<128x32xf32>
    %332 = vector.broadcast %314 : vector<1x32xf32> to vector<128x32xf32>
    %333 = arith.mulf %331, %332 : vector<128x32xf32>
    %334 = vector.broadcast %315 : vector<1x32xf32> to vector<128x32xf32>
    %335 = arith.addf %333, %334 : vector<128x32xf32>
    %c0_126 = arith.constant 0 : index
    %c0_127 = arith.constant 0 : index
    %336 = vector.load %arg9[%c0_126, %c0_127] : memref<128x32xf32, #tpu.memory_space<vmem>>, vector<128x32xf32>
    tpu.vector_store %arg9[%c0_126, %c0_127], %335 {strides = array<i32>} : memref<128x32xf32, #tpu.memory_space<vmem>>, vector<128x32xf32>,
    return
  }
  func.func @transform_0(%arg0: i32) -> (i32, i32) {
    %c0_i32 = arith.constant 0 : i32
    %c0_i32_0 = arith.constant 0 : i32
    return %arg0, %c0_i32 : i32, i32
  }
  func.func @transform_1(%arg0: i32) -> (i32, i32, i32) {
    %c0_i32 = arith.constant 0 : i32
    %c0_i32_0 = arith.constant 0 : i32
    %c0_i32_1 = arith.constant 0 : i32
    return %arg0, %c0_i32, %c0_i32_0 : i32, i32, i32
  }
  func.func @transform_2(%arg0: i32) -> (i32, i32, i32) {
    %c0_i32 = arith.constant 0 : i32
    %c0_i32_0 = arith.constant 0 : i32
    %c0_i32_1 = arith.constant 0 : i32
    return %arg0, %c0_i32, %c0_i32_0 : i32, i32, i32
  }
  func.func @transform_3(%arg0: i32) -> (i32, i32) {
    %c0_i32 = arith.constant 0 : i32
    %c0_i32_0 = arith.constant 0 : i32
    %c0_i32_1 = arith.constant 0 : i32
    return %c0_i32, %c0_i32_0 : i32, i32
  }
  func.func @transform_4(%arg0: i32) -> (i32, i32, i32) {
    %c0_i32 = arith.constant 0 : i32
    %c0_i32_0 = arith.constant 0 : i32
    %c0_i32_1 = arith.constant 0 : i32
    %c0_i32_2 = arith.constant 0 : i32
    return %c0_i32, %c0_i32_0, %c0_i32_1 : i32, i32, i32
  }
  func.func @transform_5(%arg0: i32) -> (i32, i32) {
    %c0_i32 = arith.constant 0 : i32
    %c0_i32_0 = arith.constant 0 : i32
    %c0_i32_1 = arith.constant 0 : i32
    return %c0_i32, %c0_i32_0 : i32, i32
  }
  func.func @transform_6(%arg0: i32) -> (i32, i32, i32) {
    %c0_i32 = arith.constant 0 : i32
    %c0_i32_0 = arith.constant 0 : i32
    %c0_i32_1 = arith.constant 0 : i32
    %c0_i32_2 = arith.constant 0 : i32
    return %c0_i32, %c0_i32_0, %c0_i32_1 : i32, i32, i32
  }
  func.func @transform_7(%arg0: i32) -> (i32, i32) {
    %c0_i32 = arith.constant 0 : i32
    %c0_i32_0 = arith.constant 0 : i32
    %c0_i32_1 = arith.constant 0 : i32
    return %c0_i32, %c0_i32_0 : i32, i32
  }
  func.func @transform_8(%arg0: i32) -> (i32, i32) {
    %c0_i32 = arith.constant 0 : i32
    %c0_i32_0 = arith.constant 0 : i32
    return %arg0, %c0_i32 : i32, i32
  }
}

</mosaic_0001>

<llo_original>
// kernel: tpu_custom_call.1
$region0: #{tpu_custom_call.1}
  #allocation0 [shape = 'u32[]', space=smem, size = 0x4, offset = 0x4, fixed_abs, tag = 'smem constant byte address 0x4 - core index']
  #allocation1 [shape = 'u32[72,128]{1,0:T(1,128)}', space=vmem, size = 0x9000, scoped, tag = 'internal scratch']
  %s0 = inlined_call_operand.vmem [shape: f32[256,16], index: 0, kind: input, shape index: {}]
  %s1 = inlined_call_operand.vmem [shape: f32[2,128,128], index: 1, kind: input, shape index: {}]
  %s2 = inlined_call_operand.hbm [shape: f32[2,128,128], index: 2, kind: input, shape index: {}]
  %s3 = inlined_call_operand.hbm [shape: f32[16,32], index: 3, kind: input, shape index: {}]
  %s4 = inlined_call_operand.hbm [shape: f32[2,32,192], index: 4, kind: input, shape index: {}]
  %s5 = inlined_call_operand.vmem [shape: f32[2,192], index: 5, kind: input, shape index: {}]
  %s6 = inlined_call_operand.hbm [shape: f32[4,32,32], index: 6, kind: input, shape index: {}]
  %s7 = inlined_call_operand.vmem [shape: f32[17,32], index: 7, kind: input, shape index: {}]
  %s8 = inlined_call_operand.vmem [shape: f32[256,32], index: 8, kind: output, shape index: {}]
  %s9 = sld [smem:[#allocation0]]
  $region81: #{tpu_custom_call.1} parent=0
    _
  %s11 = ssub.s32 1, %s9
  %s12 = scalar_select 0, %s11, %s9
  $region1: #{tpu_custom_call.1} parent=0
    #allocation2 [shape = 'u8[131072]{0}', space=vmem, size = 0x20000, scoped, tag = 'input window, operand 2']
    #allocation3 [shape = 's32[2]{0}', space=sflag, size = 0x8, scoped, tag = 'scoped memory for tpu_custom_call.1']
    #allocation4 [shape = 'u8[8192]{0}', space=vmem, size = 0x2000, scoped, tag = 'input window, operand 3, single buffered']
    #allocation5 [shape = 's32[1]{0}', space=sflag, size = 0x4, scoped, tag = 'scoped memory for tpu_custom_call.1']
    #allocation6 [shape = 'u8[65536]{0}', space=vmem, size = 0x10000, scoped, tag = 'input window, operand 4, single buffered']
    #allocation7 [shape = 'u8[65536]{0}', space=vmem, size = 0x10000, scoped, tag = 'input window, operand 6, single buffered']
    #allocation8 [shape = 's32[1]{0}', space=sflag, size = 0x4, scoped, tag = 'scoped memory for tpu_custom_call.1']
    %13 = vsyncpa [#allocation3], 0
    %s14 = scalar_lea.sflag [#allocation3], 1
    %15 = vsyncpa %s14, 0
    %16 = vsyncpa [#allocation5], 0
    %17 = vsyncpa [#allocation8], 0
    loop: start=0, step=1, limit=4
    $region2: #{tpu_custom_call.1} parent=1 // loop_pre_header
      _
    $region3: #{tpu_custom_call.1} parent=1 // loop_header
      %s19 = sphi 0, %s23
      %p20 = scmp.ge.s32.totalorder %s19, 4
      %s29 = sphi 0, %s31
      %s32 = sphi 0, %s29
      %s33 = sphi 0, %s32
      %s49 = sphi 0, %s33
      %s55 = sphi 0, %s57
      %s58 = sphi 0, %s55
      %s59 = sphi 0, %s58
      %s75 = sphi 0, %s59
      %s81 = sphi 0, %s83
      %s84 = sphi 0, %s81
      %s85 = sphi 0, %s84
      %s101 = sphi 0, %s85
      %s105 = sphi 0, %s105
      %s107 = sphi 0, %s105
      %s108 = sphi 0, %s107
      %s122 = sphi 0, %s108
      %s126 = sphi 0, %s126
      %s128 = sphi 0, %s126
      %s129 = sphi 0, %s128
      %s143 = sphi 0, %s129
      %s147 = sphi 0, %s147
      %s149 = sphi 0, %s147
      %s150 = sphi 0, %s149
      %s164 = sphi 0, %s150
      %s168 = sphi 0, %s168
      %s170 = sphi 0, %s168
      %s171 = sphi 0, %s170
      %s185 = sphi 0, %s171
      %s189 = sphi 0, %s189
      %s191 = sphi 0, %s189
      %s192 = sphi 0, %s191
      %s206 = sphi 0, %s192
      %s212 = sphi 0, %s214
      %s215 = sphi 0, %s212
      %s216 = sphi 0, %s215
      %s232 = sphi 0, %s216
    $region4: #{tpu_custom_call.1} parent=1 // loop_header_branch
      %22 = sbr.rel (%p20) target = $region8
    $region5: #{tpu_custom_call.1} parent=1 // loop_body
      %s24 = ssub.s32 %s19, 1
      %s25 = ssub.s32 %s19, 2
      %s26 = sadd.s32 %s19, 1
      %s27 = ssub.s32 %s19, %s26
      %p28 = scmp.eq.s32.totalorder %s27, 0
      %s30 = sadd.s32 %s29, 1
      %s31 = scalar_select %p28, %s29, %s30
      %p34 = pneg %p28
      %p35 = scmp.eq.s32.totalorder %s19, 1
      %p36 = por %p34, %p35
      %p37 = scmp.ne.s32.totalorder %s29, %s32
      %p38 = scmp.eq.s32.totalorder %s19, 0
      %p39 = por %p37, %p38
      %p40 = scmp.ne.s32.totalorder %s29, %s32
      %p41 = scmp.eq.s32.totalorder %s24, 1
      %p42 = por %p40, %p41
      %p43 = scmp.ne.s32.totalorder %s32, %s33
      %p44 = scmp.eq.s32.totalorder %s24, 0
      %p45 = por %p43, %p44
      %p46 = scmp.ne.s32.totalorder %s32, %s33
      %p47 = scmp.eq.s32.totalorder %s25, 1
      %p48 = por %p46, %p47
      %p50 = scmp.ne.s32.totalorder %s33, %s49
      %p51 = scmp.eq.s32.totalorder %s25, 0
      %p52 = por %p50, %p51
      %s53 = ssub.s32 %s19, %s26
      %p54 = scmp.eq.s32.totalorder %s53, 0
      %s56 = sadd.s32 %s55, 1
      %s57 = scalar_select %p54, %s55, %s56
      %p60 = pneg %p54
      %p61 = scmp.eq.s32.totalorder %s19, 1
      %p62 = por %p60, %p61
      %p63 = scmp.ne.s32.totalorder %s55, %s58
      %p64 = scmp.eq.s32.totalorder %s19, 0
      %p65 = por %p63, %p64
      %p66 = scmp.ne.s32.totalorder %s55, %s58
      %p67 = scmp.eq.s32.totalorder %s24, 1
      %p68 = por %p66, %p67
      %p69 = scmp.ne.s32.totalorder %s58, %s59
      %p70 = scmp.eq.s32.totalorder %s24, 0
      %p71 = por %p69, %p70
      %p72 = scmp.ne.s32.totalorder %s58, %s59
      %p73 = scmp.eq.s32.totalorder %s25, 1
      %p74 = por %p72, %p73
      %p76 = scmp.ne.s32.totalorder %s59, %s75
      %p77 = scmp.eq.s32.totalorder %s25, 0
      %p78 = por %p76, %p77
      %s79 = ssub.s32 %s19, %s26
      %p80 = scmp.eq.s32.totalorder %s79, 0
      %s82 = sadd.s32 %s81, 1
      %s83 = scalar_select %p80, %s81, %s82
      %p86 = pneg %p80
      %p87 = scmp.eq.s32.totalorder %s19, 1
      %p88 = por %p86, %p87
      %p89 = scmp.ne.s32.totalorder %s81, %s84
      %p90 = scmp.eq.s32.totalorder %s19, 0
      %p91 = por %p89, %p90
      %p92 = scmp.ne.s32.totalorder %s81, %s84
      %p93 = scmp.eq.s32.totalorder %s24, 1
      %p94 = por %p92, %p93
      %p95 = scmp.ne.s32.totalorder %s84, %s85
      %p96 = scmp.eq.s32.totalorder %s24, 0
      %p97 = por %p95, %p96
      %p98 = scmp.ne.s32.totalorder %s84, %s85
      %p99 = scmp.eq.s32.totalorder %s25, 1
      %p100 = por %p98, %p99
      %p102 = scmp.ne.s32.totalorder %s85, %s101
      %p103 = scmp.eq.s32.totalorder %s25, 0
      %p104 = por %p102, %p103
      %s106 = sadd.s32 %s105, 1
      %p109 = scmp.eq.s32.totalorder %s19, 1
      %p110 = scmp.ne.s32.totalorder %s105, %s107
      %p111 = scmp.eq.s32.totalorder %s19, 0
      %p112 = por %p110, %p111
      %p113 = scmp.ne.s32.totalorder %s105, %s107
      %p114 = scmp.eq.s32.totalorder %s24, 1
      %p115 = por %p113, %p114
      %p116 = scmp.ne.s32.totalorder %s107, %s108
      %p117 = scmp.eq.s32.totalorder %s24, 0
      %p118 = por %p116, %p117
      %p119 = scmp.ne.s32.totalorder %s107, %s108
      %p120 = scmp.eq.s32.totalorder %s25, 1
      %p121 = por %p119, %p120
      %p123 = scmp.ne.s32.totalorder %s108, %s122
      %p124 = scmp.eq.s32.totalorder %s25, 0
      %p125 = por %p123, %p124
      %s127 = sadd.s32 %s126, 1
      %p130 = scmp.eq.s32.totalorder %s19, 1
      %p131 = scmp.ne.s32.totalorder %s126, %s128
      %p132 = scmp.eq.s32.totalorder %s19, 0
      %p133 = por %p131, %p132
      %p134 = scmp.ne.s32.totalorder %s126, %s128
      %p135 = scmp.eq.s32.totalorder %s24, 1
      %p136 = por %p134, %p135
      %p137 = scmp.ne.s32.totalorder %s128, %s129
      %p138 = scmp.eq.s32.totalorder %s24, 0
      %p139 = por %p137, %p138
      %p140 = scmp.ne.s32.totalorder %s128, %s129
      %p141 = scmp.eq.s32.totalorder %s25, 1
      %p142 = por %p140, %p141
      %p144 = scmp.ne.s32.totalorder %s129, %s143
      %p145 = scmp.eq.s32.totalorder %s25, 0
      %p146 = por %p144, %p145
      %s148 = sadd.s32 %s147, 1
      %p151 = scmp.eq.s32.totalorder %s19, 1
      %p152 = scmp.ne.s32.totalorder %s147, %s149
      %p153 = scmp.eq.s32.totalorder %s19, 0
      %p154 = por %p152, %p153
      %p155 = scmp.ne.s32.totalorder %s147, %s149
      %p156 = scmp.eq.s32.totalorder %s24, 1
      %p157 = por %p155, %p156
      %p158 = scmp.ne.s32.totalorder %s149, %s150
      %p159 = scmp.eq.s32.totalorder %s24, 0
      %p160 = por %p158, %p159
      %p161 = scmp.ne.s32.totalorder %s149, %s150
      %p162 = scmp.eq.s32.totalorder %s25, 1
      %p163 = por %p161, %p162
      %p165 = scmp.ne.s32.totalorder %s150, %s164
      %p166 = scmp.eq.s32.totalorder %s25, 0
      %p167 = por %p165, %p166
      %s169 = sadd.s32 %s168, 1
      %p172 = scmp.eq.s32.totalorder %s19, 1
      %p173 = scmp.ne.s32.totalorder %s168, %s170
      %p174 = scmp.eq.s32.totalorder %s19, 0
      %p175 = por %p173, %p174
      %p176 = scmp.ne.s32.totalorder %s168, %s170
      %p177 = scmp.eq.s32.totalorder %s24, 1
      %p178 = por %p176, %p177
      %p179 = scmp.ne.s32.totalorder %s170, %s171
      %p180 = scmp.eq.s32.totalorder %s24, 0
      %p181 = por %p179, %p180
      %p182 = scmp.ne.s32.totalorder %s170, %s171
      %p183 = scmp.eq.s32.totalorder %s25, 1
      %p184 = por %p182, %p183
      %p186 = scmp.ne.s32.totalorder %s171, %s185
      %p187 = scmp.eq.s32.totalorder %s25, 0
      %p188 = por %p186, %p187
      %s190 = sadd.s32 %s189, 1
      %p193 = scmp.eq.s32.totalorder %s19, 1
      %p194 = scmp.ne.s32.totalorder %s189, %s191
      %p195 = scmp.eq.s32.totalorder %s19, 0
      %p196 = por %p194, %p195
      %p197 = scmp.ne.s32.totalorder %s189, %s191
      %p198 = scmp.eq.s32.totalorder %s24, 1
      %p199 = por %p197, %p198
      %p200 = scmp.ne.s32.totalorder %s191, %s192
      %p201 = scmp.eq.s32.totalorder %s24, 0
      %p202 = por %p200, %p201
      %p203 = scmp.ne.s32.totalorder %s191, %s192
      %p204 = scmp.eq.s32.totalorder %s25, 1
      %p205 = por %p203, %p204
      %p207 = scmp.ne.s32.totalorder %s192, %s206
      %p208 = scmp.eq.s32.totalorder %s25, 0
      %p209 = por %p207, %p208
      %s210 = ssub.s32 %s19, %s26
      %p211 = scmp.eq.s32.totalorder %s210, 0
      %s213 = sadd.s32 %s212, 1
      %s214 = scalar_select %p211, %s212, %s213
      %p217 = pneg %p211
      %p218 = scmp.eq.s32.totalorder %s19, 1
      %p219 = por %p217, %p218
      %p220 = scmp.ne.s32.totalorder %s212, %s215
      %p221 = scmp.eq.s32.totalorder %s19, 0
      %p222 = por %p220, %p221
      %p223 = scmp.ne.s32.totalorder %s212, %s215
      %p224 = scmp.eq.s32.totalorder %s24, 1
      %p225 = por %p223, %p224
      %p226 = scmp.ne.s32.totalorder %s215, %s216
      %p227 = scmp.eq.s32.totalorder %s24, 0
      %p228 = por %p226, %p227
      %p229 = scmp.ne.s32.totalorder %s215, %s216
      %p230 = scmp.eq.s32.totalorder %s25, 1
      %p231 = por %p229, %p230
      %p233 = scmp.ne.s32.totalorder %s216, %s232
      %p234 = scmp.eq.s32.totalorder %s25, 0
      %p235 = por %p233, %p234
      %p236 = scmp.le.s32.totalorder 1, %s19
      %p237 = scmp.lt.s32.totalorder %s19, 3
      %p238 = pnand %p236, %p237
      %p239 = pneg %p238
      // Predicated region
      $region9: #{tpu_custom_call.1} parent=5 // pred_check
        _
      $region10: #{tpu_custom_call.1} parent=5 // pred_check_branch
        %241 = sbr.rel (%p238) target = $region12
      $region11: #{tpu_custom_call.1} parent=5 // pred_region
        %s242 = ssub.s32 %s19, 1
        // Predicated region
        $region13: #{tpu_custom_call.1} parent=11 // pred_check
          %p243 = pneg %p118
        $region14: #{tpu_custom_call.1} parent=11 // pred_check_branch
          %245 = sbr.rel (%p243) target = $region16
        $region15: #{tpu_custom_call.1} parent=11 // pred_region
          %247 = vsyncadd [#allocation5], 0
          %s248 = sshll.u32 %s3, 4
          %s249 = int_to_ptr.hbm [resolvable:$true] %s248
          %s250 = sshll.u32 [#allocation4], 4
          %s251 = int_to_ptr.vmem [resolvable:$true] %s250
          %256 = dma.hbm_to_vmem [thread:$0]  %s249, 256, %s251, [#allocation5], 128, 128, 8
        $region16: #{tpu_custom_call.1} parent=11 // pred_fallthru
          _
        // Predicated region
        $region17: #{tpu_custom_call.1} parent=11 // pred_check
          %p257 = pneg %p139
        $region18: #{tpu_custom_call.1} parent=11 // pred_check_branch
          %259 = sbr.rel (%p257) target = $region20
        $region19: #{tpu_custom_call.1} parent=11 // pred_region
          %261 = vsyncadd [#allocation5], 0
          %s262 = sshll.u32 %s4, 4
          %s263 = int_to_ptr.hbm [resolvable:$true] %s262
          %s264 = sshll.u32 [#allocation6], 4
          %s265 = int_to_ptr.vmem [resolvable:$true] %s264
          %270 = dma.hbm_to_vmem [thread:$0]  %s263, 2048, %s265, [#allocation5], 256, 256, 16
        $region20: #{tpu_custom_call.1} parent=11 // pred_fallthru
          _
        // Predicated region
        $region21: #{tpu_custom_call.1} parent=11 // pred_check
          %p271 = pneg %p160
        $region22: #{tpu_custom_call.1} parent=11 // pred_check_branch
          %273 = sbr.rel (%p271) target = $region24
        $region23: #{tpu_custom_call.1} parent=11 // pred_region
          _
        $region24: #{tpu_custom_call.1} parent=11 // pred_fallthru
          _
        // Predicated region
        $region25: #{tpu_custom_call.1} parent=11 // pred_check
          %p274 = pneg %p181
        $region26: #{tpu_custom_call.1} parent=11 // pred_check_branch
          %276 = sbr.rel (%p274) target = $region28
        $region27: #{tpu_custom_call.1} parent=11 // pred_region
          %278 = vsyncadd [#allocation8], 0
          %s279 = sshll.u32 %s6, 4
          %s280 = int_to_ptr.hbm [resolvable:$true] %s279
          %s281 = sshll.u32 [#allocation7], 4
          %s282 = int_to_ptr.vmem [resolvable:$true] %s281
          %287 = dma.hbm_to_vmem [thread:$0]  %s280, 2048, %s282, [#allocation8], 128, 128, 8
        $region28: #{tpu_custom_call.1} parent=11 // pred_fallthru
          _
        // Predicated region
        $region29: #{tpu_custom_call.1} parent=11 // pred_check
          %p288 = pneg %p202
        $region30: #{tpu_custom_call.1} parent=11 // pred_check_branch
          %290 = sbr.rel (%p288) target = $region32
        $region31: #{tpu_custom_call.1} parent=11 // pred_region
          _
        $region32: #{tpu_custom_call.1} parent=11 // pred_fallthru
          _
      $region12: #{tpu_custom_call.1} parent=5 // pred_fallthru
        _
      %p291 = scmp.lt.s32.totalorder %s19, 2
      // Predicated region
      $region33: #{tpu_custom_call.1} parent=5 // pred_check
        %p292 = pneg %p291
      $region34: #{tpu_custom_call.1} parent=5 // pred_check_branch
        %294 = sbr.rel (%p292) target = $region36
      $region35: #{tpu_custom_call.1} parent=5 // pred_region
        // Predicated region
        $region37: #{tpu_custom_call.1} parent=35 // pred_check
          %p295 = pneg %p39
        $region38: #{tpu_custom_call.1} parent=35 // pred_check_branch
          %297 = sbr.rel (%p295) target = $region40
        $region39: #{tpu_custom_call.1} parent=35 // pred_region
          %s298 = smul.u32 16, %s19
          %p299 = scmp.lt.s32.totalorder %s298, 31
          %s300 = scalar_select %p299, %s298, 31
          %s301 = smul.addr %s300, 8
          %s302 = scalar_lea.vmem %s0, %s301
          %s303 = smul.u32 16, %s19
        $region40: #{tpu_custom_call.1} parent=35 // pred_fallthru
          _
        // Predicated region
        $region41: #{tpu_custom_call.1} parent=35 // pred_check
          %p304 = pneg %p65
        $region42: #{tpu_custom_call.1} parent=35 // pred_check_branch
          %306 = sbr.rel (%p304) target = $region44
        $region43: #{tpu_custom_call.1} parent=35 // pred_region
          %p307 = scmp.lt.s32.totalorder %s19, 1
          %s308 = scalar_select %p307, %s19, 1
          %s309 = smul.addr %s308, 16
          %s310 = smul.addr %s309, 8
          %s311 = scalar_lea.vmem %s1, %s310
        $region44: #{tpu_custom_call.1} parent=35 // pred_fallthru
          _
        // Predicated region
        $region45: #{tpu_custom_call.1} parent=35 // pred_check
          %p312 = pneg %p91
        $region46: #{tpu_custom_call.1} parent=35 // pred_check_branch
          %314 = sbr.rel (%p312) target = $region48
        $region47: #{tpu_custom_call.1} parent=35 // pred_region
          %s315 = sand.u32 %s81, 1
          %s316 = scalar_lea.sflag [#allocation3], %s315
          %s317 = sand.u32 %s81, 1
          %s318 = smul.addr %s317, 128
          %s319 = scalar_lea.vmem [#allocation2], %s318
          %321 = vsyncadd %s316, 0
          %s322 = smul.addr %s19, 16
          %s323 = smul.addr %s322, 8
          %s324 = scalar_lea.hbm %s2, %s323
          %s325 = sshll.u32 %s324, 4
          %s326 = int_to_ptr.hbm [resolvable:$true] %s325
          %s327 = sshll.u32 %s319, 4
          %s328 = int_to_ptr.vmem [resolvable:$true] %s327
          %333 = dma.hbm_to_vmem [thread:$0]  %s326, 2048, %s328, %s316, 128, 128, 8
        $region48: #{tpu_custom_call.1} parent=35 // pred_fallthru
          _
      $region36: #{tpu_custom_call.1} parent=5 // pred_fallthru
        _
      %p334 = scmp.le.s32.totalorder 1, %s19
      %p335 = scmp.lt.s32.totalorder %s19, 3
      %p336 = pnand %p334, %p335
      %p337 = pneg %p336
      // Predicated region
      $region49: #{tpu_custom_call.1} parent=5 // pred_check
        _
      $region50: #{tpu_custom_call.1} parent=5 // pred_check_branch
        %339 = sbr.rel (%p336) target = $region52
      $region51: #{tpu_custom_call.1} parent=5 // pred_region
        %s340 = ssub.s32 %s19, 1
        %s341 = sand.u32 %s84, 1
        %s342 = scalar_lea.sflag [#allocation3], %s341
        %s343 = sand.u32 %s84, 1
        %s344 = smul.addr %s343, 128
        %s345 = scalar_lea.vmem [#allocation2], %s344
        // Predicated region
        $region53: #{tpu_custom_call.1} parent=51 // pred_check
          %p346 = pneg %p97
        $region54: #{tpu_custom_call.1} parent=51 // pred_check_branch
          %348 = sbr.rel (%p346) target = $region56
        $region55: #{tpu_custom_call.1} parent=51 // pred_region
          %350 = dma.done %s342, 2048
        $region56: #{tpu_custom_call.1} parent=51 // pred_fallthru
          _
        // Predicated region
        $region57: #{tpu_custom_call.1} parent=51 // pred_check
          %p351 = pneg %p118
        $region58: #{tpu_custom_call.1} parent=51 // pred_check_branch
          %353 = sbr.rel (%p351) target = $region60
        $region59: #{tpu_custom_call.1} parent=51 // pred_region
          %355 = dma.done [#allocation5], 256
        $region60: #{tpu_custom_call.1} parent=51 // pred_fallthru
          _
        // Predicated region
        $region61: #{tpu_custom_call.1} parent=51 // pred_check
          %p356 = pneg %p139
        $region62: #{tpu_custom_call.1} parent=51 // pred_check_branch
          %358 = sbr.rel (%p356) target = $region64
        $region63: #{tpu_custom_call.1} parent=51 // pred_region
          %360 = dma.done [#allocation5], 2048
        $region64: #{tpu_custom_call.1} parent=51 // pred_fallthru
          _
        // Predicated region
        $region65: #{tpu_custom_call.1} parent=51 // pred_check
          %p361 = pneg %p181
        $region66: #{tpu_custom_call.1} parent=51 // pred_check_branch
          %363 = sbr.rel (%p361) target = $region68
        $region67: #{tpu_custom_call.1} parent=51 // pred_region
          %365 = dma.done [#allocation8], 2048
        $region68: #{tpu_custom_call.1} parent=51 // pred_fallthru
          _
        %s366 = smul.u32 16, %s24
        %p367 = scmp.lt.s32.totalorder %s366, 31
        %s368 = scalar_select %p367, %s366, 31
        %s369 = smul.addr %s368, 8
        %s370 = scalar_lea.vmem %s0, %s369
        %p371 = pneg %p45
        %p372 = pneg %p42
        %p373 = scmp.lt.s32.totalorder %s24, 1
        %s374 = scalar_select %p373, %s24, 1
        %s375 = smul.addr %s374, 16
        %s376 = smul.addr %s375, 8
        %s377 = scalar_lea.vmem %s1, %s376
        %p378 = pneg %p71
        %p379 = pneg %p68
        %s380 = sand.u32 %s84, 1
        %s381 = scalar_lea.sflag [#allocation3], %s380
        %s382 = sand.u32 %s84, 1
        %s383 = smul.addr %s382, 128
        %s384 = scalar_lea.vmem [#allocation2], %s383
        %p385 = pneg %p97
        %p386 = pneg %p94
        %p387 = pneg %p118
        %p388 = pneg %p115
        %p389 = pneg %p139
        %p390 = pneg %p136
        %p391 = pneg %p160
        %p392 = pneg %p157
        %p393 = pneg %p181
        %p394 = pneg %p178
        %p395 = pneg %p202
        %p396 = pneg %p199
        %p397 = pneg %p228
        %p398 = pneg %p225
        %s399 = smul.u32 16, %s24
        %p400 = scmp.lt.s32.totalorder %s399, 31
        %s401 = scalar_select %p400, %s399, 31
        %s402 = smul.addr %s401, 8
        %s403 = scalar_lea.vmem %s8, %s402
        %s404 = smul.u32 16, %s24
        %p405 = scmp.lt.s32.totalorder %s404, 31
        %s406 = scalar_select %p405, %s404, 31
        %s407 = smul.addr %s406, 8
        %s408 = scalar_lea.vmem %s0, %s407
        %s409 = smul.u32 16, %s24
        %p410 = scmp.lt.s32.totalorder %s24, 1
        %s411 = scalar_select %p410, %s24, 1
        %s412 = smul.addr %s411, 16
        %s413 = smul.addr %s412, 8
        %s414 = scalar_lea.vmem %s1, %s413
        %s415 = smul.u32 16, %s24
        %p416 = scmp.lt.s32.totalorder %s415, 31
        %s417 = scalar_select %p416, %s415, 31
        %s418 = smul.addr %s417, 8
        %s419 = scalar_lea.vmem %s8, %s418
        %s420 = smul.u32 16, %s24
        %v421 = vld [vmem:[%s408] sm:$0xff]
        %v422 = vld [vmem:[%s408 + $0x8] sm:$0xff]
        %v423 = vld [vmem:[%s408 + $0x10] sm:$0xff]
        %v424 = vld [vmem:[%s408 + $0x18] sm:$0xff]
        %v425 = vld [vmem:[%s408 + $0x20] sm:$0xff]
        %v426 = vld [vmem:[%s408 + $0x28] sm:$0xff]
        %v427 = vld [vmem:[%s408 + $0x30] sm:$0xff]
        %v428 = vld [vmem:[%s408 + $0x38] sm:$0xff]
        %v429 = vld [vmem:[%s408 + $0x40] sm:$0xff]
        %v430 = vld [vmem:[%s408 + $0x48] sm:$0xff]
        %v431 = vld [vmem:[%s408 + $0x50] sm:$0xff]
        %v432 = vld [vmem:[%s408 + $0x58] sm:$0xff]
        %v433 = vld [vmem:[%s408 + $0x60] sm:$0xff]
        %v434 = vld [vmem:[%s408 + $0x68] sm:$0xff]
        %v435 = vld [vmem:[%s408 + $0x70] sm:$0xff]
        %v436 = vld [vmem:[%s408 + $0x78] sm:$0xff]
        %v437 = vld [vmem:[%s414] sm:$0xff]
        %v438 = vld [vmem:[%s414 + $0x8] sm:$0xff]
        %v439 = vld [vmem:[%s414 + $0x10] sm:$0xff]
        %v440 = vld [vmem:[%s414 + $0x18] sm:$0xff]
        %v441 = vld [vmem:[%s414 + $0x20] sm:$0xff]
        %v442 = vld [vmem:[%s414 + $0x28] sm:$0xff]
        %v443 = vld [vmem:[%s414 + $0x30] sm:$0xff]
        %v444 = vld [vmem:[%s414 + $0x38] sm:$0xff]
        %v445 = vld [vmem:[%s414 + $0x40] sm:$0xff]
        %v446 = vld [vmem:[%s414 + $0x48] sm:$0xff]
        %v447 = vld [vmem:[%s414 + $0x50] sm:$0xff]
        %v448 = vld [vmem:[%s414 + $0x58] sm:$0xff]
        %v449 = vld [vmem:[%s414 + $0x60] sm:$0xff]
        %v450 = vld [vmem:[%s414 + $0x68] sm:$0xff]
        %v451 = vld [vmem:[%s414 + $0x70] sm:$0xff]
        %v452 = vld [vmem:[%s414 + $0x78] sm:$0xff]
        %v453 = vld [vmem:[%s345] sm:$0xff]
        %v454 = vld [vmem:[%s345 + $0x8] sm:$0xff]
        %v455 = vld [vmem:[%s345 + $0x10] sm:$0xff]
        %v456 = vld [vmem:[%s345 + $0x18] sm:$0xff]
        %v457 = vld [vmem:[%s345 + $0x20] sm:$0xff]
        %v458 = vld [vmem:[%s345 + $0x28] sm:$0xff]
        %v459 = vld [vmem:[%s345 + $0x30] sm:$0xff]
        %v460 = vld [vmem:[%s345 + $0x38] sm:$0xff]
        %v461 = vld [vmem:[%s345 + $0x40] sm:$0xff]
        %v462 = vld [vmem:[%s345 + $0x48] sm:$0xff]
        %v463 = vld [vmem:[%s345 + $0x50] sm:$0xff]
        %v464 = vld [vmem:[%s345 + $0x58] sm:$0xff]
        %v465 = vld [vmem:[%s345 + $0x60] sm:$0xff]
        %v466 = vld [vmem:[%s345 + $0x68] sm:$0xff]
        %v467 = vld [vmem:[%s345 + $0x70] sm:$0xff]
        %v468 = vld [vmem:[%s345 + $0x78] sm:$0xff]
        %v469 = vld [vmem:[#allocation4] sm:$0xff]
        %v470 = vld [vmem:[#allocation4 + $0x8] sm:$0xff]
        %v471 = vld [vmem:[%s7] sm:$0x1]
        %v472 = vperm.slane %v471, 0
        %vm473 = vcmask 130048
        %v475 = vsel %vm473, %v421, 0
        %v478 = vsel %vm473, %v422, 0
        %v481 = vsel %vm473, %v423, 0
        %v484 = vsel %vm473, %v424, 0
        %v487 = vsel %vm473, %v425, 0
        %v490 = vsel %vm473, %v426, 0
        %v493 = vsel %vm473, %v427, 0
        %v496 = vsel %vm473, %v428, 0
        %v499 = vsel %vm473, %v429, 0
        %v502 = vsel %vm473, %v430, 0
        %v505 = vsel %vm473, %v431, 0
        %v508 = vsel %vm473, %v432, 0
        %v511 = vsel %vm473, %v433, 0
        %v514 = vsel %vm473, %v434, 0
        %v517 = vsel %vm473, %v435, 0
        %v520 = vsel %vm473, %v436, 0
        %522 = vmatpush.msra.mxu0 0.0
        %523 = vmatpush.msra.mxu0 0.0
        %524 = vmatpush.msra.mxu0 0.0
        %525 = vmatpush.msra.mxu0 0.0
        %526 = vmatpush.msra.mxu0 0.0
        %527 = vmatpush.msra.mxu0 0.0
        %528 = vmatpush.msra.mxu0 0.0
        %529 = vmatpush.msra.mxu0 0.0
        %530 = vmatpush.msra.mxu0 0.0
        %531 = vmatpush.msra.mxu0 0.0
        %532 = vmatpush.msra.mxu0 0.0
        %533 = vmatpush.msra.mxu0 0.0
        %534 = vmatpush.msra.mxu0 0.0
        %535 = vmatpush.msra.mxu0 0.0
        %536 = vmatpush.msra.mxu0 %v470
        %537 = vmatpush.msra.mxu0 %v469
        %538 = vmatmul.f32.gmra.mxu0 %v475
        %v539 = vpop.f32.mrf.mxu0
        %v540 = vadd.f32 %v472, %v539
        %541 = vmatmul.f32.gmra.mxu0 %v478
        %v542 = vpop.f32.mrf.mxu0
        %v543 = vadd.f32 %v472, %v542
        %544 = vmatmul.f32.gmra.mxu0 %v481
        %v545 = vpop.f32.mrf.mxu0
        %v546 = vadd.f32 %v472, %v545
        %547 = vmatmul.f32.gmra.mxu0 %v484
        %v548 = vpop.f32.mrf.mxu0
        %v549 = vadd.f32 %v472, %v548
        %550 = vmatmul.f32.gmra.mxu0 %v487
        %v551 = vpop.f32.mrf.mxu0
        %v552 = vadd.f32 %v472, %v551
        %553 = vmatmul.f32.gmra.mxu0 %v490
        %v554 = vpop.f32.mrf.mxu0
        %v555 = vadd.f32 %v472, %v554
        %556 = vmatmul.f32.gmra.mxu0 %v493
        %v557 = vpop.f32.mrf.mxu0
        %v558 = vadd.f32 %v472, %v557
        %559 = vmatmul.f32.gmra.mxu0 %v496
        %v560 = vpop.f32.mrf.mxu0
        %v561 = vadd.f32 %v472, %v560
        %562 = vmatmul.f32.gmra.mxu0 %v499
        %v563 = vpop.f32.mrf.mxu0
        %v564 = vadd.f32 %v472, %v563
        %565 = vmatmul.f32.gmra.mxu0 %v502
        %v566 = vpop.f32.mrf.mxu0
        %v567 = vadd.f32 %v472, %v566
        %568 = vmatmul.f32.gmra.mxu0 %v505
        %v569 = vpop.f32.mrf.mxu0
        %v570 = vadd.f32 %v472, %v569
        %571 = vmatmul.f32.gmra.mxu0 %v508
        %v572 = vpop.f32.mrf.mxu0
        %v573 = vadd.f32 %v472, %v572
        %574 = vmatmul.f32.gmra.mxu0 %v511
        %v575 = vpop.f32.mrf.mxu0
        %v576 = vadd.f32 %v472, %v575
        %577 = vmatmul.f32.gmra.mxu0 %v514
        %v578 = vpop.f32.mrf.mxu0
        %v579 = vadd.f32 %v472, %v578
        %580 = vmatmul.f32.gmra.mxu0 %v517
        %v581 = vpop.f32.mrf.mxu0
        %v582 = vadd.f32 %v472, %v581
        %583 = vmatmul.f32.gmra.mxu0 %v520
        %v584 = vpop.f32.mrf.mxu0
        %v585 = vadd.f32 %v472, %v584
        %586 = vdwg.mxu0
        %v587 = vld [vmem:[%s7 + $0x1] sm:$0x1]
        %v588 = vld [vmem:[%s7 + $0x2] sm:$0x1]
        %vm589 = vcmask 261120
        %v590 = vsel %vm589, %v540, 0.0
        %591 = vadd.xlane.f32.xlu0 %v590
        %v592 = vpop.xlane.xlu0 %591
        %v593 = vsel %vm589, %v543, 0.0
        %594 = vadd.xlane.f32.xlu0 %v593
        %v595 = vpop.xlane.xlu0 %594
        %v596 = vsel %vm589, %v546, 0.0
        %597 = vadd.xlane.f32.xlu0 %v596
        %v598 = vpop.xlane.xlu0 %597
        %v599 = vsel %vm589, %v549, 0.0
        %600 = vadd.xlane.f32.xlu0 %v599
        %v601 = vpop.xlane.xlu0 %600
        %v602 = vsel %vm589, %v552, 0.0
        %603 = vadd.xlane.f32.xlu0 %v602
        %v604 = vpop.xlane.xlu0 %603
        %v605 = vsel %vm589, %v555, 0.0
        %606 = vadd.xlane.f32.xlu0 %v605
        %v607 = vpop.xlane.xlu0 %606
        %v608 = vsel %vm589, %v558, 0.0
        %609 = vadd.xlane.f32.xlu0 %v608
        %v610 = vpop.xlane.xlu0 %609
        %v611 = vsel %vm589, %v561, 0.0
        %612 = vadd.xlane.f32.xlu0 %v611
        %v613 = vpop.xlane.xlu0 %612
        %v614 = vsel %vm589, %v564, 0.0
        %615 = vadd.xlane.f32.xlu0 %v614
        %v616 = vpop.xlane.xlu0 %615
        %v617 = vsel %vm589, %v567, 0.0
        %618 = vadd.xlane.f32.xlu0 %v617
        %v619 = vpop.xlane.xlu0 %618
        %v620 = vsel %vm589, %v570, 0.0
        %621 = vadd.xlane.f32.xlu0 %v620
        %v622 = vpop.xlane.xlu0 %621
        %v623 = vsel %vm589, %v573, 0.0
        %624 = vadd.xlane.f32.xlu0 %v623
        %v625 = vpop.xlane.xlu0 %624
        %v626 = vsel %vm589, %v576, 0.0
        %627 = vadd.xlane.f32.xlu0 %v626
        %v628 = vpop.xlane.xlu0 %627
        %v629 = vsel %vm589, %v579, 0.0
        %630 = vadd.xlane.f32.xlu0 %v629
        %v631 = vpop.xlane.xlu0 %630
        %v632 = vsel %vm589, %v582, 0.0
        %633 = vadd.xlane.f32.xlu0 %v632
        %v634 = vpop.xlane.xlu0 %633
        %v635 = vsel %vm589, %v585, 0.0
        %636 = vadd.xlane.f32.xlu0 %v635
        %v637 = vpop.xlane.xlu0 %636
        %v638 = vrcp.pop 32.0
        %v639 = vmul.f32 32.0, %v638
        %v640 = vsub.f32 1.0, %v639
        %v641 = vmul.f32 %v638, %v640
        %v642 = vadd.f32 %v638, %v641
        %vm643 = vweird.f32 %v638
        %v644 = vsel %vm643, %v638, %v642
        %v645 = vmul.f32 %v592, %v644
        %v646 = vmul.f32 %v595, %v644
        %v647 = vmul.f32 %v598, %v644
        %v648 = vmul.f32 %v601, %v644
        %v649 = vmul.f32 %v604, %v644
        %v650 = vmul.f32 %v607, %v644
        %v651 = vmul.f32 %v610, %v644
        %v652 = vmul.f32 %v613, %v644
        %v653 = vmul.f32 %v616, %v644
        %v654 = vmul.f32 %v619, %v644
        %v655 = vmul.f32 %v622, %v644
        %v656 = vmul.f32 %v625, %v644
        %v657 = vmul.f32 %v628, %v644
        %v658 = vmul.f32 %v631, %v644
        %v659 = vmul.f32 %v634, %v644
        %v660 = vmul.f32 %v637, %v644
        %v661 = vsub.f32 %v540, %v645
        %v662 = vsub.f32 %v543, %v646
        %v663 = vsub.f32 %v546, %v647
        %v664 = vsub.f32 %v549, %v648
        %v665 = vsub.f32 %v552, %v649
        %v666 = vsub.f32 %v555, %v650
        %v667 = vsub.f32 %v558, %v651
        %v668 = vsub.f32 %v561, %v652
        %v669 = vsub.f32 %v564, %v653
        %v670 = vsub.f32 %v567, %v654
        %v671 = vsub.f32 %v570, %v655
        %v672 = vsub.f32 %v573, %v656
        %v673 = vsub.f32 %v576, %v657
        %v674 = vsub.f32 %v579, %v658
        %v675 = vsub.f32 %v582, %v659
        %v676 = vsub.f32 %v585, %v660
        %v677 = vmul.f32 %v661, %v661
        %v678 = vmul.f32 %v662, %v662
        %v679 = vmul.f32 %v663, %v663
        %v680 = vmul.f32 %v664, %v664
        %v681 = vmul.f32 %v665, %v665
        %v682 = vmul.f32 %v666, %v666
        %v683 = vmul.f32 %v667, %v667
        %v684 = vmul.f32 %v668, %v668
        %v685 = vmul.f32 %v669, %v669
        %v686 = vmul.f32 %v670, %v670
        %v687 = vmul.f32 %v671, %v671
        %v688 = vmul.f32 %v672, %v672
        %v689 = vmul.f32 %v673, %v673
        %v690 = vmul.f32 %v674, %v674
        %v691 = vmul.f32 %v675, %v675
        %v692 = vmul.f32 %v676, %v676
        %v693 = vsel %vm589, %v677, 0.0
        %694 = vadd.xlane.f32.xlu0 %v693
        %v695 = vpop.xlane.xlu0 %694
        %v696 = vsel %vm589, %v678, 0.0
        %697 = vadd.xlane.f32.xlu0 %v696
        %v698 = vpop.xlane.xlu0 %697
        %v699 = vsel %vm589, %v679, 0.0
        %700 = vadd.xlane.f32.xlu0 %v699
        %v701 = vpop.xlane.xlu0 %700
        %v702 = vsel %vm589, %v680, 0.0
        %703 = vadd.xlane.f32.xlu0 %v702
        %v704 = vpop.xlane.xlu0 %703
        %v705 = vsel %vm589, %v681, 0.0
        %706 = vadd.xlane.f32.xlu0 %v705
        %v707 = vpop.xlane.xlu0 %706
        %v708 = vsel %vm589, %v682, 0.0
        %709 = vadd.xlane.f32.xlu0 %v708
        %v710 = vpop.xlane.xlu0 %709
        %v711 = vsel %vm589, %v683, 0.0
        %712 = vadd.xlane.f32.xlu0 %v711
        %v713 = vpop.xlane.xlu0 %712
        %v714 = vsel %vm589, %v684, 0.0
        %715 = vadd.xlane.f32.xlu0 %v714
        %v716 = vpop.xlane.xlu0 %715
        %v717 = vsel %vm589, %v685, 0.0
        %718 = vadd.xlane.f32.xlu0 %v717
        %v719 = vpop.xlane.xlu0 %718
        %v720 = vsel %vm589, %v686, 0.0
        %721 = vadd.xlane.f32.xlu0 %v720
        %v722 = vpop.xlane.xlu0 %721
        %v723 = vsel %vm589, %v687, 0.0
        %724 = vadd.xlane.f32.xlu0 %v723
        %v725 = vpop.xlane.xlu0 %724
        %v726 = vsel %vm589, %v688, 0.0
        %727 = vadd.xlane.f32.xlu0 %v726
        %v728 = vpop.xlane.xlu0 %727
        %v729 = vsel %vm589, %v689, 0.0
        %730 = vadd.xlane.f32.xlu0 %v729
        %v731 = vpop.xlane.xlu0 %730
        %v732 = vsel %vm589, %v690, 0.0
        %733 = vadd.xlane.f32.xlu0 %v732
        %v734 = vpop.xlane.xlu0 %733
        %v735 = vsel %vm589, %v691, 0.0
        %736 = vadd.xlane.f32.xlu0 %v735
        %v737 = vpop.xlane.xlu0 %736
        %v738 = vsel %vm589, %v692, 0.0
        %739 = vadd.xlane.f32.xlu0 %v738
        %v740 = vpop.xlane.xlu0 %739
        %v741 = vmul.f32 %v695, %v644
        %v742 = vmul.f32 %v698, %v644
        %v743 = vmul.f32 %v701, %v644
        %v744 = vmul.f32 %v704, %v644
        %v745 = vmul.f32 %v707, %v644
        %v746 = vmul.f32 %v710, %v644
        %v747 = vmul.f32 %v713, %v644
        %v748 = vmul.f32 %v716, %v644
        %v749 = vmul.f32 %v719, %v644
        %v750 = vmul.f32 %v722, %v644
        %v751 = vmul.f32 %v725, %v644
        %v752 = vmul.f32 %v728, %v644
        %v753 = vmul.f32 %v731, %v644
        %v754 = vmul.f32 %v734, %v644
        %v755 = vmul.f32 %v737, %v644
        %v756 = vmul.f32 %v740, %v644
        %v757 = vadd.f32 %v741, 1e-05
        %v758 = vadd.f32 %v742, 1e-05
        %v759 = vadd.f32 %v743, 1e-05
        %v760 = vadd.f32 %v744, 1e-05
        %v761 = vadd.f32 %v745, 1e-05
        %v762 = vadd.f32 %v746, 1e-05
        %v763 = vadd.f32 %v747, 1e-05
        %v764 = vadd.f32 %v748, 1e-05
        %v765 = vadd.f32 %v749, 1e-05
        %v766 = vadd.f32 %v750, 1e-05
        %v767 = vadd.f32 %v751, 1e-05
        %v768 = vadd.f32 %v752, 1e-05
        %v769 = vadd.f32 %v753, 1e-05
        %v770 = vadd.f32 %v754, 1e-05
        %v771 = vadd.f32 %v755, 1e-05
        %v772 = vadd.f32 %v756, 1e-05
        %v773 = vrsqrt.pop %v757
        %v774 = vmul.f32 %v773, %v757
        %v775 = vmul.f32 %v774, %v773
        %v776 = vmul.f32 0.5, %v775
        %v777 = vsub.f32 1.5, %v776
        %v778 = vmul.f32 %v773, %v777
        %vm779 = vweird.f32 %v757
        %vm780 = vweird.f32 %v773
        %vm781 = vmor %vm779, %vm780
        %v782 = vsel %vm781, %v773, %v778
        %v783 = vrsqrt.pop %v758
        %v784 = vmul.f32 %v783, %v758
        %v785 = vmul.f32 %v784, %v783
        %v786 = vmul.f32 0.5, %v785
        %v787 = vsub.f32 1.5, %v786
        %v788 = vmul.f32 %v783, %v787
        %vm789 = vweird.f32 %v758
        %vm790 = vweird.f32 %v783
        %vm791 = vmor %vm789, %vm790
        %v792 = vsel %vm791, %v783, %v788
        %v793 = vrsqrt.pop %v759
        %v794 = vmul.f32 %v793, %v759
        %v795 = vmul.f32 %v794, %v793
        %v796 = vmul.f32 0.5, %v795
        %v797 = vsub.f32 1.5, %v796
        %v798 = vmul.f32 %v793, %v797
        %vm799 = vweird.f32 %v759
        %vm800 = vweird.f32 %v793
        %vm801 = vmor %vm799, %vm800
        %v802 = vsel %vm801, %v793, %v798
        %v803 = vrsqrt.pop %v760
        %v804 = vmul.f32 %v803, %v760
        %v805 = vmul.f32 %v804, %v803
        %v806 = vmul.f32 0.5, %v805
        %v807 = vsub.f32 1.5, %v806
        %v808 = vmul.f32 %v803, %v807
        %vm809 = vweird.f32 %v760
        %vm810 = vweird.f32 %v803
        %vm811 = vmor %vm809, %vm810
        %v812 = vsel %vm811, %v803, %v808
        %v813 = vrsqrt.pop %v761
        %v814 = vmul.f32 %v813, %v761
        %v815 = vmul.f32 %v814, %v813
        %v816 = vmul.f32 0.5, %v815
        %v817 = vsub.f32 1.5, %v816
        %v818 = vmul.f32 %v813, %v817
        %vm819 = vweird.f32 %v761
        %vm820 = vweird.f32 %v813
        %vm821 = vmor %vm819, %vm820
        %v822 = vsel %vm821, %v813, %v818
        %v823 = vrsqrt.pop %v762
        %v824 = vmul.f32 %v823, %v762
        %v825 = vmul.f32 %v824, %v823
        %v826 = vmul.f32 0.5, %v825
        %v827 = vsub.f32 1.5, %v826
        %v828 = vmul.f32 %v823, %v827
        %vm829 = vweird.f32 %v762
        %vm830 = vweird.f32 %v823
        %vm831 = vmor %vm829, %vm830
        %v832 = vsel %vm831, %v823, %v828
        %v833 = vrsqrt.pop %v763
        %v834 = vmul.f32 %v833, %v763
        %v835 = vmul.f32 %v834, %v833
        %v836 = vmul.f32 0.5, %v835
        %v837 = vsub.f32 1.5, %v836
        %v838 = vmul.f32 %v833, %v837
        %vm839 = vweird.f32 %v763
        %vm840 = vweird.f32 %v833
        %vm841 = vmor %vm839, %vm840
        %v842 = vsel %vm841, %v833, %v838
        %v843 = vrsqrt.pop %v764
        %v844 = vmul.f32 %v843, %v764
        %v845 = vmul.f32 %v844, %v843
        %v846 = vmul.f32 0.5, %v845
        %v847 = vsub.f32 1.5, %v846
        %v848 = vmul.f32 %v843, %v847
        %vm849 = vweird.f32 %v764
        %vm850 = vweird.f32 %v843
        %vm851 = vmor %vm849, %vm850
        %v852 = vsel %vm851, %v843, %v848
        %v853 = vrsqrt.pop %v765
        %v854 = vmul.f32 %v853, %v765
        %v855 = vmul.f32 %v854, %v853
        %v856 = vmul.f32 0.5, %v855
        %v857 = vsub.f32 1.5, %v856
        %v858 = vmul.f32 %v853, %v857
        %vm859 = vweird.f32 %v765
        %vm860 = vweird.f32 %v853
        %vm861 = vmor %vm859, %vm860
        %v862 = vsel %vm861, %v853, %v858
        %v863 = vrsqrt.pop %v766
        %v864 = vmul.f32 %v863, %v766
        %v865 = vmul.f32 %v864, %v863
        %v866 = vmul.f32 0.5, %v865
        %v867 = vsub.f32 1.5, %v866
        %v868 = vmul.f32 %v863, %v867
        %vm869 = vweird.f32 %v766
        %vm870 = vweird.f32 %v863
        %vm871 = vmor %vm869, %vm870
        %v872 = vsel %vm871, %v863, %v868
        %v873 = vrsqrt.pop %v767
        %v874 = vmul.f32 %v873, %v767
        %v875 = vmul.f32 %v874, %v873
        %v876 = vmul.f32 0.5, %v875
        %v877 = vsub.f32 1.5, %v876
        %v878 = vmul.f32 %v873, %v877
        %vm879 = vweird.f32 %v767
        %vm880 = vweird.f32 %v873
        %vm881 = vmor %vm879, %vm880
        %v882 = vsel %vm881, %v873, %v878
        %v883 = vrsqrt.pop %v768
        %v884 = vmul.f32 %v883, %v768
        %v885 = vmul.f32 %v884, %v883
        %v886 = vmul.f32 0.5, %v885
        %v887 = vsub.f32 1.5, %v886
        %v888 = vmul.f32 %v883, %v887
        %vm889 = vweird.f32 %v768
        %vm890 = vweird.f32 %v883
        %vm891 = vmor %vm889, %vm890
        %v892 = vsel %vm891, %v883, %v888
        %v893 = vrsqrt.pop %v769
        %v894 = vmul.f32 %v893, %v769
        %v895 = vmul.f32 %v894, %v893
        %v896 = vmul.f32 0.5, %v895
        %v897 = vsub.f32 1.5, %v896
        %v898 = vmul.f32 %v893, %v897
        %vm899 = vweird.f32 %v769
        %vm900 = vweird.f32 %v893
        %vm901 = vmor %vm899, %vm900
        %v902 = vsel %vm901, %v893, %v898
        %v903 = vrsqrt.pop %v770
        %v904 = vmul.f32 %v903, %v770
        %v905 = vmul.f32 %v904, %v903
        %v906 = vmul.f32 0.5, %v905
        %v907 = vsub.f32 1.5, %v906
        %v908 = vmul.f32 %v903, %v907
        %vm909 = vweird.f32 %v770
        %vm910 = vweird.f32 %v903
        %vm911 = vmor %vm909, %vm910
        %v912 = vsel %vm911, %v903, %v908
        %v913 = vrsqrt.pop %v771
        %v914 = vmul.f32 %v913, %v771
        %v915 = vmul.f32 %v914, %v913
        %v916 = vmul.f32 0.5, %v915
        %v917 = vsub.f32 1.5, %v916
        %v918 = vmul.f32 %v913, %v917
        %vm919 = vweird.f32 %v771
        %vm920 = vweird.f32 %v913
        %vm921 = vmor %vm919, %vm920
        %v922 = vsel %vm921, %v913, %v918
        %v923 = vrsqrt.pop %v772
        %v924 = vmul.f32 %v923, %v772
        %v925 = vmul.f32 %v924, %v923
        %v926 = vmul.f32 0.5, %v925
        %v927 = vsub.f32 1.5, %v926
        %v928 = vmul.f32 %v923, %v927
        %vm929 = vweird.f32 %v772
        %vm930 = vweird.f32 %v923
        %vm931 = vmor %vm929, %vm930
        %v932 = vsel %vm931, %v923, %v928
        %v933 = vmul.f32 %v661, %v782
        %v934 = vmul.f32 %v662, %v792
        %v935 = vmul.f32 %v663, %v802
        %v936 = vmul.f32 %v664, %v812
        %v937 = vmul.f32 %v665, %v822
        %v938 = vmul.f32 %v666, %v832
        %v939 = vmul.f32 %v667, %v842
        %v940 = vmul.f32 %v668, %v852
        %v941 = vmul.f32 %v669, %v862
        %v942 = vmul.f32 %v670, %v872
        %v943 = vmul.f32 %v671, %v882
        %v944 = vmul.f32 %v672, %v892
        %v945 = vmul.f32 %v673, %v902
        %v946 = vmul.f32 %v674, %v912
        %v947 = vmul.f32 %v675, %v922
        %v948 = vmul.f32 %v676, %v932
        %v949 = vperm.slane %v587, 0
        %v950 = vmul.f32 %v933, %v949
        %v951 = vmul.f32 %v934, %v949
        %v952 = vmul.f32 %v935, %v949
        %v953 = vmul.f32 %v936, %v949
        %v954 = vmul.f32 %v937, %v949
        %v955 = vmul.f32 %v938, %v949
        %v956 = vmul.f32 %v939, %v949
        %v957 = vmul.f32 %v940, %v949
        %v958 = vmul.f32 %v941, %v949
        %v959 = vmul.f32 %v942, %v949
        %v960 = vmul.f32 %v943, %v949
        %v961 = vmul.f32 %v944, %v949
        %v962 = vmul.f32 %v945, %v949
        %v963 = vmul.f32 %v946, %v949
        %v964 = vmul.f32 %v947, %v949
        %v965 = vmul.f32 %v948, %v949
        %v966 = vperm.slane %v588, 0
        %v967 = vadd.f32 %v950, %v966
        %v968 = vadd.f32 %v951, %v966
        %v969 = vadd.f32 %v952, %v966
        %v970 = vadd.f32 %v953, %v966
        %v971 = vadd.f32 %v954, %v966
        %v972 = vadd.f32 %v955, %v966
        %v973 = vadd.f32 %v956, %v966
        %v974 = vadd.f32 %v957, %v966
        %v975 = vadd.f32 %v958, %v966
        %v976 = vadd.f32 %v959, %v966
        %v977 = vadd.f32 %v960, %v966
        %v978 = vadd.f32 %v961, %v966
        %v979 = vadd.f32 %v962, %v966
        %v980 = vadd.f32 %v963, %v966
        %v981 = vadd.f32 %v964, %v966
        %v982 = vadd.f32 %v965, %v966
        %v983 = vld [vmem:[#allocation6] sm:$0xff]
        %v984 = vld [vmem:[#allocation6 + $0x8] sm:$0xff]
        %v985 = vld [vmem:[#allocation6 + $0x10] sm:$0xff]
        %v986 = vld [vmem:[#allocation6 + $0x18] sm:$0xff]
        %v987 = vld [vmem:[#allocation6 + $0x20] sm:$0xff]
        %v988 = vld [vmem:[#allocation6 + $0x28] sm:$0xff]
        %v989 = vld [vmem:[#allocation6 + $0x30] sm:$0xff]
        %v990 = vld [vmem:[#allocation6 + $0x38] sm:$0xff]
        %v991 = vld [vmem:[%s5] ss:$2 sm:$0x3]
        %v993 = vperm.slane %v991, 0
        %v994 = vperm.slane %v991, 1
        %v998 = vsel %vm589, %v967, 0
        %v1001 = vsel %vm589, %v968, 0
        %v1004 = vsel %vm589, %v969, 0
        %v1007 = vsel %vm589, %v970, 0
        %v1010 = vsel %vm589, %v971, 0
        %v1013 = vsel %vm589, %v972, 0
        %v1016 = vsel %vm589, %v973, 0
        %v1019 = vsel %vm589, %v974, 0
        %v1022 = vsel %vm589, %v975, 0
        %v1025 = vsel %vm589, %v976, 0
        %v1028 = vsel %vm589, %v977, 0
        %v1031 = vsel %vm589, %v978, 0
        %v1034 = vsel %vm589, %v979, 0
        %v1037 = vsel %vm589, %v980, 0
        %v1040 = vsel %vm589, %v981, 0
        %v1043 = vsel %vm589, %v982, 0
        %1045 = vmatpush.msra.mxu0 0.0
        %1046 = vmatpush.msra.mxu0 0.0
        %1047 = vmatpush.msra.mxu0 0.0
        %1048 = vmatpush.msra.mxu0 0.0
        %1049 = vmatpush.msra.mxu0 0.0
        %1050 = vmatpush.msra.mxu0 0.0
        %1051 = vmatpush.msra.mxu0 0.0
        %1052 = vmatpush.msra.mxu0 0.0
        %1053 = vmatpush.msra.mxu0 0.0
        %1054 = vmatpush.msra.mxu0 0.0
        %1055 = vmatpush.msra.mxu0 0.0
        %1056 = vmatpush.msra.mxu0 0.0
        %1057 = vmatpush.msra.mxu0 %v989
        %1058 = vmatpush.msra.mxu0 %v987
        %1059 = vmatpush.msra.mxu0 %v985
        %1060 = vmatpush.msra.mxu0 %v983
        %1061 = vmatmul.f32.gmra.mxu0 %v998
        %v1062 = vpop.f32.mrf.mxu0
        %v1063 = vadd.f32 %v993, %v1062
        %1064 = vmatmul.f32.gmra.mxu0 %v1001
        %v1065 = vpop.f32.mrf.mxu0
        %v1066 = vadd.f32 %v993, %v1065
        %1067 = vmatmul.f32.gmra.mxu0 %v1004
        %v1068 = vpop.f32.mrf.mxu0
        %v1069 = vadd.f32 %v993, %v1068
        %1070 = vmatmul.f32.gmra.mxu0 %v1007
        %v1071 = vpop.f32.mrf.mxu0
        %v1072 = vadd.f32 %v993, %v1071
        %1073 = vmatmul.f32.gmra.mxu0 %v1010
        %v1074 = vpop.f32.mrf.mxu0
        %v1075 = vadd.f32 %v993, %v1074
        %1076 = vmatmul.f32.gmra.mxu0 %v1013
        %v1077 = vpop.f32.mrf.mxu0
        %v1078 = vadd.f32 %v993, %v1077
        %1079 = vmatmul.f32.gmra.mxu0 %v1016
        %v1080 = vpop.f32.mrf.mxu0
        %v1081 = vadd.f32 %v993, %v1080
        %1082 = vmatmul.f32.gmra.mxu0 %v1019
        %v1083 = vpop.f32.mrf.mxu0
        %v1084 = vadd.f32 %v993, %v1083
        %1085 = vmatmul.f32.gmra.mxu0 %v1022
        %v1086 = vpop.f32.mrf.mxu0
        %v1087 = vadd.f32 %v993, %v1086
        %1088 = vmatmul.f32.gmra.mxu0 %v1025
        %v1089 = vpop.f32.mrf.mxu0
        %v1090 = vadd.f32 %v993, %v1089
        %1091 = vmatmul.f32.gmra.mxu0 %v1028
        %v1092 = vpop.f32.mrf.mxu0
        %v1093 = vadd.f32 %v993, %v1092
        %1094 = vmatmul.f32.gmra.mxu0 %v1031
        %v1095 = vpop.f32.mrf.mxu0
        %v1096 = vadd.f32 %v993, %v1095
        %1097 = vmatmul.f32.gmra.mxu0 %v1034
        %v1098 = vpop.f32.mrf.mxu0
        %v1099 = vadd.f32 %v993, %v1098
        %1100 = vmatmul.f32.gmra.mxu0 %v1037
        %v1101 = vpop.f32.mrf.mxu0
        %v1102 = vadd.f32 %v993, %v1101
        %1103 = vmatmul.f32.gmra.mxu0 %v1040
        %v1104 = vpop.f32.mrf.mxu0
        %v1105 = vadd.f32 %v993, %v1104
        %1106 = vmatmul.f32.gmra.mxu0 %v1043
        %v1107 = vpop.f32.mrf.mxu0
        %v1108 = vadd.f32 %v993, %v1107
        %1109 = vdwg.mxu0
        %1110 = vmatpush.msra.mxu0 0.0
        %1111 = vmatpush.msra.mxu0 0.0
        %1112 = vmatpush.msra.mxu0 0.0
        %1113 = vmatpush.msra.mxu0 0.0
        %1114 = vmatpush.msra.mxu0 0.0
        %1115 = vmatpush.msra.mxu0 0.0
        %1116 = vmatpush.msra.mxu0 0.0
        %1117 = vmatpush.msra.mxu0 0.0
        %1118 = vmatpush.msra.mxu0 0.0
        %1119 = vmatpush.msra.mxu0 0.0
        %1120 = vmatpush.msra.mxu0 0.0
        %1121 = vmatpush.msra.mxu0 0.0
        %1122 = vmatpush.msra.mxu0 %v990
        %1123 = vmatpush.msra.mxu0 %v988
        %1124 = vmatpush.msra.mxu0 %v986
        %1125 = vmatpush.msra.mxu0 %v984
        %1126 = vmatmul.f32.gmra.mxu0 %v998
        %v1127 = vpop.f32.mrf.mxu0
        %v1128 = vadd.f32 %v994, %v1127
        %1129 = vmatmul.f32.gmra.mxu0 %v1001
        %v1130 = vpop.f32.mrf.mxu0
        %v1131 = vadd.f32 %v994, %v1130
        %1132 = vmatmul.f32.gmra.mxu0 %v1004
        %v1133 = vpop.f32.mrf.mxu0
        %v1134 = vadd.f32 %v994, %v1133
        %1135 = vmatmul.f32.gmra.mxu0 %v1007
        %v1136 = vpop.f32.mrf.mxu0
        %v1137 = vadd.f32 %v994, %v1136
        %1138 = vmatmul.f32.gmra.mxu0 %v1010
        %v1139 = vpop.f32.mrf.mxu0
        %v1140 = vadd.f32 %v994, %v1139
        %1141 = vmatmul.f32.gmra.mxu0 %v1013
        %v1142 = vpop.f32.mrf.mxu0
        %v1143 = vadd.f32 %v994, %v1142
        %1144 = vmatmul.f32.gmra.mxu0 %v1016
        %v1145 = vpop.f32.mrf.mxu0
        %v1146 = vadd.f32 %v994, %v1145
        %1147 = vmatmul.f32.gmra.mxu0 %v1019
        %v1148 = vpop.f32.mrf.mxu0
        %v1149 = vadd.f32 %v994, %v1148
        %1150 = vmatmul.f32.gmra.mxu0 %v1022
        %v1151 = vpop.f32.mrf.mxu0
        %v1152 = vadd.f32 %v994, %v1151
        %1153 = vmatmul.f32.gmra.mxu0 %v1025
        %v1154 = vpop.f32.mrf.mxu0
        %v1155 = vadd.f32 %v994, %v1154
        %1156 = vmatmul.f32.gmra.mxu0 %v1028
        %v1157 = vpop.f32.mrf.mxu0
        %v1158 = vadd.f32 %v994, %v1157
        %1159 = vmatmul.f32.gmra.mxu0 %v1031
        %v1160 = vpop.f32.mrf.mxu0
        %v1161 = vadd.f32 %v994, %v1160
        %1162 = vmatmul.f32.gmra.mxu0 %v1034
        %v1163 = vpop.f32.mrf.mxu0
        %v1164 = vadd.f32 %v994, %v1163
        %1165 = vmatmul.f32.gmra.mxu0 %v1037
        %v1166 = vpop.f32.mrf.mxu0
        %v1167 = vadd.f32 %v994, %v1166
        %1168 = vmatmul.f32.gmra.mxu0 %v1040
        %v1169 = vpop.f32.mrf.mxu0
        %v1170 = vadd.f32 %v994, %v1169
        %1171 = vmatmul.f32.gmra.mxu0 %v1043
        %v1172 = vpop.f32.mrf.mxu0
        %v1173 = vadd.f32 %v994, %v1172
        %1174 = vdwg.mxu0
        %1191 = vrot.lane.b32.xlu0 %v1063, 96
        %v1192 = vpop.permute.xlu0 %1191
        %1193 = vrot.lane.b32.xlu0 %v1066, 96
        %v1194 = vpop.permute.xlu0 %1193
        %1195 = vrot.lane.b32.xlu0 %v1069, 96
        %v1196 = vpop.permute.xlu0 %1195
        %1197 = vrot.lane.b32.xlu0 %v1072, 96
        %v1198 = vpop.permute.xlu0 %1197
        %1199 = vrot.lane.b32.xlu0 %v1075, 96
        %v1200 = vpop.permute.xlu0 %1199
        %1201 = vrot.lane.b32.xlu0 %v1078, 96
        %v1202 = vpop.permute.xlu0 %1201
        %1203 = vrot.lane.b32.xlu0 %v1081, 96
        %v1204 = vpop.permute.xlu0 %1203
        %1205 = vrot.lane.b32.xlu0 %v1084, 96
        %v1206 = vpop.permute.xlu0 %1205
        %1207 = vrot.lane.b32.xlu0 %v1087, 96
        %v1208 = vpop.permute.xlu0 %1207
        %1209 = vrot.lane.b32.xlu0 %v1090, 96
        %v1210 = vpop.permute.xlu0 %1209
        %1211 = vrot.lane.b32.xlu0 %v1093, 96
        %v1212 = vpop.permute.xlu0 %1211
        %1213 = vrot.lane.b32.xlu0 %v1096, 96
        %v1214 = vpop.permute.xlu0 %1213
        %1215 = vrot.lane.b32.xlu0 %v1099, 96
        %v1216 = vpop.permute.xlu0 %1215
        %1217 = vrot.lane.b32.xlu0 %v1102, 96
        %v1218 = vpop.permute.xlu0 %1217
        %1219 = vrot.lane.b32.xlu0 %v1105, 96
        %v1220 = vpop.permute.xlu0 %1219
        %1221 = vrot.lane.b32.xlu0 %v1108, 96
        %v1222 = vpop.permute.xlu0 %1221
        %vm1223 = vcmask 64512
        %v1224 = vsel %vm1223, %v1063, 0
        %v1226 = vsel %vm1223, %v1066, 0
        %v1228 = vsel %vm1223, %v1069, 0
        %v1230 = vsel %vm1223, %v1072, 0
        %v1232 = vsel %vm1223, %v1075, 0
        %v1234 = vsel %vm1223, %v1078, 0
        %v1236 = vsel %vm1223, %v1081, 0
        %v1238 = vsel %vm1223, %v1084, 0
        %v1240 = vsel %vm1223, %v1087, 0
        %v1242 = vsel %vm1223, %v1090, 0
        %v1244 = vsel %vm1223, %v1093, 0
        %v1246 = vsel %vm1223, %v1096, 0
        %v1248 = vsel %vm1223, %v1099, 0
        %v1250 = vsel %vm1223, %v1102, 0
        %v1252 = vsel %vm1223, %v1105, 0
        %v1254 = vsel %vm1223, %v1108, 0
        %v1256 = vsel %vm1223, %v1192, 0
        %v1258 = vsel %vm1223, %v1194, 0
        %v1260 = vsel %vm1223, %v1196, 0
        %v1262 = vsel %vm1223, %v1198, 0
        %v1264 = vsel %vm1223, %v1200, 0
        %v1266 = vsel %vm1223, %v1202, 0
        %v1268 = vsel %vm1223, %v1204, 0
        %v1270 = vsel %vm1223, %v1206, 0
        %v1272 = vsel %vm1223, %v1208, 0
        %v1274 = vsel %vm1223, %v1210, 0
        %v1276 = vsel %vm1223, %v1212, 0
        %v1278 = vsel %vm1223, %v1214, 0
        %v1280 = vsel %vm1223, %v1216, 0
        %v1282 = vsel %vm1223, %v1218, 0
        %v1284 = vsel %vm1223, %v1220, 0
        %v1286 = vsel %vm1223, %v1222, 0
        %1288 = vmatpush.xpose.msra.mxu0 %v1286
        %1289 = vmatpush.xpose.msra.mxu0 %v1284
        %1290 = vmatpush.xpose.msra.mxu0 %v1282
        %1291 = vmatpush.xpose.msra.mxu0 %v1280
        %1292 = vmatpush.xpose.msra.mxu0 %v1278
        %1293 = vmatpush.xpose.msra.mxu0 %v1276
        %1294 = vmatpush.xpose.msra.mxu0 %v1274
        %1295 = vmatpush.xpose.msra.mxu0 %v1272
        %1296 = vmatpush.xpose.msra.mxu0 %v1270
        %1297 = vmatpush.xpose.msra.mxu0 %v1268
        %1298 = vmatpush.xpose.msra.mxu0 %v1266
        %1299 = vmatpush.xpose.msra.mxu0 %v1264
        %1300 = vmatpush.xpose.msra.mxu0 %v1262
        %1301 = vmatpush.xpose.msra.mxu0 %v1260
        %1302 = vmatpush.xpose.msra.mxu0 %v1258
        %1303 = vmatpush.xpose.msra.mxu0 %v1256
        %1304 = vmatmul.f32.gmra.mxu0 %v1224
        %v1305 = vpop.f32.mrf.mxu0
        %v1306 = vadd.f32 %v437, %v1305
        %1307 = vmatmul.f32.gmra.mxu0 %v1226
        %v1308 = vpop.f32.mrf.mxu0
        %v1309 = vadd.f32 %v438, %v1308
        %1310 = vmatmul.f32.gmra.mxu0 %v1228
        %v1311 = vpop.f32.mrf.mxu0
        %v1312 = vadd.f32 %v439, %v1311
        %1313 = vmatmul.f32.gmra.mxu0 %v1230
        %v1314 = vpop.f32.mrf.mxu0
        %v1315 = vadd.f32 %v440, %v1314
        %1316 = vmatmul.f32.gmra.mxu0 %v1232
        %v1317 = vpop.f32.mrf.mxu0
        %v1318 = vadd.f32 %v441, %v1317
        %1319 = vmatmul.f32.gmra.mxu0 %v1234
        %v1320 = vpop.f32.mrf.mxu0
        %v1321 = vadd.f32 %v442, %v1320
        %1322 = vmatmul.f32.gmra.mxu0 %v1236
        %v1323 = vpop.f32.mrf.mxu0
        %v1324 = vadd.f32 %v443, %v1323
        %1325 = vmatmul.f32.gmra.mxu0 %v1238
        %v1326 = vpop.f32.mrf.mxu0
        %v1327 = vadd.f32 %v444, %v1326
        %1328 = vmatmul.f32.gmra.mxu0 %v1240
        %v1329 = vpop.f32.mrf.mxu0
        %v1330 = vadd.f32 %v445, %v1329
        %1331 = vmatmul.f32.gmra.mxu0 %v1242
        %v1332 = vpop.f32.mrf.mxu0
        %v1333 = vadd.f32 %v446, %v1332
        %1334 = vmatmul.f32.gmra.mxu0 %v1244
        %v1335 = vpop.f32.mrf.mxu0
        %v1336 = vadd.f32 %v447, %v1335
        %1337 = vmatmul.f32.gmra.mxu0 %v1246
        %v1338 = vpop.f32.mrf.mxu0
        %v1339 = vadd.f32 %v448, %v1338
        %1340 = vmatmul.f32.gmra.mxu0 %v1248
        %v1341 = vpop.f32.mrf.mxu0
        %v1342 = vadd.f32 %v449, %v1341
        %1343 = vmatmul.f32.gmra.mxu0 %v1250
        %v1344 = vpop.f32.mrf.mxu0
        %v1345 = vadd.f32 %v450, %v1344
        %1346 = vmatmul.f32.gmra.mxu0 %v1252
        %v1347 = vpop.f32.mrf.mxu0
        %v1348 = vadd.f32 %v451, %v1347
        %1349 = vmatmul.f32.gmra.mxu0 %v1254
        %v1350 = vpop.f32.mrf.mxu0
        %v1351 = vadd.f32 %v452, %v1350
        %1352 = vdwg.mxu0
        %1353 = vmax.xlane.f32.xlu0 %v1306
        %v1354 = vpop.xlane.xlu0 %1353
        %1355 = vmax.xlane.f32.xlu0 %v1309
        %v1356 = vpop.xlane.xlu0 %1355
        %1357 = vmax.xlane.f32.xlu0 %v1312
        %v1358 = vpop.xlane.xlu0 %1357
        %1359 = vmax.xlane.f32.xlu0 %v1315
        %v1360 = vpop.xlane.xlu0 %1359
        %1361 = vmax.xlane.f32.xlu0 %v1318
        %v1362 = vpop.xlane.xlu0 %1361
        %1363 = vmax.xlane.f32.xlu0 %v1321
        %v1364 = vpop.xlane.xlu0 %1363
        %1365 = vmax.xlane.f32.xlu0 %v1324
        %v1366 = vpop.xlane.xlu0 %1365
        %1367 = vmax.xlane.f32.xlu0 %v1327
        %v1368 = vpop.xlane.xlu0 %1367
        %1369 = vmax.xlane.f32.xlu0 %v1330
        %v1370 = vpop.xlane.xlu0 %1369
        %1371 = vmax.xlane.f32.xlu0 %v1333
        %v1372 = vpop.xlane.xlu0 %1371
        %1373 = vmax.xlane.f32.xlu0 %v1336
        %v1374 = vpop.xlane.xlu0 %1373
        %1375 = vmax.xlane.f32.xlu0 %v1339
        %v1376 = vpop.xlane.xlu0 %1375
        %1377 = vmax.xlane.f32.xlu0 %v1342
        %v1378 = vpop.xlane.xlu0 %1377
        %1379 = vmax.xlane.f32.xlu0 %v1345
        %v1380 = vpop.xlane.xlu0 %1379
        %1381 = vmax.xlane.f32.xlu0 %v1348
        %v1382 = vpop.xlane.xlu0 %1381
        %1383 = vmax.xlane.f32.xlu0 %v1351
        %v1384 = vpop.xlane.xlu0 %1383
        %v1385 = vsub.f32 %v1306, %v1354
        %v1386 = vsub.f32 %v1309, %v1356
        %v1387 = vsub.f32 %v1312, %v1358
        %v1388 = vsub.f32 %v1315, %v1360
        %v1389 = vsub.f32 %v1318, %v1362
        %v1390 = vsub.f32 %v1321, %v1364
        %v1391 = vsub.f32 %v1324, %v1366
        %v1392 = vsub.f32 %v1327, %v1368
        %v1393 = vsub.f32 %v1330, %v1370
        %v1394 = vsub.f32 %v1333, %v1372
        %v1395 = vsub.f32 %v1336, %v1374
        %v1396 = vsub.f32 %v1339, %v1376
        %v1397 = vsub.f32 %v1342, %v1378
        %v1398 = vsub.f32 %v1345, %v1380
        %v1399 = vsub.f32 %v1348, %v1382
        %v1400 = vsub.f32 %v1351, %v1384
        %v1401 = vmul.f32 %v1385, 1.442695
        %v1402 = vpow.pop %v1401
        %v1403 = vmul.f32 %v1386, 1.442695
        %v1404 = vpow.pop %v1403
        %v1405 = vmul.f32 %v1387, 1.442695
        %v1406 = vpow.pop %v1405
        %v1407 = vmul.f32 %v1388, 1.442695
        %v1408 = vpow.pop %v1407
        %v1409 = vmul.f32 %v1389, 1.442695
        %v1410 = vpow.pop %v1409
        %v1411 = vmul.f32 %v1390, 1.442695
        %v1412 = vpow.pop %v1411
        %v1413 = vmul.f32 %v1391, 1.442695
        %v1414 = vpow.pop %v1413
        %v1415 = vmul.f32 %v1392, 1.442695
        %v1416 = vpow.pop %v1415
        %v1417 = vmul.f32 %v1393, 1.442695
        %v1418 = vpow.pop %v1417
        %v1419 = vmul.f32 %v1394, 1.442695
        %v1420 = vpow.pop %v1419
        %v1421 = vmul.f32 %v1395, 1.442695
        %v1422 = vpow.pop %v1421
        %v1423 = vmul.f32 %v1396, 1.442695
        %v1424 = vpow.pop %v1423
        %v1425 = vmul.f32 %v1397, 1.442695
        %v1426 = vpow.pop %v1425
        %v1427 = vmul.f32 %v1398, 1.442695
        %v1428 = vpow.pop %v1427
        %v1429 = vmul.f32 %v1399, 1.442695
        %v1430 = vpow.pop %v1429
        %v1431 = vmul.f32 %v1400, 1.442695
        %v1432 = vpow.pop %v1431
        %1433 = vadd.xlane.f32.xlu0 %v1402
        %v1434 = vpop.xlane.xlu0 %1433
        %1435 = vadd.xlane.f32.xlu0 %v1404
        %v1436 = vpop.xlane.xlu0 %1435
        %1437 = vadd.xlane.f32.xlu0 %v1406
        %v1438 = vpop.xlane.xlu0 %1437
        %1439 = vadd.xlane.f32.xlu0 %v1408
        %v1440 = vpop.xlane.xlu0 %1439
        %1441 = vadd.xlane.f32.xlu0 %v1410
        %v1442 = vpop.xlane.xlu0 %1441
        %1443 = vadd.xlane.f32.xlu0 %v1412
        %v1444 = vpop.xlane.xlu0 %1443
        %1445 = vadd.xlane.f32.xlu0 %v1414
        %v1446 = vpop.xlane.xlu0 %1445
        %1447 = vadd.xlane.f32.xlu0 %v1416
        %v1448 = vpop.xlane.xlu0 %1447
        %1449 = vadd.xlane.f32.xlu0 %v1418
        %v1450 = vpop.xlane.xlu0 %1449
        %1451 = vadd.xlane.f32.xlu0 %v1420
        %v1452 = vpop.xlane.xlu0 %1451
        %1453 = vadd.xlane.f32.xlu0 %v1422
        %v1454 = vpop.xlane.xlu0 %1453
        %1455 = vadd.xlane.f32.xlu0 %v1424
        %v1456 = vpop.xlane.xlu0 %1455
        %1457 = vadd.xlane.f32.xlu0 %v1426
        %v1458 = vpop.xlane.xlu0 %1457
        %1459 = vadd.xlane.f32.xlu0 %v1428
        %v1460 = vpop.xlane.xlu0 %1459
        %1461 = vadd.xlane.f32.xlu0 %v1430
        %v1462 = vpop.xlane.xlu0 %1461
        %1463 = vadd.xlane.f32.xlu0 %v1432
        %v1464 = vpop.xlane.xlu0 %1463
        %v1465 = vrcp.pop %v1434
        %v1466 = vrcp.pop %v1436
        %v1467 = vrcp.pop %v1438
        %v1468 = vrcp.pop %v1440
        %v1469 = vrcp.pop %v1442
        %v1470 = vrcp.pop %v1444
        %v1471 = vrcp.pop %v1446
        %v1472 = vrcp.pop %v1448
        %v1473 = vrcp.pop %v1450
        %v1474 = vrcp.pop %v1452
        %v1475 = vrcp.pop %v1454
        %v1476 = vrcp.pop %v1456
        %v1477 = vrcp.pop %v1458
        %v1478 = vrcp.pop %v1460
        %v1479 = vrcp.pop %v1462
        %v1480 = vrcp.pop %v1464
        %v1481 = vmul.f32 %v1465, 0.5
        %v1482 = vmul.f32 %v1466, 0.5
        %v1483 = vmul.f32 %v1467, 0.5
        %v1484 = vmul.f32 %v1468, 0.5
        %v1485 = vmul.f32 %v1469, 0.5
        %v1486 = vmul.f32 %v1470, 0.5
        %v1487 = vmul.f32 %v1471, 0.5
        %v1488 = vmul.f32 %v1472, 0.5
        %v1489 = vmul.f32 %v1473, 0.5
        %v1490 = vmul.f32 %v1474, 0.5
        %v1491 = vmul.f32 %v1475, 0.5
        %v1492 = vmul.f32 %v1476, 0.5
        %v1493 = vmul.f32 %v1477, 0.5
        %v1494 = vmul.f32 %v1478, 0.5
        %v1495 = vmul.f32 %v1479, 0.5
        %v1496 = vmul.f32 %v1480, 0.5
        %v1497 = vmul.f32 %v1402, %v1481
        %v1498 = vmul.f32 %v1404, %v1482
        %v1499 = vmul.f32 %v1406, %v1483
        %v1500 = vmul.f32 %v1408, %v1484
        %v1501 = vmul.f32 %v1410, %v1485
        %v1502 = vmul.f32 %v1412, %v1486
        %v1503 = vmul.f32 %v1414, %v1487
        %v1504 = vmul.f32 %v1416, %v1488
        %v1505 = vmul.f32 %v1418, %v1489
        %v1506 = vmul.f32 %v1420, %v1490
        %v1507 = vmul.f32 %v1422, %v1491
        %v1508 = vmul.f32 %v1424, %v1492
        %v1509 = vmul.f32 %v1426, %v1493
        %v1510 = vmul.f32 %v1428, %v1494
        %v1511 = vmul.f32 %v1430, %v1495
        %v1512 = vmul.f32 %v1432, %v1496
        %v1513 = vadd.f32 %v1497, %v453
        %v1514 = vadd.f32 %v1498, %v454
        %v1515 = vadd.f32 %v1499, %v455
        %v1516 = vadd.f32 %v1500, %v456
        %v1517 = vadd.f32 %v1501, %v457
        %v1518 = vadd.f32 %v1502, %v458
        %v1519 = vadd.f32 %v1503, %v459
        %v1520 = vadd.f32 %v1504, %v460
        %v1521 = vadd.f32 %v1505, %v461
        %v1522 = vadd.f32 %v1506, %v462
        %v1523 = vadd.f32 %v1507, %v463
        %v1524 = vadd.f32 %v1508, %v464
        %v1525 = vadd.f32 %v1509, %v465
        %v1526 = vadd.f32 %v1510, %v466
        %v1527 = vadd.f32 %v1511, %v467
        %v1528 = vadd.f32 %v1512, %v468
        %1529 = vrot.lane.b32.xlu0 %v1063, 120
        %v1530 = vpop.permute.xlu0 %1529
        %1531 = vrot.lane.b32.xlu0 %v1066, 120
        %v1532 = vpop.permute.xlu0 %1531
        %1533 = vrot.lane.b32.xlu0 %v1069, 120
        %v1534 = vpop.permute.xlu0 %1533
        %1535 = vrot.lane.b32.xlu0 %v1072, 120
        %v1536 = vpop.permute.xlu0 %1535
        %1537 = vrot.lane.b32.xlu0 %v1075, 120
        %v1538 = vpop.permute.xlu0 %1537
        %1539 = vrot.lane.b32.xlu0 %v1078, 120
        %v1540 = vpop.permute.xlu0 %1539
        %1541 = vrot.lane.b32.xlu0 %v1081, 120
        %v1542 = vpop.permute.xlu0 %1541
        %1543 = vrot.lane.b32.xlu0 %v1084, 120
        %v1544 = vpop.permute.xlu0 %1543
        %1545 = vrot.lane.b32.xlu0 %v1087, 120
        %v1546 = vpop.permute.xlu0 %1545
        %1547 = vrot.lane.b32.xlu0 %v1090, 120
        %v1548 = vpop.permute.xlu0 %1547
        %1549 = vrot.lane.b32.xlu0 %v1093, 120
        %v1550 = vpop.permute.xlu0 %1549
        %1551 = vrot.lane.b32.xlu0 %v1096, 120
        %v1552 = vpop.permute.xlu0 %1551
        %1553 = vrot.lane.b32.xlu0 %v1099, 120
        %v1554 = vpop.permute.xlu0 %1553
        %1555 = vrot.lane.b32.xlu0 %v1102, 120
        %v1556 = vpop.permute.xlu0 %1555
        %1557 = vrot.lane.b32.xlu0 %v1105, 120
        %v1558 = vpop.permute.xlu0 %1557
        %1559 = vrot.lane.b32.xlu0 %v1108, 120
        %v1560 = vpop.permute.xlu0 %1559
        %1561 = vrot.lane.b32.xlu0 %v1063, 88
        %v1562 = vpop.permute.xlu0 %1561
        %1563 = vrot.lane.b32.xlu0 %v1066, 88
        %v1564 = vpop.permute.xlu0 %1563
        %1565 = vrot.lane.b32.xlu0 %v1069, 88
        %v1566 = vpop.permute.xlu0 %1565
        %1567 = vrot.lane.b32.xlu0 %v1072, 88
        %v1568 = vpop.permute.xlu0 %1567
        %1569 = vrot.lane.b32.xlu0 %v1075, 88
        %v1570 = vpop.permute.xlu0 %1569
        %1571 = vrot.lane.b32.xlu0 %v1078, 88
        %v1572 = vpop.permute.xlu0 %1571
        %1573 = vrot.lane.b32.xlu0 %v1081, 88
        %v1574 = vpop.permute.xlu0 %1573
        %1575 = vrot.lane.b32.xlu0 %v1084, 88
        %v1576 = vpop.permute.xlu0 %1575
        %1577 = vrot.lane.b32.xlu0 %v1087, 88
        %v1578 = vpop.permute.xlu0 %1577
        %1579 = vrot.lane.b32.xlu0 %v1090, 88
        %v1580 = vpop.permute.xlu0 %1579
        %1581 = vrot.lane.b32.xlu0 %v1093, 88
        %v1582 = vpop.permute.xlu0 %1581
        %1583 = vrot.lane.b32.xlu0 %v1096, 88
        %v1584 = vpop.permute.xlu0 %1583
        %1585 = vrot.lane.b32.xlu0 %v1099, 88
        %v1586 = vpop.permute.xlu0 %1585
        %1587 = vrot.lane.b32.xlu0 %v1102, 88
        %v1588 = vpop.permute.xlu0 %1587
        %1589 = vrot.lane.b32.xlu0 %v1105, 88
        %v1590 = vpop.permute.xlu0 %1589
        %1591 = vrot.lane.b32.xlu0 %v1108, 88
        %v1592 = vpop.permute.xlu0 %1591
        %v1593 = vsel %vm1223, %v1530, 0
        %v1595 = vsel %vm1223, %v1532, 0
        %v1597 = vsel %vm1223, %v1534, 0
        %v1599 = vsel %vm1223, %v1536, 0
        %v1601 = vsel %vm1223, %v1538, 0
        %v1603 = vsel %vm1223, %v1540, 0
        %v1605 = vsel %vm1223, %v1542, 0
        %v1607 = vsel %vm1223, %v1544, 0
        %v1609 = vsel %vm1223, %v1546, 0
        %v1611 = vsel %vm1223, %v1548, 0
        %v1613 = vsel %vm1223, %v1550, 0
        %v1615 = vsel %vm1223, %v1552, 0
        %v1617 = vsel %vm1223, %v1554, 0
        %v1619 = vsel %vm1223, %v1556, 0
        %v1621 = vsel %vm1223, %v1558, 0
        %v1623 = vsel %vm1223, %v1560, 0
        %v1625 = vsel %vm1223, %v1562, 0
        %v1627 = vsel %vm1223, %v1564, 0
        %v1629 = vsel %vm1223, %v1566, 0
        %v1631 = vsel %vm1223, %v1568, 0
        %v1633 = vsel %vm1223, %v1570, 0
        %v1635 = vsel %vm1223, %v1572, 0
        %v1637 = vsel %vm1223, %v1574, 0
        %v1639 = vsel %vm1223, %v1576, 0
        %v1641 = vsel %vm1223, %v1578, 0
        %v1643 = vsel %vm1223, %v1580, 0
        %v1645 = vsel %vm1223, %v1582, 0
        %v1647 = vsel %vm1223, %v1584, 0
        %v1649 = vsel %vm1223, %v1586, 0
        %v1651 = vsel %vm1223, %v1588, 0
        %v1653 = vsel %vm1223, %v1590, 0
        %v1655 = vsel %vm1223, %v1592, 0
        %1657 = vmatpush.xpose.msra.mxu0 %v1655
        %1658 = vmatpush.xpose.msra.mxu0 %v1653
        %1659 = vmatpush.xpose.msra.mxu0 %v1651
        %1660 = vmatpush.xpose.msra.mxu0 %v1649
        %1661 = vmatpush.xpose.msra.mxu0 %v1647
        %1662 = vmatpush.xpose.msra.mxu0 %v1645
        %1663 = vmatpush.xpose.msra.mxu0 %v1643
        %1664 = vmatpush.xpose.msra.mxu0 %v1641
        %1665 = vmatpush.xpose.msra.mxu0 %v1639
        %1666 = vmatpush.xpose.msra.mxu0 %v1637
        %1667 = vmatpush.xpose.msra.mxu0 %v1635
        %1668 = vmatpush.xpose.msra.mxu0 %v1633
        %1669 = vmatpush.xpose.msra.mxu0 %v1631
        %1670 = vmatpush.xpose.msra.mxu0 %v1629
        %1671 = vmatpush.xpose.msra.mxu0 %v1627
        %1672 = vmatpush.xpose.msra.mxu0 %v1625
        %1673 = vmatmul.f32.gmra.mxu0 %v1593
        %v1674 = vpop.f32.mrf.mxu0
        %v1675 = vadd.f32 %v437, %v1674
        %1676 = vmatmul.f32.gmra.mxu0 %v1595
        %v1677 = vpop.f32.mrf.mxu0
        %v1678 = vadd.f32 %v438, %v1677
        %1679 = vmatmul.f32.gmra.mxu0 %v1597
        %v1680 = vpop.f32.mrf.mxu0
        %v1681 = vadd.f32 %v439, %v1680
        %1682 = vmatmul.f32.gmra.mxu0 %v1599
        %v1683 = vpop.f32.mrf.mxu0
        %v1684 = vadd.f32 %v440, %v1683
        %1685 = vmatmul.f32.gmra.mxu0 %v1601
        %v1686 = vpop.f32.mrf.mxu0
        %v1687 = vadd.f32 %v441, %v1686
        %1688 = vmatmul.f32.gmra.mxu0 %v1603
        %v1689 = vpop.f32.mrf.mxu0
        %v1690 = vadd.f32 %v442, %v1689
        %1691 = vmatmul.f32.gmra.mxu0 %v1605
        %v1692 = vpop.f32.mrf.mxu0
        %v1693 = vadd.f32 %v443, %v1692
        %1694 = vmatmul.f32.gmra.mxu0 %v1607
        %v1695 = vpop.f32.mrf.mxu0
        %v1696 = vadd.f32 %v444, %v1695
        %1697 = vmatmul.f32.gmra.mxu0 %v1609
        %v1698 = vpop.f32.mrf.mxu0
        %v1699 = vadd.f32 %v445, %v1698
        %1700 = vmatmul.f32.gmra.mxu0 %v1611
        %v1701 = vpop.f32.mrf.mxu0
        %v1702 = vadd.f32 %v446, %v1701
        %1703 = vmatmul.f32.gmra.mxu0 %v1613
        %v1704 = vpop.f32.mrf.mxu0
        %v1705 = vadd.f32 %v447, %v1704
        %1706 = vmatmul.f32.gmra.mxu0 %v1615
        %v1707 = vpop.f32.mrf.mxu0
        %v1708 = vadd.f32 %v448, %v1707
        %1709 = vmatmul.f32.gmra.mxu0 %v1617
        %v1710 = vpop.f32.mrf.mxu0
        %v1711 = vadd.f32 %v449, %v1710
        %1712 = vmatmul.f32.gmra.mxu0 %v1619
        %v1713 = vpop.f32.mrf.mxu0
        %v1714 = vadd.f32 %v450, %v1713
        %1715 = vmatmul.f32.gmra.mxu0 %v1621
        %v1716 = vpop.f32.mrf.mxu0
        %v1717 = vadd.f32 %v451, %v1716
        %1718 = vmatmul.f32.gmra.mxu0 %v1623
        %v1719 = vpop.f32.mrf.mxu0
        %v1720 = vadd.f32 %v452, %v1719
        %1721 = vdwg.mxu0
        %1722 = vmax.xlane.f32.xlu0 %v1675
        %v1723 = vpop.xlane.xlu0 %1722
        %1724 = vmax.xlane.f32.xlu0 %v1678
        %v1725 = vpop.xlane.xlu0 %1724
        %1726 = vmax.xlane.f32.xlu0 %v1681
        %v1727 = vpop.xlane.xlu0 %1726
        %1728 = vmax.xlane.f32.xlu0 %v1684
        %v1729 = vpop.xlane.xlu0 %1728
        %1730 = vmax.xlane.f32.xlu0 %v1687
        %v1731 = vpop.xlane.xlu0 %1730
        %1732 = vmax.xlane.f32.xlu0 %v1690
        %v1733 = vpop.xlane.xlu0 %1732
        %1734 = vmax.xlane.f32.xlu0 %v1693
        %v1735 = vpop.xlane.xlu0 %1734
        %1736 = vmax.xlane.f32.xlu0 %v1696
        %v1737 = vpop.xlane.xlu0 %1736
        %1738 = vmax.xlane.f32.xlu0 %v1699
        %v1739 = vpop.xlane.xlu0 %1738
        %1740 = vmax.xlane.f32.xlu0 %v1702
        %v1741 = vpop.xlane.xlu0 %1740
        %1742 = vmax.xlane.f32.xlu0 %v1705
        %v1743 = vpop.xlane.xlu0 %1742
        %1744 = vmax.xlane.f32.xlu0 %v1708
        %v1745 = vpop.xlane.xlu0 %1744
        %1746 = vmax.xlane.f32.xlu0 %v1711
        %v1747 = vpop.xlane.xlu0 %1746
        %1748 = vmax.xlane.f32.xlu0 %v1714
        %v1749 = vpop.xlane.xlu0 %1748
        %1750 = vmax.xlane.f32.xlu0 %v1717
        %v1751 = vpop.xlane.xlu0 %1750
        %1752 = vmax.xlane.f32.xlu0 %v1720
        %v1753 = vpop.xlane.xlu0 %1752
        %v1754 = vsub.f32 %v1675, %v1723
        %v1755 = vsub.f32 %v1678, %v1725
        %v1756 = vsub.f32 %v1681, %v1727
        %v1757 = vsub.f32 %v1684, %v1729
        %v1758 = vsub.f32 %v1687, %v1731
        %v1759 = vsub.f32 %v1690, %v1733
        %v1760 = vsub.f32 %v1693, %v1735
        %v1761 = vsub.f32 %v1696, %v1737
        %v1762 = vsub.f32 %v1699, %v1739
        %v1763 = vsub.f32 %v1702, %v1741
        %v1764 = vsub.f32 %v1705, %v1743
        %v1765 = vsub.f32 %v1708, %v1745
        %v1766 = vsub.f32 %v1711, %v1747
        %v1767 = vsub.f32 %v1714, %v1749
        %v1768 = vsub.f32 %v1717, %v1751
        %v1769 = vsub.f32 %v1720, %v1753
        %v1770 = vmul.f32 %v1754, 1.442695
        %v1771 = vpow.pop %v1770
        %v1772 = vmul.f32 %v1755, 1.442695
        %v1773 = vpow.pop %v1772
        %v1774 = vmul.f32 %v1756, 1.442695
        %v1775 = vpow.pop %v1774
        %v1776 = vmul.f32 %v1757, 1.442695
        %v1777 = vpow.pop %v1776
        %v1778 = vmul.f32 %v1758, 1.442695
        %v1779 = vpow.pop %v1778
        %v1780 = vmul.f32 %v1759, 1.442695
        %v1781 = vpow.pop %v1780
        %v1782 = vmul.f32 %v1760, 1.442695
        %v1783 = vpow.pop %v1782
        %v1784 = vmul.f32 %v1761, 1.442695
        %v1785 = vpow.pop %v1784
        %v1786 = vmul.f32 %v1762, 1.442695
        %v1787 = vpow.pop %v1786
        %v1788 = vmul.f32 %v1763, 1.442695
        %v1789 = vpow.pop %v1788
        %v1790 = vmul.f32 %v1764, 1.442695
        %v1791 = vpow.pop %v1790
        %v1792 = vmul.f32 %v1765, 1.442695
        %v1793 = vpow.pop %v1792
        %v1794 = vmul.f32 %v1766, 1.442695
        %v1795 = vpow.pop %v1794
        %v1796 = vmul.f32 %v1767, 1.442695
        %v1797 = vpow.pop %v1796
        %v1798 = vmul.f32 %v1768, 1.442695
        %v1799 = vpow.pop %v1798
        %v1800 = vmul.f32 %v1769, 1.442695
        %v1801 = vpow.pop %v1800
        %1802 = vadd.xlane.f32.xlu0 %v1771
        %v1803 = vpop.xlane.xlu0 %1802
        %1804 = vadd.xlane.f32.xlu0 %v1773
        %v1805 = vpop.xlane.xlu0 %1804
        %1806 = vadd.xlane.f32.xlu0 %v1775
        %v1807 = vpop.xlane.xlu0 %1806
        %1808 = vadd.xlane.f32.xlu0 %v1777
        %v1809 = vpop.xlane.xlu0 %1808
        %1810 = vadd.xlane.f32.xlu0 %v1779
        %v1811 = vpop.xlane.xlu0 %1810
        %1812 = vadd.xlane.f32.xlu0 %v1781
        %v1813 = vpop.xlane.xlu0 %1812
        %1814 = vadd.xlane.f32.xlu0 %v1783
        %v1815 = vpop.xlane.xlu0 %1814
        %1816 = vadd.xlane.f32.xlu0 %v1785
        %v1817 = vpop.xlane.xlu0 %1816
        %1818 = vadd.xlane.f32.xlu0 %v1787
        %v1819 = vpop.xlane.xlu0 %1818
        %1820 = vadd.xlane.f32.xlu0 %v1789
        %v1821 = vpop.xlane.xlu0 %1820
        %1822 = vadd.xlane.f32.xlu0 %v1791
        %v1823 = vpop.xlane.xlu0 %1822
        %1824 = vadd.xlane.f32.xlu0 %v1793
        %v1825 = vpop.xlane.xlu0 %1824
        %1826 = vadd.xlane.f32.xlu0 %v1795
        %v1827 = vpop.xlane.xlu0 %1826
        %1828 = vadd.xlane.f32.xlu0 %v1797
        %v1829 = vpop.xlane.xlu0 %1828
        %1830 = vadd.xlane.f32.xlu0 %v1799
        %v1831 = vpop.xlane.xlu0 %1830
        %1832 = vadd.xlane.f32.xlu0 %v1801
        %v1833 = vpop.xlane.xlu0 %1832
        %v1834 = vrcp.pop %v1803
        %v1835 = vrcp.pop %v1805
        %v1836 = vrcp.pop %v1807
        %v1837 = vrcp.pop %v1809
        %v1838 = vrcp.pop %v1811
        %v1839 = vrcp.pop %v1813
        %v1840 = vrcp.pop %v1815
        %v1841 = vrcp.pop %v1817
        %v1842 = vrcp.pop %v1819
        %v1843 = vrcp.pop %v1821
        %v1844 = vrcp.pop %v1823
        %v1845 = vrcp.pop %v1825
        %v1846 = vrcp.pop %v1827
        %v1847 = vrcp.pop %v1829
        %v1848 = vrcp.pop %v1831
        %v1849 = vrcp.pop %v1833
        %v1850 = vmul.f32 %v1834, 0.5
        %v1851 = vmul.f32 %v1835, 0.5
        %v1852 = vmul.f32 %v1836, 0.5
        %v1853 = vmul.f32 %v1837, 0.5
        %v1854 = vmul.f32 %v1838, 0.5
        %v1855 = vmul.f32 %v1839, 0.5
        %v1856 = vmul.f32 %v1840, 0.5
        %v1857 = vmul.f32 %v1841, 0.5
        %v1858 = vmul.f32 %v1842, 0.5
        %v1859 = vmul.f32 %v1843, 0.5
        %v1860 = vmul.f32 %v1844, 0.5
        %v1861 = vmul.f32 %v1845, 0.5
        %v1862 = vmul.f32 %v1846, 0.5
        %v1863 = vmul.f32 %v1847, 0.5
        %v1864 = vmul.f32 %v1848, 0.5
        %v1865 = vmul.f32 %v1849, 0.5
        %v1866 = vmul.f32 %v1771, %v1850
        %v1867 = vmul.f32 %v1773, %v1851
        %v1868 = vmul.f32 %v1775, %v1852
        %v1869 = vmul.f32 %v1777, %v1853
        %v1870 = vmul.f32 %v1779, %v1854
        %v1871 = vmul.f32 %v1781, %v1855
        %v1872 = vmul.f32 %v1783, %v1856
        %v1873 = vmul.f32 %v1785, %v1857
        %v1874 = vmul.f32 %v1787, %v1858
        %v1875 = vmul.f32 %v1789, %v1859
        %v1876 = vmul.f32 %v1791, %v1860
        %v1877 = vmul.f32 %v1793, %v1861
        %v1878 = vmul.f32 %v1795, %v1862
        %v1879 = vmul.f32 %v1797, %v1863
        %v1880 = vmul.f32 %v1799, %v1864
        %v1881 = vmul.f32 %v1801, %v1865
        %v1882 = vadd.f32 %v1866, %v453
        %v1883 = vadd.f32 %v1867, %v454
        %v1884 = vadd.f32 %v1868, %v455
        %v1885 = vadd.f32 %v1869, %v456
        %v1886 = vadd.f32 %v1870, %v457
        %v1887 = vadd.f32 %v1871, %v458
        %v1888 = vadd.f32 %v1872, %v459
        %v1889 = vadd.f32 %v1873, %v460
        %v1890 = vadd.f32 %v1874, %v461
        %v1891 = vadd.f32 %v1875, %v462
        %v1892 = vadd.f32 %v1876, %v463
        %v1893 = vadd.f32 %v1877, %v464
        %v1894 = vadd.f32 %v1878, %v465
        %v1895 = vadd.f32 %v1879, %v466
        %v1896 = vadd.f32 %v1880, %v467
        %v1897 = vadd.f32 %v1881, %v468
        %1898 = vrot.lane.b32.xlu0 %v1063, 32
        %v1899 = vpop.permute.xlu0 %1898
        %1900 = vrot.lane.b32.xlu0 %v1066, 32
        %v1901 = vpop.permute.xlu0 %1900
        %1902 = vrot.lane.b32.xlu0 %v1069, 32
        %v1903 = vpop.permute.xlu0 %1902
        %1904 = vrot.lane.b32.xlu0 %v1072, 32
        %v1905 = vpop.permute.xlu0 %1904
        %1906 = vrot.lane.b32.xlu0 %v1075, 32
        %v1907 = vpop.permute.xlu0 %1906
        %1908 = vrot.lane.b32.xlu0 %v1078, 32
        %v1909 = vpop.permute.xlu0 %1908
        %1910 = vrot.lane.b32.xlu0 %v1081, 32
        %v1911 = vpop.permute.xlu0 %1910
        %1912 = vrot.lane.b32.xlu0 %v1084, 32
        %v1913 = vpop.permute.xlu0 %1912
        %1914 = vrot.lane.b32.xlu0 %v1087, 32
        %v1915 = vpop.permute.xlu0 %1914
        %1916 = vrot.lane.b32.xlu0 %v1090, 32
        %v1917 = vpop.permute.xlu0 %1916
        %1918 = vrot.lane.b32.xlu0 %v1093, 32
        %v1919 = vpop.permute.xlu0 %1918
        %1920 = vrot.lane.b32.xlu0 %v1096, 32
        %v1921 = vpop.permute.xlu0 %1920
        %1922 = vrot.lane.b32.xlu0 %v1099, 32
        %v1923 = vpop.permute.xlu0 %1922
        %1924 = vrot.lane.b32.xlu0 %v1102, 32
        %v1925 = vpop.permute.xlu0 %1924
        %1926 = vrot.lane.b32.xlu0 %v1105, 32
        %v1927 = vpop.permute.xlu0 %1926
        %1928 = vrot.lane.b32.xlu0 %v1108, 32
        %v1929 = vpop.permute.xlu0 %1928
        %1946 = vmatpush.msra.mxu0 %v1929
        %1947 = vmatpush.msra.mxu0 %v1927
        %1948 = vmatpush.msra.mxu0 %v1925
        %1949 = vmatpush.msra.mxu0 %v1923
        %1950 = vmatpush.msra.mxu0 %v1921
        %1951 = vmatpush.msra.mxu0 %v1919
        %1952 = vmatpush.msra.mxu0 %v1917
        %1953 = vmatpush.msra.mxu0 %v1915
        %1954 = vmatpush.msra.mxu0 %v1913
        %1955 = vmatpush.msra.mxu0 %v1911
        %1956 = vmatpush.msra.mxu0 %v1909
        %1957 = vmatpush.msra.mxu0 %v1907
        %1958 = vmatpush.msra.mxu0 %v1905
        %1959 = vmatpush.msra.mxu0 %v1903
        %1960 = vmatpush.msra.mxu0 %v1901
        %1961 = vmatpush.msra.mxu0 %v1899
        %1962 = vmatmul.f32.gmra.mxu0 %v1882
        %v1963 = vpop.f32.mrf.mxu0
        %v1964 = vadd.f32 0.0, %v1963
        %1965 = vmatmul.f32.gmra.mxu0 %v1883
        %v1966 = vpop.f32.mrf.mxu0
        %v1967 = vadd.f32 0.0, %v1966
        %1968 = vmatmul.f32.gmra.mxu0 %v1884
        %v1969 = vpop.f32.mrf.mxu0
        %v1970 = vadd.f32 0.0, %v1969
        %1971 = vmatmul.f32.gmra.mxu0 %v1885
        %v1972 = vpop.f32.mrf.mxu0
        %v1973 = vadd.f32 0.0, %v1972
        %1974 = vmatmul.f32.gmra.mxu0 %v1886
        %v1975 = vpop.f32.mrf.mxu0
        %v1976 = vadd.f32 0.0, %v1975
        %1977 = vmatmul.f32.gmra.mxu0 %v1887
        %v1978 = vpop.f32.mrf.mxu0
        %v1979 = vadd.f32 0.0, %v1978
        %1980 = vmatmul.f32.gmra.mxu0 %v1888
        %v1981 = vpop.f32.mrf.mxu0
        %v1982 = vadd.f32 0.0, %v1981
        %1983 = vmatmul.f32.gmra.mxu0 %v1889
        %v1984 = vpop.f32.mrf.mxu0
        %v1985 = vadd.f32 0.0, %v1984
        %1986 = vmatmul.f32.gmra.mxu0 %v1890
        %v1987 = vpop.f32.mrf.mxu0
        %v1988 = vadd.f32 0.0, %v1987
        %1989 = vmatmul.f32.gmra.mxu0 %v1891
        %v1990 = vpop.f32.mrf.mxu0
        %v1991 = vadd.f32 0.0, %v1990
        %1992 = vmatmul.f32.gmra.mxu0 %v1892
        %v1993 = vpop.f32.mrf.mxu0
        %v1994 = vadd.f32 0.0, %v1993
        %1995 = vmatmul.f32.gmra.mxu0 %v1893
        %v1996 = vpop.f32.mrf.mxu0
        %v1997 = vadd.f32 0.0, %v1996
        %1998 = vmatmul.f32.gmra.mxu0 %v1894
        %v1999 = vpop.f32.mrf.mxu0
        %v2000 = vadd.f32 0.0, %v1999
        %2001 = vmatmul.f32.gmra.mxu0 %v1895
        %v2002 = vpop.f32.mrf.mxu0
        %v2003 = vadd.f32 0.0, %v2002
        %2004 = vmatmul.f32.gmra.mxu0 %v1896
        %v2005 = vpop.f32.mrf.mxu0
        %v2006 = vadd.f32 0.0, %v2005
        %2007 = vmatmul.f32.gmra.mxu0 %v1897
        %v2008 = vpop.f32.mrf.mxu0
        %v2009 = vadd.f32 0.0, %v2008
        %2010 = vdwg.mxu0
        %2011 = vrot.lane.b32.xlu0 %v1063, 64
        %v2012 = vpop.permute.xlu0 %2011
        %2013 = vrot.lane.b32.xlu0 %v1066, 64
        %v2014 = vpop.permute.xlu0 %2013
        %2015 = vrot.lane.b32.xlu0 %v1069, 64
        %v2016 = vpop.permute.xlu0 %2015
        %2017 = vrot.lane.b32.xlu0 %v1072, 64
        %v2018 = vpop.permute.xlu0 %2017
        %2019 = vrot.lane.b32.xlu0 %v1075, 64
        %v2020 = vpop.permute.xlu0 %2019
        %2021 = vrot.lane.b32.xlu0 %v1078, 64
        %v2022 = vpop.permute.xlu0 %2021
        %2023 = vrot.lane.b32.xlu0 %v1081, 64
        %v2024 = vpop.permute.xlu0 %2023
        %2025 = vrot.lane.b32.xlu0 %v1084, 64
        %v2026 = vpop.permute.xlu0 %2025
        %2027 = vrot.lane.b32.xlu0 %v1087, 64
        %v2028 = vpop.permute.xlu0 %2027
        %2029 = vrot.lane.b32.xlu0 %v1090, 64
        %v2030 = vpop.permute.xlu0 %2029
        %2031 = vrot.lane.b32.xlu0 %v1093, 64
        %v2032 = vpop.permute.xlu0 %2031
        %2033 = vrot.lane.b32.xlu0 %v1096, 64
        %v2034 = vpop.permute.xlu0 %2033
        %2035 = vrot.lane.b32.xlu0 %v1099, 64
        %v2036 = vpop.permute.xlu0 %2035
        %2037 = vrot.lane.b32.xlu0 %v1102, 64
        %v2038 = vpop.permute.xlu0 %2037
        %2039 = vrot.lane.b32.xlu0 %v1105, 64
        %v2040 = vpop.permute.xlu0 %2039
        %2041 = vrot.lane.b32.xlu0 %v1108, 64
        %v2042 = vpop.permute.xlu0 %2041
        %2059 = vmatpush.msra.mxu0 %v2042
        %2060 = vmatpush.msra.mxu0 %v2040
        %2061 = vmatpush.msra.mxu0 %v2038
        %2062 = vmatpush.msra.mxu0 %v2036
        %2063 = vmatpush.msra.mxu0 %v2034
        %2064 = vmatpush.msra.mxu0 %v2032
        %2065 = vmatpush.msra.mxu0 %v2030
        %2066 = vmatpush.msra.mxu0 %v2028
        %2067 = vmatpush.msra.mxu0 %v2026
        %2068 = vmatpush.msra.mxu0 %v2024
        %2069 = vmatpush.msra.mxu0 %v2022
        %2070 = vmatpush.msra.mxu0 %v2020
        %2071 = vmatpush.msra.mxu0 %v2018
        %2072 = vmatpush.msra.mxu0 %v2016
        %2073 = vmatpush.msra.mxu0 %v2014
        %2074 = vmatpush.msra.mxu0 %v2012
        %2075 = vmatmul.f32.gmra.mxu0 %v1513
        %v2076 = vpop.f32.mrf.mxu0
        %v2077 = vadd.f32 %v1964, %v2076
        %2078 = vmatmul.f32.gmra.mxu0 %v1514
        %v2079 = vpop.f32.mrf.mxu0
        %v2080 = vadd.f32 %v1967, %v2079
        %2081 = vmatmul.f32.gmra.mxu0 %v1515
        %v2082 = vpop.f32.mrf.mxu0
        %v2083 = vadd.f32 %v1970, %v2082
        %2084 = vmatmul.f32.gmra.mxu0 %v1516
        %v2085 = vpop.f32.mrf.mxu0
        %v2086 = vadd.f32 %v1973, %v2085
        %2087 = vmatmul.f32.gmra.mxu0 %v1517
        %v2088 = vpop.f32.mrf.mxu0
        %v2089 = vadd.f32 %v1976, %v2088
        %2090 = vmatmul.f32.gmra.mxu0 %v1518
        %v2091 = vpop.f32.mrf.mxu0
        %v2092 = vadd.f32 %v1979, %v2091
        %2093 = vmatmul.f32.gmra.mxu0 %v1519
        %v2094 = vpop.f32.mrf.mxu0
        %v2095 = vadd.f32 %v1982, %v2094
        %2096 = vmatmul.f32.gmra.mxu0 %v1520
        %v2097 = vpop.f32.mrf.mxu0
        %v2098 = vadd.f32 %v1985, %v2097
        %2099 = vmatmul.f32.gmra.mxu0 %v1521
        %v2100 = vpop.f32.mrf.mxu0
        %v2101 = vadd.f32 %v1988, %v2100
        %2102 = vmatmul.f32.gmra.mxu0 %v1522
        %v2103 = vpop.f32.mrf.mxu0
        %v2104 = vadd.f32 %v1991, %v2103
        %2105 = vmatmul.f32.gmra.mxu0 %v1523
        %v2106 = vpop.f32.mrf.mxu0
        %v2107 = vadd.f32 %v1994, %v2106
        %2108 = vmatmul.f32.gmra.mxu0 %v1524
        %v2109 = vpop.f32.mrf.mxu0
        %v2110 = vadd.f32 %v1997, %v2109
        %2111 = vmatmul.f32.gmra.mxu0 %v1525
        %v2112 = vpop.f32.mrf.mxu0
        %v2113 = vadd.f32 %v2000, %v2112
        %2114 = vmatmul.f32.gmra.mxu0 %v1526
        %v2115 = vpop.f32.mrf.mxu0
        %v2116 = vadd.f32 %v2003, %v2115
        %2117 = vmatmul.f32.gmra.mxu0 %v1527
        %v2118 = vpop.f32.mrf.mxu0
        %v2119 = vadd.f32 %v2006, %v2118
        %2120 = vmatmul.f32.gmra.mxu0 %v1528
        %v2121 = vpop.f32.mrf.mxu0
        %v2122 = vadd.f32 %v2009, %v2121
        %2123 = vdwg.mxu0
        %2124 = vrot.lane.b32.xlu0 %v1063, 112
        %v2125 = vpop.permute.xlu0 %2124
        %2126 = vrot.lane.b32.xlu0 %v1066, 112
        %v2127 = vpop.permute.xlu0 %2126
        %2128 = vrot.lane.b32.xlu0 %v1069, 112
        %v2129 = vpop.permute.xlu0 %2128
        %2130 = vrot.lane.b32.xlu0 %v1072, 112
        %v2131 = vpop.permute.xlu0 %2130
        %2132 = vrot.lane.b32.xlu0 %v1075, 112
        %v2133 = vpop.permute.xlu0 %2132
        %2134 = vrot.lane.b32.xlu0 %v1078, 112
        %v2135 = vpop.permute.xlu0 %2134
        %2136 = vrot.lane.b32.xlu0 %v1081, 112
        %v2137 = vpop.permute.xlu0 %2136
        %2138 = vrot.lane.b32.xlu0 %v1084, 112
        %v2139 = vpop.permute.xlu0 %2138
        %2140 = vrot.lane.b32.xlu0 %v1087, 112
        %v2141 = vpop.permute.xlu0 %2140
        %2142 = vrot.lane.b32.xlu0 %v1090, 112
        %v2143 = vpop.permute.xlu0 %2142
        %2144 = vrot.lane.b32.xlu0 %v1093, 112
        %v2145 = vpop.permute.xlu0 %2144
        %2146 = vrot.lane.b32.xlu0 %v1096, 112
        %v2147 = vpop.permute.xlu0 %2146
        %2148 = vrot.lane.b32.xlu0 %v1099, 112
        %v2149 = vpop.permute.xlu0 %2148
        %2150 = vrot.lane.b32.xlu0 %v1102, 112
        %v2151 = vpop.permute.xlu0 %2150
        %2152 = vrot.lane.b32.xlu0 %v1105, 112
        %v2153 = vpop.permute.xlu0 %2152
        %2154 = vrot.lane.b32.xlu0 %v1108, 112
        %v2155 = vpop.permute.xlu0 %2154
        %2156 = vrot.lane.b32.xlu0 %v1063, 80
        %v2157 = vpop.permute.xlu0 %2156
        %2158 = vrot.lane.b32.xlu0 %v1066, 80
        %v2159 = vpop.permute.xlu0 %2158
        %2160 = vrot.lane.b32.xlu0 %v1069, 80
        %v2161 = vpop.permute.xlu0 %2160
        %2162 = vrot.lane.b32.xlu0 %v1072, 80
        %v2163 = vpop.permute.xlu0 %2162
        %2164 = vrot.lane.b32.xlu0 %v1075, 80
        %v2165 = vpop.permute.xlu0 %2164
        %2166 = vrot.lane.b32.xlu0 %v1078, 80
        %v2167 = vpop.permute.xlu0 %2166
        %2168 = vrot.lane.b32.xlu0 %v1081, 80
        %v2169 = vpop.permute.xlu0 %2168
        %2170 = vrot.lane.b32.xlu0 %v1084, 80
        %v2171 = vpop.permute.xlu0 %2170
        %2172 = vrot.lane.b32.xlu0 %v1087, 80
        %v2173 = vpop.permute.xlu0 %2172
        %2174 = vrot.lane.b32.xlu0 %v1090, 80
        %v2175 = vpop.permute.xlu0 %2174
        %2176 = vrot.lane.b32.xlu0 %v1093, 80
        %v2177 = vpop.permute.xlu0 %2176
        %2178 = vrot.lane.b32.xlu0 %v1096, 80
        %v2179 = vpop.permute.xlu0 %2178
        %2180 = vrot.lane.b32.xlu0 %v1099, 80
        %v2181 = vpop.permute.xlu0 %2180
        %2182 = vrot.lane.b32.xlu0 %v1102, 80
        %v2183 = vpop.permute.xlu0 %2182
        %2184 = vrot.lane.b32.xlu0 %v1105, 80
        %v2185 = vpop.permute.xlu0 %2184
        %2186 = vrot.lane.b32.xlu0 %v1108, 80
        %v2187 = vpop.permute.xlu0 %2186
        %v2188 = vsel %vm1223, %v2125, 0
        %v2190 = vsel %vm1223, %v2127, 0
        %v2192 = vsel %vm1223, %v2129, 0
        %v2194 = vsel %vm1223, %v2131, 0
        %v2196 = vsel %vm1223, %v2133, 0
        %v2198 = vsel %vm1223, %v2135, 0
        %v2200 = vsel %vm1223, %v2137, 0
        %v2202 = vsel %vm1223, %v2139, 0
        %v2204 = vsel %vm1223, %v2141, 0
        %v2206 = vsel %vm1223, %v2143, 0
        %v2208 = vsel %vm1223, %v2145, 0
        %v2210 = vsel %vm1223, %v2147, 0
        %v2212 = vsel %vm1223, %v2149, 0
        %v2214 = vsel %vm1223, %v2151, 0
        %v2216 = vsel %vm1223, %v2153, 0
        %v2218 = vsel %vm1223, %v2155, 0
        %v2220 = vsel %vm1223, %v2157, 0
        %v2222 = vsel %vm1223, %v2159, 0
        %v2224 = vsel %vm1223, %v2161, 0
        %v2226 = vsel %vm1223, %v2163, 0
        %v2228 = vsel %vm1223, %v2165, 0
        %v2230 = vsel %vm1223, %v2167, 0
        %v2232 = vsel %vm1223, %v2169, 0
        %v2234 = vsel %vm1223, %v2171, 0
        %v2236 = vsel %vm1223, %v2173, 0
        %v2238 = vsel %vm1223, %v2175, 0
        %v2240 = vsel %vm1223, %v2177, 0
        %v2242 = vsel %vm1223, %v2179, 0
        %v2244 = vsel %vm1223, %v2181, 0
        %v2246 = vsel %vm1223, %v2183, 0
        %v2248 = vsel %vm1223, %v2185, 0
        %v2250 = vsel %vm1223, %v2187, 0
        %2252 = vmatpush.xpose.msra.mxu0 %v2250
        %2253 = vmatpush.xpose.msra.mxu0 %v2248
        %2254 = vmatpush.xpose.msra.mxu0 %v2246
        %2255 = vmatpush.xpose.msra.mxu0 %v2244
        %2256 = vmatpush.xpose.msra.mxu0 %v2242
        %2257 = vmatpush.xpose.msra.mxu0 %v2240
        %2258 = vmatpush.xpose.msra.mxu0 %v2238
        %2259 = vmatpush.xpose.msra.mxu0 %v2236
        %2260 = vmatpush.xpose.msra.mxu0 %v2234
        %2261 = vmatpush.xpose.msra.mxu0 %v2232
        %2262 = vmatpush.xpose.msra.mxu0 %v2230
        %2263 = vmatpush.xpose.msra.mxu0 %v2228
        %2264 = vmatpush.xpose.msra.mxu0 %v2226
        %2265 = vmatpush.xpose.msra.mxu0 %v2224
        %2266 = vmatpush.xpose.msra.mxu0 %v2222
        %2267 = vmatpush.xpose.msra.mxu0 %v2220
        %2268 = vmatmul.f32.gmra.mxu0 %v2188
        %v2269 = vpop.f32.mrf.mxu0
        %v2270 = vadd.f32 %v437, %v2269
        %2271 = vmatmul.f32.gmra.mxu0 %v2190
        %v2272 = vpop.f32.mrf.mxu0
        %v2273 = vadd.f32 %v438, %v2272
        %2274 = vmatmul.f32.gmra.mxu0 %v2192
        %v2275 = vpop.f32.mrf.mxu0
        %v2276 = vadd.f32 %v439, %v2275
        %2277 = vmatmul.f32.gmra.mxu0 %v2194
        %v2278 = vpop.f32.mrf.mxu0
        %v2279 = vadd.f32 %v440, %v2278
        %2280 = vmatmul.f32.gmra.mxu0 %v2196
        %v2281 = vpop.f32.mrf.mxu0
        %v2282 = vadd.f32 %v441, %v2281
        %2283 = vmatmul.f32.gmra.mxu0 %v2198
        %v2284 = vpop.f32.mrf.mxu0
        %v2285 = vadd.f32 %v442, %v2284
        %2286 = vmatmul.f32.gmra.mxu0 %v2200
        %v2287 = vpop.f32.mrf.mxu0
        %v2288 = vadd.f32 %v443, %v2287
        %2289 = vmatmul.f32.gmra.mxu0 %v2202
        %v2290 = vpop.f32.mrf.mxu0
        %v2291 = vadd.f32 %v444, %v2290
        %2292 = vmatmul.f32.gmra.mxu0 %v2204
        %v2293 = vpop.f32.mrf.mxu0
        %v2294 = vadd.f32 %v445, %v2293
        %2295 = vmatmul.f32.gmra.mxu0 %v2206
        %v2296 = vpop.f32.mrf.mxu0
        %v2297 = vadd.f32 %v446, %v2296
        %2298 = vmatmul.f32.gmra.mxu0 %v2208
        %v2299 = vpop.f32.mrf.mxu0
        %v2300 = vadd.f32 %v447, %v2299
        %2301 = vmatmul.f32.gmra.mxu0 %v2210
        %v2302 = vpop.f32.mrf.mxu0
        %v2303 = vadd.f32 %v448, %v2302
        %2304 = vmatmul.f32.gmra.mxu0 %v2212
        %v2305 = vpop.f32.mrf.mxu0
        %v2306 = vadd.f32 %v449, %v2305
        %2307 = vmatmul.f32.gmra.mxu0 %v2214
        %v2308 = vpop.f32.mrf.mxu0
        %v2309 = vadd.f32 %v450, %v2308
        %2310 = vmatmul.f32.gmra.mxu0 %v2216
        %v2311 = vpop.f32.mrf.mxu0
        %v2312 = vadd.f32 %v451, %v2311
        %2313 = vmatmul.f32.gmra.mxu0 %v2218
        %v2314 = vpop.f32.mrf.mxu0
        %v2315 = vadd.f32 %v452, %v2314
        %2316 = vdwg.mxu0
        %2317 = vmax.xlane.f32.xlu0 %v2270
        %v2318 = vpop.xlane.xlu0 %2317
        %2319 = vmax.xlane.f32.xlu0 %v2273
        %v2320 = vpop.xlane.xlu0 %2319
        %2321 = vmax.xlane.f32.xlu0 %v2276
        %v2322 = vpop.xlane.xlu0 %2321
        %2323 = vmax.xlane.f32.xlu0 %v2279
        %v2324 = vpop.xlane.xlu0 %2323
        %2325 = vmax.xlane.f32.xlu0 %v2282
        %v2326 = vpop.xlane.xlu0 %2325
        %2327 = vmax.xlane.f32.xlu0 %v2285
        %v2328 = vpop.xlane.xlu0 %2327
        %2329 = vmax.xlane.f32.xlu0 %v2288
        %v2330 = vpop.xlane.xlu0 %2329
        %2331 = vmax.xlane.f32.xlu0 %v2291
        %v2332 = vpop.xlane.xlu0 %2331
        %2333 = vmax.xlane.f32.xlu0 %v2294
        %v2334 = vpop.xlane.xlu0 %2333
        %2335 = vmax.xlane.f32.xlu0 %v2297
        %v2336 = vpop.xlane.xlu0 %2335
        %2337 = vmax.xlane.f32.xlu0 %v2300
        %v2338 = vpop.xlane.xlu0 %2337
        %2339 = vmax.xlane.f32.xlu0 %v2303
        %v2340 = vpop.xlane.xlu0 %2339
        %2341 = vmax.xlane.f32.xlu0 %v2306
        %v2342 = vpop.xlane.xlu0 %2341
        %2343 = vmax.xlane.f32.xlu0 %v2309
        %v2344 = vpop.xlane.xlu0 %2343
        %2345 = vmax.xlane.f32.xlu0 %v2312
        %v2346 = vpop.xlane.xlu0 %2345
        %2347 = vmax.xlane.f32.xlu0 %v2315
        %v2348 = vpop.xlane.xlu0 %2347
        %v2349 = vsub.f32 %v2270, %v2318
        %v2350 = vsub.f32 %v2273, %v2320
        %v2351 = vsub.f32 %v2276, %v2322
        %v2352 = vsub.f32 %v2279, %v2324
        %v2353 = vsub.f32 %v2282, %v2326
        %v2354 = vsub.f32 %v2285, %v2328
        %v2355 = vsub.f32 %v2288, %v2330
        %v2356 = vsub.f32 %v2291, %v2332
        %v2357 = vsub.f32 %v2294, %v2334
        %v2358 = vsub.f32 %v2297, %v2336
        %v2359 = vsub.f32 %v2300, %v2338
        %v2360 = vsub.f32 %v2303, %v2340
        %v2361 = vsub.f32 %v2306, %v2342
        %v2362 = vsub.f32 %v2309, %v2344
        %v2363 = vsub.f32 %v2312, %v2346
        %v2364 = vsub.f32 %v2315, %v2348
        %v2365 = vmul.f32 %v2349, 1.442695
        %v2366 = vpow.pop %v2365
        %v2367 = vmul.f32 %v2350, 1.442695
        %v2368 = vpow.pop %v2367
        %v2369 = vmul.f32 %v2351, 1.442695
        %v2370 = vpow.pop %v2369
        %v2371 = vmul.f32 %v2352, 1.442695
        %v2372 = vpow.pop %v2371
        %v2373 = vmul.f32 %v2353, 1.442695
        %v2374 = vpow.pop %v2373
        %v2375 = vmul.f32 %v2354, 1.442695
        %v2376 = vpow.pop %v2375
        %v2377 = vmul.f32 %v2355, 1.442695
        %v2378 = vpow.pop %v2377
        %v2379 = vmul.f32 %v2356, 1.442695
        %v2380 = vpow.pop %v2379
        %v2381 = vmul.f32 %v2357, 1.442695
        %v2382 = vpow.pop %v2381
        %v2383 = vmul.f32 %v2358, 1.442695
        %v2384 = vpow.pop %v2383
        %v2385 = vmul.f32 %v2359, 1.442695
        %v2386 = vpow.pop %v2385
        %v2387 = vmul.f32 %v2360, 1.442695
        %v2388 = vpow.pop %v2387
        %v2389 = vmul.f32 %v2361, 1.442695
        %v2390 = vpow.pop %v2389
        %v2391 = vmul.f32 %v2362, 1.442695
        %v2392 = vpow.pop %v2391
        %v2393 = vmul.f32 %v2363, 1.442695
        %v2394 = vpow.pop %v2393
        %v2395 = vmul.f32 %v2364, 1.442695
        %v2396 = vpow.pop %v2395
        %2397 = vadd.xlane.f32.xlu0 %v2366
        %v2398 = vpop.xlane.xlu0 %2397
        %2399 = vadd.xlane.f32.xlu0 %v2368
        %v2400 = vpop.xlane.xlu0 %2399
        %2401 = vadd.xlane.f32.xlu0 %v2370
        %v2402 = vpop.xlane.xlu0 %2401
        %2403 = vadd.xlane.f32.xlu0 %v2372
        %v2404 = vpop.xlane.xlu0 %2403
        %2405 = vadd.xlane.f32.xlu0 %v2374
        %v2406 = vpop.xlane.xlu0 %2405
        %2407 = vadd.xlane.f32.xlu0 %v2376
        %v2408 = vpop.xlane.xlu0 %2407
        %2409 = vadd.xlane.f32.xlu0 %v2378
        %v2410 = vpop.xlane.xlu0 %2409
        %2411 = vadd.xlane.f32.xlu0 %v2380
        %v2412 = vpop.xlane.xlu0 %2411
        %2413 = vadd.xlane.f32.xlu0 %v2382
        %v2414 = vpop.xlane.xlu0 %2413
        %2415 = vadd.xlane.f32.xlu0 %v2384
        %v2416 = vpop.xlane.xlu0 %2415
        %2417 = vadd.xlane.f32.xlu0 %v2386
        %v2418 = vpop.xlane.xlu0 %2417
        %2419 = vadd.xlane.f32.xlu0 %v2388
        %v2420 = vpop.xlane.xlu0 %2419
        %2421 = vadd.xlane.f32.xlu0 %v2390
        %v2422 = vpop.xlane.xlu0 %2421
        %2423 = vadd.xlane.f32.xlu0 %v2392
        %v2424 = vpop.xlane.xlu0 %2423
        %2425 = vadd.xlane.f32.xlu0 %v2394
        %v2426 = vpop.xlane.xlu0 %2425
        %2427 = vadd.xlane.f32.xlu0 %v2396
        %v2428 = vpop.xlane.xlu0 %2427
        %v2429 = vrcp.pop %v2398
        %v2430 = vrcp.pop %v2400
        %v2431 = vrcp.pop %v2402
        %v2432 = vrcp.pop %v2404
        %v2433 = vrcp.pop %v2406
        %v2434 = vrcp.pop %v2408
        %v2435 = vrcp.pop %v2410
        %v2436 = vrcp.pop %v2412
        %v2437 = vrcp.pop %v2414
        %v2438 = vrcp.pop %v2416
        %v2439 = vrcp.pop %v2418
        %v2440 = vrcp.pop %v2420
        %v2441 = vrcp.pop %v2422
        %v2442 = vrcp.pop %v2424
        %v2443 = vrcp.pop %v2426
        %v2444 = vrcp.pop %v2428
        %v2445 = vmul.f32 %v2429, 0.5
        %v2446 = vmul.f32 %v2430, 0.5
        %v2447 = vmul.f32 %v2431, 0.5
        %v2448 = vmul.f32 %v2432, 0.5
        %v2449 = vmul.f32 %v2433, 0.5
        %v2450 = vmul.f32 %v2434, 0.5
        %v2451 = vmul.f32 %v2435, 0.5
        %v2452 = vmul.f32 %v2436, 0.5
        %v2453 = vmul.f32 %v2437, 0.5
        %v2454 = vmul.f32 %v2438, 0.5
        %v2455 = vmul.f32 %v2439, 0.5
        %v2456 = vmul.f32 %v2440, 0.5
        %v2457 = vmul.f32 %v2441, 0.5
        %v2458 = vmul.f32 %v2442, 0.5
        %v2459 = vmul.f32 %v2443, 0.5
        %v2460 = vmul.f32 %v2444, 0.5
        %v2461 = vmul.f32 %v2366, %v2445
        %v2462 = vmul.f32 %v2368, %v2446
        %v2463 = vmul.f32 %v2370, %v2447
        %v2464 = vmul.f32 %v2372, %v2448
        %v2465 = vmul.f32 %v2374, %v2449
        %v2466 = vmul.f32 %v2376, %v2450
        %v2467 = vmul.f32 %v2378, %v2451
        %v2468 = vmul.f32 %v2380, %v2452
        %v2469 = vmul.f32 %v2382, %v2453
        %v2470 = vmul.f32 %v2384, %v2454
        %v2471 = vmul.f32 %v2386, %v2455
        %v2472 = vmul.f32 %v2388, %v2456
        %v2473 = vmul.f32 %v2390, %v2457
        %v2474 = vmul.f32 %v2392, %v2458
        %v2475 = vmul.f32 %v2394, %v2459
        %v2476 = vmul.f32 %v2396, %v2460
        %v2477 = vadd.f32 %v2461, %v453
        %v2478 = vadd.f32 %v2462, %v454
        %v2479 = vadd.f32 %v2463, %v455
        %v2480 = vadd.f32 %v2464, %v456
        %v2481 = vadd.f32 %v2465, %v457
        %v2482 = vadd.f32 %v2466, %v458
        %v2483 = vadd.f32 %v2467, %v459
        %v2484 = vadd.f32 %v2468, %v460
        %v2485 = vadd.f32 %v2469, %v461
        %v2486 = vadd.f32 %v2470, %v462
        %v2487 = vadd.f32 %v2471, %v463
        %v2488 = vadd.f32 %v2472, %v464
        %v2489 = vadd.f32 %v2473, %v465
        %v2490 = vadd.f32 %v2474, %v466
        %v2491 = vadd.f32 %v2475, %v467
        %v2492 = vadd.f32 %v2476, %v468
        %2493 = vmatpush.msra.mxu0 %v1173
        %2494 = vmatpush.msra.mxu0 %v1170
        %2495 = vmatpush.msra.mxu0 %v1167
        %2496 = vmatpush.msra.mxu0 %v1164
        %2497 = vmatpush.msra.mxu0 %v1161
        %2498 = vmatpush.msra.mxu0 %v1158
        %2499 = vmatpush.msra.mxu0 %v1155
        %2500 = vmatpush.msra.mxu0 %v1152
        %2501 = vmatpush.msra.mxu0 %v1149
        %2502 = vmatpush.msra.mxu0 %v1146
        %2503 = vmatpush.msra.mxu0 %v1143
        %2504 = vmatpush.msra.mxu0 %v1140
        %2505 = vmatpush.msra.mxu0 %v1137
        %2506 = vmatpush.msra.mxu0 %v1134
        %2507 = vmatpush.msra.mxu0 %v1131
        %2508 = vmatpush.msra.mxu0 %v1128
        %2509 = vmatmul.f32.gmra.mxu0 %v2477
        %v2510 = vpop.f32.mrf.mxu0
        %v2511 = vadd.f32 0.0, %v2510
        %2512 = vmatmul.f32.gmra.mxu0 %v2478
        %v2513 = vpop.f32.mrf.mxu0
        %v2514 = vadd.f32 0.0, %v2513
        %2515 = vmatmul.f32.gmra.mxu0 %v2479
        %v2516 = vpop.f32.mrf.mxu0
        %v2517 = vadd.f32 0.0, %v2516
        %2518 = vmatmul.f32.gmra.mxu0 %v2480
        %v2519 = vpop.f32.mrf.mxu0
        %v2520 = vadd.f32 0.0, %v2519
        %2521 = vmatmul.f32.gmra.mxu0 %v2481
        %v2522 = vpop.f32.mrf.mxu0
        %v2523 = vadd.f32 0.0, %v2522
        %2524 = vmatmul.f32.gmra.mxu0 %v2482
        %v2525 = vpop.f32.mrf.mxu0
        %v2526 = vadd.f32 0.0, %v2525
        %2527 = vmatmul.f32.gmra.mxu0 %v2483
        %v2528 = vpop.f32.mrf.mxu0
        %v2529 = vadd.f32 0.0, %v2528
        %2530 = vmatmul.f32.gmra.mxu0 %v2484
        %v2531 = vpop.f32.mrf.mxu0
        %v2532 = vadd.f32 0.0, %v2531
        %2533 = vmatmul.f32.gmra.mxu0 %v2485
        %v2534 = vpop.f32.mrf.mxu0
        %v2535 = vadd.f32 0.0, %v2534
        %2536 = vmatmul.f32.gmra.mxu0 %v2486
        %v2537 = vpop.f32.mrf.mxu0
        %v2538 = vadd.f32 0.0, %v2537
        %2539 = vmatmul.f32.gmra.mxu0 %v2487
        %v2540 = vpop.f32.mrf.mxu0
        %v2541 = vadd.f32 0.0, %v2540
        %2542 = vmatmul.f32.gmra.mxu0 %v2488
        %v2543 = vpop.f32.mrf.mxu0
        %v2544 = vadd.f32 0.0, %v2543
        %2545 = vmatmul.f32.gmra.mxu0 %v2489
        %v2546 = vpop.f32.mrf.mxu0
        %v2547 = vadd.f32 0.0, %v2546
        %2548 = vmatmul.f32.gmra.mxu0 %v2490
        %v2549 = vpop.f32.mrf.mxu0
        %v2550 = vadd.f32 0.0, %v2549
        %2551 = vmatmul.f32.gmra.mxu0 %v2491
        %v2552 = vpop.f32.mrf.mxu0
        %v2553 = vadd.f32 0.0, %v2552
        %2554 = vmatmul.f32.gmra.mxu0 %v2492
        %v2555 = vpop.f32.mrf.mxu0
        %v2556 = vadd.f32 0.0, %v2555
        %2557 = vdwg.mxu0
        %v2558 = vadd.f32 %v2077, %v2511
        %v2559 = vadd.f32 %v2080, %v2514
        %v2560 = vadd.f32 %v2083, %v2517
        %v2561 = vadd.f32 %v2086, %v2520
        %v2562 = vadd.f32 %v2089, %v2523
        %v2563 = vadd.f32 %v2092, %v2526
        %v2564 = vadd.f32 %v2095, %v2529
        %v2565 = vadd.f32 %v2098, %v2532
        %v2566 = vadd.f32 %v2101, %v2535
        %v2567 = vadd.f32 %v2104, %v2538
        %v2568 = vadd.f32 %v2107, %v2541
        %v2569 = vadd.f32 %v2110, %v2544
        %v2570 = vadd.f32 %v2113, %v2547
        %v2571 = vadd.f32 %v2116, %v2550
        %v2572 = vadd.f32 %v2119, %v2553
        %v2573 = vadd.f32 %v2122, %v2556
        %2574 = vrot.lane.b32.xlu0 %v1063, 104
        %v2575 = vpop.permute.xlu0 %2574
        %2576 = vrot.lane.b32.xlu0 %v1066, 104
        %v2577 = vpop.permute.xlu0 %2576
        %2578 = vrot.lane.b32.xlu0 %v1069, 104
        %v2579 = vpop.permute.xlu0 %2578
        %2580 = vrot.lane.b32.xlu0 %v1072, 104
        %v2581 = vpop.permute.xlu0 %2580
        %2582 = vrot.lane.b32.xlu0 %v1075, 104
        %v2583 = vpop.permute.xlu0 %2582
        %2584 = vrot.lane.b32.xlu0 %v1078, 104
        %v2585 = vpop.permute.xlu0 %2584
        %2586 = vrot.lane.b32.xlu0 %v1081, 104
        %v2587 = vpop.permute.xlu0 %2586
        %2588 = vrot.lane.b32.xlu0 %v1084, 104
        %v2589 = vpop.permute.xlu0 %2588
        %2590 = vrot.lane.b32.xlu0 %v1087, 104
        %v2591 = vpop.permute.xlu0 %2590
        %2592 = vrot.lane.b32.xlu0 %v1090, 104
        %v2593 = vpop.permute.xlu0 %2592
        %2594 = vrot.lane.b32.xlu0 %v1093, 104
        %v2595 = vpop.permute.xlu0 %2594
        %2596 = vrot.lane.b32.xlu0 %v1096, 104
        %v2597 = vpop.permute.xlu0 %2596
        %2598 = vrot.lane.b32.xlu0 %v1099, 104
        %v2599 = vpop.permute.xlu0 %2598
        %2600 = vrot.lane.b32.xlu0 %v1102, 104
        %v2601 = vpop.permute.xlu0 %2600
        %2602 = vrot.lane.b32.xlu0 %v1105, 104
        %v2603 = vpop.permute.xlu0 %2602
        %2604 = vrot.lane.b32.xlu0 %v1108, 104
        %v2605 = vpop.permute.xlu0 %2604
        %2606 = vrot.lane.b32.xlu0 %v1063, 72
        %v2607 = vpop.permute.xlu0 %2606
        %2608 = vrot.lane.b32.xlu0 %v1066, 72
        %v2609 = vpop.permute.xlu0 %2608
        %2610 = vrot.lane.b32.xlu0 %v1069, 72
        %v2611 = vpop.permute.xlu0 %2610
        %2612 = vrot.lane.b32.xlu0 %v1072, 72
        %v2613 = vpop.permute.xlu0 %2612
        %2614 = vrot.lane.b32.xlu0 %v1075, 72
        %v2615 = vpop.permute.xlu0 %2614
        %2616 = vrot.lane.b32.xlu0 %v1078, 72
        %v2617 = vpop.permute.xlu0 %2616
        %2618 = vrot.lane.b32.xlu0 %v1081, 72
        %v2619 = vpop.permute.xlu0 %2618
        %2620 = vrot.lane.b32.xlu0 %v1084, 72
        %v2621 = vpop.permute.xlu0 %2620
        %2622 = vrot.lane.b32.xlu0 %v1087, 72
        %v2623 = vpop.permute.xlu0 %2622
        %2624 = vrot.lane.b32.xlu0 %v1090, 72
        %v2625 = vpop.permute.xlu0 %2624
        %2626 = vrot.lane.b32.xlu0 %v1093, 72
        %v2627 = vpop.permute.xlu0 %2626
        %2628 = vrot.lane.b32.xlu0 %v1096, 72
        %v2629 = vpop.permute.xlu0 %2628
        %2630 = vrot.lane.b32.xlu0 %v1099, 72
        %v2631 = vpop.permute.xlu0 %2630
        %2632 = vrot.lane.b32.xlu0 %v1102, 72
        %v2633 = vpop.permute.xlu0 %2632
        %2634 = vrot.lane.b32.xlu0 %v1105, 72
        %v2635 = vpop.permute.xlu0 %2634
        %2636 = vrot.lane.b32.xlu0 %v1108, 72
        %v2637 = vpop.permute.xlu0 %2636
        %v2638 = vsel %vm1223, %v2575, 0
        %v2640 = vsel %vm1223, %v2577, 0
        %v2642 = vsel %vm1223, %v2579, 0
        %v2644 = vsel %vm1223, %v2581, 0
        %v2646 = vsel %vm1223, %v2583, 0
        %v2648 = vsel %vm1223, %v2585, 0
        %v2650 = vsel %vm1223, %v2587, 0
        %v2652 = vsel %vm1223, %v2589, 0
        %v2654 = vsel %vm1223, %v2591, 0
        %v2656 = vsel %vm1223, %v2593, 0
        %v2658 = vsel %vm1223, %v2595, 0
        %v2660 = vsel %vm1223, %v2597, 0
        %v2662 = vsel %vm1223, %v2599, 0
        %v2664 = vsel %vm1223, %v2601, 0
        %v2666 = vsel %vm1223, %v2603, 0
        %v2668 = vsel %vm1223, %v2605, 0
        %v2670 = vsel %vm1223, %v2607, 0
        %v2672 = vsel %vm1223, %v2609, 0
        %v2674 = vsel %vm1223, %v2611, 0
        %v2676 = vsel %vm1223, %v2613, 0
        %v2678 = vsel %vm1223, %v2615, 0
        %v2680 = vsel %vm1223, %v2617, 0
        %v2682 = vsel %vm1223, %v2619, 0
        %v2684 = vsel %vm1223, %v2621, 0
        %v2686 = vsel %vm1223, %v2623, 0
        %v2688 = vsel %vm1223, %v2625, 0
        %v2690 = vsel %vm1223, %v2627, 0
        %v2692 = vsel %vm1223, %v2629, 0
        %v2694 = vsel %vm1223, %v2631, 0
        %v2696 = vsel %vm1223, %v2633, 0
        %v2698 = vsel %vm1223, %v2635, 0
        %v2700 = vsel %vm1223, %v2637, 0
        %2702 = vmatpush.xpose.msra.mxu0 %v2700
        %2703 = vmatpush.xpose.msra.mxu0 %v2698
        %2704 = vmatpush.xpose.msra.mxu0 %v2696
        %2705 = vmatpush.xpose.msra.mxu0 %v2694
        %2706 = vmatpush.xpose.msra.mxu0 %v2692
        %2707 = vmatpush.xpose.msra.mxu0 %v2690
        %2708 = vmatpush.xpose.msra.mxu0 %v2688
        %2709 = vmatpush.xpose.msra.mxu0 %v2686
        %2710 = vmatpush.xpose.msra.mxu0 %v2684
        %2711 = vmatpush.xpose.msra.mxu0 %v2682
        %2712 = vmatpush.xpose.msra.mxu0 %v2680
        %2713 = vmatpush.xpose.msra.mxu0 %v2678
        %2714 = vmatpush.xpose.msra.mxu0 %v2676
        %2715 = vmatpush.xpose.msra.mxu0 %v2674
        %2716 = vmatpush.xpose.msra.mxu0 %v2672
        %2717 = vmatpush.xpose.msra.mxu0 %v2670
        %2718 = vmatmul.f32.gmra.mxu0 %v2638
        %v2719 = vpop.f32.mrf.mxu0
        %v2720 = vadd.f32 %v437, %v2719
        %2721 = vmatmul.f32.gmra.mxu0 %v2640
        %v2722 = vpop.f32.mrf.mxu0
        %v2723 = vadd.f32 %v438, %v2722
        %2724 = vmatmul.f32.gmra.mxu0 %v2642
        %v2725 = vpop.f32.mrf.mxu0
        %v2726 = vadd.f32 %v439, %v2725
        %2727 = vmatmul.f32.gmra.mxu0 %v2644
        %v2728 = vpop.f32.mrf.mxu0
        %v2729 = vadd.f32 %v440, %v2728
        %2730 = vmatmul.f32.gmra.mxu0 %v2646
        %v2731 = vpop.f32.mrf.mxu0
        %v2732 = vadd.f32 %v441, %v2731
        %2733 = vmatmul.f32.gmra.mxu0 %v2648
        %v2734 = vpop.f32.mrf.mxu0
        %v2735 = vadd.f32 %v442, %v2734
        %2736 = vmatmul.f32.gmra.mxu0 %v2650
        %v2737 = vpop.f32.mrf.mxu0
        %v2738 = vadd.f32 %v443, %v2737
        %2739 = vmatmul.f32.gmra.mxu0 %v2652
        %v2740 = vpop.f32.mrf.mxu0
        %v2741 = vadd.f32 %v444, %v2740
        %2742 = vmatmul.f32.gmra.mxu0 %v2654
        %v2743 = vpop.f32.mrf.mxu0
        %v2744 = vadd.f32 %v445, %v2743
        %2745 = vmatmul.f32.gmra.mxu0 %v2656
        %v2746 = vpop.f32.mrf.mxu0
        %v2747 = vadd.f32 %v446, %v2746
        %2748 = vmatmul.f32.gmra.mxu0 %v2658
        %v2749 = vpop.f32.mrf.mxu0
        %v2750 = vadd.f32 %v447, %v2749
        %2751 = vmatmul.f32.gmra.mxu0 %v2660
        %v2752 = vpop.f32.mrf.mxu0
        %v2753 = vadd.f32 %v448, %v2752
        %2754 = vmatmul.f32.gmra.mxu0 %v2662
        %v2755 = vpop.f32.mrf.mxu0
        %v2756 = vadd.f32 %v449, %v2755
        %2757 = vmatmul.f32.gmra.mxu0 %v2664
        %v2758 = vpop.f32.mrf.mxu0
        %v2759 = vadd.f32 %v450, %v2758
        %2760 = vmatmul.f32.gmra.mxu0 %v2666
        %v2761 = vpop.f32.mrf.mxu0
        %v2762 = vadd.f32 %v451, %v2761
        %2763 = vmatmul.f32.gmra.mxu0 %v2668
        %v2764 = vpop.f32.mrf.mxu0
        %v2765 = vadd.f32 %v452, %v2764
        %2766 = vdwg.mxu0
        %2767 = vmax.xlane.f32.xlu0 %v2720
        %v2768 = vpop.xlane.xlu0 %2767
        %2769 = vmax.xlane.f32.xlu0 %v2723
        %v2770 = vpop.xlane.xlu0 %2769
        %2771 = vmax.xlane.f32.xlu0 %v2726
        %v2772 = vpop.xlane.xlu0 %2771
        %2773 = vmax.xlane.f32.xlu0 %v2729
        %v2774 = vpop.xlane.xlu0 %2773
        %2775 = vmax.xlane.f32.xlu0 %v2732
        %v2776 = vpop.xlane.xlu0 %2775
        %2777 = vmax.xlane.f32.xlu0 %v2735
        %v2778 = vpop.xlane.xlu0 %2777
        %2779 = vmax.xlane.f32.xlu0 %v2738
        %v2780 = vpop.xlane.xlu0 %2779
        %2781 = vmax.xlane.f32.xlu0 %v2741
        %v2782 = vpop.xlane.xlu0 %2781
        %2783 = vmax.xlane.f32.xlu0 %v2744
        %v2784 = vpop.xlane.xlu0 %2783
        %2785 = vmax.xlane.f32.xlu0 %v2747
        %v2786 = vpop.xlane.xlu0 %2785
        %2787 = vmax.xlane.f32.xlu0 %v2750
        %v2788 = vpop.xlane.xlu0 %2787
        %2789 = vmax.xlane.f32.xlu0 %v2753
        %v2790 = vpop.xlane.xlu0 %2789
        %2791 = vmax.xlane.f32.xlu0 %v2756
        %v2792 = vpop.xlane.xlu0 %2791
        %2793 = vmax.xlane.f32.xlu0 %v2759
        %v2794 = vpop.xlane.xlu0 %2793
        %2795 = vmax.xlane.f32.xlu0 %v2762
        %v2796 = vpop.xlane.xlu0 %2795
        %2797 = vmax.xlane.f32.xlu0 %v2765
        %v2798 = vpop.xlane.xlu0 %2797
        %v2799 = vsub.f32 %v2720, %v2768
        %v2800 = vsub.f32 %v2723, %v2770
        %v2801 = vsub.f32 %v2726, %v2772
        %v2802 = vsub.f32 %v2729, %v2774
        %v2803 = vsub.f32 %v2732, %v2776
        %v2804 = vsub.f32 %v2735, %v2778
        %v2805 = vsub.f32 %v2738, %v2780
        %v2806 = vsub.f32 %v2741, %v2782
        %v2807 = vsub.f32 %v2744, %v2784
        %v2808 = vsub.f32 %v2747, %v2786
        %v2809 = vsub.f32 %v2750, %v2788
        %v2810 = vsub.f32 %v2753, %v2790
        %v2811 = vsub.f32 %v2756, %v2792
        %v2812 = vsub.f32 %v2759, %v2794
        %v2813 = vsub.f32 %v2762, %v2796
        %v2814 = vsub.f32 %v2765, %v2798
        %v2815 = vmul.f32 %v2799, 1.442695
        %v2816 = vpow.pop %v2815
        %v2817 = vmul.f32 %v2800, 1.442695
        %v2818 = vpow.pop %v2817
        %v2819 = vmul.f32 %v2801, 1.442695
        %v2820 = vpow.pop %v2819
        %v2821 = vmul.f32 %v2802, 1.442695
        %v2822 = vpow.pop %v2821
        %v2823 = vmul.f32 %v2803, 1.442695
        %v2824 = vpow.pop %v2823
        %v2825 = vmul.f32 %v2804, 1.442695
        %v2826 = vpow.pop %v2825
        %v2827 = vmul.f32 %v2805, 1.442695
        %v2828 = vpow.pop %v2827
        %v2829 = vmul.f32 %v2806, 1.442695
        %v2830 = vpow.pop %v2829
        %v2831 = vmul.f32 %v2807, 1.442695
        %v2832 = vpow.pop %v2831
        %v2833 = vmul.f32 %v2808, 1.442695
        %v2834 = vpow.pop %v2833
        %v2835 = vmul.f32 %v2809, 1.442695
        %v2836 = vpow.pop %v2835
        %v2837 = vmul.f32 %v2810, 1.442695
        %v2838 = vpow.pop %v2837
        %v2839 = vmul.f32 %v2811, 1.442695
        %v2840 = vpow.pop %v2839
        %v2841 = vmul.f32 %v2812, 1.442695
        %v2842 = vpow.pop %v2841
        %v2843 = vmul.f32 %v2813, 1.442695
        %v2844 = vpow.pop %v2843
        %v2845 = vmul.f32 %v2814, 1.442695
        %v2846 = vpow.pop %v2845
        %2847 = vadd.xlane.f32.xlu0 %v2816
        %v2848 = vpop.xlane.xlu0 %2847
        %2849 = vadd.xlane.f32.xlu0 %v2818
        %v2850 = vpop.xlane.xlu0 %2849
        %2851 = vadd.xlane.f32.xlu0 %v2820
        %v2852 = vpop.xlane.xlu0 %2851
        %2853 = vadd.xlane.f32.xlu0 %v2822
        %v2854 = vpop.xlane.xlu0 %2853
        %2855 = vadd.xlane.f32.xlu0 %v2824
        %v2856 = vpop.xlane.xlu0 %2855
        %2857 = vadd.xlane.f32.xlu0 %v2826
        %v2858 = vpop.xlane.xlu0 %2857
        %2859 = vadd.xlane.f32.xlu0 %v2828
        %v2860 = vpop.xlane.xlu0 %2859
        %2861 = vadd.xlane.f32.xlu0 %v2830
        %v2862 = vpop.xlane.xlu0 %2861
        %2863 = vadd.xlane.f32.xlu0 %v2832
        %v2864 = vpop.xlane.xlu0 %2863
        %2865 = vadd.xlane.f32.xlu0 %v2834
        %v2866 = vpop.xlane.xlu0 %2865
        %2867 = vadd.xlane.f32.xlu0 %v2836
        %v2868 = vpop.xlane.xlu0 %2867
        %2869 = vadd.xlane.f32.xlu0 %v2838
        %v2870 = vpop.xlane.xlu0 %2869
        %2871 = vadd.xlane.f32.xlu0 %v2840
        %v2872 = vpop.xlane.xlu0 %2871
        %2873 = vadd.xlane.f32.xlu0 %v2842
        %v2874 = vpop.xlane.xlu0 %2873
        %2875 = vadd.xlane.f32.xlu0 %v2844
        %v2876 = vpop.xlane.xlu0 %2875
        %2877 = vadd.xlane.f32.xlu0 %v2846
        %v2878 = vpop.xlane.xlu0 %2877
        %v2879 = vrcp.pop %v2848
        %v2880 = vrcp.pop %v2850
        %v2881 = vrcp.pop %v2852
        %v2882 = vrcp.pop %v2854
        %v2883 = vrcp.pop %v2856
        %v2884 = vrcp.pop %v2858
        %v2885 = vrcp.pop %v2860
        %v2886 = vrcp.pop %v2862
        %v2887 = vrcp.pop %v2864
        %v2888 = vrcp.pop %v2866
        %v2889 = vrcp.pop %v2868
        %v2890 = vrcp.pop %v2870
        %v2891 = vrcp.pop %v2872
        %v2892 = vrcp.pop %v2874
        %v2893 = vrcp.pop %v2876
        %v2894 = vrcp.pop %v2878
        %v2895 = vmul.f32 %v2879, 0.5
        %v2896 = vmul.f32 %v2880, 0.5
        %v2897 = vmul.f32 %v2881, 0.5
        %v2898 = vmul.f32 %v2882, 0.5
        %v2899 = vmul.f32 %v2883, 0.5
        %v2900 = vmul.f32 %v2884, 0.5
        %v2901 = vmul.f32 %v2885, 0.5
        %v2902 = vmul.f32 %v2886, 0.5
        %v2903 = vmul.f32 %v2887, 0.5
        %v2904 = vmul.f32 %v2888, 0.5
        %v2905 = vmul.f32 %v2889, 0.5
        %v2906 = vmul.f32 %v2890, 0.5
        %v2907 = vmul.f32 %v2891, 0.5
        %v2908 = vmul.f32 %v2892, 0.5
        %v2909 = vmul.f32 %v2893, 0.5
        %v2910 = vmul.f32 %v2894, 0.5
        %v2911 = vmul.f32 %v2816, %v2895
        %v2912 = vmul.f32 %v2818, %v2896
        %v2913 = vmul.f32 %v2820, %v2897
        %v2914 = vmul.f32 %v2822, %v2898
        %v2915 = vmul.f32 %v2824, %v2899
        %v2916 = vmul.f32 %v2826, %v2900
        %v2917 = vmul.f32 %v2828, %v2901
        %v2918 = vmul.f32 %v2830, %v2902
        %v2919 = vmul.f32 %v2832, %v2903
        %v2920 = vmul.f32 %v2834, %v2904
        %v2921 = vmul.f32 %v2836, %v2905
        %v2922 = vmul.f32 %v2838, %v2906
        %v2923 = vmul.f32 %v2840, %v2907
        %v2924 = vmul.f32 %v2842, %v2908
        %v2925 = vmul.f32 %v2844, %v2909
        %v2926 = vmul.f32 %v2846, %v2910
        %v2927 = vadd.f32 %v2911, %v453
        %v2928 = vadd.f32 %v2912, %v454
        %v2929 = vadd.f32 %v2913, %v455
        %v2930 = vadd.f32 %v2914, %v456
        %v2931 = vadd.f32 %v2915, %v457
        %v2932 = vadd.f32 %v2916, %v458
        %v2933 = vadd.f32 %v2917, %v459
        %v2934 = vadd.f32 %v2918, %v460
        %v2935 = vadd.f32 %v2919, %v461
        %v2936 = vadd.f32 %v2920, %v462
        %v2937 = vadd.f32 %v2921, %v463
        %v2938 = vadd.f32 %v2922, %v464
        %v2939 = vadd.f32 %v2923, %v465
        %v2940 = vadd.f32 %v2924, %v466
        %v2941 = vadd.f32 %v2925, %v467
        %v2942 = vadd.f32 %v2926, %v468
        %2959 = vrot.lane.b32.xlu0 %v1128, 96
        %v2960 = vpop.permute.xlu0 %2959
        %2961 = vrot.lane.b32.xlu0 %v1131, 96
        %v2962 = vpop.permute.xlu0 %2961
        %2963 = vrot.lane.b32.xlu0 %v1134, 96
        %v2964 = vpop.permute.xlu0 %2963
        %2965 = vrot.lane.b32.xlu0 %v1137, 96
        %v2966 = vpop.permute.xlu0 %2965
        %2967 = vrot.lane.b32.xlu0 %v1140, 96
        %v2968 = vpop.permute.xlu0 %2967
        %2969 = vrot.lane.b32.xlu0 %v1143, 96
        %v2970 = vpop.permute.xlu0 %2969
        %2971 = vrot.lane.b32.xlu0 %v1146, 96
        %v2972 = vpop.permute.xlu0 %2971
        %2973 = vrot.lane.b32.xlu0 %v1149, 96
        %v2974 = vpop.permute.xlu0 %2973
        %2975 = vrot.lane.b32.xlu0 %v1152, 96
        %v2976 = vpop.permute.xlu0 %2975
        %2977 = vrot.lane.b32.xlu0 %v1155, 96
        %v2978 = vpop.permute.xlu0 %2977
        %2979 = vrot.lane.b32.xlu0 %v1158, 96
        %v2980 = vpop.permute.xlu0 %2979
        %2981 = vrot.lane.b32.xlu0 %v1161, 96
        %v2982 = vpop.permute.xlu0 %2981
        %2983 = vrot.lane.b32.xlu0 %v1164, 96
        %v2984 = vpop.permute.xlu0 %2983
        %2985 = vrot.lane.b32.xlu0 %v1167, 96
        %v2986 = vpop.permute.xlu0 %2985
        %2987 = vrot.lane.b32.xlu0 %v1170, 96
        %v2988 = vpop.permute.xlu0 %2987
        %2989 = vrot.lane.b32.xlu0 %v1173, 96
        %v2990 = vpop.permute.xlu0 %2989
        %3007 = vmatpush.msra.mxu0 %v2990
        %3008 = vmatpush.msra.mxu0 %v2988
        %3009 = vmatpush.msra.mxu0 %v2986
        %3010 = vmatpush.msra.mxu0 %v2984
        %3011 = vmatpush.msra.mxu0 %v2982
        %3012 = vmatpush.msra.mxu0 %v2980
        %3013 = vmatpush.msra.mxu0 %v2978
        %3014 = vmatpush.msra.mxu0 %v2976
        %3015 = vmatpush.msra.mxu0 %v2974
        %3016 = vmatpush.msra.mxu0 %v2972
        %3017 = vmatpush.msra.mxu0 %v2970
        %3018 = vmatpush.msra.mxu0 %v2968
        %3019 = vmatpush.msra.mxu0 %v2966
        %3020 = vmatpush.msra.mxu0 %v2964
        %3021 = vmatpush.msra.mxu0 %v2962
        %3022 = vmatpush.msra.mxu0 %v2960
        %3023 = vmatmul.f32.gmra.mxu0 %v2927
        %v3024 = vpop.f32.mrf.mxu0
        %v3025 = vadd.f32 0.0, %v3024
        %3026 = vmatmul.f32.gmra.mxu0 %v2928
        %v3027 = vpop.f32.mrf.mxu0
        %v3028 = vadd.f32 0.0, %v3027
        %3029 = vmatmul.f32.gmra.mxu0 %v2929
        %v3030 = vpop.f32.mrf.mxu0
        %v3031 = vadd.f32 0.0, %v3030
        %3032 = vmatmul.f32.gmra.mxu0 %v2930
        %v3033 = vpop.f32.mrf.mxu0
        %v3034 = vadd.f32 0.0, %v3033
        %3035 = vmatmul.f32.gmra.mxu0 %v2931
        %v3036 = vpop.f32.mrf.mxu0
        %v3037 = vadd.f32 0.0, %v3036
        %3038 = vmatmul.f32.gmra.mxu0 %v2932
        %v3039 = vpop.f32.mrf.mxu0
        %v3040 = vadd.f32 0.0, %v3039
        %3041 = vmatmul.f32.gmra.mxu0 %v2933
        %v3042 = vpop.f32.mrf.mxu0
        %v3043 = vadd.f32 0.0, %v3042
        %3044 = vmatmul.f32.gmra.mxu0 %v2934
        %v3045 = vpop.f32.mrf.mxu0
        %v3046 = vadd.f32 0.0, %v3045
        %3047 = vmatmul.f32.gmra.mxu0 %v2935
        %v3048 = vpop.f32.mrf.mxu0
        %v3049 = vadd.f32 0.0, %v3048
        %3050 = vmatmul.f32.gmra.mxu0 %v2936
        %v3051 = vpop.f32.mrf.mxu0
        %v3052 = vadd.f32 0.0, %v3051
        %3053 = vmatmul.f32.gmra.mxu0 %v2937
        %v3054 = vpop.f32.mrf.mxu0
        %v3055 = vadd.f32 0.0, %v3054
        %3056 = vmatmul.f32.gmra.mxu0 %v2938
        %v3057 = vpop.f32.mrf.mxu0
        %v3058 = vadd.f32 0.0, %v3057
        %3059 = vmatmul.f32.gmra.mxu0 %v2939
        %v3060 = vpop.f32.mrf.mxu0
        %v3061 = vadd.f32 0.0, %v3060
        %3062 = vmatmul.f32.gmra.mxu0 %v2940
        %v3063 = vpop.f32.mrf.mxu0
        %v3064 = vadd.f32 0.0, %v3063
        %3065 = vmatmul.f32.gmra.mxu0 %v2941
        %v3066 = vpop.f32.mrf.mxu0
        %v3067 = vadd.f32 0.0, %v3066
        %3068 = vmatmul.f32.gmra.mxu0 %v2942
        %v3069 = vpop.f32.mrf.mxu0
        %v3070 = vadd.f32 0.0, %v3069
        %3071 = vdwg.mxu0
        %v3072 = vadd.f32 %v2558, %v3025
        %v3073 = vadd.f32 %v2559, %v3028
        %v3074 = vadd.f32 %v2560, %v3031
        %v3075 = vadd.f32 %v2561, %v3034
        %v3076 = vadd.f32 %v2562, %v3037
        %v3077 = vadd.f32 %v2563, %v3040
        %v3078 = vadd.f32 %v2564, %v3043
        %v3079 = vadd.f32 %v2565, %v3046
        %v3080 = vadd.f32 %v2566, %v3049
        %v3081 = vadd.f32 %v2567, %v3052
        %v3082 = vadd.f32 %v2568, %v3055
        %v3083 = vadd.f32 %v2569, %v3058
        %v3084 = vadd.f32 %v2570, %v3061
        %v3085 = vadd.f32 %v2571, %v3064
        %v3086 = vadd.f32 %v2572, %v3067
        %v3087 = vadd.f32 %v2573, %v3070
        %v3088 = vadd.f32 %v540, %v3072
        %v3089 = vadd.f32 %v543, %v3073
        %v3090 = vadd.f32 %v546, %v3074
        %v3091 = vadd.f32 %v549, %v3075
        %v3092 = vadd.f32 %v552, %v3076
        %v3093 = vadd.f32 %v555, %v3077
        %v3094 = vadd.f32 %v558, %v3078
        %v3095 = vadd.f32 %v561, %v3079
        %v3096 = vadd.f32 %v564, %v3080
        %v3097 = vadd.f32 %v567, %v3081
        %v3098 = vadd.f32 %v570, %v3082
        %v3099 = vadd.f32 %v573, %v3083
        %v3100 = vadd.f32 %v576, %v3084
        %v3101 = vadd.f32 %v579, %v3085
        %v3102 = vadd.f32 %v582, %v3086
        %v3103 = vadd.f32 %v585, %v3087
        %v3104 = vld [vmem:[%s7 + $0x3] sm:$0x1]
        %v3105 = vperm.slane %v3104, 0
        %v3106 = vadd.f32 %v3088, %v3105
        %v3107 = vadd.f32 %v3089, %v3105
        %v3108 = vadd.f32 %v3090, %v3105
        %v3109 = vadd.f32 %v3091, %v3105
        %v3110 = vadd.f32 %v3092, %v3105
        %v3111 = vadd.f32 %v3093, %v3105
        %v3112 = vadd.f32 %v3094, %v3105
        %v3113 = vadd.f32 %v3095, %v3105
        %v3114 = vadd.f32 %v3096, %v3105
        %v3115 = vadd.f32 %v3097, %v3105
        %v3116 = vadd.f32 %v3098, %v3105
        %v3117 = vadd.f32 %v3099, %v3105
        %v3118 = vadd.f32 %v3100, %v3105
        %v3119 = vadd.f32 %v3101, %v3105
        %v3120 = vadd.f32 %v3102, %v3105
        %v3121 = vadd.f32 %v3103, %v3105
        %v3122 = vld [vmem:[%s7 + $0x4] sm:$0x1]
        %v3123 = vld [vmem:[%s7 + $0x5] sm:$0x1]
        %v3124 = vsel %vm589, %v3106, 0.0
        %3125 = vadd.xlane.f32.xlu0 %v3124
        %v3126 = vpop.xlane.xlu0 %3125
        %v3127 = vsel %vm589, %v3107, 0.0
        %3128 = vadd.xlane.f32.xlu0 %v3127
        %v3129 = vpop.xlane.xlu0 %3128
        %v3130 = vsel %vm589, %v3108, 0.0
        %3131 = vadd.xlane.f32.xlu0 %v3130
        %v3132 = vpop.xlane.xlu0 %3131
        %v3133 = vsel %vm589, %v3109, 0.0
        %3134 = vadd.xlane.f32.xlu0 %v3133
        %v3135 = vpop.xlane.xlu0 %3134
        %v3136 = vsel %vm589, %v3110, 0.0
        %3137 = vadd.xlane.f32.xlu0 %v3136
        %v3138 = vpop.xlane.xlu0 %3137
        %v3139 = vsel %vm589, %v3111, 0.0
        %3140 = vadd.xlane.f32.xlu0 %v3139
        %v3141 = vpop.xlane.xlu0 %3140
        %v3142 = vsel %vm589, %v3112, 0.0
        %3143 = vadd.xlane.f32.xlu0 %v3142
        %v3144 = vpop.xlane.xlu0 %3143
        %v3145 = vsel %vm589, %v3113, 0.0
        %3146 = vadd.xlane.f32.xlu0 %v3145
        %v3147 = vpop.xlane.xlu0 %3146
        %v3148 = vsel %vm589, %v3114, 0.0
        %3149 = vadd.xlane.f32.xlu0 %v3148
        %v3150 = vpop.xlane.xlu0 %3149
        %v3151 = vsel %vm589, %v3115, 0.0
        %3152 = vadd.xlane.f32.xlu0 %v3151
        %v3153 = vpop.xlane.xlu0 %3152
        %v3154 = vsel %vm589, %v3116, 0.0
        %3155 = vadd.xlane.f32.xlu0 %v3154
        %v3156 = vpop.xlane.xlu0 %3155
        %v3157 = vsel %vm589, %v3117, 0.0
        %3158 = vadd.xlane.f32.xlu0 %v3157
        %v3159 = vpop.xlane.xlu0 %3158
        %v3160 = vsel %vm589, %v3118, 0.0
        %3161 = vadd.xlane.f32.xlu0 %v3160
        %v3162 = vpop.xlane.xlu0 %3161
        %v3163 = vsel %vm589, %v3119, 0.0
        %3164 = vadd.xlane.f32.xlu0 %v3163
        %v3165 = vpop.xlane.xlu0 %3164
        %v3166 = vsel %vm589, %v3120, 0.0
        %3167 = vadd.xlane.f32.xlu0 %v3166
        %v3168 = vpop.xlane.xlu0 %3167
        %v3169 = vsel %vm589, %v3121, 0.0
        %3170 = vadd.xlane.f32.xlu0 %v3169
        %v3171 = vpop.xlane.xlu0 %3170
        %v3172 = vmul.f32 %v3126, %v644
        %v3173 = vmul.f32 %v3129, %v644
        %v3174 = vmul.f32 %v3132, %v644
        %v3175 = vmul.f32 %v3135, %v644
        %v3176 = vmul.f32 %v3138, %v644
        %v3177 = vmul.f32 %v3141, %v644
        %v3178 = vmul.f32 %v3144, %v644
        %v3179 = vmul.f32 %v3147, %v644
        %v3180 = vmul.f32 %v3150, %v644
        %v3181 = vmul.f32 %v3153, %v644
        %v3182 = vmul.f32 %v3156, %v644
        %v3183 = vmul.f32 %v3159, %v644
        %v3184 = vmul.f32 %v3162, %v644
        %v3185 = vmul.f32 %v3165, %v644
        %v3186 = vmul.f32 %v3168, %v644
        %v3187 = vmul.f32 %v3171, %v644
        %v3188 = vsub.f32 %v3106, %v3172
        %v3189 = vsub.f32 %v3107, %v3173
        %v3190 = vsub.f32 %v3108, %v3174
        %v3191 = vsub.f32 %v3109, %v3175
        %v3192 = vsub.f32 %v3110, %v3176
        %v3193 = vsub.f32 %v3111, %v3177
        %v3194 = vsub.f32 %v3112, %v3178
        %v3195 = vsub.f32 %v3113, %v3179
        %v3196 = vsub.f32 %v3114, %v3180
        %v3197 = vsub.f32 %v3115, %v3181
        %v3198 = vsub.f32 %v3116, %v3182
        %v3199 = vsub.f32 %v3117, %v3183
        %v3200 = vsub.f32 %v3118, %v3184
        %v3201 = vsub.f32 %v3119, %v3185
        %v3202 = vsub.f32 %v3120, %v3186
        %v3203 = vsub.f32 %v3121, %v3187
        %v3204 = vmul.f32 %v3188, %v3188
        %v3205 = vmul.f32 %v3189, %v3189
        %v3206 = vmul.f32 %v3190, %v3190
        %v3207 = vmul.f32 %v3191, %v3191
        %v3208 = vmul.f32 %v3192, %v3192
        %v3209 = vmul.f32 %v3193, %v3193
        %v3210 = vmul.f32 %v3194, %v3194
        %v3211 = vmul.f32 %v3195, %v3195
        %v3212 = vmul.f32 %v3196, %v3196
        %v3213 = vmul.f32 %v3197, %v3197
        %v3214 = vmul.f32 %v3198, %v3198
        %v3215 = vmul.f32 %v3199, %v3199
        %v3216 = vmul.f32 %v3200, %v3200
        %v3217 = vmul.f32 %v3201, %v3201
        %v3218 = vmul.f32 %v3202, %v3202
        %v3219 = vmul.f32 %v3203, %v3203
        %v3220 = vsel %vm589, %v3204, 0.0
        %3221 = vadd.xlane.f32.xlu0 %v3220
        %v3222 = vpop.xlane.xlu0 %3221
        %v3223 = vsel %vm589, %v3205, 0.0
        %3224 = vadd.xlane.f32.xlu0 %v3223
        %v3225 = vpop.xlane.xlu0 %3224
        %v3226 = vsel %vm589, %v3206, 0.0
        %3227 = vadd.xlane.f32.xlu0 %v3226
        %v3228 = vpop.xlane.xlu0 %3227
        %v3229 = vsel %vm589, %v3207, 0.0
        %3230 = vadd.xlane.f32.xlu0 %v3229
        %v3231 = vpop.xlane.xlu0 %3230
        %v3232 = vsel %vm589, %v3208, 0.0
        %3233 = vadd.xlane.f32.xlu0 %v3232
        %v3234 = vpop.xlane.xlu0 %3233
        %v3235 = vsel %vm589, %v3209, 0.0
        %3236 = vadd.xlane.f32.xlu0 %v3235
        %v3237 = vpop.xlane.xlu0 %3236
        %v3238 = vsel %vm589, %v3210, 0.0
        %3239 = vadd.xlane.f32.xlu0 %v3238
        %v3240 = vpop.xlane.xlu0 %3239
        %v3241 = vsel %vm589, %v3211, 0.0
        %3242 = vadd.xlane.f32.xlu0 %v3241
        %v3243 = vpop.xlane.xlu0 %3242
        %v3244 = vsel %vm589, %v3212, 0.0
        %3245 = vadd.xlane.f32.xlu0 %v3244
        %v3246 = vpop.xlane.xlu0 %3245
        %v3247 = vsel %vm589, %v3213, 0.0
        %3248 = vadd.xlane.f32.xlu0 %v3247
        %v3249 = vpop.xlane.xlu0 %3248
        %v3250 = vsel %vm589, %v3214, 0.0
        %3251 = vadd.xlane.f32.xlu0 %v3250
        %v3252 = vpop.xlane.xlu0 %3251
        %v3253 = vsel %vm589, %v3215, 0.0
        %3254 = vadd.xlane.f32.xlu0 %v3253
        %v3255 = vpop.xlane.xlu0 %3254
        %v3256 = vsel %vm589, %v3216, 0.0
        %3257 = vadd.xlane.f32.xlu0 %v3256
        %v3258 = vpop.xlane.xlu0 %3257
        %v3259 = vsel %vm589, %v3217, 0.0
        %3260 = vadd.xlane.f32.xlu0 %v3259
        %v3261 = vpop.xlane.xlu0 %3260
        %v3262 = vsel %vm589, %v3218, 0.0
        %3263 = vadd.xlane.f32.xlu0 %v3262
        %v3264 = vpop.xlane.xlu0 %3263
        %v3265 = vsel %vm589, %v3219, 0.0
        %3266 = vadd.xlane.f32.xlu0 %v3265
        %v3267 = vpop.xlane.xlu0 %3266
        %v3268 = vmul.f32 %v3222, %v644
        %v3269 = vmul.f32 %v3225, %v644
        %v3270 = vmul.f32 %v3228, %v644
        %v3271 = vmul.f32 %v3231, %v644
        %v3272 = vmul.f32 %v3234, %v644
        %v3273 = vmul.f32 %v3237, %v644
        %v3274 = vmul.f32 %v3240, %v644
        %v3275 = vmul.f32 %v3243, %v644
        %v3276 = vmul.f32 %v3246, %v644
        %v3277 = vmul.f32 %v3249, %v644
        %v3278 = vmul.f32 %v3252, %v644
        %v3279 = vmul.f32 %v3255, %v644
        %v3280 = vmul.f32 %v3258, %v644
        %v3281 = vmul.f32 %v3261, %v644
        %v3282 = vmul.f32 %v3264, %v644
        %v3283 = vmul.f32 %v3267, %v644
        %v3284 = vadd.f32 %v3268, 1e-05
        %v3285 = vadd.f32 %v3269, 1e-05
        %v3286 = vadd.f32 %v3270, 1e-05
        %v3287 = vadd.f32 %v3271, 1e-05
        %v3288 = vadd.f32 %v3272, 1e-05
        %v3289 = vadd.f32 %v3273, 1e-05
        %v3290 = vadd.f32 %v3274, 1e-05
        %v3291 = vadd.f32 %v3275, 1e-05
        %v3292 = vadd.f32 %v3276, 1e-05
        %v3293 = vadd.f32 %v3277, 1e-05
        %v3294 = vadd.f32 %v3278, 1e-05
        %v3295 = vadd.f32 %v3279, 1e-05
        %v3296 = vadd.f32 %v3280, 1e-05
        %v3297 = vadd.f32 %v3281, 1e-05
        %v3298 = vadd.f32 %v3282, 1e-05
        %v3299 = vadd.f32 %v3283, 1e-05
        %v3300 = vrsqrt.pop %v3284
        %v3301 = vmul.f32 %v3300, %v3284
        %v3302 = vmul.f32 %v3301, %v3300
        %v3303 = vmul.f32 0.5, %v3302
        %v3304 = vsub.f32 1.5, %v3303
        %v3305 = vmul.f32 %v3300, %v3304
        %vm3306 = vweird.f32 %v3284
        %vm3307 = vweird.f32 %v3300
        %vm3308 = vmor %vm3306, %vm3307
        %v3309 = vsel %vm3308, %v3300, %v3305
        %v3310 = vrsqrt.pop %v3285
        %v3311 = vmul.f32 %v3310, %v3285
        %v3312 = vmul.f32 %v3311, %v3310
        %v3313 = vmul.f32 0.5, %v3312
        %v3314 = vsub.f32 1.5, %v3313
        %v3315 = vmul.f32 %v3310, %v3314
        %vm3316 = vweird.f32 %v3285
        %vm3317 = vweird.f32 %v3310
        %vm3318 = vmor %vm3316, %vm3317
        %v3319 = vsel %vm3318, %v3310, %v3315
        %v3320 = vrsqrt.pop %v3286
        %v3321 = vmul.f32 %v3320, %v3286
        %v3322 = vmul.f32 %v3321, %v3320
        %v3323 = vmul.f32 0.5, %v3322
        %v3324 = vsub.f32 1.5, %v3323
        %v3325 = vmul.f32 %v3320, %v3324
        %vm3326 = vweird.f32 %v3286
        %vm3327 = vweird.f32 %v3320
        %vm3328 = vmor %vm3326, %vm3327
        %v3329 = vsel %vm3328, %v3320, %v3325
        %v3330 = vrsqrt.pop %v3287
        %v3331 = vmul.f32 %v3330, %v3287
        %v3332 = vmul.f32 %v3331, %v3330
        %v3333 = vmul.f32 0.5, %v3332
        %v3334 = vsub.f32 1.5, %v3333
        %v3335 = vmul.f32 %v3330, %v3334
        %vm3336 = vweird.f32 %v3287
        %vm3337 = vweird.f32 %v3330
        %vm3338 = vmor %vm3336, %vm3337
        %v3339 = vsel %vm3338, %v3330, %v3335
        %v3340 = vrsqrt.pop %v3288
        %v3341 = vmul.f32 %v3340, %v3288
        %v3342 = vmul.f32 %v3341, %v3340
        %v3343 = vmul.f32 0.5, %v3342
        %v3344 = vsub.f32 1.5, %v3343
        %v3345 = vmul.f32 %v3340, %v3344
        %vm3346 = vweird.f32 %v3288
        %vm3347 = vweird.f32 %v3340
        %vm3348 = vmor %vm3346, %vm3347
        %v3349 = vsel %vm3348, %v3340, %v3345
        %v3350 = vrsqrt.pop %v3289
        %v3351 = vmul.f32 %v3350, %v3289
        %v3352 = vmul.f32 %v3351, %v3350
        %v3353 = vmul.f32 0.5, %v3352
        %v3354 = vsub.f32 1.5, %v3353
        %v3355 = vmul.f32 %v3350, %v3354
        %vm3356 = vweird.f32 %v3289
        %vm3357 = vweird.f32 %v3350
        %vm3358 = vmor %vm3356, %vm3357
        %v3359 = vsel %vm3358, %v3350, %v3355
        %v3360 = vrsqrt.pop %v3290
        %v3361 = vmul.f32 %v3360, %v3290
        %v3362 = vmul.f32 %v3361, %v3360
        %v3363 = vmul.f32 0.5, %v3362
        %v3364 = vsub.f32 1.5, %v3363
        %v3365 = vmul.f32 %v3360, %v3364
        %vm3366 = vweird.f32 %v3290
        %vm3367 = vweird.f32 %v3360
        %vm3368 = vmor %vm3366, %vm3367
        %v3369 = vsel %vm3368, %v3360, %v3365
        %v3370 = vrsqrt.pop %v3291
        %v3371 = vmul.f32 %v3370, %v3291
        %v3372 = vmul.f32 %v3371, %v3370
        %v3373 = vmul.f32 0.5, %v3372
        %v3374 = vsub.f32 1.5, %v3373
        %v3375 = vmul.f32 %v3370, %v3374
        %vm3376 = vweird.f32 %v3291
        %vm3377 = vweird.f32 %v3370
        %vm3378 = vmor %vm3376, %vm3377
        %v3379 = vsel %vm3378, %v3370, %v3375
        %v3380 = vrsqrt.pop %v3292
        %v3381 = vmul.f32 %v3380, %v3292
        %v3382 = vmul.f32 %v3381, %v3380
        %v3383 = vmul.f32 0.5, %v3382
        %v3384 = vsub.f32 1.5, %v3383
        %v3385 = vmul.f32 %v3380, %v3384
        %vm3386 = vweird.f32 %v3292
        %vm3387 = vweird.f32 %v3380
        %vm3388 = vmor %vm3386, %vm3387
        %v3389 = vsel %vm3388, %v3380, %v3385
        %v3390 = vrsqrt.pop %v3293
        %v3391 = vmul.f32 %v3390, %v3293
        %v3392 = vmul.f32 %v3391, %v3390
        %v3393 = vmul.f32 0.5, %v3392
        %v3394 = vsub.f32 1.5, %v3393
        %v3395 = vmul.f32 %v3390, %v3394
        %vm3396 = vweird.f32 %v3293
        %vm3397 = vweird.f32 %v3390
        %vm3398 = vmor %vm3396, %vm3397
        %v3399 = vsel %vm3398, %v3390, %v3395
        %v3400 = vrsqrt.pop %v3294
        %v3401 = vmul.f32 %v3400, %v3294
        %v3402 = vmul.f32 %v3401, %v3400
        %v3403 = vmul.f32 0.5, %v3402
        %v3404 = vsub.f32 1.5, %v3403
        %v3405 = vmul.f32 %v3400, %v3404
        %vm3406 = vweird.f32 %v3294
        %vm3407 = vweird.f32 %v3400
        %vm3408 = vmor %vm3406, %vm3407
        %v3409 = vsel %vm3408, %v3400, %v3405
        %v3410 = vrsqrt.pop %v3295
        %v3411 = vmul.f32 %v3410, %v3295
        %v3412 = vmul.f32 %v3411, %v3410
        %v3413 = vmul.f32 0.5, %v3412
        %v3414 = vsub.f32 1.5, %v3413
        %v3415 = vmul.f32 %v3410, %v3414
        %vm3416 = vweird.f32 %v3295
        %vm3417 = vweird.f32 %v3410
        %vm3418 = vmor %vm3416, %vm3417
        %v3419 = vsel %vm3418, %v3410, %v3415
        %v3420 = vrsqrt.pop %v3296
        %v3421 = vmul.f32 %v3420, %v3296
        %v3422 = vmul.f32 %v3421, %v3420
        %v3423 = vmul.f32 0.5, %v3422
        %v3424 = vsub.f32 1.5, %v3423
        %v3425 = vmul.f32 %v3420, %v3424
        %vm3426 = vweird.f32 %v3296
        %vm3427 = vweird.f32 %v3420
        %vm3428 = vmor %vm3426, %vm3427
        %v3429 = vsel %vm3428, %v3420, %v3425
        %v3430 = vrsqrt.pop %v3297
        %v3431 = vmul.f32 %v3430, %v3297
        %v3432 = vmul.f32 %v3431, %v3430
        %v3433 = vmul.f32 0.5, %v3432
        %v3434 = vsub.f32 1.5, %v3433
        %v3435 = vmul.f32 %v3430, %v3434
        %vm3436 = vweird.f32 %v3297
        %vm3437 = vweird.f32 %v3430
        %vm3438 = vmor %vm3436, %vm3437
        %v3439 = vsel %vm3438, %v3430, %v3435
        %v3440 = vrsqrt.pop %v3298
        %v3441 = vmul.f32 %v3440, %v3298
        %v3442 = vmul.f32 %v3441, %v3440
        %v3443 = vmul.f32 0.5, %v3442
        %v3444 = vsub.f32 1.5, %v3443
        %v3445 = vmul.f32 %v3440, %v3444
        %vm3446 = vweird.f32 %v3298
        %vm3447 = vweird.f32 %v3440
        %vm3448 = vmor %vm3446, %vm3447
        %v3449 = vsel %vm3448, %v3440, %v3445
        %v3450 = vrsqrt.pop %v3299
        %v3451 = vmul.f32 %v3450, %v3299
        %v3452 = vmul.f32 %v3451, %v3450
        %v3453 = vmul.f32 0.5, %v3452
        %v3454 = vsub.f32 1.5, %v3453
        %v3455 = vmul.f32 %v3450, %v3454
        %vm3456 = vweird.f32 %v3299
        %vm3457 = vweird.f32 %v3450
        %vm3458 = vmor %vm3456, %vm3457
        %v3459 = vsel %vm3458, %v3450, %v3455
        %v3460 = vmul.f32 %v3188, %v3309
        %v3461 = vmul.f32 %v3189, %v3319
        %v3462 = vmul.f32 %v3190, %v3329
        %v3463 = vmul.f32 %v3191, %v3339
        %v3464 = vmul.f32 %v3192, %v3349
        %v3465 = vmul.f32 %v3193, %v3359
        %v3466 = vmul.f32 %v3194, %v3369
        %v3467 = vmul.f32 %v3195, %v3379
        %v3468 = vmul.f32 %v3196, %v3389
        %v3469 = vmul.f32 %v3197, %v3399
        %v3470 = vmul.f32 %v3198, %v3409
        %v3471 = vmul.f32 %v3199, %v3419
        %v3472 = vmul.f32 %v3200, %v3429
        %v3473 = vmul.f32 %v3201, %v3439
        %v3474 = vmul.f32 %v3202, %v3449
        %v3475 = vmul.f32 %v3203, %v3459
        %v3476 = vperm.slane %v3122, 0
        %v3477 = vmul.f32 %v3460, %v3476
        %v3478 = vmul.f32 %v3461, %v3476
        %v3479 = vmul.f32 %v3462, %v3476
        %v3480 = vmul.f32 %v3463, %v3476
        %v3481 = vmul.f32 %v3464, %v3476
        %v3482 = vmul.f32 %v3465, %v3476
        %v3483 = vmul.f32 %v3466, %v3476
        %v3484 = vmul.f32 %v3467, %v3476
        %v3485 = vmul.f32 %v3468, %v3476
        %v3486 = vmul.f32 %v3469, %v3476
        %v3487 = vmul.f32 %v3470, %v3476
        %v3488 = vmul.f32 %v3471, %v3476
        %v3489 = vmul.f32 %v3472, %v3476
        %v3490 = vmul.f32 %v3473, %v3476
        %v3491 = vmul.f32 %v3474, %v3476
        %v3492 = vmul.f32 %v3475, %v3476
        %v3493 = vperm.slane %v3123, 0
        %v3494 = vadd.f32 %v3477, %v3493
        %v3495 = vadd.f32 %v3478, %v3493
        %v3496 = vadd.f32 %v3479, %v3493
        %v3497 = vadd.f32 %v3480, %v3493
        %v3498 = vadd.f32 %v3481, %v3493
        %v3499 = vadd.f32 %v3482, %v3493
        %v3500 = vadd.f32 %v3483, %v3493
        %v3501 = vadd.f32 %v3484, %v3493
        %v3502 = vadd.f32 %v3485, %v3493
        %v3503 = vadd.f32 %v3486, %v3493
        %v3504 = vadd.f32 %v3487, %v3493
        %v3505 = vadd.f32 %v3488, %v3493
        %v3506 = vadd.f32 %v3489, %v3493
        %v3507 = vadd.f32 %v3490, %v3493
        %v3508 = vadd.f32 %v3491, %v3493
        %v3509 = vadd.f32 %v3492, %v3493
        %v3510 = vld [vmem:[#allocation7] sm:$0xff]
        %v3511 = vld [vmem:[#allocation7 + $0x8] sm:$0xff]
        %v3512 = vld [vmem:[#allocation7 + $0x10] sm:$0xff]
        %v3513 = vld [vmem:[#allocation7 + $0x18] sm:$0xff]
        %v3514 = vld [vmem:[%s7 + $0x6] sm:$0x1]
        %v3515 = vperm.slane %v3514, 0
        %v3517 = vsel %vm589, %v3494, 0
        %v3520 = vsel %vm589, %v3495, 0
        %v3523 = vsel %vm589, %v3496, 0
        %v3526 = vsel %vm589, %v3497, 0
        %v3529 = vsel %vm589, %v3498, 0
        %v3532 = vsel %vm589, %v3499, 0
        %v3535 = vsel %vm589, %v3500, 0
        %v3538 = vsel %vm589, %v3501, 0
        %v3541 = vsel %vm589, %v3502, 0
        %v3544 = vsel %vm589, %v3503, 0
        %v3547 = vsel %vm589, %v3504, 0
        %v3550 = vsel %vm589, %v3505, 0
        %v3553 = vsel %vm589, %v3506, 0
        %v3556 = vsel %vm589, %v3507, 0
        %v3559 = vsel %vm589, %v3508, 0
        %v3562 = vsel %vm589, %v3509, 0
        %3564 = vmatpush.msra.mxu0 0.0
        %3565 = vmatpush.msra.mxu0 0.0
        %3566 = vmatpush.msra.mxu0 0.0
        %3567 = vmatpush.msra.mxu0 0.0
        %3568 = vmatpush.msra.mxu0 0.0
        %3569 = vmatpush.msra.mxu0 0.0
        %3570 = vmatpush.msra.mxu0 0.0
        %3571 = vmatpush.msra.mxu0 0.0
        %3572 = vmatpush.msra.mxu0 0.0
        %3573 = vmatpush.msra.mxu0 0.0
        %3574 = vmatpush.msra.mxu0 0.0
        %3575 = vmatpush.msra.mxu0 0.0
        %3576 = vmatpush.msra.mxu0 %v3513
        %3577 = vmatpush.msra.mxu0 %v3512
        %3578 = vmatpush.msra.mxu0 %v3511
        %3579 = vmatpush.msra.mxu0 %v3510
        %3580 = vmatmul.f32.gmra.mxu0 %v3517
        %v3581 = vpop.f32.mrf.mxu0
        %v3582 = vadd.f32 %v3515, %v3581
        %3583 = vmatmul.f32.gmra.mxu0 %v3520
        %v3584 = vpop.f32.mrf.mxu0
        %v3585 = vadd.f32 %v3515, %v3584
        %3586 = vmatmul.f32.gmra.mxu0 %v3523
        %v3587 = vpop.f32.mrf.mxu0
        %v3588 = vadd.f32 %v3515, %v3587
        %3589 = vmatmul.f32.gmra.mxu0 %v3526
        %v3590 = vpop.f32.mrf.mxu0
        %v3591 = vadd.f32 %v3515, %v3590
        %3592 = vmatmul.f32.gmra.mxu0 %v3529
        %v3593 = vpop.f32.mrf.mxu0
        %v3594 = vadd.f32 %v3515, %v3593
        %3595 = vmatmul.f32.gmra.mxu0 %v3532
        %v3596 = vpop.f32.mrf.mxu0
        %v3597 = vadd.f32 %v3515, %v3596
        %3598 = vmatmul.f32.gmra.mxu0 %v3535
        %v3599 = vpop.f32.mrf.mxu0
        %v3600 = vadd.f32 %v3515, %v3599
        %3601 = vmatmul.f32.gmra.mxu0 %v3538
        %v3602 = vpop.f32.mrf.mxu0
        %v3603 = vadd.f32 %v3515, %v3602
        %3604 = vmatmul.f32.gmra.mxu0 %v3541
        %v3605 = vpop.f32.mrf.mxu0
        %v3606 = vadd.f32 %v3515, %v3605
        %3607 = vmatmul.f32.gmra.mxu0 %v3544
        %v3608 = vpop.f32.mrf.mxu0
        %v3609 = vadd.f32 %v3515, %v3608
        %3610 = vmatmul.f32.gmra.mxu0 %v3547
        %v3611 = vpop.f32.mrf.mxu0
        %v3612 = vadd.f32 %v3515, %v3611
        %3613 = vmatmul.f32.gmra.mxu0 %v3550
        %v3614 = vpop.f32.mrf.mxu0
        %v3615 = vadd.f32 %v3515, %v3614
        %3616 = vmatmul.f32.gmra.mxu0 %v3553
        %v3617 = vpop.f32.mrf.mxu0
        %v3618 = vadd.f32 %v3515, %v3617
        %3619 = vmatmul.f32.gmra.mxu0 %v3556
        %v3620 = vpop.f32.mrf.mxu0
        %v3621 = vadd.f32 %v3515, %v3620
        %3622 = vmatmul.f32.gmra.mxu0 %v3559
        %v3623 = vpop.f32.mrf.mxu0
        %v3624 = vadd.f32 %v3515, %v3623
        %3625 = vmatmul.f32.gmra.mxu0 %v3562
        %v3626 = vpop.f32.mrf.mxu0
        %v3627 = vadd.f32 %v3515, %v3626
        %3628 = vdwg.mxu0
        %v3629 = vmax.f32 %v3582, 0.0
        %v3630 = vmax.f32 %v3585, 0.0
        %v3631 = vmax.f32 %v3588, 0.0
        %v3632 = vmax.f32 %v3591, 0.0
        %v3633 = vmax.f32 %v3594, 0.0
        %v3634 = vmax.f32 %v3597, 0.0
        %v3635 = vmax.f32 %v3600, 0.0
        %v3636 = vmax.f32 %v3603, 0.0
        %v3637 = vmax.f32 %v3606, 0.0
        %v3638 = vmax.f32 %v3609, 0.0
        %v3639 = vmax.f32 %v3612, 0.0
        %v3640 = vmax.f32 %v3615, 0.0
        %v3641 = vmax.f32 %v3618, 0.0
        %v3642 = vmax.f32 %v3621, 0.0
        %v3643 = vmax.f32 %v3624, 0.0
        %v3644 = vmax.f32 %v3627, 0.0
        %s3645 = scalar_lea.vmem [#allocation7], 32
        %v3646 = vld [vmem:[%s3645] sm:$0xff]
        %v3647 = vld [vmem:[%s3645 + $0x8] sm:$0xff]
        %v3648 = vld [vmem:[%s3645 + $0x10] sm:$0xff]
        %v3649 = vld [vmem:[%s3645 + $0x18] sm:$0xff]
        %v3650 = vld [vmem:[%s7 + $0x7] sm:$0x1]
        %v3651 = vperm.slane %v3650, 0
        %v3653 = vsel %vm589, %v3629, 0
        %v3656 = vsel %vm589, %v3630, 0
        %v3659 = vsel %vm589, %v3631, 0
        %v3662 = vsel %vm589, %v3632, 0
        %v3665 = vsel %vm589, %v3633, 0
        %v3668 = vsel %vm589, %v3634, 0
        %v3671 = vsel %vm589, %v3635, 0
        %v3674 = vsel %vm589, %v3636, 0
        %v3677 = vsel %vm589, %v3637, 0
        %v3680 = vsel %vm589, %v3638, 0
        %v3683 = vsel %vm589, %v3639, 0
        %v3686 = vsel %vm589, %v3640, 0
        %v3689 = vsel %vm589, %v3641, 0
        %v3692 = vsel %vm589, %v3642, 0
        %v3695 = vsel %vm589, %v3643, 0
        %v3698 = vsel %vm589, %v3644, 0
        %3700 = vmatpush.msra.mxu0 0.0
        %3701 = vmatpush.msra.mxu0 0.0
        %3702 = vmatpush.msra.mxu0 0.0
        %3703 = vmatpush.msra.mxu0 0.0
        %3704 = vmatpush.msra.mxu0 0.0
        %3705 = vmatpush.msra.mxu0 0.0
        %3706 = vmatpush.msra.mxu0 0.0
        %3707 = vmatpush.msra.mxu0 0.0
        %3708 = vmatpush.msra.mxu0 0.0
        %3709 = vmatpush.msra.mxu0 0.0
        %3710 = vmatpush.msra.mxu0 0.0
        %3711 = vmatpush.msra.mxu0 0.0
        %3712 = vmatpush.msra.mxu0 %v3649
        %3713 = vmatpush.msra.mxu0 %v3648
        %3714 = vmatpush.msra.mxu0 %v3647
        %3715 = vmatpush.msra.mxu0 %v3646
        %3716 = vmatmul.f32.gmra.mxu0 %v3653
        %v3717 = vpop.f32.mrf.mxu0
        %v3718 = vadd.f32 %v3651, %v3717
        %3719 = vmatmul.f32.gmra.mxu0 %v3656
        %v3720 = vpop.f32.mrf.mxu0
        %v3721 = vadd.f32 %v3651, %v3720
        %3722 = vmatmul.f32.gmra.mxu0 %v3659
        %v3723 = vpop.f32.mrf.mxu0
        %v3724 = vadd.f32 %v3651, %v3723
        %3725 = vmatmul.f32.gmra.mxu0 %v3662
        %v3726 = vpop.f32.mrf.mxu0
        %v3727 = vadd.f32 %v3651, %v3726
        %3728 = vmatmul.f32.gmra.mxu0 %v3665
        %v3729 = vpop.f32.mrf.mxu0
        %v3730 = vadd.f32 %v3651, %v3729
        %3731 = vmatmul.f32.gmra.mxu0 %v3668
        %v3732 = vpop.f32.mrf.mxu0
        %v3733 = vadd.f32 %v3651, %v3732
        %3734 = vmatmul.f32.gmra.mxu0 %v3671
        %v3735 = vpop.f32.mrf.mxu0
        %v3736 = vadd.f32 %v3651, %v3735
        %3737 = vmatmul.f32.gmra.mxu0 %v3674
        %v3738 = vpop.f32.mrf.mxu0
        %v3739 = vadd.f32 %v3651, %v3738
        %3740 = vmatmul.f32.gmra.mxu0 %v3677
        %v3741 = vpop.f32.mrf.mxu0
        %v3742 = vadd.f32 %v3651, %v3741
        %3743 = vmatmul.f32.gmra.mxu0 %v3680
        %v3744 = vpop.f32.mrf.mxu0
        %v3745 = vadd.f32 %v3651, %v3744
        %3746 = vmatmul.f32.gmra.mxu0 %v3683
        %v3747 = vpop.f32.mrf.mxu0
        %v3748 = vadd.f32 %v3651, %v3747
        %3749 = vmatmul.f32.gmra.mxu0 %v3686
        %v3750 = vpop.f32.mrf.mxu0
        %v3751 = vadd.f32 %v3651, %v3750
        %3752 = vmatmul.f32.gmra.mxu0 %v3689
        %v3753 = vpop.f32.mrf.mxu0
        %v3754 = vadd.f32 %v3651, %v3753
        %3755 = vmatmul.f32.gmra.mxu0 %v3692
        %v3756 = vpop.f32.mrf.mxu0
        %v3757 = vadd.f32 %v3651, %v3756
        %3758 = vmatmul.f32.gmra.mxu0 %v3695
        %v3759 = vpop.f32.mrf.mxu0
        %v3760 = vadd.f32 %v3651, %v3759
        %3761 = vmatmul.f32.gmra.mxu0 %v3698
        %v3762 = vpop.f32.mrf.mxu0
        %v3763 = vadd.f32 %v3651, %v3762
        %3764 = vdwg.mxu0
        %v3765 = vmax.f32 %v3718, 0.0
        %v3766 = vmax.f32 %v3721, 0.0
        %v3767 = vmax.f32 %v3724, 0.0
        %v3768 = vmax.f32 %v3727, 0.0
        %v3769 = vmax.f32 %v3730, 0.0
        %v3770 = vmax.f32 %v3733, 0.0
        %v3771 = vmax.f32 %v3736, 0.0
        %v3772 = vmax.f32 %v3739, 0.0
        %v3773 = vmax.f32 %v3742, 0.0
        %v3774 = vmax.f32 %v3745, 0.0
        %v3775 = vmax.f32 %v3748, 0.0
        %v3776 = vmax.f32 %v3751, 0.0
        %v3777 = vmax.f32 %v3754, 0.0
        %v3778 = vmax.f32 %v3757, 0.0
        %v3779 = vmax.f32 %v3760, 0.0
        %v3780 = vmax.f32 %v3763, 0.0
        %v3781 = vadd.f32 %v3106, %v3765
        %v3782 = vadd.f32 %v3107, %v3766
        %v3783 = vadd.f32 %v3108, %v3767
        %v3784 = vadd.f32 %v3109, %v3768
        %v3785 = vadd.f32 %v3110, %v3769
        %v3786 = vadd.f32 %v3111, %v3770
        %v3787 = vadd.f32 %v3112, %v3771
        %v3788 = vadd.f32 %v3113, %v3772
        %v3789 = vadd.f32 %v3114, %v3773
        %v3790 = vadd.f32 %v3115, %v3774
        %v3791 = vadd.f32 %v3116, %v3775
        %v3792 = vadd.f32 %v3117, %v3776
        %v3793 = vadd.f32 %v3118, %v3777
        %v3794 = vadd.f32 %v3119, %v3778
        %v3795 = vadd.f32 %v3120, %v3779
        %v3796 = vadd.f32 %v3121, %v3780
        %v3797 = vld [vmem:[%s7 + $0x8] sm:$0x1]
        %v3798 = vld [vmem:[%s7 + $0x9] sm:$0x1]
        %v3799 = vsel %vm589, %v3781, 0.0
        %3800 = vadd.xlane.f32.xlu0 %v3799
        %v3801 = vpop.xlane.xlu0 %3800
        %v3802 = vsel %vm589, %v3782, 0.0
        %3803 = vadd.xlane.f32.xlu0 %v3802
        %v3804 = vpop.xlane.xlu0 %3803
        %v3805 = vsel %vm589, %v3783, 0.0
        %3806 = vadd.xlane.f32.xlu0 %v3805
        %v3807 = vpop.xlane.xlu0 %3806
        %v3808 = vsel %vm589, %v3784, 0.0
        %3809 = vadd.xlane.f32.xlu0 %v3808
        %v3810 = vpop.xlane.xlu0 %3809
        %v3811 = vsel %vm589, %v3785, 0.0
        %3812 = vadd.xlane.f32.xlu0 %v3811
        %v3813 = vpop.xlane.xlu0 %3812
        %v3814 = vsel %vm589, %v3786, 0.0
        %3815 = vadd.xlane.f32.xlu0 %v3814
        %v3816 = vpop.xlane.xlu0 %3815
        %v3817 = vsel %vm589, %v3787, 0.0
        %3818 = vadd.xlane.f32.xlu0 %v3817
        %v3819 = vpop.xlane.xlu0 %3818
        %v3820 = vsel %vm589, %v3788, 0.0
        %3821 = vadd.xlane.f32.xlu0 %v3820
        %v3822 = vpop.xlane.xlu0 %3821
        %v3823 = vsel %vm589, %v3789, 0.0
        %3824 = vadd.xlane.f32.xlu0 %v3823
        %v3825 = vpop.xlane.xlu0 %3824
        %v3826 = vsel %vm589, %v3790, 0.0
        %3827 = vadd.xlane.f32.xlu0 %v3826
        %v3828 = vpop.xlane.xlu0 %3827
        %v3829 = vsel %vm589, %v3791, 0.0
        %3830 = vadd.xlane.f32.xlu0 %v3829
        %v3831 = vpop.xlane.xlu0 %3830
        %v3832 = vsel %vm589, %v3792, 0.0
        %3833 = vadd.xlane.f32.xlu0 %v3832
        %v3834 = vpop.xlane.xlu0 %3833
        %v3835 = vsel %vm589, %v3793, 0.0
        %3836 = vadd.xlane.f32.xlu0 %v3835
        %v3837 = vpop.xlane.xlu0 %3836
        %v3838 = vsel %vm589, %v3794, 0.0
        %3839 = vadd.xlane.f32.xlu0 %v3838
        %v3840 = vpop.xlane.xlu0 %3839
        %v3841 = vsel %vm589, %v3795, 0.0
        %3842 = vadd.xlane.f32.xlu0 %v3841
        %v3843 = vpop.xlane.xlu0 %3842
        %v3844 = vsel %vm589, %v3796, 0.0
        %3845 = vadd.xlane.f32.xlu0 %v3844
        %v3846 = vpop.xlane.xlu0 %3845
        %v3847 = vmul.f32 %v3801, %v644
        %v3848 = vmul.f32 %v3804, %v644
        %v3849 = vmul.f32 %v3807, %v644
        %v3850 = vmul.f32 %v3810, %v644
        %v3851 = vmul.f32 %v3813, %v644
        %v3852 = vmul.f32 %v3816, %v644
        %v3853 = vmul.f32 %v3819, %v644
        %v3854 = vmul.f32 %v3822, %v644
        %v3855 = vmul.f32 %v3825, %v644
        %v3856 = vmul.f32 %v3828, %v644
        %v3857 = vmul.f32 %v3831, %v644
        %v3858 = vmul.f32 %v3834, %v644
        %v3859 = vmul.f32 %v3837, %v644
        %v3860 = vmul.f32 %v3840, %v644
        %v3861 = vmul.f32 %v3843, %v644
        %v3862 = vmul.f32 %v3846, %v644
        %v3863 = vsub.f32 %v3781, %v3847
        %v3864 = vsub.f32 %v3782, %v3848
        %v3865 = vsub.f32 %v3783, %v3849
        %v3866 = vsub.f32 %v3784, %v3850
        %v3867 = vsub.f32 %v3785, %v3851
        %v3868 = vsub.f32 %v3786, %v3852
        %v3869 = vsub.f32 %v3787, %v3853
        %v3870 = vsub.f32 %v3788, %v3854
        %v3871 = vsub.f32 %v3789, %v3855
        %v3872 = vsub.f32 %v3790, %v3856
        %v3873 = vsub.f32 %v3791, %v3857
        %v3874 = vsub.f32 %v3792, %v3858
        %v3875 = vsub.f32 %v3793, %v3859
        %v3876 = vsub.f32 %v3794, %v3860
        %v3877 = vsub.f32 %v3795, %v3861
        %v3878 = vsub.f32 %v3796, %v3862
        %v3879 = vmul.f32 %v3863, %v3863
        %v3880 = vmul.f32 %v3864, %v3864
        %v3881 = vmul.f32 %v3865, %v3865
        %v3882 = vmul.f32 %v3866, %v3866
        %v3883 = vmul.f32 %v3867, %v3867
        %v3884 = vmul.f32 %v3868, %v3868
        %v3885 = vmul.f32 %v3869, %v3869
        %v3886 = vmul.f32 %v3870, %v3870
        %v3887 = vmul.f32 %v3871, %v3871
        %v3888 = vmul.f32 %v3872, %v3872
        %v3889 = vmul.f32 %v3873, %v3873
        %v3890 = vmul.f32 %v3874, %v3874
        %v3891 = vmul.f32 %v3875, %v3875
        %v3892 = vmul.f32 %v3876, %v3876
        %v3893 = vmul.f32 %v3877, %v3877
        %v3894 = vmul.f32 %v3878, %v3878
        %v3895 = vsel %vm589, %v3879, 0.0
        %3896 = vadd.xlane.f32.xlu0 %v3895
        %v3897 = vpop.xlane.xlu0 %3896
        %v3898 = vsel %vm589, %v3880, 0.0
        %3899 = vadd.xlane.f32.xlu0 %v3898
        %v3900 = vpop.xlane.xlu0 %3899
        %v3901 = vsel %vm589, %v3881, 0.0
        %3902 = vadd.xlane.f32.xlu0 %v3901
        %v3903 = vpop.xlane.xlu0 %3902
        %v3904 = vsel %vm589, %v3882, 0.0
        %3905 = vadd.xlane.f32.xlu0 %v3904
        %v3906 = vpop.xlane.xlu0 %3905
        %v3907 = vsel %vm589, %v3883, 0.0
        %3908 = vadd.xlane.f32.xlu0 %v3907
        %v3909 = vpop.xlane.xlu0 %3908
        %v3910 = vsel %vm589, %v3884, 0.0
        %3911 = vadd.xlane.f32.xlu0 %v3910
        %v3912 = vpop.xlane.xlu0 %3911
        %v3913 = vsel %vm589, %v3885, 0.0
        %3914 = vadd.xlane.f32.xlu0 %v3913
        %v3915 = vpop.xlane.xlu0 %3914
        %v3916 = vsel %vm589, %v3886, 0.0
        %3917 = vadd.xlane.f32.xlu0 %v3916
        %v3918 = vpop.xlane.xlu0 %3917
        %v3919 = vsel %vm589, %v3887, 0.0
        %3920 = vadd.xlane.f32.xlu0 %v3919
        %v3921 = vpop.xlane.xlu0 %3920
        %v3922 = vsel %vm589, %v3888, 0.0
        %3923 = vadd.xlane.f32.xlu0 %v3922
        %v3924 = vpop.xlane.xlu0 %3923
        %v3925 = vsel %vm589, %v3889, 0.0
        %3926 = vadd.xlane.f32.xlu0 %v3925
        %v3927 = vpop.xlane.xlu0 %3926
        %v3928 = vsel %vm589, %v3890, 0.0
        %3929 = vadd.xlane.f32.xlu0 %v3928
        %v3930 = vpop.xlane.xlu0 %3929
        %v3931 = vsel %vm589, %v3891, 0.0
        %3932 = vadd.xlane.f32.xlu0 %v3931
        %v3933 = vpop.xlane.xlu0 %3932
        %v3934 = vsel %vm589, %v3892, 0.0
        %3935 = vadd.xlane.f32.xlu0 %v3934
        %v3936 = vpop.xlane.xlu0 %3935
        %v3937 = vsel %vm589, %v3893, 0.0
        %3938 = vadd.xlane.f32.xlu0 %v3937
        %v3939 = vpop.xlane.xlu0 %3938
        %v3940 = vsel %vm589, %v3894, 0.0
        %3941 = vadd.xlane.f32.xlu0 %v3940
        %v3942 = vpop.xlane.xlu0 %3941
        %v3943 = vmul.f32 %v3897, %v644
        %v3944 = vmul.f32 %v3900, %v644
        %v3945 = vmul.f32 %v3903, %v644
        %v3946 = vmul.f32 %v3906, %v644
        %v3947 = vmul.f32 %v3909, %v644
        %v3948 = vmul.f32 %v3912, %v644
        %v3949 = vmul.f32 %v3915, %v644
        %v3950 = vmul.f32 %v3918, %v644
        %v3951 = vmul.f32 %v3921, %v644
        %v3952 = vmul.f32 %v3924, %v644
        %v3953 = vmul.f32 %v3927, %v644
        %v3954 = vmul.f32 %v3930, %v644
        %v3955 = vmul.f32 %v3933, %v644
        %v3956 = vmul.f32 %v3936, %v644
        %v3957 = vmul.f32 %v3939, %v644
        %v3958 = vmul.f32 %v3942, %v644
        %v3959 = vadd.f32 %v3943, 1e-05
        %v3960 = vadd.f32 %v3944, 1e-05
        %v3961 = vadd.f32 %v3945, 1e-05
        %v3962 = vadd.f32 %v3946, 1e-05
        %v3963 = vadd.f32 %v3947, 1e-05
        %v3964 = vadd.f32 %v3948, 1e-05
        %v3965 = vadd.f32 %v3949, 1e-05
        %v3966 = vadd.f32 %v3950, 1e-05
        %v3967 = vadd.f32 %v3951, 1e-05
        %v3968 = vadd.f32 %v3952, 1e-05
        %v3969 = vadd.f32 %v3953, 1e-05
        %v3970 = vadd.f32 %v3954, 1e-05
        %v3971 = vadd.f32 %v3955, 1e-05
        %v3972 = vadd.f32 %v3956, 1e-05
        %v3973 = vadd.f32 %v3957, 1e-05
        %v3974 = vadd.f32 %v3958, 1e-05
        %v3975 = vrsqrt.pop %v3959
        %v3976 = vmul.f32 %v3975, %v3959
        %v3977 = vmul.f32 %v3976, %v3975
        %v3978 = vmul.f32 0.5, %v3977
        %v3979 = vsub.f32 1.5, %v3978
        %v3980 = vmul.f32 %v3975, %v3979
        %vm3981 = vweird.f32 %v3959
        %vm3982 = vweird.f32 %v3975
        %vm3983 = vmor %vm3981, %vm3982
        %v3984 = vsel %vm3983, %v3975, %v3980
        %v3985 = vrsqrt.pop %v3960
        %v3986 = vmul.f32 %v3985, %v3960
        %v3987 = vmul.f32 %v3986, %v3985
        %v3988 = vmul.f32 0.5, %v3987
        %v3989 = vsub.f32 1.5, %v3988
        %v3990 = vmul.f32 %v3985, %v3989
        %vm3991 = vweird.f32 %v3960
        %vm3992 = vweird.f32 %v3985
        %vm3993 = vmor %vm3991, %vm3992
        %v3994 = vsel %vm3993, %v3985, %v3990
        %v3995 = vrsqrt.pop %v3961
        %v3996 = vmul.f32 %v3995, %v3961
        %v3997 = vmul.f32 %v3996, %v3995
        %v3998 = vmul.f32 0.5, %v3997
        %v3999 = vsub.f32 1.5, %v3998
        %v4000 = vmul.f32 %v3995, %v3999
        %vm4001 = vweird.f32 %v3961
        %vm4002 = vweird.f32 %v3995
        %vm4003 = vmor %vm4001, %vm4002
        %v4004 = vsel %vm4003, %v3995, %v4000
        %v4005 = vrsqrt.pop %v3962
        %v4006 = vmul.f32 %v4005, %v3962
        %v4007 = vmul.f32 %v4006, %v4005
        %v4008 = vmul.f32 0.5, %v4007
        %v4009 = vsub.f32 1.5, %v4008
        %v4010 = vmul.f32 %v4005, %v4009
        %vm4011 = vweird.f32 %v3962
        %vm4012 = vweird.f32 %v4005
        %vm4013 = vmor %vm4011, %vm4012
        %v4014 = vsel %vm4013, %v4005, %v4010
        %v4015 = vrsqrt.pop %v3963
        %v4016 = vmul.f32 %v4015, %v3963
        %v4017 = vmul.f32 %v4016, %v4015
        %v4018 = vmul.f32 0.5, %v4017
        %v4019 = vsub.f32 1.5, %v4018
        %v4020 = vmul.f32 %v4015, %v4019
        %vm4021 = vweird.f32 %v3963
        %vm4022 = vweird.f32 %v4015
        %vm4023 = vmor %vm4021, %vm4022
        %v4024 = vsel %vm4023, %v4015, %v4020
        %v4025 = vrsqrt.pop %v3964
        %v4026 = vmul.f32 %v4025, %v3964
        %v4027 = vmul.f32 %v4026, %v4025
        %v4028 = vmul.f32 0.5, %v4027
        %v4029 = vsub.f32 1.5, %v4028
        %v4030 = vmul.f32 %v4025, %v4029
        %vm4031 = vweird.f32 %v3964
        %vm4032 = vweird.f32 %v4025
        %vm4033 = vmor %vm4031, %vm4032
        %v4034 = vsel %vm4033, %v4025, %v4030
        %v4035 = vrsqrt.pop %v3965
        %v4036 = vmul.f32 %v4035, %v3965
        %v4037 = vmul.f32 %v4036, %v4035
        %v4038 = vmul.f32 0.5, %v4037
        %v4039 = vsub.f32 1.5, %v4038
        %v4040 = vmul.f32 %v4035, %v4039
        %vm4041 = vweird.f32 %v3965
        %vm4042 = vweird.f32 %v4035
        %vm4043 = vmor %vm4041, %vm4042
        %v4044 = vsel %vm4043, %v4035, %v4040
        %v4045 = vrsqrt.pop %v3966
        %v4046 = vmul.f32 %v4045, %v3966
        %v4047 = vmul.f32 %v4046, %v4045
        %v4048 = vmul.f32 0.5, %v4047
        %v4049 = vsub.f32 1.5, %v4048
        %v4050 = vmul.f32 %v4045, %v4049
        %vm4051 = vweird.f32 %v3966
        %vm4052 = vweird.f32 %v4045
        %vm4053 = vmor %vm4051, %vm4052
        %v4054 = vsel %vm4053, %v4045, %v4050
        %v4055 = vrsqrt.pop %v3967
        %v4056 = vmul.f32 %v4055, %v3967
        %v4057 = vmul.f32 %v4056, %v4055
        %v4058 = vmul.f32 0.5, %v4057
        %v4059 = vsub.f32 1.5, %v4058
        %v4060 = vmul.f32 %v4055, %v4059
        %vm4061 = vweird.f32 %v3967
        %vm4062 = vweird.f32 %v4055
        %vm4063 = vmor %vm4061, %vm4062
        %v4064 = vsel %vm4063, %v4055, %v4060
        %v4065 = vrsqrt.pop %v3968
        %v4066 = vmul.f32 %v4065, %v3968
        %v4067 = vmul.f32 %v4066, %v4065
        %v4068 = vmul.f32 0.5, %v4067
        %v4069 = vsub.f32 1.5, %v4068
        %v4070 = vmul.f32 %v4065, %v4069
        %vm4071 = vweird.f32 %v3968
        %vm4072 = vweird.f32 %v4065
        %vm4073 = vmor %vm4071, %vm4072
        %v4074 = vsel %vm4073, %v4065, %v4070
        %v4075 = vrsqrt.pop %v3969
        %v4076 = vmul.f32 %v4075, %v3969
        %v4077 = vmul.f32 %v4076, %v4075
        %v4078 = vmul.f32 0.5, %v4077
        %v4079 = vsub.f32 1.5, %v4078
        %v4080 = vmul.f32 %v4075, %v4079
        %vm4081 = vweird.f32 %v3969
        %vm4082 = vweird.f32 %v4075
        %vm4083 = vmor %vm4081, %vm4082
        %v4084 = vsel %vm4083, %v4075, %v4080
        %v4085 = vrsqrt.pop %v3970
        %v4086 = vmul.f32 %v4085, %v3970
        %v4087 = vmul.f32 %v4086, %v4085
        %v4088 = vmul.f32 0.5, %v4087
        %v4089 = vsub.f32 1.5, %v4088
        %v4090 = vmul.f32 %v4085, %v4089
        %vm4091 = vweird.f32 %v3970
        %vm4092 = vweird.f32 %v4085
        %vm4093 = vmor %vm4091, %vm4092
        %v4094 = vsel %vm4093, %v4085, %v4090
        %v4095 = vrsqrt.pop %v3971
        %v4096 = vmul.f32 %v4095, %v3971
        %v4097 = vmul.f32 %v4096, %v4095
        %v4098 = vmul.f32 0.5, %v4097
        %v4099 = vsub.f32 1.5, %v4098
        %v4100 = vmul.f32 %v4095, %v4099
        %vm4101 = vweird.f32 %v3971
        %vm4102 = vweird.f32 %v4095
        %vm4103 = vmor %vm4101, %vm4102
        %v4104 = vsel %vm4103, %v4095, %v4100
        %v4105 = vrsqrt.pop %v3972
        %v4106 = vmul.f32 %v4105, %v3972
        %v4107 = vmul.f32 %v4106, %v4105
        %v4108 = vmul.f32 0.5, %v4107
        %v4109 = vsub.f32 1.5, %v4108
        %v4110 = vmul.f32 %v4105, %v4109
        %vm4111 = vweird.f32 %v3972
        %vm4112 = vweird.f32 %v4105
        %vm4113 = vmor %vm4111, %vm4112
        %v4114 = vsel %vm4113, %v4105, %v4110
        %v4115 = vrsqrt.pop %v3973
        %v4116 = vmul.f32 %v4115, %v3973
        %v4117 = vmul.f32 %v4116, %v4115
        %v4118 = vmul.f32 0.5, %v4117
        %v4119 = vsub.f32 1.5, %v4118
        %v4120 = vmul.f32 %v4115, %v4119
        %vm4121 = vweird.f32 %v3973
        %vm4122 = vweird.f32 %v4115
        %vm4123 = vmor %vm4121, %vm4122
        %v4124 = vsel %vm4123, %v4115, %v4120
        %v4125 = vrsqrt.pop %v3974
        %v4126 = vmul.f32 %v4125, %v3974
        %v4127 = vmul.f32 %v4126, %v4125
        %v4128 = vmul.f32 0.5, %v4127
        %v4129 = vsub.f32 1.5, %v4128
        %v4130 = vmul.f32 %v4125, %v4129
        %vm4131 = vweird.f32 %v3974
        %vm4132 = vweird.f32 %v4125
        %vm4133 = vmor %vm4131, %vm4132
        %v4134 = vsel %vm4133, %v4125, %v4130
        %v4135 = vmul.f32 %v3863, %v3984
        %v4136 = vmul.f32 %v3864, %v3994
        %v4137 = vmul.f32 %v3865, %v4004
        %v4138 = vmul.f32 %v3866, %v4014
        %v4139 = vmul.f32 %v3867, %v4024
        %v4140 = vmul.f32 %v3868, %v4034
        %v4141 = vmul.f32 %v3869, %v4044
        %v4142 = vmul.f32 %v3870, %v4054
        %v4143 = vmul.f32 %v3871, %v4064
        %v4144 = vmul.f32 %v3872, %v4074
        %v4145 = vmul.f32 %v3873, %v4084
        %v4146 = vmul.f32 %v3874, %v4094
        %v4147 = vmul.f32 %v3875, %v4104
        %v4148 = vmul.f32 %v3876, %v4114
        %v4149 = vmul.f32 %v3877, %v4124
        %v4150 = vmul.f32 %v3878, %v4134
        %v4151 = vperm.slane %v3797, 0
        %v4152 = vmul.f32 %v4135, %v4151
        %v4153 = vmul.f32 %v4136, %v4151
        %v4154 = vmul.f32 %v4137, %v4151
        %v4155 = vmul.f32 %v4138, %v4151
        %v4156 = vmul.f32 %v4139, %v4151
        %v4157 = vmul.f32 %v4140, %v4151
        %v4158 = vmul.f32 %v4141, %v4151
        %v4159 = vmul.f32 %v4142, %v4151
        %v4160 = vmul.f32 %v4143, %v4151
        %v4161 = vmul.f32 %v4144, %v4151
        %v4162 = vmul.f32 %v4145, %v4151
        %v4163 = vmul.f32 %v4146, %v4151
        %v4164 = vmul.f32 %v4147, %v4151
        %v4165 = vmul.f32 %v4148, %v4151
        %v4166 = vmul.f32 %v4149, %v4151
        %v4167 = vmul.f32 %v4150, %v4151
        %v4168 = vperm.slane %v3798, 0
        %v4169 = vadd.f32 %v4152, %v4168
        %v4170 = vadd.f32 %v4153, %v4168
        %v4171 = vadd.f32 %v4154, %v4168
        %v4172 = vadd.f32 %v4155, %v4168
        %v4173 = vadd.f32 %v4156, %v4168
        %v4174 = vadd.f32 %v4157, %v4168
        %v4175 = vadd.f32 %v4158, %v4168
        %v4176 = vadd.f32 %v4159, %v4168
        %v4177 = vadd.f32 %v4160, %v4168
        %v4178 = vadd.f32 %v4161, %v4168
        %v4179 = vadd.f32 %v4162, %v4168
        %v4180 = vadd.f32 %v4163, %v4168
        %v4181 = vadd.f32 %v4164, %v4168
        %v4182 = vadd.f32 %v4165, %v4168
        %v4183 = vadd.f32 %v4166, %v4168
        %v4184 = vadd.f32 %v4167, %v4168
        %s4185 = scalar_lea.vmem [#allocation6], 64
        %v4186 = vld [vmem:[%s4185] sm:$0xff]
        %v4187 = vld [vmem:[%s4185 + $0x8] sm:$0xff]
        %v4188 = vld [vmem:[%s4185 + $0x10] sm:$0xff]
        %v4189 = vld [vmem:[%s4185 + $0x18] sm:$0xff]
        %v4190 = vld [vmem:[%s4185 + $0x20] sm:$0xff]
        %v4191 = vld [vmem:[%s4185 + $0x28] sm:$0xff]
        %v4192 = vld [vmem:[%s4185 + $0x30] sm:$0xff]
        %v4193 = vld [vmem:[%s4185 + $0x38] sm:$0xff]
        %s4194 = scalar_lea.vmem %s5, 1
        %v4195 = vld [vmem:[%s4194] ss:$2 sm:$0x3]
        %v4197 = vperm.slane %v4195, 0
        %v4198 = vperm.slane %v4195, 1
        %v4202 = vsel %vm589, %v4169, 0
        %v4205 = vsel %vm589, %v4170, 0
        %v4208 = vsel %vm589, %v4171, 0
        %v4211 = vsel %vm589, %v4172, 0
        %v4214 = vsel %vm589, %v4173, 0
        %v4217 = vsel %vm589, %v4174, 0
        %v4220 = vsel %vm589, %v4175, 0
        %v4223 = vsel %vm589, %v4176, 0
        %v4226 = vsel %vm589, %v4177, 0
        %v4229 = vsel %vm589, %v4178, 0
        %v4232 = vsel %vm589, %v4179, 0
        %v4235 = vsel %vm589, %v4180, 0
        %v4238 = vsel %vm589, %v4181, 0
        %v4241 = vsel %vm589, %v4182, 0
        %v4244 = vsel %vm589, %v4183, 0
        %v4247 = vsel %vm589, %v4184, 0
        %4249 = vmatpush.msra.mxu0 0.0
        %4250 = vmatpush.msra.mxu0 0.0
        %4251 = vmatpush.msra.mxu0 0.0
        %4252 = vmatpush.msra.mxu0 0.0
        %4253 = vmatpush.msra.mxu0 0.0
        %4254 = vmatpush.msra.mxu0 0.0
        %4255 = vmatpush.msra.mxu0 0.0
        %4256 = vmatpush.msra.mxu0 0.0
        %4257 = vmatpush.msra.mxu0 0.0
        %4258 = vmatpush.msra.mxu0 0.0
        %4259 = vmatpush.msra.mxu0 0.0
        %4260 = vmatpush.msra.mxu0 0.0
        %4261 = vmatpush.msra.mxu0 %v4192
        %4262 = vmatpush.msra.mxu0 %v4190
        %4263 = vmatpush.msra.mxu0 %v4188
        %4264 = vmatpush.msra.mxu0 %v4186
        %4265 = vmatmul.f32.gmra.mxu0 %v4202
        %v4266 = vpop.f32.mrf.mxu0
        %v4267 = vadd.f32 %v4197, %v4266
        %4268 = vmatmul.f32.gmra.mxu0 %v4205
        %v4269 = vpop.f32.mrf.mxu0
        %v4270 = vadd.f32 %v4197, %v4269
        %4271 = vmatmul.f32.gmra.mxu0 %v4208
        %v4272 = vpop.f32.mrf.mxu0
        %v4273 = vadd.f32 %v4197, %v4272
        %4274 = vmatmul.f32.gmra.mxu0 %v4211
        %v4275 = vpop.f32.mrf.mxu0
        %v4276 = vadd.f32 %v4197, %v4275
        %4277 = vmatmul.f32.gmra.mxu0 %v4214
        %v4278 = vpop.f32.mrf.mxu0
        %v4279 = vadd.f32 %v4197, %v4278
        %4280 = vmatmul.f32.gmra.mxu0 %v4217
        %v4281 = vpop.f32.mrf.mxu0
        %v4282 = vadd.f32 %v4197, %v4281
        %4283 = vmatmul.f32.gmra.mxu0 %v4220
        %v4284 = vpop.f32.mrf.mxu0
        %v4285 = vadd.f32 %v4197, %v4284
        %4286 = vmatmul.f32.gmra.mxu0 %v4223
        %v4287 = vpop.f32.mrf.mxu0
        %v4288 = vadd.f32 %v4197, %v4287
        %4289 = vmatmul.f32.gmra.mxu0 %v4226
        %v4290 = vpop.f32.mrf.mxu0
        %v4291 = vadd.f32 %v4197, %v4290
        %4292 = vmatmul.f32.gmra.mxu0 %v4229
        %v4293 = vpop.f32.mrf.mxu0
        %v4294 = vadd.f32 %v4197, %v4293
        %4295 = vmatmul.f32.gmra.mxu0 %v4232
        %v4296 = vpop.f32.mrf.mxu0
        %v4297 = vadd.f32 %v4197, %v4296
        %4298 = vmatmul.f32.gmra.mxu0 %v4235
        %v4299 = vpop.f32.mrf.mxu0
        %v4300 = vadd.f32 %v4197, %v4299
        %4301 = vmatmul.f32.gmra.mxu0 %v4238
        %v4302 = vpop.f32.mrf.mxu0
        %v4303 = vadd.f32 %v4197, %v4302
        %4304 = vmatmul.f32.gmra.mxu0 %v4241
        %v4305 = vpop.f32.mrf.mxu0
        %v4306 = vadd.f32 %v4197, %v4305
        %4307 = vmatmul.f32.gmra.mxu0 %v4244
        %v4308 = vpop.f32.mrf.mxu0
        %v4309 = vadd.f32 %v4197, %v4308
        %4310 = vmatmul.f32.gmra.mxu0 %v4247
        %v4311 = vpop.f32.mrf.mxu0
        %v4312 = vadd.f32 %v4197, %v4311
        %4313 = vdwg.mxu0
        %4314 = vmatpush.msra.mxu0 0.0
        %4315 = vmatpush.msra.mxu0 0.0
        %4316 = vmatpush.msra.mxu0 0.0
        %4317 = vmatpush.msra.mxu0 0.0
        %4318 = vmatpush.msra.mxu0 0.0
        %4319 = vmatpush.msra.mxu0 0.0
        %4320 = vmatpush.msra.mxu0 0.0
        %4321 = vmatpush.msra.mxu0 0.0
        %4322 = vmatpush.msra.mxu0 0.0
        %4323 = vmatpush.msra.mxu0 0.0
        %4324 = vmatpush.msra.mxu0 0.0
        %4325 = vmatpush.msra.mxu0 0.0
        %4326 = vmatpush.msra.mxu0 %v4193
        %4327 = vmatpush.msra.mxu0 %v4191
        %4328 = vmatpush.msra.mxu0 %v4189
        %4329 = vmatpush.msra.mxu0 %v4187
        %4330 = vmatmul.f32.gmra.mxu0 %v4202
        %v4331 = vpop.f32.mrf.mxu0
        %v4332 = vadd.f32 %v4198, %v4331
        %4333 = vmatmul.f32.gmra.mxu0 %v4205
        %v4334 = vpop.f32.mrf.mxu0
        %v4335 = vadd.f32 %v4198, %v4334
        %4336 = vmatmul.f32.gmra.mxu0 %v4208
        %v4337 = vpop.f32.mrf.mxu0
        %v4338 = vadd.f32 %v4198, %v4337
        %4339 = vmatmul.f32.gmra.mxu0 %v4211
        %v4340 = vpop.f32.mrf.mxu0
        %v4341 = vadd.f32 %v4198, %v4340
        %4342 = vmatmul.f32.gmra.mxu0 %v4214
        %v4343 = vpop.f32.mrf.mxu0
        %v4344 = vadd.f32 %v4198, %v4343
        %4345 = vmatmul.f32.gmra.mxu0 %v4217
        %v4346 = vpop.f32.mrf.mxu0
        %v4347 = vadd.f32 %v4198, %v4346
        %4348 = vmatmul.f32.gmra.mxu0 %v4220
        %v4349 = vpop.f32.mrf.mxu0
        %v4350 = vadd.f32 %v4198, %v4349
        %4351 = vmatmul.f32.gmra.mxu0 %v4223
        %v4352 = vpop.f32.mrf.mxu0
        %v4353 = vadd.f32 %v4198, %v4352
        %4354 = vmatmul.f32.gmra.mxu0 %v4226
        %v4355 = vpop.f32.mrf.mxu0
        %v4356 = vadd.f32 %v4198, %v4355
        %4357 = vmatmul.f32.gmra.mxu0 %v4229
        %v4358 = vpop.f32.mrf.mxu0
        %v4359 = vadd.f32 %v4198, %v4358
        %4360 = vmatmul.f32.gmra.mxu0 %v4232
        %v4361 = vpop.f32.mrf.mxu0
        %v4362 = vadd.f32 %v4198, %v4361
        %4363 = vmatmul.f32.gmra.mxu0 %v4235
        %v4364 = vpop.f32.mrf.mxu0
        %v4365 = vadd.f32 %v4198, %v4364
        %4366 = vmatmul.f32.gmra.mxu0 %v4238
        %v4367 = vpop.f32.mrf.mxu0
        %v4368 = vadd.f32 %v4198, %v4367
        %4369 = vmatmul.f32.gmra.mxu0 %v4241
        %v4370 = vpop.f32.mrf.mxu0
        %v4371 = vadd.f32 %v4198, %v4370
        %4372 = vmatmul.f32.gmra.mxu0 %v4244
        %v4373 = vpop.f32.mrf.mxu0
        %v4374 = vadd.f32 %v4198, %v4373
        %4375 = vmatmul.f32.gmra.mxu0 %v4247
        %v4376 = vpop.f32.mrf.mxu0
        %v4377 = vadd.f32 %v4198, %v4376
        %4378 = vdwg.mxu0
        %4395 = vrot.lane.b32.xlu0 %v4267, 96
        %v4396 = vpop.permute.xlu0 %4395
        %4397 = vrot.lane.b32.xlu0 %v4270, 96
        %v4398 = vpop.permute.xlu0 %4397
        %4399 = vrot.lane.b32.xlu0 %v4273, 96
        %v4400 = vpop.permute.xlu0 %4399
        %4401 = vrot.lane.b32.xlu0 %v4276, 96
        %v4402 = vpop.permute.xlu0 %4401
        %4403 = vrot.lane.b32.xlu0 %v4279, 96
        %v4404 = vpop.permute.xlu0 %4403
        %4405 = vrot.lane.b32.xlu0 %v4282, 96
        %v4406 = vpop.permute.xlu0 %4405
        %4407 = vrot.lane.b32.xlu0 %v4285, 96
        %v4408 = vpop.permute.xlu0 %4407
        %4409 = vrot.lane.b32.xlu0 %v4288, 96
        %v4410 = vpop.permute.xlu0 %4409
        %4411 = vrot.lane.b32.xlu0 %v4291, 96
        %v4412 = vpop.permute.xlu0 %4411
        %4413 = vrot.lane.b32.xlu0 %v4294, 96
        %v4414 = vpop.permute.xlu0 %4413
        %4415 = vrot.lane.b32.xlu0 %v4297, 96
        %v4416 = vpop.permute.xlu0 %4415
        %4417 = vrot.lane.b32.xlu0 %v4300, 96
        %v4418 = vpop.permute.xlu0 %4417
        %4419 = vrot.lane.b32.xlu0 %v4303, 96
        %v4420 = vpop.permute.xlu0 %4419
        %4421 = vrot.lane.b32.xlu0 %v4306, 96
        %v4422 = vpop.permute.xlu0 %4421
        %4423 = vrot.lane.b32.xlu0 %v4309, 96
        %v4424 = vpop.permute.xlu0 %4423
        %4425 = vrot.lane.b32.xlu0 %v4312, 96
        %v4426 = vpop.permute.xlu0 %4425
        %v4427 = vsel %vm1223, %v4267, 0
        %v4429 = vsel %vm1223, %v4270, 0
        %v4431 = vsel %vm1223, %v4273, 0
        %v4433 = vsel %vm1223, %v4276, 0
        %v4435 = vsel %vm1223, %v4279, 0
        %v4437 = vsel %vm1223, %v4282, 0
        %v4439 = vsel %vm1223, %v4285, 0
        %v4441 = vsel %vm1223, %v4288, 0
        %v4443 = vsel %vm1223, %v4291, 0
        %v4445 = vsel %vm1223, %v4294, 0
        %v4447 = vsel %vm1223, %v4297, 0
        %v4449 = vsel %vm1223, %v4300, 0
        %v4451 = vsel %vm1223, %v4303, 0
        %v4453 = vsel %vm1223, %v4306, 0
        %v4455 = vsel %vm1223, %v4309, 0
        %v4457 = vsel %vm1223, %v4312, 0
        %v4459 = vsel %vm1223, %v4396, 0
        %v4461 = vsel %vm1223, %v4398, 0
        %v4463 = vsel %vm1223, %v4400, 0
        %v4465 = vsel %vm1223, %v4402, 0
        %v4467 = vsel %vm1223, %v4404, 0
        %v4469 = vsel %vm1223, %v4406, 0
        %v4471 = vsel %vm1223, %v4408, 0
        %v4473 = vsel %vm1223, %v4410, 0
        %v4475 = vsel %vm1223, %v4412, 0
        %v4477 = vsel %vm1223, %v4414, 0
        %v4479 = vsel %vm1223, %v4416, 0
        %v4481 = vsel %vm1223, %v4418, 0
        %v4483 = vsel %vm1223, %v4420, 0
        %v4485 = vsel %vm1223, %v4422, 0
        %v4487 = vsel %vm1223, %v4424, 0
        %v4489 = vsel %vm1223, %v4426, 0
        %4491 = vmatpush.xpose.msra.mxu0 %v4489
        %4492 = vmatpush.xpose.msra.mxu0 %v4487
        %4493 = vmatpush.xpose.msra.mxu0 %v4485
        %4494 = vmatpush.xpose.msra.mxu0 %v4483
        %4495 = vmatpush.xpose.msra.mxu0 %v4481
        %4496 = vmatpush.xpose.msra.mxu0 %v4479
        %4497 = vmatpush.xpose.msra.mxu0 %v4477
        %4498 = vmatpush.xpose.msra.mxu0 %v4475
        %4499 = vmatpush.xpose.msra.mxu0 %v4473
        %4500 = vmatpush.xpose.msra.mxu0 %v4471
        %4501 = vmatpush.xpose.msra.mxu0 %v4469
        %4502 = vmatpush.xpose.msra.mxu0 %v4467
        %4503 = vmatpush.xpose.msra.mxu0 %v4465
        %4504 = vmatpush.xpose.msra.mxu0 %v4463
        %4505 = vmatpush.xpose.msra.mxu0 %v4461
        %4506 = vmatpush.xpose.msra.mxu0 %v4459
        %4507 = vmatmul.f32.gmra.mxu0 %v4427
        %v4508 = vpop.f32.mrf.mxu0
        %v4509 = vadd.f32 %v437, %v4508
        %4510 = vmatmul.f32.gmra.mxu0 %v4429
        %v4511 = vpop.f32.mrf.mxu0
        %v4512 = vadd.f32 %v438, %v4511
        %4513 = vmatmul.f32.gmra.mxu0 %v4431
        %v4514 = vpop.f32.mrf.mxu0
        %v4515 = vadd.f32 %v439, %v4514
        %4516 = vmatmul.f32.gmra.mxu0 %v4433
        %v4517 = vpop.f32.mrf.mxu0
        %v4518 = vadd.f32 %v440, %v4517
        %4519 = vmatmul.f32.gmra.mxu0 %v4435
        %v4520 = vpop.f32.mrf.mxu0
        %v4521 = vadd.f32 %v441, %v4520
        %4522 = vmatmul.f32.gmra.mxu0 %v4437
        %v4523 = vpop.f32.mrf.mxu0
        %v4524 = vadd.f32 %v442, %v4523
        %4525 = vmatmul.f32.gmra.mxu0 %v4439
        %v4526 = vpop.f32.mrf.mxu0
        %v4527 = vadd.f32 %v443, %v4526
        %4528 = vmatmul.f32.gmra.mxu0 %v4441
        %v4529 = vpop.f32.mrf.mxu0
        %v4530 = vadd.f32 %v444, %v4529
        %4531 = vmatmul.f32.gmra.mxu0 %v4443
        %v4532 = vpop.f32.mrf.mxu0
        %v4533 = vadd.f32 %v445, %v4532
        %4534 = vmatmul.f32.gmra.mxu0 %v4445
        %v4535 = vpop.f32.mrf.mxu0
        %v4536 = vadd.f32 %v446, %v4535
        %4537 = vmatmul.f32.gmra.mxu0 %v4447
        %v4538 = vpop.f32.mrf.mxu0
        %v4539 = vadd.f32 %v447, %v4538
        %4540 = vmatmul.f32.gmra.mxu0 %v4449
        %v4541 = vpop.f32.mrf.mxu0
        %v4542 = vadd.f32 %v448, %v4541
        %4543 = vmatmul.f32.gmra.mxu0 %v4451
        %v4544 = vpop.f32.mrf.mxu0
        %v4545 = vadd.f32 %v449, %v4544
        %4546 = vmatmul.f32.gmra.mxu0 %v4453
        %v4547 = vpop.f32.mrf.mxu0
        %v4548 = vadd.f32 %v450, %v4547
        %4549 = vmatmul.f32.gmra.mxu0 %v4455
        %v4550 = vpop.f32.mrf.mxu0
        %v4551 = vadd.f32 %v451, %v4550
        %4552 = vmatmul.f32.gmra.mxu0 %v4457
        %v4553 = vpop.f32.mrf.mxu0
        %v4554 = vadd.f32 %v452, %v4553
        %4555 = vdwg.mxu0
        %4556 = vmax.xlane.f32.xlu0 %v4509
        %v4557 = vpop.xlane.xlu0 %4556
        %4558 = vmax.xlane.f32.xlu0 %v4512
        %v4559 = vpop.xlane.xlu0 %4558
        %4560 = vmax.xlane.f32.xlu0 %v4515
        %v4561 = vpop.xlane.xlu0 %4560
        %4562 = vmax.xlane.f32.xlu0 %v4518
        %v4563 = vpop.xlane.xlu0 %4562
        %4564 = vmax.xlane.f32.xlu0 %v4521
        %v4565 = vpop.xlane.xlu0 %4564
        %4566 = vmax.xlane.f32.xlu0 %v4524
        %v4567 = vpop.xlane.xlu0 %4566
        %4568 = vmax.xlane.f32.xlu0 %v4527
        %v4569 = vpop.xlane.xlu0 %4568
        %4570 = vmax.xlane.f32.xlu0 %v4530
        %v4571 = vpop.xlane.xlu0 %4570
        %4572 = vmax.xlane.f32.xlu0 %v4533
        %v4573 = vpop.xlane.xlu0 %4572
        %4574 = vmax.xlane.f32.xlu0 %v4536
        %v4575 = vpop.xlane.xlu0 %4574
        %4576 = vmax.xlane.f32.xlu0 %v4539
        %v4577 = vpop.xlane.xlu0 %4576
        %4578 = vmax.xlane.f32.xlu0 %v4542
        %v4579 = vpop.xlane.xlu0 %4578
        %4580 = vmax.xlane.f32.xlu0 %v4545
        %v4581 = vpop.xlane.xlu0 %4580
        %4582 = vmax.xlane.f32.xlu0 %v4548
        %v4583 = vpop.xlane.xlu0 %4582
        %4584 = vmax.xlane.f32.xlu0 %v4551
        %v4585 = vpop.xlane.xlu0 %4584
        %4586 = vmax.xlane.f32.xlu0 %v4554
        %v4587 = vpop.xlane.xlu0 %4586
        %v4588 = vsub.f32 %v4509, %v4557
        %v4589 = vsub.f32 %v4512, %v4559
        %v4590 = vsub.f32 %v4515, %v4561
        %v4591 = vsub.f32 %v4518, %v4563
        %v4592 = vsub.f32 %v4521, %v4565
        %v4593 = vsub.f32 %v4524, %v4567
        %v4594 = vsub.f32 %v4527, %v4569
        %v4595 = vsub.f32 %v4530, %v4571
        %v4596 = vsub.f32 %v4533, %v4573
        %v4597 = vsub.f32 %v4536, %v4575
        %v4598 = vsub.f32 %v4539, %v4577
        %v4599 = vsub.f32 %v4542, %v4579
        %v4600 = vsub.f32 %v4545, %v4581
        %v4601 = vsub.f32 %v4548, %v4583
        %v4602 = vsub.f32 %v4551, %v4585
        %v4603 = vsub.f32 %v4554, %v4587
        %v4604 = vmul.f32 %v4588, 1.442695
        %v4605 = vpow.pop %v4604
        %v4606 = vmul.f32 %v4589, 1.442695
        %v4607 = vpow.pop %v4606
        %v4608 = vmul.f32 %v4590, 1.442695
        %v4609 = vpow.pop %v4608
        %v4610 = vmul.f32 %v4591, 1.442695
        %v4611 = vpow.pop %v4610
        %v4612 = vmul.f32 %v4592, 1.442695
        %v4613 = vpow.pop %v4612
        %v4614 = vmul.f32 %v4593, 1.442695
        %v4615 = vpow.pop %v4614
        %v4616 = vmul.f32 %v4594, 1.442695
        %v4617 = vpow.pop %v4616
        %v4618 = vmul.f32 %v4595, 1.442695
        %v4619 = vpow.pop %v4618
        %v4620 = vmul.f32 %v4596, 1.442695
        %v4621 = vpow.pop %v4620
        %v4622 = vmul.f32 %v4597, 1.442695
        %v4623 = vpow.pop %v4622
        %v4624 = vmul.f32 %v4598, 1.442695
        %v4625 = vpow.pop %v4624
        %v4626 = vmul.f32 %v4599, 1.442695
        %v4627 = vpow.pop %v4626
        %v4628 = vmul.f32 %v4600, 1.442695
        %v4629 = vpow.pop %v4628
        %v4630 = vmul.f32 %v4601, 1.442695
        %v4631 = vpow.pop %v4630
        %v4632 = vmul.f32 %v4602, 1.442695
        %v4633 = vpow.pop %v4632
        %v4634 = vmul.f32 %v4603, 1.442695
        %v4635 = vpow.pop %v4634
        %4636 = vadd.xlane.f32.xlu0 %v4605
        %v4637 = vpop.xlane.xlu0 %4636
        %4638 = vadd.xlane.f32.xlu0 %v4607
        %v4639 = vpop.xlane.xlu0 %4638
        %4640 = vadd.xlane.f32.xlu0 %v4609
        %v4641 = vpop.xlane.xlu0 %4640
        %4642 = vadd.xlane.f32.xlu0 %v4611
        %v4643 = vpop.xlane.xlu0 %4642
        %4644 = vadd.xlane.f32.xlu0 %v4613
        %v4645 = vpop.xlane.xlu0 %4644
        %4646 = vadd.xlane.f32.xlu0 %v4615
        %v4647 = vpop.xlane.xlu0 %4646
        %4648 = vadd.xlane.f32.xlu0 %v4617
        %v4649 = vpop.xlane.xlu0 %4648
        %4650 = vadd.xlane.f32.xlu0 %v4619
        %v4651 = vpop.xlane.xlu0 %4650
        %4652 = vadd.xlane.f32.xlu0 %v4621
        %v4653 = vpop.xlane.xlu0 %4652
        %4654 = vadd.xlane.f32.xlu0 %v4623
        %v4655 = vpop.xlane.xlu0 %4654
        %4656 = vadd.xlane.f32.xlu0 %v4625
        %v4657 = vpop.xlane.xlu0 %4656
        %4658 = vadd.xlane.f32.xlu0 %v4627
        %v4659 = vpop.xlane.xlu0 %4658
        %4660 = vadd.xlane.f32.xlu0 %v4629
        %v4661 = vpop.xlane.xlu0 %4660
        %4662 = vadd.xlane.f32.xlu0 %v4631
        %v4663 = vpop.xlane.xlu0 %4662
        %4664 = vadd.xlane.f32.xlu0 %v4633
        %v4665 = vpop.xlane.xlu0 %4664
        %4666 = vadd.xlane.f32.xlu0 %v4635
        %v4667 = vpop.xlane.xlu0 %4666
        %v4668 = vrcp.pop %v4637
        %v4669 = vrcp.pop %v4639
        %v4670 = vrcp.pop %v4641
        %v4671 = vrcp.pop %v4643
        %v4672 = vrcp.pop %v4645
        %v4673 = vrcp.pop %v4647
        %v4674 = vrcp.pop %v4649
        %v4675 = vrcp.pop %v4651
        %v4676 = vrcp.pop %v4653
        %v4677 = vrcp.pop %v4655
        %v4678 = vrcp.pop %v4657
        %v4679 = vrcp.pop %v4659
        %v4680 = vrcp.pop %v4661
        %v4681 = vrcp.pop %v4663
        %v4682 = vrcp.pop %v4665
        %v4683 = vrcp.pop %v4667
        %v4684 = vmul.f32 %v4668, 0.5
        %v4685 = vmul.f32 %v4669, 0.5
        %v4686 = vmul.f32 %v4670, 0.5
        %v4687 = vmul.f32 %v4671, 0.5
        %v4688 = vmul.f32 %v4672, 0.5
        %v4689 = vmul.f32 %v4673, 0.5
        %v4690 = vmul.f32 %v4674, 0.5
        %v4691 = vmul.f32 %v4675, 0.5
        %v4692 = vmul.f32 %v4676, 0.5
        %v4693 = vmul.f32 %v4677, 0.5
        %v4694 = vmul.f32 %v4678, 0.5
        %v4695 = vmul.f32 %v4679, 0.5
        %v4696 = vmul.f32 %v4680, 0.5
        %v4697 = vmul.f32 %v4681, 0.5
        %v4698 = vmul.f32 %v4682, 0.5
        %v4699 = vmul.f32 %v4683, 0.5
        %v4700 = vmul.f32 %v4605, %v4684
        %v4701 = vmul.f32 %v4607, %v4685
        %v4702 = vmul.f32 %v4609, %v4686
        %v4703 = vmul.f32 %v4611, %v4687
        %v4704 = vmul.f32 %v4613, %v4688
        %v4705 = vmul.f32 %v4615, %v4689
        %v4706 = vmul.f32 %v4617, %v4690
        %v4707 = vmul.f32 %v4619, %v4691
        %v4708 = vmul.f32 %v4621, %v4692
        %v4709 = vmul.f32 %v4623, %v4693
        %v4710 = vmul.f32 %v4625, %v4694
        %v4711 = vmul.f32 %v4627, %v4695
        %v4712 = vmul.f32 %v4629, %v4696
        %v4713 = vmul.f32 %v4631, %v4697
        %v4714 = vmul.f32 %v4633, %v4698
        %v4715 = vmul.f32 %v4635, %v4699
        %v4716 = vadd.f32 %v4700, %v453
        %v4717 = vadd.f32 %v4701, %v454
        %v4718 = vadd.f32 %v4702, %v455
        %v4719 = vadd.f32 %v4703, %v456
        %v4720 = vadd.f32 %v4704, %v457
        %v4721 = vadd.f32 %v4705, %v458
        %v4722 = vadd.f32 %v4706, %v459
        %v4723 = vadd.f32 %v4707, %v460
        %v4724 = vadd.f32 %v4708, %v461
        %v4725 = vadd.f32 %v4709, %v462
        %v4726 = vadd.f32 %v4710, %v463
        %v4727 = vadd.f32 %v4711, %v464
        %v4728 = vadd.f32 %v4712, %v465
        %v4729 = vadd.f32 %v4713, %v466
        %v4730 = vadd.f32 %v4714, %v467
        %v4731 = vadd.f32 %v4715, %v468
        %4732 = vrot.lane.b32.xlu0 %v4267, 120
        %v4733 = vpop.permute.xlu0 %4732
        %4734 = vrot.lane.b32.xlu0 %v4270, 120
        %v4735 = vpop.permute.xlu0 %4734
        %4736 = vrot.lane.b32.xlu0 %v4273, 120
        %v4737 = vpop.permute.xlu0 %4736
        %4738 = vrot.lane.b32.xlu0 %v4276, 120
        %v4739 = vpop.permute.xlu0 %4738
        %4740 = vrot.lane.b32.xlu0 %v4279, 120
        %v4741 = vpop.permute.xlu0 %4740
        %4742 = vrot.lane.b32.xlu0 %v4282, 120
        %v4743 = vpop.permute.xlu0 %4742
        %4744 = vrot.lane.b32.xlu0 %v4285, 120
        %v4745 = vpop.permute.xlu0 %4744
        %4746 = vrot.lane.b32.xlu0 %v4288, 120
        %v4747 = vpop.permute.xlu0 %4746
        %4748 = vrot.lane.b32.xlu0 %v4291, 120
        %v4749 = vpop.permute.xlu0 %4748
        %4750 = vrot.lane.b32.xlu0 %v4294, 120
        %v4751 = vpop.permute.xlu0 %4750
        %4752 = vrot.lane.b32.xlu0 %v4297, 120
        %v4753 = vpop.permute.xlu0 %4752
        %4754 = vrot.lane.b32.xlu0 %v4300, 120
        %v4755 = vpop.permute.xlu0 %4754
        %4756 = vrot.lane.b32.xlu0 %v4303, 120
        %v4757 = vpop.permute.xlu0 %4756
        %4758 = vrot.lane.b32.xlu0 %v4306, 120
        %v4759 = vpop.permute.xlu0 %4758
        %4760 = vrot.lane.b32.xlu0 %v4309, 120
        %v4761 = vpop.permute.xlu0 %4760
        %4762 = vrot.lane.b32.xlu0 %v4312, 120
        %v4763 = vpop.permute.xlu0 %4762
        %4764 = vrot.lane.b32.xlu0 %v4267, 88
        %v4765 = vpop.permute.xlu0 %4764
        %4766 = vrot.lane.b32.xlu0 %v4270, 88
        %v4767 = vpop.permute.xlu0 %4766
        %4768 = vrot.lane.b32.xlu0 %v4273, 88
        %v4769 = vpop.permute.xlu0 %4768
        %4770 = vrot.lane.b32.xlu0 %v4276, 88
        %v4771 = vpop.permute.xlu0 %4770
        %4772 = vrot.lane.b32.xlu0 %v4279, 88
        %v4773 = vpop.permute.xlu0 %4772
        %4774 = vrot.lane.b32.xlu0 %v4282, 88
        %v4775 = vpop.permute.xlu0 %4774
        %4776 = vrot.lane.b32.xlu0 %v4285, 88
        %v4777 = vpop.permute.xlu0 %4776
        %4778 = vrot.lane.b32.xlu0 %v4288, 88
        %v4779 = vpop.permute.xlu0 %4778
        %4780 = vrot.lane.b32.xlu0 %v4291, 88
        %v4781 = vpop.permute.xlu0 %4780
        %4782 = vrot.lane.b32.xlu0 %v4294, 88
        %v4783 = vpop.permute.xlu0 %4782
        %4784 = vrot.lane.b32.xlu0 %v4297, 88
        %v4785 = vpop.permute.xlu0 %4784
        %4786 = vrot.lane.b32.xlu0 %v4300, 88
        %v4787 = vpop.permute.xlu0 %4786
        %4788 = vrot.lane.b32.xlu0 %v4303, 88
        %v4789 = vpop.permute.xlu0 %4788
        %4790 = vrot.lane.b32.xlu0 %v4306, 88
        %v4791 = vpop.permute.xlu0 %4790
        %4792 = vrot.lane.b32.xlu0 %v4309, 88
        %v4793 = vpop.permute.xlu0 %4792
        %4794 = vrot.lane.b32.xlu0 %v4312, 88
        %v4795 = vpop.permute.xlu0 %4794
        %v4796 = vsel %vm1223, %v4733, 0
        %v4798 = vsel %vm1223, %v4735, 0
        %v4800 = vsel %vm1223, %v4737, 0
        %v4802 = vsel %vm1223, %v4739, 0
        %v4804 = vsel %vm1223, %v4741, 0
        %v4806 = vsel %vm1223, %v4743, 0
        %v4808 = vsel %vm1223, %v4745, 0
        %v4810 = vsel %vm1223, %v4747, 0
        %v4812 = vsel %vm1223, %v4749, 0
        %v4814 = vsel %vm1223, %v4751, 0
        %v4816 = vsel %vm1223, %v4753, 0
        %v4818 = vsel %vm1223, %v4755, 0
        %v4820 = vsel %vm1223, %v4757, 0
        %v4822 = vsel %vm1223, %v4759, 0
        %v4824 = vsel %vm1223, %v4761, 0
        %v4826 = vsel %vm1223, %v4763, 0
        %v4828 = vsel %vm1223, %v4765, 0
        %v4830 = vsel %vm1223, %v4767, 0
        %v4832 = vsel %vm1223, %v4769, 0
        %v4834 = vsel %vm1223, %v4771, 0
        %v4836 = vsel %vm1223, %v4773, 0
        %v4838 = vsel %vm1223, %v4775, 0
        %v4840 = vsel %vm1223, %v4777, 0
        %v4842 = vsel %vm1223, %v4779, 0
        %v4844 = vsel %vm1223, %v4781, 0
        %v4846 = vsel %vm1223, %v4783, 0
        %v4848 = vsel %vm1223, %v4785, 0
        %v4850 = vsel %vm1223, %v4787, 0
        %v4852 = vsel %vm1223, %v4789, 0
        %v4854 = vsel %vm1223, %v4791, 0
        %v4856 = vsel %vm1223, %v4793, 0
        %v4858 = vsel %vm1223, %v4795, 0
        %4860 = vmatpush.xpose.msra.mxu0 %v4858
        %4861 = vmatpush.xpose.msra.mxu0 %v4856
        %4862 = vmatpush.xpose.msra.mxu0 %v4854
        %4863 = vmatpush.xpose.msra.mxu0 %v4852
        %4864 = vmatpush.xpose.msra.mxu0 %v4850
        %4865 = vmatpush.xpose.msra.mxu0 %v4848
        %4866 = vmatpush.xpose.msra.mxu0 %v4846
        %4867 = vmatpush.xpose.msra.mxu0 %v4844
        %4868 = vmatpush.xpose.msra.mxu0 %v4842
        %4869 = vmatpush.xpose.msra.mxu0 %v4840
        %4870 = vmatpush.xpose.msra.mxu0 %v4838
        %4871 = vmatpush.xpose.msra.mxu0 %v4836
        %4872 = vmatpush.xpose.msra.mxu0 %v4834
        %4873 = vmatpush.xpose.msra.mxu0 %v4832
        %4874 = vmatpush.xpose.msra.mxu0 %v4830
        %4875 = vmatpush.xpose.msra.mxu0 %v4828
        %4876 = vmatmul.f32.gmra.mxu0 %v4796
        %v4877 = vpop.f32.mrf.mxu0
        %v4878 = vadd.f32 %v437, %v4877
        %4879 = vmatmul.f32.gmra.mxu0 %v4798
        %v4880 = vpop.f32.mrf.mxu0
        %v4881 = vadd.f32 %v438, %v4880
        %4882 = vmatmul.f32.gmra.mxu0 %v4800
        %v4883 = vpop.f32.mrf.mxu0
        %v4884 = vadd.f32 %v439, %v4883
        %4885 = vmatmul.f32.gmra.mxu0 %v4802
        %v4886 = vpop.f32.mrf.mxu0
        %v4887 = vadd.f32 %v440, %v4886
        %4888 = vmatmul.f32.gmra.mxu0 %v4804
        %v4889 = vpop.f32.mrf.mxu0
        %v4890 = vadd.f32 %v441, %v4889
        %4891 = vmatmul.f32.gmra.mxu0 %v4806
        %v4892 = vpop.f32.mrf.mxu0
        %v4893 = vadd.f32 %v442, %v4892
        %4894 = vmatmul.f32.gmra.mxu0 %v4808
        %v4895 = vpop.f32.mrf.mxu0
        %v4896 = vadd.f32 %v443, %v4895
        %4897 = vmatmul.f32.gmra.mxu0 %v4810
        %v4898 = vpop.f32.mrf.mxu0
        %v4899 = vadd.f32 %v444, %v4898
        %4900 = vmatmul.f32.gmra.mxu0 %v4812
        %v4901 = vpop.f32.mrf.mxu0
        %v4902 = vadd.f32 %v445, %v4901
        %4903 = vmatmul.f32.gmra.mxu0 %v4814
        %v4904 = vpop.f32.mrf.mxu0
        %v4905 = vadd.f32 %v446, %v4904
        %4906 = vmatmul.f32.gmra.mxu0 %v4816
        %v4907 = vpop.f32.mrf.mxu0
        %v4908 = vadd.f32 %v447, %v4907
        %4909 = vmatmul.f32.gmra.mxu0 %v4818
        %v4910 = vpop.f32.mrf.mxu0
        %v4911 = vadd.f32 %v448, %v4910
        %4912 = vmatmul.f32.gmra.mxu0 %v4820
        %v4913 = vpop.f32.mrf.mxu0
        %v4914 = vadd.f32 %v449, %v4913
        %4915 = vmatmul.f32.gmra.mxu0 %v4822
        %v4916 = vpop.f32.mrf.mxu0
        %v4917 = vadd.f32 %v450, %v4916
        %4918 = vmatmul.f32.gmra.mxu0 %v4824
        %v4919 = vpop.f32.mrf.mxu0
        %v4920 = vadd.f32 %v451, %v4919
        %4921 = vmatmul.f32.gmra.mxu0 %v4826
        %v4922 = vpop.f32.mrf.mxu0
        %v4923 = vadd.f32 %v452, %v4922
        %4924 = vdwg.mxu0
        %4925 = vmax.xlane.f32.xlu0 %v4878
        %v4926 = vpop.xlane.xlu0 %4925
        %4927 = vmax.xlane.f32.xlu0 %v4881
        %v4928 = vpop.xlane.xlu0 %4927
        %4929 = vmax.xlane.f32.xlu0 %v4884
        %v4930 = vpop.xlane.xlu0 %4929
        %4931 = vmax.xlane.f32.xlu0 %v4887
        %v4932 = vpop.xlane.xlu0 %4931
        %4933 = vmax.xlane.f32.xlu0 %v4890
        %v4934 = vpop.xlane.xlu0 %4933
        %4935 = vmax.xlane.f32.xlu0 %v4893
        %v4936 = vpop.xlane.xlu0 %4935
        %4937 = vmax.xlane.f32.xlu0 %v4896
        %v4938 = vpop.xlane.xlu0 %4937
        %4939 = vmax.xlane.f32.xlu0 %v4899
        %v4940 = vpop.xlane.xlu0 %4939
        %4941 = vmax.xlane.f32.xlu0 %v4902
        %v4942 = vpop.xlane.xlu0 %4941
        %4943 = vmax.xlane.f32.xlu0 %v4905
        %v4944 = vpop.xlane.xlu0 %4943
        %4945 = vmax.xlane.f32.xlu0 %v4908
        %v4946 = vpop.xlane.xlu0 %4945
        %4947 = vmax.xlane.f32.xlu0 %v4911
        %v4948 = vpop.xlane.xlu0 %4947
        %4949 = vmax.xlane.f32.xlu0 %v4914
        %v4950 = vpop.xlane.xlu0 %4949
        %4951 = vmax.xlane.f32.xlu0 %v4917
        %v4952 = vpop.xlane.xlu0 %4951
        %4953 = vmax.xlane.f32.xlu0 %v4920
        %v4954 = vpop.xlane.xlu0 %4953
        %4955 = vmax.xlane.f32.xlu0 %v4923
        %v4956 = vpop.xlane.xlu0 %4955
        %v4957 = vsub.f32 %v4878, %v4926
        %v4958 = vsub.f32 %v4881, %v4928
        %v4959 = vsub.f32 %v4884, %v4930
        %v4960 = vsub.f32 %v4887, %v4932
        %v4961 = vsub.f32 %v4890, %v4934
        %v4962 = vsub.f32 %v4893, %v4936
        %v4963 = vsub.f32 %v4896, %v4938
        %v4964 = vsub.f32 %v4899, %v4940
        %v4965 = vsub.f32 %v4902, %v4942
        %v4966 = vsub.f32 %v4905, %v4944
        %v4967 = vsub.f32 %v4908, %v4946
        %v4968 = vsub.f32 %v4911, %v4948
        %v4969 = vsub.f32 %v4914, %v4950
        %v4970 = vsub.f32 %v4917, %v4952
        %v4971 = vsub.f32 %v4920, %v4954
        %v4972 = vsub.f32 %v4923, %v4956
        %v4973 = vmul.f32 %v4957, 1.442695
        %v4974 = vpow.pop %v4973
        %v4975 = vmul.f32 %v4958, 1.442695
        %v4976 = vpow.pop %v4975
        %v4977 = vmul.f32 %v4959, 1.442695
        %v4978 = vpow.pop %v4977
        %v4979 = vmul.f32 %v4960, 1.442695
        %v4980 = vpow.pop %v4979
        %v4981 = vmul.f32 %v4961, 1.442695
        %v4982 = vpow.pop %v4981
        %v4983 = vmul.f32 %v4962, 1.442695
        %v4984 = vpow.pop %v4983
        %v4985 = vmul.f32 %v4963, 1.442695
        %v4986 = vpow.pop %v4985
        %v4987 = vmul.f32 %v4964, 1.442695
        %v4988 = vpow.pop %v4987
        %v4989 = vmul.f32 %v4965, 1.442695
        %v4990 = vpow.pop %v4989
        %v4991 = vmul.f32 %v4966, 1.442695
        %v4992 = vpow.pop %v4991
        %v4993 = vmul.f32 %v4967, 1.442695
        %v4994 = vpow.pop %v4993
        %v4995 = vmul.f32 %v4968, 1.442695
        %v4996 = vpow.pop %v4995
        %v4997 = vmul.f32 %v4969, 1.442695
        %v4998 = vpow.pop %v4997
        %v4999 = vmul.f32 %v4970, 1.442695
        %v5000 = vpow.pop %v4999
        %v5001 = vmul.f32 %v4971, 1.442695
        %v5002 = vpow.pop %v5001
        %v5003 = vmul.f32 %v4972, 1.442695
        %v5004 = vpow.pop %v5003
        %5005 = vadd.xlane.f32.xlu0 %v4974
        %v5006 = vpop.xlane.xlu0 %5005
        %5007 = vadd.xlane.f32.xlu0 %v4976
        %v5008 = vpop.xlane.xlu0 %5007
        %5009 = vadd.xlane.f32.xlu0 %v4978
        %v5010 = vpop.xlane.xlu0 %5009
        %5011 = vadd.xlane.f32.xlu0 %v4980
        %v5012 = vpop.xlane.xlu0 %5011
        %5013 = vadd.xlane.f32.xlu0 %v4982
        %v5014 = vpop.xlane.xlu0 %5013
        %5015 = vadd.xlane.f32.xlu0 %v4984
        %v5016 = vpop.xlane.xlu0 %5015
        %5017 = vadd.xlane.f32.xlu0 %v4986
        %v5018 = vpop.xlane.xlu0 %5017
        %5019 = vadd.xlane.f32.xlu0 %v4988
        %v5020 = vpop.xlane.xlu0 %5019
        %5021 = vadd.xlane.f32.xlu0 %v4990
        %v5022 = vpop.xlane.xlu0 %5021
        %5023 = vadd.xlane.f32.xlu0 %v4992
        %v5024 = vpop.xlane.xlu0 %5023
        %5025 = vadd.xlane.f32.xlu0 %v4994
        %v5026 = vpop.xlane.xlu0 %5025
        %5027 = vadd.xlane.f32.xlu0 %v4996
        %v5028 = vpop.xlane.xlu0 %5027
        %5029 = vadd.xlane.f32.xlu0 %v4998
        %v5030 = vpop.xlane.xlu0 %5029
        %5031 = vadd.xlane.f32.xlu0 %v5000
        %v5032 = vpop.xlane.xlu0 %5031
        %5033 = vadd.xlane.f32.xlu0 %v5002
        %v5034 = vpop.xlane.xlu0 %5033
        %5035 = vadd.xlane.f32.xlu0 %v5004
        %v5036 = vpop.xlane.xlu0 %5035
        %v5037 = vrcp.pop %v5006
        %v5038 = vrcp.pop %v5008
        %v5039 = vrcp.pop %v5010
        %v5040 = vrcp.pop %v5012
        %v5041 = vrcp.pop %v5014
        %v5042 = vrcp.pop %v5016
        %v5043 = vrcp.pop %v5018
        %v5044 = vrcp.pop %v5020
        %v5045 = vrcp.pop %v5022
        %v5046 = vrcp.pop %v5024
        %v5047 = vrcp.pop %v5026
        %v5048 = vrcp.pop %v5028
        %v5049 = vrcp.pop %v5030
        %v5050 = vrcp.pop %v5032
        %v5051 = vrcp.pop %v5034
        %v5052 = vrcp.pop %v5036
        %v5053 = vmul.f32 %v5037, 0.5
        %v5054 = vmul.f32 %v5038, 0.5
        %v5055 = vmul.f32 %v5039, 0.5
        %v5056 = vmul.f32 %v5040, 0.5
        %v5057 = vmul.f32 %v5041, 0.5
        %v5058 = vmul.f32 %v5042, 0.5
        %v5059 = vmul.f32 %v5043, 0.5
        %v5060 = vmul.f32 %v5044, 0.5
        %v5061 = vmul.f32 %v5045, 0.5
        %v5062 = vmul.f32 %v5046, 0.5
        %v5063 = vmul.f32 %v5047, 0.5
        %v5064 = vmul.f32 %v5048, 0.5
        %v5065 = vmul.f32 %v5049, 0.5
        %v5066 = vmul.f32 %v5050, 0.5
        %v5067 = vmul.f32 %v5051, 0.5
        %v5068 = vmul.f32 %v5052, 0.5
        %v5069 = vmul.f32 %v4974, %v5053
        %v5070 = vmul.f32 %v4976, %v5054
        %v5071 = vmul.f32 %v4978, %v5055
        %v5072 = vmul.f32 %v4980, %v5056
        %v5073 = vmul.f32 %v4982, %v5057
        %v5074 = vmul.f32 %v4984, %v5058
        %v5075 = vmul.f32 %v4986, %v5059
        %v5076 = vmul.f32 %v4988, %v5060
        %v5077 = vmul.f32 %v4990, %v5061
        %v5078 = vmul.f32 %v4992, %v5062
        %v5079 = vmul.f32 %v4994, %v5063
        %v5080 = vmul.f32 %v4996, %v5064
        %v5081 = vmul.f32 %v4998, %v5065
        %v5082 = vmul.f32 %v5000, %v5066
        %v5083 = vmul.f32 %v5002, %v5067
        %v5084 = vmul.f32 %v5004, %v5068
        %v5085 = vadd.f32 %v5069, %v453
        %v5086 = vadd.f32 %v5070, %v454
        %v5087 = vadd.f32 %v5071, %v455
        %v5088 = vadd.f32 %v5072, %v456
        %v5089 = vadd.f32 %v5073, %v457
        %v5090 = vadd.f32 %v5074, %v458
        %v5091 = vadd.f32 %v5075, %v459
        %v5092 = vadd.f32 %v5076, %v460
        %v5093 = vadd.f32 %v5077, %v461
        %v5094 = vadd.f32 %v5078, %v462
        %v5095 = vadd.f32 %v5079, %v463
        %v5096 = vadd.f32 %v5080, %v464
        %v5097 = vadd.f32 %v5081, %v465
        %v5098 = vadd.f32 %v5082, %v466
        %v5099 = vadd.f32 %v5083, %v467
        %v5100 = vadd.f32 %v5084, %v468
        %5101 = vrot.lane.b32.xlu0 %v4267, 32
        %v5102 = vpop.permute.xlu0 %5101
        %5103 = vrot.lane.b32.xlu0 %v4270, 32
        %v5104 = vpop.permute.xlu0 %5103
        %5105 = vrot.lane.b32.xlu0 %v4273, 32
        %v5106 = vpop.permute.xlu0 %5105
        %5107 = vrot.lane.b32.xlu0 %v4276, 32
        %v5108 = vpop.permute.xlu0 %5107
        %5109 = vrot.lane.b32.xlu0 %v4279, 32
        %v5110 = vpop.permute.xlu0 %5109
        %5111 = vrot.lane.b32.xlu0 %v4282, 32
        %v5112 = vpop.permute.xlu0 %5111
        %5113 = vrot.lane.b32.xlu0 %v4285, 32
        %v5114 = vpop.permute.xlu0 %5113
        %5115 = vrot.lane.b32.xlu0 %v4288, 32
        %v5116 = vpop.permute.xlu0 %5115
        %5117 = vrot.lane.b32.xlu0 %v4291, 32
        %v5118 = vpop.permute.xlu0 %5117
        %5119 = vrot.lane.b32.xlu0 %v4294, 32
        %v5120 = vpop.permute.xlu0 %5119
        %5121 = vrot.lane.b32.xlu0 %v4297, 32
        %v5122 = vpop.permute.xlu0 %5121
        %5123 = vrot.lane.b32.xlu0 %v4300, 32
        %v5124 = vpop.permute.xlu0 %5123
        %5125 = vrot.lane.b32.xlu0 %v4303, 32
        %v5126 = vpop.permute.xlu0 %5125
        %5127 = vrot.lane.b32.xlu0 %v4306, 32
        %v5128 = vpop.permute.xlu0 %5127
        %5129 = vrot.lane.b32.xlu0 %v4309, 32
        %v5130 = vpop.permute.xlu0 %5129
        %5131 = vrot.lane.b32.xlu0 %v4312, 32
        %v5132 = vpop.permute.xlu0 %5131
        %5149 = vmatpush.msra.mxu0 %v5132
        %5150 = vmatpush.msra.mxu0 %v5130
        %5151 = vmatpush.msra.mxu0 %v5128
        %5152 = vmatpush.msra.mxu0 %v5126
        %5153 = vmatpush.msra.mxu0 %v5124
        %5154 = vmatpush.msra.mxu0 %v5122
        %5155 = vmatpush.msra.mxu0 %v5120
        %5156 = vmatpush.msra.mxu0 %v5118
        %5157 = vmatpush.msra.mxu0 %v5116
        %5158 = vmatpush.msra.mxu0 %v5114
        %5159 = vmatpush.msra.mxu0 %v5112
        %5160 = vmatpush.msra.mxu0 %v5110
        %5161 = vmatpush.msra.mxu0 %v5108
        %5162 = vmatpush.msra.mxu0 %v5106
        %5163 = vmatpush.msra.mxu0 %v5104
        %5164 = vmatpush.msra.mxu0 %v5102
        %5165 = vmatmul.f32.gmra.mxu0 %v5085
        %v5166 = vpop.f32.mrf.mxu0
        %v5167 = vadd.f32 0.0, %v5166
        %5168 = vmatmul.f32.gmra.mxu0 %v5086
        %v5169 = vpop.f32.mrf.mxu0
        %v5170 = vadd.f32 0.0, %v5169
        %5171 = vmatmul.f32.gmra.mxu0 %v5087
        %v5172 = vpop.f32.mrf.mxu0
        %v5173 = vadd.f32 0.0, %v5172
        %5174 = vmatmul.f32.gmra.mxu0 %v5088
        %v5175 = vpop.f32.mrf.mxu0
        %v5176 = vadd.f32 0.0, %v5175
        %5177 = vmatmul.f32.gmra.mxu0 %v5089
        %v5178 = vpop.f32.mrf.mxu0
        %v5179 = vadd.f32 0.0, %v5178
        %5180 = vmatmul.f32.gmra.mxu0 %v5090
        %v5181 = vpop.f32.mrf.mxu0
        %v5182 = vadd.f32 0.0, %v5181
        %5183 = vmatmul.f32.gmra.mxu0 %v5091
        %v5184 = vpop.f32.mrf.mxu0
        %v5185 = vadd.f32 0.0, %v5184
        %5186 = vmatmul.f32.gmra.mxu0 %v5092
        %v5187 = vpop.f32.mrf.mxu0
        %v5188 = vadd.f32 0.0, %v5187
        %5189 = vmatmul.f32.gmra.mxu0 %v5093
        %v5190 = vpop.f32.mrf.mxu0
        %v5191 = vadd.f32 0.0, %v5190
        %5192 = vmatmul.f32.gmra.mxu0 %v5094
        %v5193 = vpop.f32.mrf.mxu0
        %v5194 = vadd.f32 0.0, %v5193
        %5195 = vmatmul.f32.gmra.mxu0 %v5095
        %v5196 = vpop.f32.mrf.mxu0
        %v5197 = vadd.f32 0.0, %v5196
        %5198 = vmatmul.f32.gmra.mxu0 %v5096
        %v5199 = vpop.f32.mrf.mxu0
        %v5200 = vadd.f32 0.0, %v5199
        %5201 = vmatmul.f32.gmra.mxu0 %v5097
        %v5202 = vpop.f32.mrf.mxu0
        %v5203 = vadd.f32 0.0, %v5202
        %5204 = vmatmul.f32.gmra.mxu0 %v5098
        %v5205 = vpop.f32.mrf.mxu0
        %v5206 = vadd.f32 0.0, %v5205
        %5207 = vmatmul.f32.gmra.mxu0 %v5099
        %v5208 = vpop.f32.mrf.mxu0
        %v5209 = vadd.f32 0.0, %v5208
        %5210 = vmatmul.f32.gmra.mxu0 %v5100
        %v5211 = vpop.f32.mrf.mxu0
        %v5212 = vadd.f32 0.0, %v5211
        %5213 = vdwg.mxu0
        %5214 = vrot.lane.b32.xlu0 %v4267, 64
        %v5215 = vpop.permute.xlu0 %5214
        %5216 = vrot.lane.b32.xlu0 %v4270, 64
        %v5217 = vpop.permute.xlu0 %5216
        %5218 = vrot.lane.b32.xlu0 %v4273, 64
        %v5219 = vpop.permute.xlu0 %5218
        %5220 = vrot.lane.b32.xlu0 %v4276, 64
        %v5221 = vpop.permute.xlu0 %5220
        %5222 = vrot.lane.b32.xlu0 %v4279, 64
        %v5223 = vpop.permute.xlu0 %5222
        %5224 = vrot.lane.b32.xlu0 %v4282, 64
        %v5225 = vpop.permute.xlu0 %5224
        %5226 = vrot.lane.b32.xlu0 %v4285, 64
        %v5227 = vpop.permute.xlu0 %5226
        %5228 = vrot.lane.b32.xlu0 %v4288, 64
        %v5229 = vpop.permute.xlu0 %5228
        %5230 = vrot.lane.b32.xlu0 %v4291, 64
        %v5231 = vpop.permute.xlu0 %5230
        %5232 = vrot.lane.b32.xlu0 %v4294, 64
        %v5233 = vpop.permute.xlu0 %5232
        %5234 = vrot.lane.b32.xlu0 %v4297, 64
        %v5235 = vpop.permute.xlu0 %5234
        %5236 = vrot.lane.b32.xlu0 %v4300, 64
        %v5237 = vpop.permute.xlu0 %5236
        %5238 = vrot.lane.b32.xlu0 %v4303, 64
        %v5239 = vpop.permute.xlu0 %5238
        %5240 = vrot.lane.b32.xlu0 %v4306, 64
        %v5241 = vpop.permute.xlu0 %5240
        %5242 = vrot.lane.b32.xlu0 %v4309, 64
        %v5243 = vpop.permute.xlu0 %5242
        %5244 = vrot.lane.b32.xlu0 %v4312, 64
        %v5245 = vpop.permute.xlu0 %5244
        %5262 = vmatpush.msra.mxu0 %v5245
        %5263 = vmatpush.msra.mxu0 %v5243
        %5264 = vmatpush.msra.mxu0 %v5241
        %5265 = vmatpush.msra.mxu0 %v5239
        %5266 = vmatpush.msra.mxu0 %v5237
        %5267 = vmatpush.msra.mxu0 %v5235
        %5268 = vmatpush.msra.mxu0 %v5233
        %5269 = vmatpush.msra.mxu0 %v5231
        %5270 = vmatpush.msra.mxu0 %v5229
        %5271 = vmatpush.msra.mxu0 %v5227
        %5272 = vmatpush.msra.mxu0 %v5225
        %5273 = vmatpush.msra.mxu0 %v5223
        %5274 = vmatpush.msra.mxu0 %v5221
        %5275 = vmatpush.msra.mxu0 %v5219
        %5276 = vmatpush.msra.mxu0 %v5217
        %5277 = vmatpush.msra.mxu0 %v5215
        %5278 = vmatmul.f32.gmra.mxu0 %v4716
        %v5279 = vpop.f32.mrf.mxu0
        %v5280 = vadd.f32 %v5167, %v5279
        %5281 = vmatmul.f32.gmra.mxu0 %v4717
        %v5282 = vpop.f32.mrf.mxu0
        %v5283 = vadd.f32 %v5170, %v5282
        %5284 = vmatmul.f32.gmra.mxu0 %v4718
        %v5285 = vpop.f32.mrf.mxu0
        %v5286 = vadd.f32 %v5173, %v5285
        %5287 = vmatmul.f32.gmra.mxu0 %v4719
        %v5288 = vpop.f32.mrf.mxu0
        %v5289 = vadd.f32 %v5176, %v5288
        %5290 = vmatmul.f32.gmra.mxu0 %v4720
        %v5291 = vpop.f32.mrf.mxu0
        %v5292 = vadd.f32 %v5179, %v5291
        %5293 = vmatmul.f32.gmra.mxu0 %v4721
        %v5294 = vpop.f32.mrf.mxu0
        %v5295 = vadd.f32 %v5182, %v5294
        %5296 = vmatmul.f32.gmra.mxu0 %v4722
        %v5297 = vpop.f32.mrf.mxu0
        %v5298 = vadd.f32 %v5185, %v5297
        %5299 = vmatmul.f32.gmra.mxu0 %v4723
        %v5300 = vpop.f32.mrf.mxu0
        %v5301 = vadd.f32 %v5188, %v5300
        %5302 = vmatmul.f32.gmra.mxu0 %v4724
        %v5303 = vpop.f32.mrf.mxu0
        %v5304 = vadd.f32 %v5191, %v5303
        %5305 = vmatmul.f32.gmra.mxu0 %v4725
        %v5306 = vpop.f32.mrf.mxu0
        %v5307 = vadd.f32 %v5194, %v5306
        %5308 = vmatmul.f32.gmra.mxu0 %v4726
        %v5309 = vpop.f32.mrf.mxu0
        %v5310 = vadd.f32 %v5197, %v5309
        %5311 = vmatmul.f32.gmra.mxu0 %v4727
        %v5312 = vpop.f32.mrf.mxu0
        %v5313 = vadd.f32 %v5200, %v5312
        %5314 = vmatmul.f32.gmra.mxu0 %v4728
        %v5315 = vpop.f32.mrf.mxu0
        %v5316 = vadd.f32 %v5203, %v5315
        %5317 = vmatmul.f32.gmra.mxu0 %v4729
        %v5318 = vpop.f32.mrf.mxu0
        %v5319 = vadd.f32 %v5206, %v5318
        %5320 = vmatmul.f32.gmra.mxu0 %v4730
        %v5321 = vpop.f32.mrf.mxu0
        %v5322 = vadd.f32 %v5209, %v5321
        %5323 = vmatmul.f32.gmra.mxu0 %v4731
        %v5324 = vpop.f32.mrf.mxu0
        %v5325 = vadd.f32 %v5212, %v5324
        %5326 = vdwg.mxu0
        %5327 = vrot.lane.b32.xlu0 %v4267, 112
        %v5328 = vpop.permute.xlu0 %5327
        %5329 = vrot.lane.b32.xlu0 %v4270, 112
        %v5330 = vpop.permute.xlu0 %5329
        %5331 = vrot.lane.b32.xlu0 %v4273, 112
        %v5332 = vpop.permute.xlu0 %5331
        %5333 = vrot.lane.b32.xlu0 %v4276, 112
        %v5334 = vpop.permute.xlu0 %5333
        %5335 = vrot.lane.b32.xlu0 %v4279, 112
        %v5336 = vpop.permute.xlu0 %5335
        %5337 = vrot.lane.b32.xlu0 %v4282, 112
        %v5338 = vpop.permute.xlu0 %5337
        %5339 = vrot.lane.b32.xlu0 %v4285, 112
        %v5340 = vpop.permute.xlu0 %5339
        %5341 = vrot.lane.b32.xlu0 %v4288, 112
        %v5342 = vpop.permute.xlu0 %5341
        %5343 = vrot.lane.b32.xlu0 %v4291, 112
        %v5344 = vpop.permute.xlu0 %5343
        %5345 = vrot.lane.b32.xlu0 %v4294, 112
        %v5346 = vpop.permute.xlu0 %5345
        %5347 = vrot.lane.b32.xlu0 %v4297, 112
        %v5348 = vpop.permute.xlu0 %5347
        %5349 = vrot.lane.b32.xlu0 %v4300, 112
        %v5350 = vpop.permute.xlu0 %5349
        %5351 = vrot.lane.b32.xlu0 %v4303, 112
        %v5352 = vpop.permute.xlu0 %5351
        %5353 = vrot.lane.b32.xlu0 %v4306, 112
        %v5354 = vpop.permute.xlu0 %5353
        %5355 = vrot.lane.b32.xlu0 %v4309, 112
        %v5356 = vpop.permute.xlu0 %5355
        %5357 = vrot.lane.b32.xlu0 %v4312, 112
        %v5358 = vpop.permute.xlu0 %5357
        %5359 = vrot.lane.b32.xlu0 %v4267, 80
        %v5360 = vpop.permute.xlu0 %5359
        %5361 = vrot.lane.b32.xlu0 %v4270, 80
        %v5362 = vpop.permute.xlu0 %5361
        %5363 = vrot.lane.b32.xlu0 %v4273, 80
        %v5364 = vpop.permute.xlu0 %5363
        %5365 = vrot.lane.b32.xlu0 %v4276, 80
        %v5366 = vpop.permute.xlu0 %5365
        %5367 = vrot.lane.b32.xlu0 %v4279, 80
        %v5368 = vpop.permute.xlu0 %5367
        %5369 = vrot.lane.b32.xlu0 %v4282, 80
        %v5370 = vpop.permute.xlu0 %5369
        %5371 = vrot.lane.b32.xlu0 %v4285, 80
        %v5372 = vpop.permute.xlu0 %5371
        %5373 = vrot.lane.b32.xlu0 %v4288, 80
        %v5374 = vpop.permute.xlu0 %5373
        %5375 = vrot.lane.b32.xlu0 %v4291, 80
        %v5376 = vpop.permute.xlu0 %5375
        %5377 = vrot.lane.b32.xlu0 %v4294, 80
        %v5378 = vpop.permute.xlu0 %5377
        %5379 = vrot.lane.b32.xlu0 %v4297, 80
        %v5380 = vpop.permute.xlu0 %5379
        %5381 = vrot.lane.b32.xlu0 %v4300, 80
        %v5382 = vpop.permute.xlu0 %5381
        %5383 = vrot.lane.b32.xlu0 %v4303, 80
        %v5384 = vpop.permute.xlu0 %5383
        %5385 = vrot.lane.b32.xlu0 %v4306, 80
        %v5386 = vpop.permute.xlu0 %5385
        %5387 = vrot.lane.b32.xlu0 %v4309, 80
        %v5388 = vpop.permute.xlu0 %5387
        %5389 = vrot.lane.b32.xlu0 %v4312, 80
        %v5390 = vpop.permute.xlu0 %5389
        %v5391 = vsel %vm1223, %v5328, 0
        %v5393 = vsel %vm1223, %v5330, 0
        %v5395 = vsel %vm1223, %v5332, 0
        %v5397 = vsel %vm1223, %v5334, 0
        %v5399 = vsel %vm1223, %v5336, 0
        %v5401 = vsel %vm1223, %v5338, 0
        %v5403 = vsel %vm1223, %v5340, 0
        %v5405 = vsel %vm1223, %v5342, 0
        %v5407 = vsel %vm1223, %v5344, 0
        %v5409 = vsel %vm1223, %v5346, 0
        %v5411 = vsel %vm1223, %v5348, 0
        %v5413 = vsel %vm1223, %v5350, 0
        %v5415 = vsel %vm1223, %v5352, 0
        %v5417 = vsel %vm1223, %v5354, 0
        %v5419 = vsel %vm1223, %v5356, 0
        %v5421 = vsel %vm1223, %v5358, 0
        %v5423 = vsel %vm1223, %v5360, 0
        %v5425 = vsel %vm1223, %v5362, 0
        %v5427 = vsel %vm1223, %v5364, 0
        %v5429 = vsel %vm1223, %v5366, 0
        %v5431 = vsel %vm1223, %v5368, 0
        %v5433 = vsel %vm1223, %v5370, 0
        %v5435 = vsel %vm1223, %v5372, 0
        %v5437 = vsel %vm1223, %v5374, 0
        %v5439 = vsel %vm1223, %v5376, 0
        %v5441 = vsel %vm1223, %v5378, 0
        %v5443 = vsel %vm1223, %v5380, 0
        %v5445 = vsel %vm1223, %v5382, 0
        %v5447 = vsel %vm1223, %v5384, 0
        %v5449 = vsel %vm1223, %v5386, 0
        %v5451 = vsel %vm1223, %v5388, 0
        %v5453 = vsel %vm1223, %v5390, 0
        %5455 = vmatpush.xpose.msra.mxu0 %v5453
        %5456 = vmatpush.xpose.msra.mxu0 %v5451
        %5457 = vmatpush.xpose.msra.mxu0 %v5449
        %5458 = vmatpush.xpose.msra.mxu0 %v5447
        %5459 = vmatpush.xpose.msra.mxu0 %v5445
        %5460 = vmatpush.xpose.msra.mxu0 %v5443
        %5461 = vmatpush.xpose.msra.mxu0 %v5441
        %5462 = vmatpush.xpose.msra.mxu0 %v5439
        %5463 = vmatpush.xpose.msra.mxu0 %v5437
        %5464 = vmatpush.xpose.msra.mxu0 %v5435
        %5465 = vmatpush.xpose.msra.mxu0 %v5433
        %5466 = vmatpush.xpose.msra.mxu0 %v5431
        %5467 = vmatpush.xpose.msra.mxu0 %v5429
        %5468 = vmatpush.xpose.msra.mxu0 %v5427
        %5469 = vmatpush.xpose.msra.mxu0 %v5425
        %5470 = vmatpush.xpose.msra.mxu0 %v5423
        %5471 = vmatmul.f32.gmra.mxu0 %v5391
        %v5472 = vpop.f32.mrf.mxu0
        %v5473 = vadd.f32 %v437, %v5472
        %5474 = vmatmul.f32.gmra.mxu0 %v5393
        %v5475 = vpop.f32.mrf.mxu0
        %v5476 = vadd.f32 %v438, %v5475
        %5477 = vmatmul.f32.gmra.mxu0 %v5395
        %v5478 = vpop.f32.mrf.mxu0
        %v5479 = vadd.f32 %v439, %v5478
        %5480 = vmatmul.f32.gmra.mxu0 %v5397
        %v5481 = vpop.f32.mrf.mxu0
        %v5482 = vadd.f32 %v440, %v5481
        %5483 = vmatmul.f32.gmra.mxu0 %v5399
        %v5484 = vpop.f32.mrf.mxu0
        %v5485 = vadd.f32 %v441, %v5484
        %5486 = vmatmul.f32.gmra.mxu0 %v5401
        %v5487 = vpop.f32.mrf.mxu0
        %v5488 = vadd.f32 %v442, %v5487
        %5489 = vmatmul.f32.gmra.mxu0 %v5403
        %v5490 = vpop.f32.mrf.mxu0
        %v5491 = vadd.f32 %v443, %v5490
        %5492 = vmatmul.f32.gmra.mxu0 %v5405
        %v5493 = vpop.f32.mrf.mxu0
        %v5494 = vadd.f32 %v444, %v5493
        %5495 = vmatmul.f32.gmra.mxu0 %v5407
        %v5496 = vpop.f32.mrf.mxu0
        %v5497 = vadd.f32 %v445, %v5496
        %5498 = vmatmul.f32.gmra.mxu0 %v5409
        %v5499 = vpop.f32.mrf.mxu0
        %v5500 = vadd.f32 %v446, %v5499
        %5501 = vmatmul.f32.gmra.mxu0 %v5411
        %v5502 = vpop.f32.mrf.mxu0
        %v5503 = vadd.f32 %v447, %v5502
        %5504 = vmatmul.f32.gmra.mxu0 %v5413
        %v5505 = vpop.f32.mrf.mxu0
        %v5506 = vadd.f32 %v448, %v5505
        %5507 = vmatmul.f32.gmra.mxu0 %v5415
        %v5508 = vpop.f32.mrf.mxu0
        %v5509 = vadd.f32 %v449, %v5508
        %5510 = vmatmul.f32.gmra.mxu0 %v5417
        %v5511 = vpop.f32.mrf.mxu0
        %v5512 = vadd.f32 %v450, %v5511
        %5513 = vmatmul.f32.gmra.mxu0 %v5419
        %v5514 = vpop.f32.mrf.mxu0
        %v5515 = vadd.f32 %v451, %v5514
        %5516 = vmatmul.f32.gmra.mxu0 %v5421
        %v5517 = vpop.f32.mrf.mxu0
        %v5518 = vadd.f32 %v452, %v5517
        %5519 = vdwg.mxu0
        %5520 = vmax.xlane.f32.xlu0 %v5473
        %v5521 = vpop.xlane.xlu0 %5520
        %5522 = vmax.xlane.f32.xlu0 %v5476
        %v5523 = vpop.xlane.xlu0 %5522
        %5524 = vmax.xlane.f32.xlu0 %v5479
        %v5525 = vpop.xlane.xlu0 %5524
        %5526 = vmax.xlane.f32.xlu0 %v5482
        %v5527 = vpop.xlane.xlu0 %5526
        %5528 = vmax.xlane.f32.xlu0 %v5485
        %v5529 = vpop.xlane.xlu0 %5528
        %5530 = vmax.xlane.f32.xlu0 %v5488
        %v5531 = vpop.xlane.xlu0 %5530
        %5532 = vmax.xlane.f32.xlu0 %v5491
        %v5533 = vpop.xlane.xlu0 %5532
        %5534 = vmax.xlane.f32.xlu0 %v5494
        %v5535 = vpop.xlane.xlu0 %5534
        %5536 = vmax.xlane.f32.xlu0 %v5497
        %v5537 = vpop.xlane.xlu0 %5536
        %5538 = vmax.xlane.f32.xlu0 %v5500
        %v5539 = vpop.xlane.xlu0 %5538
        %5540 = vmax.xlane.f32.xlu0 %v5503
        %v5541 = vpop.xlane.xlu0 %5540
        %5542 = vmax.xlane.f32.xlu0 %v5506
        %v5543 = vpop.xlane.xlu0 %5542
        %5544 = vmax.xlane.f32.xlu0 %v5509
        %v5545 = vpop.xlane.xlu0 %5544
        %5546 = vmax.xlane.f32.xlu0 %v5512
        %v5547 = vpop.xlane.xlu0 %5546
        %5548 = vmax.xlane.f32.xlu0 %v5515
        %v5549 = vpop.xlane.xlu0 %5548
        %5550 = vmax.xlane.f32.xlu0 %v5518
        %v5551 = vpop.xlane.xlu0 %5550
        %v5552 = vsub.f32 %v5473, %v5521
        %v5553 = vsub.f32 %v5476, %v5523
        %v5554 = vsub.f32 %v5479, %v5525
        %v5555 = vsub.f32 %v5482, %v5527
        %v5556 = vsub.f32 %v5485, %v5529
        %v5557 = vsub.f32 %v5488, %v5531
        %v5558 = vsub.f32 %v5491, %v5533
        %v5559 = vsub.f32 %v5494, %v5535
        %v5560 = vsub.f32 %v5497, %v5537
        %v5561 = vsub.f32 %v5500, %v5539
        %v5562 = vsub.f32 %v5503, %v5541
        %v5563 = vsub.f32 %v5506, %v5543
        %v5564 = vsub.f32 %v5509, %v5545
        %v5565 = vsub.f32 %v5512, %v5547
        %v5566 = vsub.f32 %v5515, %v5549
        %v5567 = vsub.f32 %v5518, %v5551
        %v5568 = vmul.f32 %v5552, 1.442695
        %v5569 = vpow.pop %v5568
        %v5570 = vmul.f32 %v5553, 1.442695
        %v5571 = vpow.pop %v5570
        %v5572 = vmul.f32 %v5554, 1.442695
        %v5573 = vpow.pop %v5572
        %v5574 = vmul.f32 %v5555, 1.442695
        %v5575 = vpow.pop %v5574
        %v5576 = vmul.f32 %v5556, 1.442695
        %v5577 = vpow.pop %v5576
        %v5578 = vmul.f32 %v5557, 1.442695
        %v5579 = vpow.pop %v5578
        %v5580 = vmul.f32 %v5558, 1.442695
        %v5581 = vpow.pop %v5580
        %v5582 = vmul.f32 %v5559, 1.442695
        %v5583 = vpow.pop %v5582
        %v5584 = vmul.f32 %v5560, 1.442695
        %v5585 = vpow.pop %v5584
        %v5586 = vmul.f32 %v5561, 1.442695
        %v5587 = vpow.pop %v5586
        %v5588 = vmul.f32 %v5562, 1.442695
        %v5589 = vpow.pop %v5588
        %v5590 = vmul.f32 %v5563, 1.442695
        %v5591 = vpow.pop %v5590
        %v5592 = vmul.f32 %v5564, 1.442695
        %v5593 = vpow.pop %v5592
        %v5594 = vmul.f32 %v5565, 1.442695
        %v5595 = vpow.pop %v5594
        %v5596 = vmul.f32 %v5566, 1.442695
        %v5597 = vpow.pop %v5596
        %v5598 = vmul.f32 %v5567, 1.442695
        %v5599 = vpow.pop %v5598
        %5600 = vadd.xlane.f32.xlu0 %v5569
        %v5601 = vpop.xlane.xlu0 %5600
        %5602 = vadd.xlane.f32.xlu0 %v5571
        %v5603 = vpop.xlane.xlu0 %5602
        %5604 = vadd.xlane.f32.xlu0 %v5573
        %v5605 = vpop.xlane.xlu0 %5604
        %5606 = vadd.xlane.f32.xlu0 %v5575
        %v5607 = vpop.xlane.xlu0 %5606
        %5608 = vadd.xlane.f32.xlu0 %v5577
        %v5609 = vpop.xlane.xlu0 %5608
        %5610 = vadd.xlane.f32.xlu0 %v5579
        %v5611 = vpop.xlane.xlu0 %5610
        %5612 = vadd.xlane.f32.xlu0 %v5581
        %v5613 = vpop.xlane.xlu0 %5612
        %5614 = vadd.xlane.f32.xlu0 %v5583
        %v5615 = vpop.xlane.xlu0 %5614
        %5616 = vadd.xlane.f32.xlu0 %v5585
        %v5617 = vpop.xlane.xlu0 %5616
        %5618 = vadd.xlane.f32.xlu0 %v5587
        %v5619 = vpop.xlane.xlu0 %5618
        %5620 = vadd.xlane.f32.xlu0 %v5589
        %v5621 = vpop.xlane.xlu0 %5620
        %5622 = vadd.xlane.f32.xlu0 %v5591
        %v5623 = vpop.xlane.xlu0 %5622
        %5624 = vadd.xlane.f32.xlu0 %v5593
        %v5625 = vpop.xlane.xlu0 %5624
        %5626 = vadd.xlane.f32.xlu0 %v5595
        %v5627 = vpop.xlane.xlu0 %5626
        %5628 = vadd.xlane.f32.xlu0 %v5597
        %v5629 = vpop.xlane.xlu0 %5628
        %5630 = vadd.xlane.f32.xlu0 %v5599
        %v5631 = vpop.xlane.xlu0 %5630
        %v5632 = vrcp.pop %v5601
        %v5633 = vrcp.pop %v5603
        %v5634 = vrcp.pop %v5605
        %v5635 = vrcp.pop %v5607
        %v5636 = vrcp.pop %v5609
        %v5637 = vrcp.pop %v5611
        %v5638 = vrcp.pop %v5613
        %v5639 = vrcp.pop %v5615
        %v5640 = vrcp.pop %v5617
        %v5641 = vrcp.pop %v5619
        %v5642 = vrcp.pop %v5621
        %v5643 = vrcp.pop %v5623
        %v5644 = vrcp.pop %v5625
        %v5645 = vrcp.pop %v5627
        %v5646 = vrcp.pop %v5629
        %v5647 = vrcp.pop %v5631
        %v5648 = vmul.f32 %v5632, 0.5
        %v5649 = vmul.f32 %v5633, 0.5
        %v5650 = vmul.f32 %v5634, 0.5
        %v5651 = vmul.f32 %v5635, 0.5
        %v5652 = vmul.f32 %v5636, 0.5
        %v5653 = vmul.f32 %v5637, 0.5
        %v5654 = vmul.f32 %v5638, 0.5
        %v5655 = vmul.f32 %v5639, 0.5
        %v5656 = vmul.f32 %v5640, 0.5
        %v5657 = vmul.f32 %v5641, 0.5
        %v5658 = vmul.f32 %v5642, 0.5
        %v5659 = vmul.f32 %v5643, 0.5
        %v5660 = vmul.f32 %v5644, 0.5
        %v5661 = vmul.f32 %v5645, 0.5
        %v5662 = vmul.f32 %v5646, 0.5
        %v5663 = vmul.f32 %v5647, 0.5
        %v5664 = vmul.f32 %v5569, %v5648
        %v5665 = vmul.f32 %v5571, %v5649
        %v5666 = vmul.f32 %v5573, %v5650
        %v5667 = vmul.f32 %v5575, %v5651
        %v5668 = vmul.f32 %v5577, %v5652
        %v5669 = vmul.f32 %v5579, %v5653
        %v5670 = vmul.f32 %v5581, %v5654
        %v5671 = vmul.f32 %v5583, %v5655
        %v5672 = vmul.f32 %v5585, %v5656
        %v5673 = vmul.f32 %v5587, %v5657
        %v5674 = vmul.f32 %v5589, %v5658
        %v5675 = vmul.f32 %v5591, %v5659
        %v5676 = vmul.f32 %v5593, %v5660
        %v5677 = vmul.f32 %v5595, %v5661
        %v5678 = vmul.f32 %v5597, %v5662
        %v5679 = vmul.f32 %v5599, %v5663
        %v5680 = vadd.f32 %v5664, %v453
        %v5681 = vadd.f32 %v5665, %v454
        %v5682 = vadd.f32 %v5666, %v455
        %v5683 = vadd.f32 %v5667, %v456
        %v5684 = vadd.f32 %v5668, %v457
        %v5685 = vadd.f32 %v5669, %v458
        %v5686 = vadd.f32 %v5670, %v459
        %v5687 = vadd.f32 %v5671, %v460
        %v5688 = vadd.f32 %v5672, %v461
        %v5689 = vadd.f32 %v5673, %v462
        %v5690 = vadd.f32 %v5674, %v463
        %v5691 = vadd.f32 %v5675, %v464
        %v5692 = vadd.f32 %v5676, %v465
        %v5693 = vadd.f32 %v5677, %v466
        %v5694 = vadd.f32 %v5678, %v467
        %v5695 = vadd.f32 %v5679, %v468
        %5696 = vmatpush.msra.mxu0 %v4377
        %5697 = vmatpush.msra.mxu0 %v4374
        %5698 = vmatpush.msra.mxu0 %v4371
        %5699 = vmatpush.msra.mxu0 %v4368
        %5700 = vmatpush.msra.mxu0 %v4365
        %5701 = vmatpush.msra.mxu0 %v4362
        %5702 = vmatpush.msra.mxu0 %v4359
        %5703 = vmatpush.msra.mxu0 %v4356
        %5704 = vmatpush.msra.mxu0 %v4353
        %5705 = vmatpush.msra.mxu0 %v4350
        %5706 = vmatpush.msra.mxu0 %v4347
        %5707 = vmatpush.msra.mxu0 %v4344
        %5708 = vmatpush.msra.mxu0 %v4341
        %5709 = vmatpush.msra.mxu0 %v4338
        %5710 = vmatpush.msra.mxu0 %v4335
        %5711 = vmatpush.msra.mxu0 %v4332
        %5712 = vmatmul.f32.gmra.mxu0 %v5680
        %v5713 = vpop.f32.mrf.mxu0
        %v5714 = vadd.f32 0.0, %v5713
        %5715 = vmatmul.f32.gmra.mxu0 %v5681
        %v5716 = vpop.f32.mrf.mxu0
        %v5717 = vadd.f32 0.0, %v5716
        %5718 = vmatmul.f32.gmra.mxu0 %v5682
        %v5719 = vpop.f32.mrf.mxu0
        %v5720 = vadd.f32 0.0, %v5719
        %5721 = vmatmul.f32.gmra.mxu0 %v5683
        %v5722 = vpop.f32.mrf.mxu0
        %v5723 = vadd.f32 0.0, %v5722
        %5724 = vmatmul.f32.gmra.mxu0 %v5684
        %v5725 = vpop.f32.mrf.mxu0
        %v5726 = vadd.f32 0.0, %v5725
        %5727 = vmatmul.f32.gmra.mxu0 %v5685
        %v5728 = vpop.f32.mrf.mxu0
        %v5729 = vadd.f32 0.0, %v5728
        %5730 = vmatmul.f32.gmra.mxu0 %v5686
        %v5731 = vpop.f32.mrf.mxu0
        %v5732 = vadd.f32 0.0, %v5731
        %5733 = vmatmul.f32.gmra.mxu0 %v5687
        %v5734 = vpop.f32.mrf.mxu0
        %v5735 = vadd.f32 0.0, %v5734
        %5736 = vmatmul.f32.gmra.mxu0 %v5688
        %v5737 = vpop.f32.mrf.mxu0
        %v5738 = vadd.f32 0.0, %v5737
        %5739 = vmatmul.f32.gmra.mxu0 %v5689
        %v5740 = vpop.f32.mrf.mxu0
        %v5741 = vadd.f32 0.0, %v5740
        %5742 = vmatmul.f32.gmra.mxu0 %v5690
        %v5743 = vpop.f32.mrf.mxu0
        %v5744 = vadd.f32 0.0, %v5743
        %5745 = vmatmul.f32.gmra.mxu0 %v5691
        %v5746 = vpop.f32.mrf.mxu0
        %v5747 = vadd.f32 0.0, %v5746
        %5748 = vmatmul.f32.gmra.mxu0 %v5692
        %v5749 = vpop.f32.mrf.mxu0
        %v5750 = vadd.f32 0.0, %v5749
        %5751 = vmatmul.f32.gmra.mxu0 %v5693
        %v5752 = vpop.f32.mrf.mxu0
        %v5753 = vadd.f32 0.0, %v5752
        %5754 = vmatmul.f32.gmra.mxu0 %v5694
        %v5755 = vpop.f32.mrf.mxu0
        %v5756 = vadd.f32 0.0, %v5755
        %5757 = vmatmul.f32.gmra.mxu0 %v5695
        %v5758 = vpop.f32.mrf.mxu0
        %v5759 = vadd.f32 0.0, %v5758
        %5760 = vdwg.mxu0
        %v5761 = vadd.f32 %v5280, %v5714
        %v5762 = vadd.f32 %v5283, %v5717
        %v5763 = vadd.f32 %v5286, %v5720
        %v5764 = vadd.f32 %v5289, %v5723
        %v5765 = vadd.f32 %v5292, %v5726
        %v5766 = vadd.f32 %v5295, %v5729
        %v5767 = vadd.f32 %v5298, %v5732
        %v5768 = vadd.f32 %v5301, %v5735
        %v5769 = vadd.f32 %v5304, %v5738
        %v5770 = vadd.f32 %v5307, %v5741
        %v5771 = vadd.f32 %v5310, %v5744
        %v5772 = vadd.f32 %v5313, %v5747
        %v5773 = vadd.f32 %v5316, %v5750
        %v5774 = vadd.f32 %v5319, %v5753
        %v5775 = vadd.f32 %v5322, %v5756
        %v5776 = vadd.f32 %v5325, %v5759
        %5777 = vrot.lane.b32.xlu0 %v4267, 104
        %v5778 = vpop.permute.xlu0 %5777
        %5779 = vrot.lane.b32.xlu0 %v4270, 104
        %v5780 = vpop.permute.xlu0 %5779
        %5781 = vrot.lane.b32.xlu0 %v4273, 104
        %v5782 = vpop.permute.xlu0 %5781
        %5783 = vrot.lane.b32.xlu0 %v4276, 104
        %v5784 = vpop.permute.xlu0 %5783
        %5785 = vrot.lane.b32.xlu0 %v4279, 104
        %v5786 = vpop.permute.xlu0 %5785
        %5787 = vrot.lane.b32.xlu0 %v4282, 104
        %v5788 = vpop.permute.xlu0 %5787
        %5789 = vrot.lane.b32.xlu0 %v4285, 104
        %v5790 = vpop.permute.xlu0 %5789
        %5791 = vrot.lane.b32.xlu0 %v4288, 104
        %v5792 = vpop.permute.xlu0 %5791
        %5793 = vrot.lane.b32.xlu0 %v4291, 104
        %v5794 = vpop.permute.xlu0 %5793
        %5795 = vrot.lane.b32.xlu0 %v4294, 104
        %v5796 = vpop.permute.xlu0 %5795
        %5797 = vrot.lane.b32.xlu0 %v4297, 104
        %v5798 = vpop.permute.xlu0 %5797
        %5799 = vrot.lane.b32.xlu0 %v4300, 104
        %v5800 = vpop.permute.xlu0 %5799
        %5801 = vrot.lane.b32.xlu0 %v4303, 104
        %v5802 = vpop.permute.xlu0 %5801
        %5803 = vrot.lane.b32.xlu0 %v4306, 104
        %v5804 = vpop.permute.xlu0 %5803
        %5805 = vrot.lane.b32.xlu0 %v4309, 104
        %v5806 = vpop.permute.xlu0 %5805
        %5807 = vrot.lane.b32.xlu0 %v4312, 104
        %v5808 = vpop.permute.xlu0 %5807
        %5809 = vrot.lane.b32.xlu0 %v4267, 72
        %v5810 = vpop.permute.xlu0 %5809
        %5811 = vrot.lane.b32.xlu0 %v4270, 72
        %v5812 = vpop.permute.xlu0 %5811
        %5813 = vrot.lane.b32.xlu0 %v4273, 72
        %v5814 = vpop.permute.xlu0 %5813
        %5815 = vrot.lane.b32.xlu0 %v4276, 72
        %v5816 = vpop.permute.xlu0 %5815
        %5817 = vrot.lane.b32.xlu0 %v4279, 72
        %v5818 = vpop.permute.xlu0 %5817
        %5819 = vrot.lane.b32.xlu0 %v4282, 72
        %v5820 = vpop.permute.xlu0 %5819
        %5821 = vrot.lane.b32.xlu0 %v4285, 72
        %v5822 = vpop.permute.xlu0 %5821
        %5823 = vrot.lane.b32.xlu0 %v4288, 72
        %v5824 = vpop.permute.xlu0 %5823
        %5825 = vrot.lane.b32.xlu0 %v4291, 72
        %v5826 = vpop.permute.xlu0 %5825
        %5827 = vrot.lane.b32.xlu0 %v4294, 72
        %v5828 = vpop.permute.xlu0 %5827
        %5829 = vrot.lane.b32.xlu0 %v4297, 72
        %v5830 = vpop.permute.xlu0 %5829
        %5831 = vrot.lane.b32.xlu0 %v4300, 72
        %v5832 = vpop.permute.xlu0 %5831
        %5833 = vrot.lane.b32.xlu0 %v4303, 72
        %v5834 = vpop.permute.xlu0 %5833
        %5835 = vrot.lane.b32.xlu0 %v4306, 72
        %v5836 = vpop.permute.xlu0 %5835
        %5837 = vrot.lane.b32.xlu0 %v4309, 72
        %v5838 = vpop.permute.xlu0 %5837
        %5839 = vrot.lane.b32.xlu0 %v4312, 72
        %v5840 = vpop.permute.xlu0 %5839
        %v5841 = vsel %vm1223, %v5778, 0
        %v5843 = vsel %vm1223, %v5780, 0
        %v5845 = vsel %vm1223, %v5782, 0
        %v5847 = vsel %vm1223, %v5784, 0
        %v5849 = vsel %vm1223, %v5786, 0
        %v5851 = vsel %vm1223, %v5788, 0
        %v5853 = vsel %vm1223, %v5790, 0
        %v5855 = vsel %vm1223, %v5792, 0
        %v5857 = vsel %vm1223, %v5794, 0
        %v5859 = vsel %vm1223, %v5796, 0
        %v5861 = vsel %vm1223, %v5798, 0
        %v5863 = vsel %vm1223, %v5800, 0
        %v5865 = vsel %vm1223, %v5802, 0
        %v5867 = vsel %vm1223, %v5804, 0
        %v5869 = vsel %vm1223, %v5806, 0
        %v5871 = vsel %vm1223, %v5808, 0
        %v5873 = vsel %vm1223, %v5810, 0
        %v5875 = vsel %vm1223, %v5812, 0
        %v5877 = vsel %vm1223, %v5814, 0
        %v5879 = vsel %vm1223, %v5816, 0
        %v5881 = vsel %vm1223, %v5818, 0
        %v5883 = vsel %vm1223, %v5820, 0
        %v5885 = vsel %vm1223, %v5822, 0
        %v5887 = vsel %vm1223, %v5824, 0
        %v5889 = vsel %vm1223, %v5826, 0
        %v5891 = vsel %vm1223, %v5828, 0
        %v5893 = vsel %vm1223, %v5830, 0
        %v5895 = vsel %vm1223, %v5832, 0
        %v5897 = vsel %vm1223, %v5834, 0
        %v5899 = vsel %vm1223, %v5836, 0
        %v5901 = vsel %vm1223, %v5838, 0
        %v5903 = vsel %vm1223, %v5840, 0
        %5905 = vmatpush.xpose.msra.mxu0 %v5903
        %5906 = vmatpush.xpose.msra.mxu0 %v5901
        %5907 = vmatpush.xpose.msra.mxu0 %v5899
        %5908 = vmatpush.xpose.msra.mxu0 %v5897
        %5909 = vmatpush.xpose.msra.mxu0 %v5895
        %5910 = vmatpush.xpose.msra.mxu0 %v5893
        %5911 = vmatpush.xpose.msra.mxu0 %v5891
        %5912 = vmatpush.xpose.msra.mxu0 %v5889
        %5913 = vmatpush.xpose.msra.mxu0 %v5887
        %5914 = vmatpush.xpose.msra.mxu0 %v5885
        %5915 = vmatpush.xpose.msra.mxu0 %v5883
        %5916 = vmatpush.xpose.msra.mxu0 %v5881
        %5917 = vmatpush.xpose.msra.mxu0 %v5879
        %5918 = vmatpush.xpose.msra.mxu0 %v5877
        %5919 = vmatpush.xpose.msra.mxu0 %v5875
        %5920 = vmatpush.xpose.msra.mxu0 %v5873
        %5921 = vmatmul.f32.gmra.mxu0 %v5841
        %v5922 = vpop.f32.mrf.mxu0
        %v5923 = vadd.f32 %v437, %v5922
        %5924 = vmatmul.f32.gmra.mxu0 %v5843
        %v5925 = vpop.f32.mrf.mxu0
        %v5926 = vadd.f32 %v438, %v5925
        %5927 = vmatmul.f32.gmra.mxu0 %v5845
        %v5928 = vpop.f32.mrf.mxu0
        %v5929 = vadd.f32 %v439, %v5928
        %5930 = vmatmul.f32.gmra.mxu0 %v5847
        %v5931 = vpop.f32.mrf.mxu0
        %v5932 = vadd.f32 %v440, %v5931
        %5933 = vmatmul.f32.gmra.mxu0 %v5849
        %v5934 = vpop.f32.mrf.mxu0
        %v5935 = vadd.f32 %v441, %v5934
        %5936 = vmatmul.f32.gmra.mxu0 %v5851
        %v5937 = vpop.f32.mrf.mxu0
        %v5938 = vadd.f32 %v442, %v5937
        %5939 = vmatmul.f32.gmra.mxu0 %v5853
        %v5940 = vpop.f32.mrf.mxu0
        %v5941 = vadd.f32 %v443, %v5940
        %5942 = vmatmul.f32.gmra.mxu0 %v5855
        %v5943 = vpop.f32.mrf.mxu0
        %v5944 = vadd.f32 %v444, %v5943
        %5945 = vmatmul.f32.gmra.mxu0 %v5857
        %v5946 = vpop.f32.mrf.mxu0
        %v5947 = vadd.f32 %v445, %v5946
        %5948 = vmatmul.f32.gmra.mxu0 %v5859
        %v5949 = vpop.f32.mrf.mxu0
        %v5950 = vadd.f32 %v446, %v5949
        %5951 = vmatmul.f32.gmra.mxu0 %v5861
        %v5952 = vpop.f32.mrf.mxu0
        %v5953 = vadd.f32 %v447, %v5952
        %5954 = vmatmul.f32.gmra.mxu0 %v5863
        %v5955 = vpop.f32.mrf.mxu0
        %v5956 = vadd.f32 %v448, %v5955
        %5957 = vmatmul.f32.gmra.mxu0 %v5865
        %v5958 = vpop.f32.mrf.mxu0
        %v5959 = vadd.f32 %v449, %v5958
        %5960 = vmatmul.f32.gmra.mxu0 %v5867
        %v5961 = vpop.f32.mrf.mxu0
        %v5962 = vadd.f32 %v450, %v5961
        %5963 = vmatmul.f32.gmra.mxu0 %v5869
        %v5964 = vpop.f32.mrf.mxu0
        %v5965 = vadd.f32 %v451, %v5964
        %5966 = vmatmul.f32.gmra.mxu0 %v5871
        %v5967 = vpop.f32.mrf.mxu0
        %v5968 = vadd.f32 %v452, %v5967
        %5969 = vdwg.mxu0
        %5970 = vmax.xlane.f32.xlu0 %v5923
        %v5971 = vpop.xlane.xlu0 %5970
        %5972 = vmax.xlane.f32.xlu0 %v5926
        %v5973 = vpop.xlane.xlu0 %5972
        %5974 = vmax.xlane.f32.xlu0 %v5929
        %v5975 = vpop.xlane.xlu0 %5974
        %5976 = vmax.xlane.f32.xlu0 %v5932
        %v5977 = vpop.xlane.xlu0 %5976
        %5978 = vmax.xlane.f32.xlu0 %v5935
        %v5979 = vpop.xlane.xlu0 %5978
        %5980 = vmax.xlane.f32.xlu0 %v5938
        %v5981 = vpop.xlane.xlu0 %5980
        %5982 = vmax.xlane.f32.xlu0 %v5941
        %v5983 = vpop.xlane.xlu0 %5982
        %5984 = vmax.xlane.f32.xlu0 %v5944
        %v5985 = vpop.xlane.xlu0 %5984
        %5986 = vmax.xlane.f32.xlu0 %v5947
        %v5987 = vpop.xlane.xlu0 %5986
        %5988 = vmax.xlane.f32.xlu0 %v5950
        %v5989 = vpop.xlane.xlu0 %5988
        %5990 = vmax.xlane.f32.xlu0 %v5953
        %v5991 = vpop.xlane.xlu0 %5990
        %5992 = vmax.xlane.f32.xlu0 %v5956
        %v5993 = vpop.xlane.xlu0 %5992
        %5994 = vmax.xlane.f32.xlu0 %v5959
        %v5995 = vpop.xlane.xlu0 %5994
        %5996 = vmax.xlane.f32.xlu0 %v5962
        %v5997 = vpop.xlane.xlu0 %5996
        %5998 = vmax.xlane.f32.xlu0 %v5965
        %v5999 = vpop.xlane.xlu0 %5998
        %6000 = vmax.xlane.f32.xlu0 %v5968
        %v6001 = vpop.xlane.xlu0 %6000
        %v6002 = vsub.f32 %v5923, %v5971
        %v6003 = vsub.f32 %v5926, %v5973
        %v6004 = vsub.f32 %v5929, %v5975
        %v6005 = vsub.f32 %v5932, %v5977
        %v6006 = vsub.f32 %v5935, %v5979
        %v6007 = vsub.f32 %v5938, %v5981
        %v6008 = vsub.f32 %v5941, %v5983
        %v6009 = vsub.f32 %v5944, %v5985
        %v6010 = vsub.f32 %v5947, %v5987
        %v6011 = vsub.f32 %v5950, %v5989
        %v6012 = vsub.f32 %v5953, %v5991
        %v6013 = vsub.f32 %v5956, %v5993
        %v6014 = vsub.f32 %v5959, %v5995
        %v6015 = vsub.f32 %v5962, %v5997
        %v6016 = vsub.f32 %v5965, %v5999
        %v6017 = vsub.f32 %v5968, %v6001
        %v6018 = vmul.f32 %v6002, 1.442695
        %v6019 = vpow.pop %v6018
        %v6020 = vmul.f32 %v6003, 1.442695
        %v6021 = vpow.pop %v6020
        %v6022 = vmul.f32 %v6004, 1.442695
        %v6023 = vpow.pop %v6022
        %v6024 = vmul.f32 %v6005, 1.442695
        %v6025 = vpow.pop %v6024
        %v6026 = vmul.f32 %v6006, 1.442695
        %v6027 = vpow.pop %v6026
        %v6028 = vmul.f32 %v6007, 1.442695
        %v6029 = vpow.pop %v6028
        %v6030 = vmul.f32 %v6008, 1.442695
        %v6031 = vpow.pop %v6030
        %v6032 = vmul.f32 %v6009, 1.442695
        %v6033 = vpow.pop %v6032
        %v6034 = vmul.f32 %v6010, 1.442695
        %v6035 = vpow.pop %v6034
        %v6036 = vmul.f32 %v6011, 1.442695
        %v6037 = vpow.pop %v6036
        %v6038 = vmul.f32 %v6012, 1.442695
        %v6039 = vpow.pop %v6038
        %v6040 = vmul.f32 %v6013, 1.442695
        %v6041 = vpow.pop %v6040
        %v6042 = vmul.f32 %v6014, 1.442695
        %v6043 = vpow.pop %v6042
        %v6044 = vmul.f32 %v6015, 1.442695
        %v6045 = vpow.pop %v6044
        %v6046 = vmul.f32 %v6016, 1.442695
        %v6047 = vpow.pop %v6046
        %v6048 = vmul.f32 %v6017, 1.442695
        %v6049 = vpow.pop %v6048
        %6050 = vadd.xlane.f32.xlu0 %v6019
        %v6051 = vpop.xlane.xlu0 %6050
        %6052 = vadd.xlane.f32.xlu0 %v6021
        %v6053 = vpop.xlane.xlu0 %6052
        %6054 = vadd.xlane.f32.xlu0 %v6023
        %v6055 = vpop.xlane.xlu0 %6054
        %6056 = vadd.xlane.f32.xlu0 %v6025
        %v6057 = vpop.xlane.xlu0 %6056
        %6058 = vadd.xlane.f32.xlu0 %v6027
        %v6059 = vpop.xlane.xlu0 %6058
        %6060 = vadd.xlane.f32.xlu0 %v6029
        %v6061 = vpop.xlane.xlu0 %6060
        %6062 = vadd.xlane.f32.xlu0 %v6031
        %v6063 = vpop.xlane.xlu0 %6062
        %6064 = vadd.xlane.f32.xlu0 %v6033
        %v6065 = vpop.xlane.xlu0 %6064
        %6066 = vadd.xlane.f32.xlu0 %v6035
        %v6067 = vpop.xlane.xlu0 %6066
        %6068 = vadd.xlane.f32.xlu0 %v6037
        %v6069 = vpop.xlane.xlu0 %6068
        %6070 = vadd.xlane.f32.xlu0 %v6039
        %v6071 = vpop.xlane.xlu0 %6070
        %6072 = vadd.xlane.f32.xlu0 %v6041
        %v6073 = vpop.xlane.xlu0 %6072
        %6074 = vadd.xlane.f32.xlu0 %v6043
        %v6075 = vpop.xlane.xlu0 %6074
        %6076 = vadd.xlane.f32.xlu0 %v6045
        %v6077 = vpop.xlane.xlu0 %6076
        %6078 = vadd.xlane.f32.xlu0 %v6047
        %v6079 = vpop.xlane.xlu0 %6078
        %6080 = vadd.xlane.f32.xlu0 %v6049
        %v6081 = vpop.xlane.xlu0 %6080
        %v6082 = vrcp.pop %v6051
        %v6083 = vrcp.pop %v6053
        %v6084 = vrcp.pop %v6055
        %v6085 = vrcp.pop %v6057
        %v6086 = vrcp.pop %v6059
        %v6087 = vrcp.pop %v6061
        %v6088 = vrcp.pop %v6063
        %v6089 = vrcp.pop %v6065
        %v6090 = vrcp.pop %v6067
        %v6091 = vrcp.pop %v6069
        %v6092 = vrcp.pop %v6071
        %v6093 = vrcp.pop %v6073
        %v6094 = vrcp.pop %v6075
        %v6095 = vrcp.pop %v6077
        %v6096 = vrcp.pop %v6079
        %v6097 = vrcp.pop %v6081
        %v6098 = vmul.f32 %v6082, 0.5
        %v6099 = vmul.f32 %v6083, 0.5
        %v6100 = vmul.f32 %v6084, 0.5
        %v6101 = vmul.f32 %v6085, 0.5
        %v6102 = vmul.f32 %v6086, 0.5
        %v6103 = vmul.f32 %v6087, 0.5
        %v6104 = vmul.f32 %v6088, 0.5
        %v6105 = vmul.f32 %v6089, 0.5
        %v6106 = vmul.f32 %v6090, 0.5
        %v6107 = vmul.f32 %v6091, 0.5
        %v6108 = vmul.f32 %v6092, 0.5
        %v6109 = vmul.f32 %v6093, 0.5
        %v6110 = vmul.f32 %v6094, 0.5
        %v6111 = vmul.f32 %v6095, 0.5
        %v6112 = vmul.f32 %v6096, 0.5
        %v6113 = vmul.f32 %v6097, 0.5
        %v6114 = vmul.f32 %v6019, %v6098
        %v6115 = vmul.f32 %v6021, %v6099
        %v6116 = vmul.f32 %v6023, %v6100
        %v6117 = vmul.f32 %v6025, %v6101
        %v6118 = vmul.f32 %v6027, %v6102
        %v6119 = vmul.f32 %v6029, %v6103
        %v6120 = vmul.f32 %v6031, %v6104
        %v6121 = vmul.f32 %v6033, %v6105
        %v6122 = vmul.f32 %v6035, %v6106
        %v6123 = vmul.f32 %v6037, %v6107
        %v6124 = vmul.f32 %v6039, %v6108
        %v6125 = vmul.f32 %v6041, %v6109
        %v6126 = vmul.f32 %v6043, %v6110
        %v6127 = vmul.f32 %v6045, %v6111
        %v6128 = vmul.f32 %v6047, %v6112
        %v6129 = vmul.f32 %v6049, %v6113
        %v6130 = vadd.f32 %v6114, %v453
        %v6131 = vadd.f32 %v6115, %v454
        %v6132 = vadd.f32 %v6116, %v455
        %v6133 = vadd.f32 %v6117, %v456
        %v6134 = vadd.f32 %v6118, %v457
        %v6135 = vadd.f32 %v6119, %v458
        %v6136 = vadd.f32 %v6120, %v459
        %v6137 = vadd.f32 %v6121, %v460
        %v6138 = vadd.f32 %v6122, %v461
        %v6139 = vadd.f32 %v6123, %v462
        %v6140 = vadd.f32 %v6124, %v463
        %v6141 = vadd.f32 %v6125, %v464
        %v6142 = vadd.f32 %v6126, %v465
        %v6143 = vadd.f32 %v6127, %v466
        %v6144 = vadd.f32 %v6128, %v467
        %v6145 = vadd.f32 %v6129, %v468
        %6162 = vrot.lane.b32.xlu0 %v4332, 96
        %v6163 = vpop.permute.xlu0 %6162
        %6164 = vrot.lane.b32.xlu0 %v4335, 96
        %v6165 = vpop.permute.xlu0 %6164
        %6166 = vrot.lane.b32.xlu0 %v4338, 96
        %v6167 = vpop.permute.xlu0 %6166
        %6168 = vrot.lane.b32.xlu0 %v4341, 96
        %v6169 = vpop.permute.xlu0 %6168
        %6170 = vrot.lane.b32.xlu0 %v4344, 96
        %v6171 = vpop.permute.xlu0 %6170
        %6172 = vrot.lane.b32.xlu0 %v4347, 96
        %v6173 = vpop.permute.xlu0 %6172
        %6174 = vrot.lane.b32.xlu0 %v4350, 96
        %v6175 = vpop.permute.xlu0 %6174
        %6176 = vrot.lane.b32.xlu0 %v4353, 96
        %v6177 = vpop.permute.xlu0 %6176
        %6178 = vrot.lane.b32.xlu0 %v4356, 96
        %v6179 = vpop.permute.xlu0 %6178
        %6180 = vrot.lane.b32.xlu0 %v4359, 96
        %v6181 = vpop.permute.xlu0 %6180
        %6182 = vrot.lane.b32.xlu0 %v4362, 96
        %v6183 = vpop.permute.xlu0 %6182
        %6184 = vrot.lane.b32.xlu0 %v4365, 96
        %v6185 = vpop.permute.xlu0 %6184
        %6186 = vrot.lane.b32.xlu0 %v4368, 96
        %v6187 = vpop.permute.xlu0 %6186
        %6188 = vrot.lane.b32.xlu0 %v4371, 96
        %v6189 = vpop.permute.xlu0 %6188
        %6190 = vrot.lane.b32.xlu0 %v4374, 96
        %v6191 = vpop.permute.xlu0 %6190
        %6192 = vrot.lane.b32.xlu0 %v4377, 96
        %v6193 = vpop.permute.xlu0 %6192
        %6210 = vmatpush.msra.mxu0 %v6193
        %6211 = vmatpush.msra.mxu0 %v6191
        %6212 = vmatpush.msra.mxu0 %v6189
        %6213 = vmatpush.msra.mxu0 %v6187
        %6214 = vmatpush.msra.mxu0 %v6185
        %6215 = vmatpush.msra.mxu0 %v6183
        %6216 = vmatpush.msra.mxu0 %v6181
        %6217 = vmatpush.msra.mxu0 %v6179
        %6218 = vmatpush.msra.mxu0 %v6177
        %6219 = vmatpush.msra.mxu0 %v6175
        %6220 = vmatpush.msra.mxu0 %v6173
        %6221 = vmatpush.msra.mxu0 %v6171
        %6222 = vmatpush.msra.mxu0 %v6169
        %6223 = vmatpush.msra.mxu0 %v6167
        %6224 = vmatpush.msra.mxu0 %v6165
        %6225 = vmatpush.msra.mxu0 %v6163
        %6226 = vmatmul.f32.gmra.mxu0 %v6130
        %v6227 = vpop.f32.mrf.mxu0
        %v6228 = vadd.f32 0.0, %v6227
        %6229 = vmatmul.f32.gmra.mxu0 %v6131
        %v6230 = vpop.f32.mrf.mxu0
        %v6231 = vadd.f32 0.0, %v6230
        %6232 = vmatmul.f32.gmra.mxu0 %v6132
        %v6233 = vpop.f32.mrf.mxu0
        %v6234 = vadd.f32 0.0, %v6233
        %6235 = vmatmul.f32.gmra.mxu0 %v6133
        %v6236 = vpop.f32.mrf.mxu0
        %v6237 = vadd.f32 0.0, %v6236
        %6238 = vmatmul.f32.gmra.mxu0 %v6134
        %v6239 = vpop.f32.mrf.mxu0
        %v6240 = vadd.f32 0.0, %v6239
        %6241 = vmatmul.f32.gmra.mxu0 %v6135
        %v6242 = vpop.f32.mrf.mxu0
        %v6243 = vadd.f32 0.0, %v6242
        %6244 = vmatmul.f32.gmra.mxu0 %v6136
        %v6245 = vpop.f32.mrf.mxu0
        %v6246 = vadd.f32 0.0, %v6245
        %6247 = vmatmul.f32.gmra.mxu0 %v6137
        %v6248 = vpop.f32.mrf.mxu0
        %v6249 = vadd.f32 0.0, %v6248
        %6250 = vmatmul.f32.gmra.mxu0 %v6138
        %v6251 = vpop.f32.mrf.mxu0
        %v6252 = vadd.f32 0.0, %v6251
        %6253 = vmatmul.f32.gmra.mxu0 %v6139
        %v6254 = vpop.f32.mrf.mxu0
        %v6255 = vadd.f32 0.0, %v6254
        %6256 = vmatmul.f32.gmra.mxu0 %v6140
        %v6257 = vpop.f32.mrf.mxu0
        %v6258 = vadd.f32 0.0, %v6257
        %6259 = vmatmul.f32.gmra.mxu0 %v6141
        %v6260 = vpop.f32.mrf.mxu0
        %v6261 = vadd.f32 0.0, %v6260
        %6262 = vmatmul.f32.gmra.mxu0 %v6142
        %v6263 = vpop.f32.mrf.mxu0
        %v6264 = vadd.f32 0.0, %v6263
        %6265 = vmatmul.f32.gmra.mxu0 %v6143
        %v6266 = vpop.f32.mrf.mxu0
        %v6267 = vadd.f32 0.0, %v6266
        %6268 = vmatmul.f32.gmra.mxu0 %v6144
        %v6269 = vpop.f32.mrf.mxu0
        %v6270 = vadd.f32 0.0, %v6269
        %6271 = vmatmul.f32.gmra.mxu0 %v6145
        %v6272 = vpop.f32.mrf.mxu0
        %v6273 = vadd.f32 0.0, %v6272
        %6274 = vdwg.mxu0
        %v6275 = vadd.f32 %v5761, %v6228
        %v6276 = vadd.f32 %v5762, %v6231
        %v6277 = vadd.f32 %v5763, %v6234
        %v6278 = vadd.f32 %v5764, %v6237
        %v6279 = vadd.f32 %v5765, %v6240
        %v6280 = vadd.f32 %v5766, %v6243
        %v6281 = vadd.f32 %v5767, %v6246
        %v6282 = vadd.f32 %v5768, %v6249
        %v6283 = vadd.f32 %v5769, %v6252
        %v6284 = vadd.f32 %v5770, %v6255
        %v6285 = vadd.f32 %v5771, %v6258
        %v6286 = vadd.f32 %v5772, %v6261
        %v6287 = vadd.f32 %v5773, %v6264
        %v6288 = vadd.f32 %v5774, %v6267
        %v6289 = vadd.f32 %v5775, %v6270
        %v6290 = vadd.f32 %v5776, %v6273
        %v6291 = vadd.f32 %v3781, %v6275
        %v6292 = vadd.f32 %v3782, %v6276
        %v6293 = vadd.f32 %v3783, %v6277
        %v6294 = vadd.f32 %v3784, %v6278
        %v6295 = vadd.f32 %v3785, %v6279
        %v6296 = vadd.f32 %v3786, %v6280
        %v6297 = vadd.f32 %v3787, %v6281
        %v6298 = vadd.f32 %v3788, %v6282
        %v6299 = vadd.f32 %v3789, %v6283
        %v6300 = vadd.f32 %v3790, %v6284
        %v6301 = vadd.f32 %v3791, %v6285
        %v6302 = vadd.f32 %v3792, %v6286
        %v6303 = vadd.f32 %v3793, %v6287
        %v6304 = vadd.f32 %v3794, %v6288
        %v6305 = vadd.f32 %v3795, %v6289
        %v6306 = vadd.f32 %v3796, %v6290
        %v6307 = vld [vmem:[%s7 + $0xa] sm:$0x1]
        %v6308 = vperm.slane %v6307, 0
        %v6309 = vadd.f32 %v6291, %v6308
        %v6310 = vadd.f32 %v6292, %v6308
        %v6311 = vadd.f32 %v6293, %v6308
        %v6312 = vadd.f32 %v6294, %v6308
        %v6313 = vadd.f32 %v6295, %v6308
        %v6314 = vadd.f32 %v6296, %v6308
        %v6315 = vadd.f32 %v6297, %v6308
        %v6316 = vadd.f32 %v6298, %v6308
        %v6317 = vadd.f32 %v6299, %v6308
        %v6318 = vadd.f32 %v6300, %v6308
        %v6319 = vadd.f32 %v6301, %v6308
        %v6320 = vadd.f32 %v6302, %v6308
        %v6321 = vadd.f32 %v6303, %v6308
        %v6322 = vadd.f32 %v6304, %v6308
        %v6323 = vadd.f32 %v6305, %v6308
        %v6324 = vadd.f32 %v6306, %v6308
        %v6325 = vld [vmem:[%s7 + $0xb] sm:$0x1]
        %v6326 = vld [vmem:[%s7 + $0xc] sm:$0x1]
        %v6327 = vsel %vm589, %v6309, 0.0
        %6328 = vadd.xlane.f32.xlu0 %v6327
        %v6329 = vpop.xlane.xlu0 %6328
        %v6330 = vsel %vm589, %v6310, 0.0
        %6331 = vadd.xlane.f32.xlu0 %v6330
        %v6332 = vpop.xlane.xlu0 %6331
        %v6333 = vsel %vm589, %v6311, 0.0
        %6334 = vadd.xlane.f32.xlu0 %v6333
        %v6335 = vpop.xlane.xlu0 %6334
        %v6336 = vsel %vm589, %v6312, 0.0
        %6337 = vadd.xlane.f32.xlu0 %v6336
        %v6338 = vpop.xlane.xlu0 %6337
        %v6339 = vsel %vm589, %v6313, 0.0
        %6340 = vadd.xlane.f32.xlu0 %v6339
        %v6341 = vpop.xlane.xlu0 %6340
        %v6342 = vsel %vm589, %v6314, 0.0
        %6343 = vadd.xlane.f32.xlu0 %v6342
        %v6344 = vpop.xlane.xlu0 %6343
        %v6345 = vsel %vm589, %v6315, 0.0
        %6346 = vadd.xlane.f32.xlu0 %v6345
        %v6347 = vpop.xlane.xlu0 %6346
        %v6348 = vsel %vm589, %v6316, 0.0
        %6349 = vadd.xlane.f32.xlu0 %v6348
        %v6350 = vpop.xlane.xlu0 %6349
        %v6351 = vsel %vm589, %v6317, 0.0
        %6352 = vadd.xlane.f32.xlu0 %v6351
        %v6353 = vpop.xlane.xlu0 %6352
        %v6354 = vsel %vm589, %v6318, 0.0
        %6355 = vadd.xlane.f32.xlu0 %v6354
        %v6356 = vpop.xlane.xlu0 %6355
        %v6357 = vsel %vm589, %v6319, 0.0
        %6358 = vadd.xlane.f32.xlu0 %v6357
        %v6359 = vpop.xlane.xlu0 %6358
        %v6360 = vsel %vm589, %v6320, 0.0
        %6361 = vadd.xlane.f32.xlu0 %v6360
        %v6362 = vpop.xlane.xlu0 %6361
        %v6363 = vsel %vm589, %v6321, 0.0
        %6364 = vadd.xlane.f32.xlu0 %v6363
        %v6365 = vpop.xlane.xlu0 %6364
        %v6366 = vsel %vm589, %v6322, 0.0
        %6367 = vadd.xlane.f32.xlu0 %v6366
        %v6368 = vpop.xlane.xlu0 %6367
        %v6369 = vsel %vm589, %v6323, 0.0
        %6370 = vadd.xlane.f32.xlu0 %v6369
        %v6371 = vpop.xlane.xlu0 %6370
        %v6372 = vsel %vm589, %v6324, 0.0
        %6373 = vadd.xlane.f32.xlu0 %v6372
        %v6374 = vpop.xlane.xlu0 %6373
        %v6375 = vmul.f32 %v6329, %v644
        %v6376 = vmul.f32 %v6332, %v644
        %v6377 = vmul.f32 %v6335, %v644
        %v6378 = vmul.f32 %v6338, %v644
        %v6379 = vmul.f32 %v6341, %v644
        %v6380 = vmul.f32 %v6344, %v644
        %v6381 = vmul.f32 %v6347, %v644
        %v6382 = vmul.f32 %v6350, %v644
        %v6383 = vmul.f32 %v6353, %v644
        %v6384 = vmul.f32 %v6356, %v644
        %v6385 = vmul.f32 %v6359, %v644
        %v6386 = vmul.f32 %v6362, %v644
        %v6387 = vmul.f32 %v6365, %v644
        %v6388 = vmul.f32 %v6368, %v644
        %v6389 = vmul.f32 %v6371, %v644
        %v6390 = vmul.f32 %v6374, %v644
        %v6391 = vsub.f32 %v6309, %v6375
        %v6392 = vsub.f32 %v6310, %v6376
        %v6393 = vsub.f32 %v6311, %v6377
        %v6394 = vsub.f32 %v6312, %v6378
        %v6395 = vsub.f32 %v6313, %v6379
        %v6396 = vsub.f32 %v6314, %v6380
        %v6397 = vsub.f32 %v6315, %v6381
        %v6398 = vsub.f32 %v6316, %v6382
        %v6399 = vsub.f32 %v6317, %v6383
        %v6400 = vsub.f32 %v6318, %v6384
        %v6401 = vsub.f32 %v6319, %v6385
        %v6402 = vsub.f32 %v6320, %v6386
        %v6403 = vsub.f32 %v6321, %v6387
        %v6404 = vsub.f32 %v6322, %v6388
        %v6405 = vsub.f32 %v6323, %v6389
        %v6406 = vsub.f32 %v6324, %v6390
        %v6407 = vmul.f32 %v6391, %v6391
        %v6408 = vmul.f32 %v6392, %v6392
        %v6409 = vmul.f32 %v6393, %v6393
        %v6410 = vmul.f32 %v6394, %v6394
        %v6411 = vmul.f32 %v6395, %v6395
        %v6412 = vmul.f32 %v6396, %v6396
        %v6413 = vmul.f32 %v6397, %v6397
        %v6414 = vmul.f32 %v6398, %v6398
        %v6415 = vmul.f32 %v6399, %v6399
        %v6416 = vmul.f32 %v6400, %v6400
        %v6417 = vmul.f32 %v6401, %v6401
        %v6418 = vmul.f32 %v6402, %v6402
        %v6419 = vmul.f32 %v6403, %v6403
        %v6420 = vmul.f32 %v6404, %v6404
        %v6421 = vmul.f32 %v6405, %v6405
        %v6422 = vmul.f32 %v6406, %v6406
        %v6423 = vsel %vm589, %v6407, 0.0
        %6424 = vadd.xlane.f32.xlu0 %v6423
        %v6425 = vpop.xlane.xlu0 %6424
        %v6426 = vsel %vm589, %v6408, 0.0
        %6427 = vadd.xlane.f32.xlu0 %v6426
        %v6428 = vpop.xlane.xlu0 %6427
        %v6429 = vsel %vm589, %v6409, 0.0
        %6430 = vadd.xlane.f32.xlu0 %v6429
        %v6431 = vpop.xlane.xlu0 %6430
        %v6432 = vsel %vm589, %v6410, 0.0
        %6433 = vadd.xlane.f32.xlu0 %v6432
        %v6434 = vpop.xlane.xlu0 %6433
        %v6435 = vsel %vm589, %v6411, 0.0
        %6436 = vadd.xlane.f32.xlu0 %v6435
        %v6437 = vpop.xlane.xlu0 %6436
        %v6438 = vsel %vm589, %v6412, 0.0
        %6439 = vadd.xlane.f32.xlu0 %v6438
        %v6440 = vpop.xlane.xlu0 %6439
        %v6441 = vsel %vm589, %v6413, 0.0
        %6442 = vadd.xlane.f32.xlu0 %v6441
        %v6443 = vpop.xlane.xlu0 %6442
        %v6444 = vsel %vm589, %v6414, 0.0
        %6445 = vadd.xlane.f32.xlu0 %v6444
        %v6446 = vpop.xlane.xlu0 %6445
        %v6447 = vsel %vm589, %v6415, 0.0
        %6448 = vadd.xlane.f32.xlu0 %v6447
        %v6449 = vpop.xlane.xlu0 %6448
        %v6450 = vsel %vm589, %v6416, 0.0
        %6451 = vadd.xlane.f32.xlu0 %v6450
        %v6452 = vpop.xlane.xlu0 %6451
        %v6453 = vsel %vm589, %v6417, 0.0
        %6454 = vadd.xlane.f32.xlu0 %v6453
        %v6455 = vpop.xlane.xlu0 %6454
        %v6456 = vsel %vm589, %v6418, 0.0
        %6457 = vadd.xlane.f32.xlu0 %v6456
        %v6458 = vpop.xlane.xlu0 %6457
        %v6459 = vsel %vm589, %v6419, 0.0
        %6460 = vadd.xlane.f32.xlu0 %v6459
        %v6461 = vpop.xlane.xlu0 %6460
        %v6462 = vsel %vm589, %v6420, 0.0
        %6463 = vadd.xlane.f32.xlu0 %v6462
        %v6464 = vpop.xlane.xlu0 %6463
        %v6465 = vsel %vm589, %v6421, 0.0
        %6466 = vadd.xlane.f32.xlu0 %v6465
        %v6467 = vpop.xlane.xlu0 %6466
        %v6468 = vsel %vm589, %v6422, 0.0
        %6469 = vadd.xlane.f32.xlu0 %v6468
        %v6470 = vpop.xlane.xlu0 %6469
        %v6471 = vmul.f32 %v6425, %v644
        %v6472 = vmul.f32 %v6428, %v644
        %v6473 = vmul.f32 %v6431, %v644
        %v6474 = vmul.f32 %v6434, %v644
        %v6475 = vmul.f32 %v6437, %v644
        %v6476 = vmul.f32 %v6440, %v644
        %v6477 = vmul.f32 %v6443, %v644
        %v6478 = vmul.f32 %v6446, %v644
        %v6479 = vmul.f32 %v6449, %v644
        %v6480 = vmul.f32 %v6452, %v644
        %v6481 = vmul.f32 %v6455, %v644
        %v6482 = vmul.f32 %v6458, %v644
        %v6483 = vmul.f32 %v6461, %v644
        %v6484 = vmul.f32 %v6464, %v644
        %v6485 = vmul.f32 %v6467, %v644
        %v6486 = vmul.f32 %v6470, %v644
        %v6487 = vadd.f32 %v6471, 1e-05
        %v6488 = vadd.f32 %v6472, 1e-05
        %v6489 = vadd.f32 %v6473, 1e-05
        %v6490 = vadd.f32 %v6474, 1e-05
        %v6491 = vadd.f32 %v6475, 1e-05
        %v6492 = vadd.f32 %v6476, 1e-05
        %v6493 = vadd.f32 %v6477, 1e-05
        %v6494 = vadd.f32 %v6478, 1e-05
        %v6495 = vadd.f32 %v6479, 1e-05
        %v6496 = vadd.f32 %v6480, 1e-05
        %v6497 = vadd.f32 %v6481, 1e-05
        %v6498 = vadd.f32 %v6482, 1e-05
        %v6499 = vadd.f32 %v6483, 1e-05
        %v6500 = vadd.f32 %v6484, 1e-05
        %v6501 = vadd.f32 %v6485, 1e-05
        %v6502 = vadd.f32 %v6486, 1e-05
        %v6503 = vrsqrt.pop %v6487
        %v6504 = vmul.f32 %v6503, %v6487
        %v6505 = vmul.f32 %v6504, %v6503
        %v6506 = vmul.f32 0.5, %v6505
        %v6507 = vsub.f32 1.5, %v6506
        %v6508 = vmul.f32 %v6503, %v6507
        %vm6509 = vweird.f32 %v6487
        %vm6510 = vweird.f32 %v6503
        %vm6511 = vmor %vm6509, %vm6510
        %v6512 = vsel %vm6511, %v6503, %v6508
        %v6513 = vrsqrt.pop %v6488
        %v6514 = vmul.f32 %v6513, %v6488
        %v6515 = vmul.f32 %v6514, %v6513
        %v6516 = vmul.f32 0.5, %v6515
        %v6517 = vsub.f32 1.5, %v6516
        %v6518 = vmul.f32 %v6513, %v6517
        %vm6519 = vweird.f32 %v6488
        %vm6520 = vweird.f32 %v6513
        %vm6521 = vmor %vm6519, %vm6520
        %v6522 = vsel %vm6521, %v6513, %v6518
        %v6523 = vrsqrt.pop %v6489
        %v6524 = vmul.f32 %v6523, %v6489
        %v6525 = vmul.f32 %v6524, %v6523
        %v6526 = vmul.f32 0.5, %v6525
        %v6527 = vsub.f32 1.5, %v6526
        %v6528 = vmul.f32 %v6523, %v6527
        %vm6529 = vweird.f32 %v6489
        %vm6530 = vweird.f32 %v6523
        %vm6531 = vmor %vm6529, %vm6530
        %v6532 = vsel %vm6531, %v6523, %v6528
        %v6533 = vrsqrt.pop %v6490
        %v6534 = vmul.f32 %v6533, %v6490
        %v6535 = vmul.f32 %v6534, %v6533
        %v6536 = vmul.f32 0.5, %v6535
        %v6537 = vsub.f32 1.5, %v6536
        %v6538 = vmul.f32 %v6533, %v6537
        %vm6539 = vweird.f32 %v6490
        %vm6540 = vweird.f32 %v6533
        %vm6541 = vmor %vm6539, %vm6540
        %v6542 = vsel %vm6541, %v6533, %v6538
        %v6543 = vrsqrt.pop %v6491
        %v6544 = vmul.f32 %v6543, %v6491
        %v6545 = vmul.f32 %v6544, %v6543
        %v6546 = vmul.f32 0.5, %v6545
        %v6547 = vsub.f32 1.5, %v6546
        %v6548 = vmul.f32 %v6543, %v6547
        %vm6549 = vweird.f32 %v6491
        %vm6550 = vweird.f32 %v6543
        %vm6551 = vmor %vm6549, %vm6550
        %v6552 = vsel %vm6551, %v6543, %v6548
        %v6553 = vrsqrt.pop %v6492
        %v6554 = vmul.f32 %v6553, %v6492
        %v6555 = vmul.f32 %v6554, %v6553
        %v6556 = vmul.f32 0.5, %v6555
        %v6557 = vsub.f32 1.5, %v6556
        %v6558 = vmul.f32 %v6553, %v6557
        %vm6559 = vweird.f32 %v6492
        %vm6560 = vweird.f32 %v6553
        %vm6561 = vmor %vm6559, %vm6560
        %v6562 = vsel %vm6561, %v6553, %v6558
        %v6563 = vrsqrt.pop %v6493
        %v6564 = vmul.f32 %v6563, %v6493
        %v6565 = vmul.f32 %v6564, %v6563
        %v6566 = vmul.f32 0.5, %v6565
        %v6567 = vsub.f32 1.5, %v6566
        %v6568 = vmul.f32 %v6563, %v6567
        %vm6569 = vweird.f32 %v6493
        %vm6570 = vweird.f32 %v6563
        %vm6571 = vmor %vm6569, %vm6570
        %v6572 = vsel %vm6571, %v6563, %v6568
        %v6573 = vrsqrt.pop %v6494
        %v6574 = vmul.f32 %v6573, %v6494
        %v6575 = vmul.f32 %v6574, %v6573
        %v6576 = vmul.f32 0.5, %v6575
        %v6577 = vsub.f32 1.5, %v6576
        %v6578 = vmul.f32 %v6573, %v6577
        %vm6579 = vweird.f32 %v6494
        %vm6580 = vweird.f32 %v6573
        %vm6581 = vmor %vm6579, %vm6580
        %v6582 = vsel %vm6581, %v6573, %v6578
        %v6583 = vrsqrt.pop %v6495
        %v6584 = vmul.f32 %v6583, %v6495
        %v6585 = vmul.f32 %v6584, %v6583
        %v6586 = vmul.f32 0.5, %v6585
        %v6587 = vsub.f32 1.5, %v6586
        %v6588 = vmul.f32 %v6583, %v6587
        %vm6589 = vweird.f32 %v6495
        %vm6590 = vweird.f32 %v6583
        %vm6591 = vmor %vm6589, %vm6590
        %v6592 = vsel %vm6591, %v6583, %v6588
        %v6593 = vrsqrt.pop %v6496
        %v6594 = vmul.f32 %v6593, %v6496
        %v6595 = vmul.f32 %v6594, %v6593
        %v6596 = vmul.f32 0.5, %v6595
        %v6597 = vsub.f32 1.5, %v6596
        %v6598 = vmul.f32 %v6593, %v6597
        %vm6599 = vweird.f32 %v6496
        %vm6600 = vweird.f32 %v6593
        %vm6601 = vmor %vm6599, %vm6600
        %v6602 = vsel %vm6601, %v6593, %v6598
        %v6603 = vrsqrt.pop %v6497
        %v6604 = vmul.f32 %v6603, %v6497
        %v6605 = vmul.f32 %v6604, %v6603
        %v6606 = vmul.f32 0.5, %v6605
        %v6607 = vsub.f32 1.5, %v6606
        %v6608 = vmul.f32 %v6603, %v6607
        %vm6609 = vweird.f32 %v6497
        %vm6610 = vweird.f32 %v6603
        %vm6611 = vmor %vm6609, %vm6610
        %v6612 = vsel %vm6611, %v6603, %v6608
        %v6613 = vrsqrt.pop %v6498
        %v6614 = vmul.f32 %v6613, %v6498
        %v6615 = vmul.f32 %v6614, %v6613
        %v6616 = vmul.f32 0.5, %v6615
        %v6617 = vsub.f32 1.5, %v6616
        %v6618 = vmul.f32 %v6613, %v6617
        %vm6619 = vweird.f32 %v6498
        %vm6620 = vweird.f32 %v6613
        %vm6621 = vmor %vm6619, %vm6620
        %v6622 = vsel %vm6621, %v6613, %v6618
        %v6623 = vrsqrt.pop %v6499
        %v6624 = vmul.f32 %v6623, %v6499
        %v6625 = vmul.f32 %v6624, %v6623
        %v6626 = vmul.f32 0.5, %v6625
        %v6627 = vsub.f32 1.5, %v6626
        %v6628 = vmul.f32 %v6623, %v6627
        %vm6629 = vweird.f32 %v6499
        %vm6630 = vweird.f32 %v6623
        %vm6631 = vmor %vm6629, %vm6630
        %v6632 = vsel %vm6631, %v6623, %v6628
        %v6633 = vrsqrt.pop %v6500
        %v6634 = vmul.f32 %v6633, %v6500
        %v6635 = vmul.f32 %v6634, %v6633
        %v6636 = vmul.f32 0.5, %v6635
        %v6637 = vsub.f32 1.5, %v6636
        %v6638 = vmul.f32 %v6633, %v6637
        %vm6639 = vweird.f32 %v6500
        %vm6640 = vweird.f32 %v6633
        %vm6641 = vmor %vm6639, %vm6640
        %v6642 = vsel %vm6641, %v6633, %v6638
        %v6643 = vrsqrt.pop %v6501
        %v6644 = vmul.f32 %v6643, %v6501
        %v6645 = vmul.f32 %v6644, %v6643
        %v6646 = vmul.f32 0.5, %v6645
        %v6647 = vsub.f32 1.5, %v6646
        %v6648 = vmul.f32 %v6643, %v6647
        %vm6649 = vweird.f32 %v6501
        %vm6650 = vweird.f32 %v6643
        %vm6651 = vmor %vm6649, %vm6650
        %v6652 = vsel %vm6651, %v6643, %v6648
        %v6653 = vrsqrt.pop %v6502
        %v6654 = vmul.f32 %v6653, %v6502
        %v6655 = vmul.f32 %v6654, %v6653
        %v6656 = vmul.f32 0.5, %v6655
        %v6657 = vsub.f32 1.5, %v6656
        %v6658 = vmul.f32 %v6653, %v6657
        %vm6659 = vweird.f32 %v6502
        %vm6660 = vweird.f32 %v6653
        %vm6661 = vmor %vm6659, %vm6660
        %v6662 = vsel %vm6661, %v6653, %v6658
        %v6663 = vmul.f32 %v6391, %v6512
        %v6664 = vmul.f32 %v6392, %v6522
        %v6665 = vmul.f32 %v6393, %v6532
        %v6666 = vmul.f32 %v6394, %v6542
        %v6667 = vmul.f32 %v6395, %v6552
        %v6668 = vmul.f32 %v6396, %v6562
        %v6669 = vmul.f32 %v6397, %v6572
        %v6670 = vmul.f32 %v6398, %v6582
        %v6671 = vmul.f32 %v6399, %v6592
        %v6672 = vmul.f32 %v6400, %v6602
        %v6673 = vmul.f32 %v6401, %v6612
        %v6674 = vmul.f32 %v6402, %v6622
        %v6675 = vmul.f32 %v6403, %v6632
        %v6676 = vmul.f32 %v6404, %v6642
        %v6677 = vmul.f32 %v6405, %v6652
        %v6678 = vmul.f32 %v6406, %v6662
        %v6679 = vperm.slane %v6325, 0
        %v6680 = vmul.f32 %v6663, %v6679
        %v6681 = vmul.f32 %v6664, %v6679
        %v6682 = vmul.f32 %v6665, %v6679
        %v6683 = vmul.f32 %v6666, %v6679
        %v6684 = vmul.f32 %v6667, %v6679
        %v6685 = vmul.f32 %v6668, %v6679
        %v6686 = vmul.f32 %v6669, %v6679
        %v6687 = vmul.f32 %v6670, %v6679
        %v6688 = vmul.f32 %v6671, %v6679
        %v6689 = vmul.f32 %v6672, %v6679
        %v6690 = vmul.f32 %v6673, %v6679
        %v6691 = vmul.f32 %v6674, %v6679
        %v6692 = vmul.f32 %v6675, %v6679
        %v6693 = vmul.f32 %v6676, %v6679
        %v6694 = vmul.f32 %v6677, %v6679
        %v6695 = vmul.f32 %v6678, %v6679
        %v6696 = vperm.slane %v6326, 0
        %v6697 = vadd.f32 %v6680, %v6696
        %v6698 = vadd.f32 %v6681, %v6696
        %v6699 = vadd.f32 %v6682, %v6696
        %v6700 = vadd.f32 %v6683, %v6696
        %v6701 = vadd.f32 %v6684, %v6696
        %v6702 = vadd.f32 %v6685, %v6696
        %v6703 = vadd.f32 %v6686, %v6696
        %v6704 = vadd.f32 %v6687, %v6696
        %v6705 = vadd.f32 %v6688, %v6696
        %v6706 = vadd.f32 %v6689, %v6696
        %v6707 = vadd.f32 %v6690, %v6696
        %v6708 = vadd.f32 %v6691, %v6696
        %v6709 = vadd.f32 %v6692, %v6696
        %v6710 = vadd.f32 %v6693, %v6696
        %v6711 = vadd.f32 %v6694, %v6696
        %v6712 = vadd.f32 %v6695, %v6696
        %s6713 = scalar_lea.vmem [#allocation7], 64
        %v6714 = vld [vmem:[%s6713] sm:$0xff]
        %v6715 = vld [vmem:[%s6713 + $0x8] sm:$0xff]
        %v6716 = vld [vmem:[%s6713 + $0x10] sm:$0xff]
        %v6717 = vld [vmem:[%s6713 + $0x18] sm:$0xff]
        %v6718 = vld [vmem:[%s7 + $0xd] sm:$0x1]
        %v6719 = vperm.slane %v6718, 0
        %v6721 = vsel %vm589, %v6697, 0
        %v6724 = vsel %vm589, %v6698, 0
        %v6727 = vsel %vm589, %v6699, 0
        %v6730 = vsel %vm589, %v6700, 0
        %v6733 = vsel %vm589, %v6701, 0
        %v6736 = vsel %vm589, %v6702, 0
        %v6739 = vsel %vm589, %v6703, 0
        %v6742 = vsel %vm589, %v6704, 0
        %v6745 = vsel %vm589, %v6705, 0
        %v6748 = vsel %vm589, %v6706, 0
        %v6751 = vsel %vm589, %v6707, 0
        %v6754 = vsel %vm589, %v6708, 0
        %v6757 = vsel %vm589, %v6709, 0
        %v6760 = vsel %vm589, %v6710, 0
        %v6763 = vsel %vm589, %v6711, 0
        %v6766 = vsel %vm589, %v6712, 0
        %6768 = vmatpush.msra.mxu0 0.0
        %6769 = vmatpush.msra.mxu0 0.0
        %6770 = vmatpush.msra.mxu0 0.0
        %6771 = vmatpush.msra.mxu0 0.0
        %6772 = vmatpush.msra.mxu0 0.0
        %6773 = vmatpush.msra.mxu0 0.0
        %6774 = vmatpush.msra.mxu0 0.0
        %6775 = vmatpush.msra.mxu0 0.0
        %6776 = vmatpush.msra.mxu0 0.0
        %6777 = vmatpush.msra.mxu0 0.0
        %6778 = vmatpush.msra.mxu0 0.0
        %6779 = vmatpush.msra.mxu0 0.0
        %6780 = vmatpush.msra.mxu0 %v6717
        %6781 = vmatpush.msra.mxu0 %v6716
        %6782 = vmatpush.msra.mxu0 %v6715
        %6783 = vmatpush.msra.mxu0 %v6714
        %6784 = vmatmul.f32.gmra.mxu0 %v6721
        %v6785 = vpop.f32.mrf.mxu0
        %v6786 = vadd.f32 %v6719, %v6785
        %6787 = vmatmul.f32.gmra.mxu0 %v6724
        %v6788 = vpop.f32.mrf.mxu0
        %v6789 = vadd.f32 %v6719, %v6788
        %6790 = vmatmul.f32.gmra.mxu0 %v6727
        %v6791 = vpop.f32.mrf.mxu0
        %v6792 = vadd.f32 %v6719, %v6791
        %6793 = vmatmul.f32.gmra.mxu0 %v6730
        %v6794 = vpop.f32.mrf.mxu0
        %v6795 = vadd.f32 %v6719, %v6794
        %6796 = vmatmul.f32.gmra.mxu0 %v6733
        %v6797 = vpop.f32.mrf.mxu0
        %v6798 = vadd.f32 %v6719, %v6797
        %6799 = vmatmul.f32.gmra.mxu0 %v6736
        %v6800 = vpop.f32.mrf.mxu0
        %v6801 = vadd.f32 %v6719, %v6800
        %6802 = vmatmul.f32.gmra.mxu0 %v6739
        %v6803 = vpop.f32.mrf.mxu0
        %v6804 = vadd.f32 %v6719, %v6803
        %6805 = vmatmul.f32.gmra.mxu0 %v6742
        %v6806 = vpop.f32.mrf.mxu0
        %v6807 = vadd.f32 %v6719, %v6806
        %6808 = vmatmul.f32.gmra.mxu0 %v6745
        %v6809 = vpop.f32.mrf.mxu0
        %v6810 = vadd.f32 %v6719, %v6809
        %6811 = vmatmul.f32.gmra.mxu0 %v6748
        %v6812 = vpop.f32.mrf.mxu0
        %v6813 = vadd.f32 %v6719, %v6812
        %6814 = vmatmul.f32.gmra.mxu0 %v6751
        %v6815 = vpop.f32.mrf.mxu0
        %v6816 = vadd.f32 %v6719, %v6815
        %6817 = vmatmul.f32.gmra.mxu0 %v6754
        %v6818 = vpop.f32.mrf.mxu0
        %v6819 = vadd.f32 %v6719, %v6818
        %6820 = vmatmul.f32.gmra.mxu0 %v6757
        %v6821 = vpop.f32.mrf.mxu0
        %v6822 = vadd.f32 %v6719, %v6821
        %6823 = vmatmul.f32.gmra.mxu0 %v6760
        %v6824 = vpop.f32.mrf.mxu0
        %v6825 = vadd.f32 %v6719, %v6824
        %6826 = vmatmul.f32.gmra.mxu0 %v6763
        %v6827 = vpop.f32.mrf.mxu0
        %v6828 = vadd.f32 %v6719, %v6827
        %6829 = vmatmul.f32.gmra.mxu0 %v6766
        %v6830 = vpop.f32.mrf.mxu0
        %v6831 = vadd.f32 %v6719, %v6830
        %6832 = vdwg.mxu0
        %v6833 = vmax.f32 %v6786, 0.0
        %v6834 = vmax.f32 %v6789, 0.0
        %v6835 = vmax.f32 %v6792, 0.0
        %v6836 = vmax.f32 %v6795, 0.0
        %v6837 = vmax.f32 %v6798, 0.0
        %v6838 = vmax.f32 %v6801, 0.0
        %v6839 = vmax.f32 %v6804, 0.0
        %v6840 = vmax.f32 %v6807, 0.0
        %v6841 = vmax.f32 %v6810, 0.0
        %v6842 = vmax.f32 %v6813, 0.0
        %v6843 = vmax.f32 %v6816, 0.0
        %v6844 = vmax.f32 %v6819, 0.0
        %v6845 = vmax.f32 %v6822, 0.0
        %v6846 = vmax.f32 %v6825, 0.0
        %v6847 = vmax.f32 %v6828, 0.0
        %v6848 = vmax.f32 %v6831, 0.0
        %s6849 = scalar_lea.vmem [#allocation7], 96
        %v6850 = vld [vmem:[%s6849] sm:$0xff]
        %v6851 = vld [vmem:[%s6849 + $0x8] sm:$0xff]
        %v6852 = vld [vmem:[%s6849 + $0x10] sm:$0xff]
        %v6853 = vld [vmem:[%s6849 + $0x18] sm:$0xff]
        %v6854 = vld [vmem:[%s7 + $0xe] sm:$0x1]
        %v6855 = vperm.slane %v6854, 0
        %v6857 = vsel %vm589, %v6833, 0
        %v6860 = vsel %vm589, %v6834, 0
        %v6863 = vsel %vm589, %v6835, 0
        %v6866 = vsel %vm589, %v6836, 0
        %v6869 = vsel %vm589, %v6837, 0
        %v6872 = vsel %vm589, %v6838, 0
        %v6875 = vsel %vm589, %v6839, 0
        %v6878 = vsel %vm589, %v6840, 0
        %v6881 = vsel %vm589, %v6841, 0
        %v6884 = vsel %vm589, %v6842, 0
        %v6887 = vsel %vm589, %v6843, 0
        %v6890 = vsel %vm589, %v6844, 0
        %v6893 = vsel %vm589, %v6845, 0
        %v6896 = vsel %vm589, %v6846, 0
        %v6899 = vsel %vm589, %v6847, 0
        %v6902 = vsel %vm589, %v6848, 0
        %6904 = vmatpush.msra.mxu0 0.0
        %6905 = vmatpush.msra.mxu0 0.0
        %6906 = vmatpush.msra.mxu0 0.0
        %6907 = vmatpush.msra.mxu0 0.0
        %6908 = vmatpush.msra.mxu0 0.0
        %6909 = vmatpush.msra.mxu0 0.0
        %6910 = vmatpush.msra.mxu0 0.0
        %6911 = vmatpush.msra.mxu0 0.0
        %6912 = vmatpush.msra.mxu0 0.0
        %6913 = vmatpush.msra.mxu0 0.0
        %6914 = vmatpush.msra.mxu0 0.0
        %6915 = vmatpush.msra.mxu0 0.0
        %6916 = vmatpush.msra.mxu0 %v6853
        %6917 = vmatpush.msra.mxu0 %v6852
        %6918 = vmatpush.msra.mxu0 %v6851
        %6919 = vmatpush.msra.mxu0 %v6850
        %6920 = vmatmul.f32.gmra.mxu0 %v6857
        %v6921 = vpop.f32.mrf.mxu0
        %v6922 = vadd.f32 %v6855, %v6921
        %6923 = vmatmul.f32.gmra.mxu0 %v6860
        %v6924 = vpop.f32.mrf.mxu0
        %v6925 = vadd.f32 %v6855, %v6924
        %6926 = vmatmul.f32.gmra.mxu0 %v6863
        %v6927 = vpop.f32.mrf.mxu0
        %v6928 = vadd.f32 %v6855, %v6927
        %6929 = vmatmul.f32.gmra.mxu0 %v6866
        %v6930 = vpop.f32.mrf.mxu0
        %v6931 = vadd.f32 %v6855, %v6930
        %6932 = vmatmul.f32.gmra.mxu0 %v6869
        %v6933 = vpop.f32.mrf.mxu0
        %v6934 = vadd.f32 %v6855, %v6933
        %6935 = vmatmul.f32.gmra.mxu0 %v6872
        %v6936 = vpop.f32.mrf.mxu0
        %v6937 = vadd.f32 %v6855, %v6936
        %6938 = vmatmul.f32.gmra.mxu0 %v6875
        %v6939 = vpop.f32.mrf.mxu0
        %v6940 = vadd.f32 %v6855, %v6939
        %6941 = vmatmul.f32.gmra.mxu0 %v6878
        %v6942 = vpop.f32.mrf.mxu0
        %v6943 = vadd.f32 %v6855, %v6942
        %6944 = vmatmul.f32.gmra.mxu0 %v6881
        %v6945 = vpop.f32.mrf.mxu0
        %v6946 = vadd.f32 %v6855, %v6945
        %6947 = vmatmul.f32.gmra.mxu0 %v6884
        %v6948 = vpop.f32.mrf.mxu0
        %v6949 = vadd.f32 %v6855, %v6948
        %6950 = vmatmul.f32.gmra.mxu0 %v6887
        %v6951 = vpop.f32.mrf.mxu0
        %v6952 = vadd.f32 %v6855, %v6951
        %6953 = vmatmul.f32.gmra.mxu0 %v6890
        %v6954 = vpop.f32.mrf.mxu0
        %v6955 = vadd.f32 %v6855, %v6954
        %6956 = vmatmul.f32.gmra.mxu0 %v6893
        %v6957 = vpop.f32.mrf.mxu0
        %v6958 = vadd.f32 %v6855, %v6957
        %6959 = vmatmul.f32.gmra.mxu0 %v6896
        %v6960 = vpop.f32.mrf.mxu0
        %v6961 = vadd.f32 %v6855, %v6960
        %6962 = vmatmul.f32.gmra.mxu0 %v6899
        %v6963 = vpop.f32.mrf.mxu0
        %v6964 = vadd.f32 %v6855, %v6963
        %6965 = vmatmul.f32.gmra.mxu0 %v6902
        %v6966 = vpop.f32.mrf.mxu0
        %v6967 = vadd.f32 %v6855, %v6966
        %6968 = vdwg.mxu0
        %v6969 = vmax.f32 %v6922, 0.0
        %v6970 = vmax.f32 %v6925, 0.0
        %v6971 = vmax.f32 %v6928, 0.0
        %v6972 = vmax.f32 %v6931, 0.0
        %v6973 = vmax.f32 %v6934, 0.0
        %v6974 = vmax.f32 %v6937, 0.0
        %v6975 = vmax.f32 %v6940, 0.0
        %v6976 = vmax.f32 %v6943, 0.0
        %v6977 = vmax.f32 %v6946, 0.0
        %v6978 = vmax.f32 %v6949, 0.0
        %v6979 = vmax.f32 %v6952, 0.0
        %v6980 = vmax.f32 %v6955, 0.0
        %v6981 = vmax.f32 %v6958, 0.0
        %v6982 = vmax.f32 %v6961, 0.0
        %v6983 = vmax.f32 %v6964, 0.0
        %v6984 = vmax.f32 %v6967, 0.0
        %v6985 = vadd.f32 %v6309, %v6969
        %v6986 = vadd.f32 %v6310, %v6970
        %v6987 = vadd.f32 %v6311, %v6971
        %v6988 = vadd.f32 %v6312, %v6972
        %v6989 = vadd.f32 %v6313, %v6973
        %v6990 = vadd.f32 %v6314, %v6974
        %v6991 = vadd.f32 %v6315, %v6975
        %v6992 = vadd.f32 %v6316, %v6976
        %v6993 = vadd.f32 %v6317, %v6977
        %v6994 = vadd.f32 %v6318, %v6978
        %v6995 = vadd.f32 %v6319, %v6979
        %v6996 = vadd.f32 %v6320, %v6980
        %v6997 = vadd.f32 %v6321, %v6981
        %v6998 = vadd.f32 %v6322, %v6982
        %v6999 = vadd.f32 %v6323, %v6983
        %v7000 = vadd.f32 %v6324, %v6984
        %v7001 = vld [vmem:[%s7 + $0xf] sm:$0x1]
        %v7002 = vld [vmem:[%s7 + $0x10] sm:$0x1]
        %v7003 = vsel %vm589, %v6985, 0.0
        %7004 = vadd.xlane.f32.xlu0 %v7003
        %v7005 = vpop.xlane.xlu0 %7004
        %v7006 = vsel %vm589, %v6986, 0.0
        %7007 = vadd.xlane.f32.xlu0 %v7006
        %v7008 = vpop.xlane.xlu0 %7007
        %v7009 = vsel %vm589, %v6987, 0.0
        %7010 = vadd.xlane.f32.xlu0 %v7009
        %v7011 = vpop.xlane.xlu0 %7010
        %v7012 = vsel %vm589, %v6988, 0.0
        %7013 = vadd.xlane.f32.xlu0 %v7012
        %v7014 = vpop.xlane.xlu0 %7013
        %v7015 = vsel %vm589, %v6989, 0.0
        %7016 = vadd.xlane.f32.xlu0 %v7015
        %v7017 = vpop.xlane.xlu0 %7016
        %v7018 = vsel %vm589, %v6990, 0.0
        %7019 = vadd.xlane.f32.xlu0 %v7018
        %v7020 = vpop.xlane.xlu0 %7019
        %v7021 = vsel %vm589, %v6991, 0.0
        %7022 = vadd.xlane.f32.xlu0 %v7021
        %v7023 = vpop.xlane.xlu0 %7022
        %v7024 = vsel %vm589, %v6992, 0.0
        %7025 = vadd.xlane.f32.xlu0 %v7024
        %v7026 = vpop.xlane.xlu0 %7025
        %v7027 = vsel %vm589, %v6993, 0.0
        %7028 = vadd.xlane.f32.xlu0 %v7027
        %v7029 = vpop.xlane.xlu0 %7028
        %v7030 = vsel %vm589, %v6994, 0.0
        %7031 = vadd.xlane.f32.xlu0 %v7030
        %v7032 = vpop.xlane.xlu0 %7031
        %v7033 = vsel %vm589, %v6995, 0.0
        %7034 = vadd.xlane.f32.xlu0 %v7033
        %v7035 = vpop.xlane.xlu0 %7034
        %v7036 = vsel %vm589, %v6996, 0.0
        %7037 = vadd.xlane.f32.xlu0 %v7036
        %v7038 = vpop.xlane.xlu0 %7037
        %v7039 = vsel %vm589, %v6997, 0.0
        %7040 = vadd.xlane.f32.xlu0 %v7039
        %v7041 = vpop.xlane.xlu0 %7040
        %v7042 = vsel %vm589, %v6998, 0.0
        %7043 = vadd.xlane.f32.xlu0 %v7042
        %v7044 = vpop.xlane.xlu0 %7043
        %v7045 = vsel %vm589, %v6999, 0.0
        %7046 = vadd.xlane.f32.xlu0 %v7045
        %v7047 = vpop.xlane.xlu0 %7046
        %v7048 = vsel %vm589, %v7000, 0.0
        %7049 = vadd.xlane.f32.xlu0 %v7048
        %v7050 = vpop.xlane.xlu0 %7049
        %v7051 = vmul.f32 %v7005, %v644
        %v7052 = vmul.f32 %v7008, %v644
        %v7053 = vmul.f32 %v7011, %v644
        %v7054 = vmul.f32 %v7014, %v644
        %v7055 = vmul.f32 %v7017, %v644
        %v7056 = vmul.f32 %v7020, %v644
        %v7057 = vmul.f32 %v7023, %v644
        %v7058 = vmul.f32 %v7026, %v644
        %v7059 = vmul.f32 %v7029, %v644
        %v7060 = vmul.f32 %v7032, %v644
        %v7061 = vmul.f32 %v7035, %v644
        %v7062 = vmul.f32 %v7038, %v644
        %v7063 = vmul.f32 %v7041, %v644
        %v7064 = vmul.f32 %v7044, %v644
        %v7065 = vmul.f32 %v7047, %v644
        %v7066 = vmul.f32 %v7050, %v644
        %v7067 = vsub.f32 %v6985, %v7051
        %v7068 = vsub.f32 %v6986, %v7052
        %v7069 = vsub.f32 %v6987, %v7053
        %v7070 = vsub.f32 %v6988, %v7054
        %v7071 = vsub.f32 %v6989, %v7055
        %v7072 = vsub.f32 %v6990, %v7056
        %v7073 = vsub.f32 %v6991, %v7057
        %v7074 = vsub.f32 %v6992, %v7058
        %v7075 = vsub.f32 %v6993, %v7059
        %v7076 = vsub.f32 %v6994, %v7060
        %v7077 = vsub.f32 %v6995, %v7061
        %v7078 = vsub.f32 %v6996, %v7062
        %v7079 = vsub.f32 %v6997, %v7063
        %v7080 = vsub.f32 %v6998, %v7064
        %v7081 = vsub.f32 %v6999, %v7065
        %v7082 = vsub.f32 %v7000, %v7066
        %v7083 = vmul.f32 %v7067, %v7067
        %v7084 = vmul.f32 %v7068, %v7068
        %v7085 = vmul.f32 %v7069, %v7069
        %v7086 = vmul.f32 %v7070, %v7070
        %v7087 = vmul.f32 %v7071, %v7071
        %v7088 = vmul.f32 %v7072, %v7072
        %v7089 = vmul.f32 %v7073, %v7073
        %v7090 = vmul.f32 %v7074, %v7074
        %v7091 = vmul.f32 %v7075, %v7075
        %v7092 = vmul.f32 %v7076, %v7076
        %v7093 = vmul.f32 %v7077, %v7077
        %v7094 = vmul.f32 %v7078, %v7078
        %v7095 = vmul.f32 %v7079, %v7079
        %v7096 = vmul.f32 %v7080, %v7080
        %v7097 = vmul.f32 %v7081, %v7081
        %v7098 = vmul.f32 %v7082, %v7082
        %v7099 = vsel %vm589, %v7083, 0.0
        %7100 = vadd.xlane.f32.xlu0 %v7099
        %v7101 = vpop.xlane.xlu0 %7100
        %v7102 = vsel %vm589, %v7084, 0.0
        %7103 = vadd.xlane.f32.xlu0 %v7102
        %v7104 = vpop.xlane.xlu0 %7103
        %v7105 = vsel %vm589, %v7085, 0.0
        %7106 = vadd.xlane.f32.xlu0 %v7105
        %v7107 = vpop.xlane.xlu0 %7106
        %v7108 = vsel %vm589, %v7086, 0.0
        %7109 = vadd.xlane.f32.xlu0 %v7108
        %v7110 = vpop.xlane.xlu0 %7109
        %v7111 = vsel %vm589, %v7087, 0.0
        %7112 = vadd.xlane.f32.xlu0 %v7111
        %v7113 = vpop.xlane.xlu0 %7112
        %v7114 = vsel %vm589, %v7088, 0.0
        %7115 = vadd.xlane.f32.xlu0 %v7114
        %v7116 = vpop.xlane.xlu0 %7115
        %v7117 = vsel %vm589, %v7089, 0.0
        %7118 = vadd.xlane.f32.xlu0 %v7117
        %v7119 = vpop.xlane.xlu0 %7118
        %v7120 = vsel %vm589, %v7090, 0.0
        %7121 = vadd.xlane.f32.xlu0 %v7120
        %v7122 = vpop.xlane.xlu0 %7121
        %v7123 = vsel %vm589, %v7091, 0.0
        %7124 = vadd.xlane.f32.xlu0 %v7123
        %v7125 = vpop.xlane.xlu0 %7124
        %v7126 = vsel %vm589, %v7092, 0.0
        %7127 = vadd.xlane.f32.xlu0 %v7126
        %v7128 = vpop.xlane.xlu0 %7127
        %v7129 = vsel %vm589, %v7093, 0.0
        %7130 = vadd.xlane.f32.xlu0 %v7129
        %v7131 = vpop.xlane.xlu0 %7130
        %v7132 = vsel %vm589, %v7094, 0.0
        %7133 = vadd.xlane.f32.xlu0 %v7132
        %v7134 = vpop.xlane.xlu0 %7133
        %v7135 = vsel %vm589, %v7095, 0.0
        %7136 = vadd.xlane.f32.xlu0 %v7135
        %v7137 = vpop.xlane.xlu0 %7136
        %v7138 = vsel %vm589, %v7096, 0.0
        %7139 = vadd.xlane.f32.xlu0 %v7138
        %v7140 = vpop.xlane.xlu0 %7139
        %v7141 = vsel %vm589, %v7097, 0.0
        %7142 = vadd.xlane.f32.xlu0 %v7141
        %v7143 = vpop.xlane.xlu0 %7142
        %v7144 = vsel %vm589, %v7098, 0.0
        %7145 = vadd.xlane.f32.xlu0 %v7144
        %v7146 = vpop.xlane.xlu0 %7145
        %v7147 = vmul.f32 %v7101, %v644
        %v7148 = vmul.f32 %v7104, %v644
        %v7149 = vmul.f32 %v7107, %v644
        %v7150 = vmul.f32 %v7110, %v644
        %v7151 = vmul.f32 %v7113, %v644
        %v7152 = vmul.f32 %v7116, %v644
        %v7153 = vmul.f32 %v7119, %v644
        %v7154 = vmul.f32 %v7122, %v644
        %v7155 = vmul.f32 %v7125, %v644
        %v7156 = vmul.f32 %v7128, %v644
        %v7157 = vmul.f32 %v7131, %v644
        %v7158 = vmul.f32 %v7134, %v644
        %v7159 = vmul.f32 %v7137, %v644
        %v7160 = vmul.f32 %v7140, %v644
        %v7161 = vmul.f32 %v7143, %v644
        %v7162 = vmul.f32 %v7146, %v644
        %v7163 = vadd.f32 %v7147, 1e-05
        %v7164 = vadd.f32 %v7148, 1e-05
        %v7165 = vadd.f32 %v7149, 1e-05
        %v7166 = vadd.f32 %v7150, 1e-05
        %v7167 = vadd.f32 %v7151, 1e-05
        %v7168 = vadd.f32 %v7152, 1e-05
        %v7169 = vadd.f32 %v7153, 1e-05
        %v7170 = vadd.f32 %v7154, 1e-05
        %v7171 = vadd.f32 %v7155, 1e-05
        %v7172 = vadd.f32 %v7156, 1e-05
        %v7173 = vadd.f32 %v7157, 1e-05
        %v7174 = vadd.f32 %v7158, 1e-05
        %v7175 = vadd.f32 %v7159, 1e-05
        %v7176 = vadd.f32 %v7160, 1e-05
        %v7177 = vadd.f32 %v7161, 1e-05
        %v7178 = vadd.f32 %v7162, 1e-05
        %v7179 = vrsqrt.pop %v7163
        %v7180 = vmul.f32 %v7179, %v7163
        %v7181 = vmul.f32 %v7180, %v7179
        %v7182 = vmul.f32 0.5, %v7181
        %v7183 = vsub.f32 1.5, %v7182
        %v7184 = vmul.f32 %v7179, %v7183
        %vm7185 = vweird.f32 %v7163
        %vm7186 = vweird.f32 %v7179
        %vm7187 = vmor %vm7185, %vm7186
        %v7188 = vsel %vm7187, %v7179, %v7184
        %v7189 = vrsqrt.pop %v7164
        %v7190 = vmul.f32 %v7189, %v7164
        %v7191 = vmul.f32 %v7190, %v7189
        %v7192 = vmul.f32 0.5, %v7191
        %v7193 = vsub.f32 1.5, %v7192
        %v7194 = vmul.f32 %v7189, %v7193
        %vm7195 = vweird.f32 %v7164
        %vm7196 = vweird.f32 %v7189
        %vm7197 = vmor %vm7195, %vm7196
        %v7198 = vsel %vm7197, %v7189, %v7194
        %v7199 = vrsqrt.pop %v7165
        %v7200 = vmul.f32 %v7199, %v7165
        %v7201 = vmul.f32 %v7200, %v7199
        %v7202 = vmul.f32 0.5, %v7201
        %v7203 = vsub.f32 1.5, %v7202
        %v7204 = vmul.f32 %v7199, %v7203
        %vm7205 = vweird.f32 %v7165
        %vm7206 = vweird.f32 %v7199
        %vm7207 = vmor %vm7205, %vm7206
        %v7208 = vsel %vm7207, %v7199, %v7204
        %v7209 = vrsqrt.pop %v7166
        %v7210 = vmul.f32 %v7209, %v7166
        %v7211 = vmul.f32 %v7210, %v7209
        %v7212 = vmul.f32 0.5, %v7211
        %v7213 = vsub.f32 1.5, %v7212
        %v7214 = vmul.f32 %v7209, %v7213
        %vm7215 = vweird.f32 %v7166
        %vm7216 = vweird.f32 %v7209
        %vm7217 = vmor %vm7215, %vm7216
        %v7218 = vsel %vm7217, %v7209, %v7214
        %v7219 = vrsqrt.pop %v7167
        %v7220 = vmul.f32 %v7219, %v7167
        %v7221 = vmul.f32 %v7220, %v7219
        %v7222 = vmul.f32 0.5, %v7221
        %v7223 = vsub.f32 1.5, %v7222
        %v7224 = vmul.f32 %v7219, %v7223
        %vm7225 = vweird.f32 %v7167
        %vm7226 = vweird.f32 %v7219
        %vm7227 = vmor %vm7225, %vm7226
        %v7228 = vsel %vm7227, %v7219, %v7224
        %v7229 = vrsqrt.pop %v7168
        %v7230 = vmul.f32 %v7229, %v7168
        %v7231 = vmul.f32 %v7230, %v7229
        %v7232 = vmul.f32 0.5, %v7231
        %v7233 = vsub.f32 1.5, %v7232
        %v7234 = vmul.f32 %v7229, %v7233
        %vm7235 = vweird.f32 %v7168
        %vm7236 = vweird.f32 %v7229
        %vm7237 = vmor %vm7235, %vm7236
        %v7238 = vsel %vm7237, %v7229, %v7234
        %v7239 = vrsqrt.pop %v7169
        %v7240 = vmul.f32 %v7239, %v7169
        %v7241 = vmul.f32 %v7240, %v7239
        %v7242 = vmul.f32 0.5, %v7241
        %v7243 = vsub.f32 1.5, %v7242
        %v7244 = vmul.f32 %v7239, %v7243
        %vm7245 = vweird.f32 %v7169
        %vm7246 = vweird.f32 %v7239
        %vm7247 = vmor %vm7245, %vm7246
        %v7248 = vsel %vm7247, %v7239, %v7244
        %v7249 = vrsqrt.pop %v7170
        %v7250 = vmul.f32 %v7249, %v7170
        %v7251 = vmul.f32 %v7250, %v7249
        %v7252 = vmul.f32 0.5, %v7251
        %v7253 = vsub.f32 1.5, %v7252
        %v7254 = vmul.f32 %v7249, %v7253
        %vm7255 = vweird.f32 %v7170
        %vm7256 = vweird.f32 %v7249
        %vm7257 = vmor %vm7255, %vm7256
        %v7258 = vsel %vm7257, %v7249, %v7254
        %v7259 = vrsqrt.pop %v7171
        %v7260 = vmul.f32 %v7259, %v7171
        %v7261 = vmul.f32 %v7260, %v7259
        %v7262 = vmul.f32 0.5, %v7261
        %v7263 = vsub.f32 1.5, %v7262
        %v7264 = vmul.f32 %v7259, %v7263
        %vm7265 = vweird.f32 %v7171
        %vm7266 = vweird.f32 %v7259
        %vm7267 = vmor %vm7265, %vm7266
        %v7268 = vsel %vm7267, %v7259, %v7264
        %v7269 = vrsqrt.pop %v7172
        %v7270 = vmul.f32 %v7269, %v7172
        %v7271 = vmul.f32 %v7270, %v7269
        %v7272 = vmul.f32 0.5, %v7271
        %v7273 = vsub.f32 1.5, %v7272
        %v7274 = vmul.f32 %v7269, %v7273
        %vm7275 = vweird.f32 %v7172
        %vm7276 = vweird.f32 %v7269
        %vm7277 = vmor %vm7275, %vm7276
        %v7278 = vsel %vm7277, %v7269, %v7274
        %v7279 = vrsqrt.pop %v7173
        %v7280 = vmul.f32 %v7279, %v7173
        %v7281 = vmul.f32 %v7280, %v7279
        %v7282 = vmul.f32 0.5, %v7281
        %v7283 = vsub.f32 1.5, %v7282
        %v7284 = vmul.f32 %v7279, %v7283
        %vm7285 = vweird.f32 %v7173
        %vm7286 = vweird.f32 %v7279
        %vm7287 = vmor %vm7285, %vm7286
        %v7288 = vsel %vm7287, %v7279, %v7284
        %v7289 = vrsqrt.pop %v7174
        %v7290 = vmul.f32 %v7289, %v7174
        %v7291 = vmul.f32 %v7290, %v7289
        %v7292 = vmul.f32 0.5, %v7291
        %v7293 = vsub.f32 1.5, %v7292
        %v7294 = vmul.f32 %v7289, %v7293
        %vm7295 = vweird.f32 %v7174
        %vm7296 = vweird.f32 %v7289
        %vm7297 = vmor %vm7295, %vm7296
        %v7298 = vsel %vm7297, %v7289, %v7294
        %v7299 = vrsqrt.pop %v7175
        %v7300 = vmul.f32 %v7299, %v7175
        %v7301 = vmul.f32 %v7300, %v7299
        %v7302 = vmul.f32 0.5, %v7301
        %v7303 = vsub.f32 1.5, %v7302
        %v7304 = vmul.f32 %v7299, %v7303
        %vm7305 = vweird.f32 %v7175
        %vm7306 = vweird.f32 %v7299
        %vm7307 = vmor %vm7305, %vm7306
        %v7308 = vsel %vm7307, %v7299, %v7304
        %v7309 = vrsqrt.pop %v7176
        %v7310 = vmul.f32 %v7309, %v7176
        %v7311 = vmul.f32 %v7310, %v7309
        %v7312 = vmul.f32 0.5, %v7311
        %v7313 = vsub.f32 1.5, %v7312
        %v7314 = vmul.f32 %v7309, %v7313
        %vm7315 = vweird.f32 %v7176
        %vm7316 = vweird.f32 %v7309
        %vm7317 = vmor %vm7315, %vm7316
        %v7318 = vsel %vm7317, %v7309, %v7314
        %v7319 = vrsqrt.pop %v7177
        %v7320 = vmul.f32 %v7319, %v7177
        %v7321 = vmul.f32 %v7320, %v7319
        %v7322 = vmul.f32 0.5, %v7321
        %v7323 = vsub.f32 1.5, %v7322
        %v7324 = vmul.f32 %v7319, %v7323
        %vm7325 = vweird.f32 %v7177
        %vm7326 = vweird.f32 %v7319
        %vm7327 = vmor %vm7325, %vm7326
        %v7328 = vsel %vm7327, %v7319, %v7324
        %v7329 = vrsqrt.pop %v7178
        %v7330 = vmul.f32 %v7329, %v7178
        %v7331 = vmul.f32 %v7330, %v7329
        %v7332 = vmul.f32 0.5, %v7331
        %v7333 = vsub.f32 1.5, %v7332
        %v7334 = vmul.f32 %v7329, %v7333
        %vm7335 = vweird.f32 %v7178
        %vm7336 = vweird.f32 %v7329
        %vm7337 = vmor %vm7335, %vm7336
        %v7338 = vsel %vm7337, %v7329, %v7334
        %v7339 = vmul.f32 %v7067, %v7188
        %v7340 = vmul.f32 %v7068, %v7198
        %v7341 = vmul.f32 %v7069, %v7208
        %v7342 = vmul.f32 %v7070, %v7218
        %v7343 = vmul.f32 %v7071, %v7228
        %v7344 = vmul.f32 %v7072, %v7238
        %v7345 = vmul.f32 %v7073, %v7248
        %v7346 = vmul.f32 %v7074, %v7258
        %v7347 = vmul.f32 %v7075, %v7268
        %v7348 = vmul.f32 %v7076, %v7278
        %v7349 = vmul.f32 %v7077, %v7288
        %v7350 = vmul.f32 %v7078, %v7298
        %v7351 = vmul.f32 %v7079, %v7308
        %v7352 = vmul.f32 %v7080, %v7318
        %v7353 = vmul.f32 %v7081, %v7328
        %v7354 = vmul.f32 %v7082, %v7338
        %v7355 = vperm.slane %v7001, 0
        %v7356 = vmul.f32 %v7339, %v7355
        %v7357 = vmul.f32 %v7340, %v7355
        %v7358 = vmul.f32 %v7341, %v7355
        %v7359 = vmul.f32 %v7342, %v7355
        %v7360 = vmul.f32 %v7343, %v7355
        %v7361 = vmul.f32 %v7344, %v7355
        %v7362 = vmul.f32 %v7345, %v7355
        %v7363 = vmul.f32 %v7346, %v7355
        %v7364 = vmul.f32 %v7347, %v7355
        %v7365 = vmul.f32 %v7348, %v7355
        %v7366 = vmul.f32 %v7349, %v7355
        %v7367 = vmul.f32 %v7350, %v7355
        %v7368 = vmul.f32 %v7351, %v7355
        %v7369 = vmul.f32 %v7352, %v7355
        %v7370 = vmul.f32 %v7353, %v7355
        %v7371 = vmul.f32 %v7354, %v7355
        %v7372 = vperm.slane %v7002, 0
        %v7373 = vadd.f32 %v7356, %v7372
        %v7374 = vadd.f32 %v7357, %v7372
        %v7375 = vadd.f32 %v7358, %v7372
        %v7376 = vadd.f32 %v7359, %v7372
        %v7377 = vadd.f32 %v7360, %v7372
        %v7378 = vadd.f32 %v7361, %v7372
        %v7379 = vadd.f32 %v7362, %v7372
        %v7380 = vadd.f32 %v7363, %v7372
        %v7381 = vadd.f32 %v7364, %v7372
        %v7382 = vadd.f32 %v7365, %v7372
        %v7383 = vadd.f32 %v7366, %v7372
        %v7384 = vadd.f32 %v7367, %v7372
        %v7385 = vadd.f32 %v7368, %v7372
        %v7386 = vadd.f32 %v7369, %v7372
        %v7387 = vadd.f32 %v7370, %v7372
        %v7388 = vadd.f32 %v7371, %v7372
        %7389 = vst.msk [vmem:[%s419] sm:$0xff] %vm589, %v7373
        %7390 = vst.msk [vmem:[%s419 + $0x8] sm:$0xff] %vm589, %v7374
        %7391 = vst.msk [vmem:[%s419 + $0x10] sm:$0xff] %vm589, %v7375
        %7392 = vst.msk [vmem:[%s419 + $0x18] sm:$0xff] %vm589, %v7376
        %7393 = vst.msk [vmem:[%s419 + $0x20] sm:$0xff] %vm589, %v7377
        %7394 = vst.msk [vmem:[%s419 + $0x28] sm:$0xff] %vm589, %v7378
        %7395 = vst.msk [vmem:[%s419 + $0x30] sm:$0xff] %vm589, %v7379
        %7396 = vst.msk [vmem:[%s419 + $0x38] sm:$0xff] %vm589, %v7380
        %7397 = vst.msk [vmem:[%s419 + $0x40] sm:$0xff] %vm589, %v7381
        %7398 = vst.msk [vmem:[%s419 + $0x48] sm:$0xff] %vm589, %v7382
        %7399 = vst.msk [vmem:[%s419 + $0x50] sm:$0xff] %vm589, %v7383
        %7400 = vst.msk [vmem:[%s419 + $0x58] sm:$0xff] %vm589, %v7384
        %7401 = vst.msk [vmem:[%s419 + $0x60] sm:$0xff] %vm589, %v7385
        %7402 = vst.msk [vmem:[%s419 + $0x68] sm:$0xff] %vm589, %v7386
        %7403 = vst.msk [vmem:[%s419 + $0x70] sm:$0xff] %vm589, %v7387
        %7404 = vst.msk [vmem:[%s419 + $0x78] sm:$0xff] %vm589, %v7388
        %s7405 = smul.u32 16, %s24
        %p7406 = scmp.lt.s32.totalorder %s7405, 31
        %s7407 = scalar_select %p7406, %s7405, 31
        %s7408 = smul.addr %s7407, 8
        %s7409 = scalar_lea.vmem %s8, %s7408
        // Predicated region
        $region69: #{tpu_custom_call.1} parent=51 // pred_check
          %p7410 = pneg %p225
        $region70: #{tpu_custom_call.1} parent=51 // pred_check_branch
          %7412 = sbr.rel (%p7410) target = $region72
        $region71: #{tpu_custom_call.1} parent=51 // pred_region
          %s7413 = smul.u32 16, %s24
        $region72: #{tpu_custom_call.1} parent=51 // pred_fallthru
          _
      $region52: #{tpu_custom_call.1} parent=5 // pred_fallthru
        _
      %p7414 = scmp.le.s32.totalorder 2, %s19
      // Predicated region
      $region73: #{tpu_custom_call.1} parent=5 // pred_check
        %p7415 = pneg %p7414
      $region74: #{tpu_custom_call.1} parent=5 // pred_check_branch
        %7417 = sbr.rel (%p7415) target = $region76
      $region75: #{tpu_custom_call.1} parent=5 // pred_region
        %s7418 = ssub.s32 %s19, 2
        // Predicated region
        $region77: #{tpu_custom_call.1} parent=75 // pred_check
          %p7419 = pneg %p231
        $region78: #{tpu_custom_call.1} parent=75 // pred_check_branch
          %7421 = sbr.rel (%p7419) target = $region80
        $region79: #{tpu_custom_call.1} parent=75 // pred_region
          %s7422 = smul.u32 16, %s25
          %p7423 = scmp.lt.s32.totalorder %s7422, 31
          %s7424 = scalar_select %p7423, %s7422, 31
          %s7425 = smul.addr %s7424, 8
          %s7426 = scalar_lea.vmem %s8, %s7425
        $region80: #{tpu_custom_call.1} parent=75 // pred_fallthru
          _
      $region76: #{tpu_custom_call.1} parent=5 // pred_fallthru
        _
    $region6: #{tpu_custom_call.1} parent=1 // loop_footer
      %s23 = sadd.s32 1, %s19
    $region7: #{tpu_custom_call.1} parent=1 // loop_footer_branch
      %18 = sbr.rel target = $region3
    $region8: #{tpu_custom_call.1} parent=1 // loop_exit
      _
    %7427 = vsyncpa [#allocation3], 1
    %s7428 = scalar_lea.sflag [#allocation3], 1
    %7429 = vsyncpa %s7428, 1
    %7430 = vsyncpa [#allocation5], 1
    %7431 = vsyncpa [#allocation8], 1

</llo_original>
